<compile_context>
chip_gen: v7x
topology: tpu7x:2x2x1
jax: 0.10.0
libtpu: 0.0.40
codegen_flags: <defaults>
</compile_context>

<pallas_src>
import functools
import math

import jax
import jax.numpy as jnp
from jax.experimental import pallas as pl
from jax.experimental.pallas import tpu as pltpu


# ---------------------------------------------------------------------------
# Fused Pallas kernel: num_layers x TransformerEncoderLayer + linear + softmax
# ---------------------------------------------------------------------------
def _fused_encoder_head_kernel(nhead, num_layers, batch, seq,
                               x_ref,
                               wqkv_ref, bqkv_ref, wo_ref, bo_ref,
                               ln1_g_ref, ln1_b_ref,
                               w1_ref, b1_ref, w2_ref, b2_ref,
                               ln2_g_ref, ln2_b_ref,
                               lin_w_ref, lin_b_ref,
                               o_ref):
    x = x_ref[...]                            # (B*L, E) f32 activation slab
    _, E = x.shape
    L = seq
    hd = E // nhead
    scale = 1.0 / math.sqrt(hd)

    # additive float mask: 1.0 on lower triangle (i >= j), 0.0 above (PyTorch
    # float-mask semantics -> added to the scores, not -inf).
    row = jax.lax.broadcasted_iota(jnp.int32, (L, L), 0)
    col = jax.lax.broadcasted_iota(jnp.int32, (L, L), 1)
    mask = (row >= col).astype(jnp.float32)   # (L, L)

    def layernorm(v, g, b):
        mu = jnp.mean(v, axis=-1, keepdims=True)
        var = jnp.mean((v - mu) ** 2, axis=-1, keepdims=True)
        return (v - mu) * jax.lax.rsqrt(var + 1e-5) * g + b

    for l in range(num_layers):               # static unroll (num_layers = 2)
        # ---- fused QKV projection: ONE matmul over both batch rows ----
        # bf16 weight is promoted to f32 in VMEM; accumulation stays f32.
        qkv = jnp.dot(x, wqkv_ref[l],
                      preferred_element_type=jnp.float32) + bqkv_ref[l]   # (B*L, 3E)

        # ---- per-(batch, head) attention on 2D tiles (all static slices) ----
        ctx_rows = []
        for b in range(batch):                # static, B = 2
            rs = b * L
            head_ctx = []
            for h in range(nhead):            # static, H = 4
                qh = qkv[rs:rs + L, h * hd:(h + 1) * hd] * scale          # (L, hd)
                kh = qkv[rs:rs + L, E + h * hd:E + (h + 1) * hd]          # (L, hd)
                vh = qkv[rs:rs + L, 2 * E + h * hd:2 * E + (h + 1) * hd]  # (L, hd)

                s = jnp.einsum('ld,md->lm', qh, kh,
                               preferred_element_type=jnp.float32) + mask  # (L, L)
                s = s - jnp.max(s, axis=-1, keepdims=True)
                e = jnp.exp(s)
                p = e / jnp.sum(e, axis=-1, keepdims=True)    # exact softmax
                head_ctx.append(jnp.dot(p, vh,
                                        preferred_element_type=jnp.float32))
            ctx_rows.append(jnp.concatenate(head_ctx, axis=-1))           # (L, E)
        ctx = jnp.concatenate(ctx_rows, axis=0)                           # (B*L, E)

        # ---- output projection: ONE matmul, head-sum folded into the K dim ----
        attn = jnp.dot(ctx, wo_ref[l],
                       preferred_element_type=jnp.float32) + bo_ref[l]    # (B*L, E)

        # ---- residual + LayerNorm1 (post-norm) ----
        x1 = layernorm(x + attn, ln1_g_ref[l], ln1_b_ref[l])

        # ---- feed forward: Linear -> ReLU -> Linear, M = B*L ----
        h1 = jnp.maximum(
            jnp.dot(x1, w1_ref[l], preferred_element_type=jnp.float32) + b1_ref[l],
            0.0)
        ff = jnp.dot(h1, w2_ref[l], preferred_element_type=jnp.float32) + b2_ref[l]

        # ---- residual + LayerNorm2 ----
        x = layernorm(x1 + ff, ln2_g_ref[l], ln2_b_ref[l])

    # ---- head: final linear + softmax over classes, all positions ----
    logits = jnp.dot(x, lin_w_ref[...],
                     preferred_element_type=jnp.float32) + lin_b_ref[...]  # (B*L, C)
    logits = logits - jnp.max(logits, axis=-1, keepdims=True)
    ez = jnp.exp(logits)
    o_ref[...] = ez / jnp.sum(ez, axis=-1, keepdims=True)


# ---------------------------------------------------------------------------
# Wrapper: one pallas_call, no grid, everything resident in VMEM once.
# ---------------------------------------------------------------------------
def fused_transformer_head(x2d, p, *, nhead, num_layers, batch, seq):
    C = p["lin_w"].shape[1]
    weight_args = (p["wqkv"], p["bqkv"], p["wo"], p["bo"],
                   p["ln1_g"], p["ln1_b"],
                   p["w1"], p["b1"], p["w2"], p["b2"],
                   p["ln2_g"], p["ln2_b"],
                   p["lin_w"], p["lin_b"])

    n_in = 1 + len(weight_args)
    kernel = functools.partial(_fused_encoder_head_kernel,
                               nhead, num_layers, batch, seq)
    return pl.pallas_call(
        kernel,
        out_shape=jax.ShapeDtypeStruct((batch * seq, C), jnp.float32),
        in_specs=[pl.BlockSpec(memory_space=pltpu.MemorySpace.VMEM)] * n_in,
        out_specs=pl.BlockSpec(memory_space=pltpu.MemorySpace.VMEM),
    )(x2d, *weight_args)


# ---------------------------------------------------------------------------
# Full model forward (embedding / pos-enc / concat are plain-JAX glue)
# ---------------------------------------------------------------------------
def model_forward(params, s, q, pa, *, nhead, num_layers):
    emb_tbl = params["emb"]            # (vocab, d_model)
    pos_tbl = params["pos"]            # (num_positions, d_model)
    B, L = s.shape
    d_model = emb_tbl.shape[1]

    # TODO(synk): embedding gather + positional add + concat kept as JAX glue
    # (token-id gather; the review marked in-kernel gather as optional).
    def embed(tok):
        e = emb_tbl[tok]                               # (B, L, d_model)
        return 2.0 * e + pos_tbl[:L][None, :, :]       # emb += (emb + pos) -> 2*emb + pos

    X = jnp.concatenate([embed(s), embed(q), embed(pa)], axis=2)     # (B, L, 3*d_model)
    x2d = X.reshape(B * L, 3 * d_model)

    probs = fused_transformer_head(x2d, params, nhead=nhead,
                                   num_layers=num_layers, batch=B, seq=L)
    return probs.reshape(B, L, -1)[:, -1, :]           # softmax probs at last position


# ---------------------------------------------------------------------------
# Deterministic parameter init (synthetic; shapes match the nn.Module __init__).
# Large matrices are stored in bfloat16 (weight-DMA bound kernel); matmuls in
# the kernel promote them and accumulate in f32.
#   wqkv : (num_layers, E, 3E)   columns ordered [Wq | Wk | Wv], heads contiguous
#   wo   : (num_layers, E, E)
#   w1   : (num_layers, E, dim_ff) ; w2 : (num_layers, dim_ff, E)
# ---------------------------------------------------------------------------
def init_params(key, vocab_size, num_positions, d_model, num_classes,
                num_layers, nhead, dim_ff=2048):
    E = 3 * d_model
    assert E % nhead == 0
    keys = jax.random.split(key, 3 + num_layers)

    def nrm(k, shape, dtype=jnp.float32):
        return (jax.random.normal(k, shape, jnp.float32) * 0.02).astype(dtype)

    wqkv, wo, w1, w2 = [], [], [], []
    for l in range(num_layers):
        lk = jax.random.split(keys[3 + l], 4)
        wqkv.append(nrm(lk[0], (E, 3 * E), jnp.bfloat16))
        wo.append(nrm(lk[1], (E, E), jnp.bfloat16))
        w1.append(nrm(lk[2], (E, dim_ff), jnp.bfloat16))
        w2.append(nrm(lk[3], (dim_ff, E), jnp.bfloat16))

    params = {
        "emb": nrm(keys[0], (vocab_size, d_model)),
        "pos": nrm(keys[1], (num_positions, d_model)),
        "lin_w": nrm(keys[2], (E, num_classes)),
        "lin_b": jnp.zeros((1, num_classes), jnp.float32),
        # fused, stacked per-layer attention weights (bf16)
        "wqkv": jnp.stack(wqkv),
        "bqkv": jnp.zeros((num_layers, 1, 3 * E), jnp.float32),
        "wo": jnp.stack(wo),
        "bo": jnp.zeros((num_layers, 1, E), jnp.float32),
        # stacked per-layer LayerNorm / FFN params
        "ln1_g": jnp.ones((num_layers, 1, E), jnp.float32),
        "ln1_b": jnp.zeros((num_layers, 1, E), jnp.float32),
        "ln2_g": jnp.ones((num_layers, 1, E), jnp.float32),
        "ln2_b": jnp.zeros((num_layers, 1, E), jnp.float32),
        "w1": jnp.stack(w1), "b1": jnp.zeros((num_layers, 1, dim_ff), jnp.float32),
        "w2": jnp.stack(w2), "b2": jnp.zeros((num_layers, 1, E), jnp.float32),
    }
    return params


# ---------------------------------------------------------------------------
if __name__ == "__main__":
    vocab_size = 50
    num_positions = 8          # seq len equals num_positions (mask is P x P)
    d_model = 32               # E = 3 * d_model = 96
    num_classes = 5
    num_layers = 2
    nhead = 4

    B, L = 2, num_positions

    key = jax.random.PRNGKey(0)
    pkey, skey, qkey, pakey = jax.random.split(key, 4)

    params = init_params(pkey, vocab_size, num_positions, d_model,
                         num_classes, num_layers, nhead)

    s = jax.random.randint(skey, (B, L), 0, vocab_size, dtype=jnp.int32)
    q = jax.random.randint(qkey, (B, L), 0, vocab_size, dtype=jnp.int32)
    pa = jax.random.randint(pakey, (B, L), 0, vocab_size, dtype=jnp.int32)

    fwd = jax.jit(functools.partial(model_forward, nhead=nhead, num_layers=num_layers))
    out = fwd(params, s, q, pa)
    out = jax.block_until_ready(out)

    assert out.shape == (B, num_classes)
    assert bool(jnp.all(jnp.isfinite(out)))
    # rows sum to 1 (softmax)
    assert bool(jnp.allclose(jnp.sum(out, axis=-1), 1.0, atol=1e-5))
    print("KERNEL_OK")
</pallas_src>

<mosaic_0001>
module attributes {stable_mosaic.version = 11 : i64} {
  func.func @_fused_encoder_head_kernel(%arg0: memref<16x96xf32, #tpu.memory_space<vmem>>, %arg1: memref<2x96x288xbf16, #tpu.memory_space<vmem>>, %arg2: memref<2x1x288xf32, #tpu.memory_space<vmem>>, %arg3: memref<2x96x96xbf16, #tpu.memory_space<vmem>>, %arg4: memref<2x1x96xf32, #tpu.memory_space<vmem>>, %arg5: memref<2x1x96xf32, #tpu.memory_space<vmem>>, %arg6: memref<2x1x96xf32, #tpu.memory_space<vmem>>, %arg7: memref<2x96x2048xbf16, #tpu.memory_space<vmem>>, %arg8: memref<2x1x2048xf32, #tpu.memory_space<vmem>>, %arg9: memref<2x2048x96xbf16, #tpu.memory_space<vmem>>, %arg10: memref<2x1x96xf32, #tpu.memory_space<vmem>>, %arg11: memref<2x1x96xf32, #tpu.memory_space<vmem>>, %arg12: memref<2x1x96xf32, #tpu.memory_space<vmem>>, %arg13: memref<96x5xf32, #tpu.memory_space<vmem>>, %arg14: memref<1x5xf32, #tpu.memory_space<vmem>>, %arg15: memref<16x5xf32, #tpu.memory_space<vmem>>) attributes {dimension_semantics = [], scalar_prefetch = 0 : i64, scratch_operands = 0 : i64, tpu.core_type = #tpu.core_type<tc>} {
    %c0 = arith.constant 0 : index
    %c0_0 = arith.constant 0 : index
    %0 = vector.load %arg0[%c0, %c0_0] : memref<16x96xf32, #tpu.memory_space<vmem>>, vector<16x96xf32>
    %1 = tpu.iota {dimensions = array<i32: 0>} : vector<8x8xi32>
    %2 = tpu.iota {dimensions = array<i32: 1>} : vector<8x8xi32>
    %3 = arith.cmpi sge, %1, %2 : vector<8x8xi32>
    %4 = arith.extui %3 : vector<8x8xi1> to vector<8x8xi32>
    %5 = arith.sitofp %4 : vector<8x8xi32> to vector<8x8xf32>
    %c0_1 = arith.constant 0 : index
    %c0_2 = arith.constant 0 : index
    %c0_3 = arith.constant 0 : index
    %6 = vector.load %arg1[%c0_1, %c0_2, %c0_3] : memref<2x96x288xbf16, #tpu.memory_space<vmem>>, vector<1x96x288xbf16>
    %7 = vector.shape_cast %6 : vector<1x96x288xbf16> to vector<96x288xbf16>
    %cst = arith.constant dense<0.000000e+00> : vector<16x288xf32>
    %8 = tpu.matmul %0, %7, %cst {dimension_numbers = #tpu.dot_dimension_numbers<[1], [0], [0], [1], [0, 0, 1, 1], [], []>} : vector<16x96xf32>, vector<96x288xbf16>, vector<16x288xf32> -> vector<16x288xf32>
    %c0_4 = arith.constant 0 : index
    %c0_5 = arith.constant 0 : index
    %c0_6 = arith.constant 0 : index
    %9 = vector.load %arg2[%c0_4, %c0_5, %c0_6] : memref<2x1x288xf32, #tpu.memory_space<vmem>>, vector<1x1x288xf32>
    %10 = vector.shape_cast %9 : vector<1x1x288xf32> to vector<1x288xf32>
    %11 = vector.broadcast %10 : vector<1x288xf32> to vector<16x288xf32>
    %12 = arith.addf %8, %11 : vector<16x288xf32>
    %13 = vector.extract_strided_slice %12 {offsets = [0, 0], sizes = [8, 24], strides = [1, 1]} : vector<16x288xf32> to vector<8x24xf32>
    %cst_7 = arith.constant 0.204124153 : f32
    %14 = vector.broadcast %cst_7 : f32 to vector<8x24xf32>
    %15 = arith.mulf %13, %14 : vector<8x24xf32>
    %16 = vector.extract_strided_slice %12 {offsets = [0, 96], sizes = [8, 24], strides = [1, 1]} : vector<16x288xf32> to vector<8x24xf32>
    %17 = vector.extract_strided_slice %12 {offsets = [0, 192], sizes = [8, 24], strides = [1, 1]} : vector<16x288xf32> to vector<8x24xf32>
    "tpu.trace_start"() <{level = 10 : i32, message = "ld,md->lm"}> : () -> ()
    %cst_8 = arith.constant dense<0.000000e+00> : vector<8x8xf32>
    %18 = tpu.matmul %15, %16, %cst_8 {dimension_numbers = #tpu.dot_dimension_numbers<[1], [1], [0], [0], [0, 0, 1, 0], [], []>} : vector<8x24xf32>, vector<8x24xf32>, vector<8x8xf32> -> vector<8x8xf32>
    "tpu.trace_stop"() : () -> ()
    %19 = arith.addf %18, %5 : vector<8x8xf32>
    %cst_9 = arith.constant dense<0xFF800000> : vector<8xf32>
    %20 = vector.multi_reduction <maximumf>, %19, %cst_9 [1] : vector<8x8xf32> to vector<8xf32>
    %21 = vector.shape_cast %20 : vector<8xf32> to vector<8x1xf32>
    %22 = vector.broadcast %21 : vector<8x1xf32> to vector<8x8xf32>
    %23 = arith.subf %19, %22 : vector<8x8xf32>
    %24 = math.exp %23 : vector<8x8xf32>
    %cst_10 = arith.constant dense<0.000000e+00> : vector<8xf32>
    %25 = vector.multi_reduction <add>, %24, %cst_10 [1] : vector<8x8xf32> to vector<8xf32>
    %26 = vector.shape_cast %25 : vector<8xf32> to vector<8x1xf32>
    %27 = vector.broadcast %26 : vector<8x1xf32> to vector<8x8xf32>
    %28 = arith.divf %24, %27 : vector<8x8xf32>
    %cst_11 = arith.constant dense<0.000000e+00> : vector<8x24xf32>
    %29 = tpu.matmul %28, %17, %cst_11 {dimension_numbers = #tpu.dot_dimension_numbers<[1], [0], [0], [1], [0, 0, 1, 1], [], []>} : vector<8x8xf32>, vector<8x24xf32>, vector<8x24xf32> -> vector<8x24xf32>
    %30 = vector.extract_strided_slice %12 {offsets = [0, 24], sizes = [8, 24], strides = [1, 1]} : vector<16x288xf32> to vector<8x24xf32>
    %cst_12 = arith.constant 0.204124153 : f32
    %31 = vector.broadcast %cst_12 : f32 to vector<8x24xf32>
    %32 = arith.mulf %30, %31 : vector<8x24xf32>
    %33 = vector.extract_strided_slice %12 {offsets = [0, 120], sizes = [8, 24], strides = [1, 1]} : vector<16x288xf32> to vector<8x24xf32>
    %34 = vector.extract_strided_slice %12 {offsets = [0, 216], sizes = [8, 24], strides = [1, 1]} : vector<16x288xf32> to vector<8x24xf32>
    "tpu.trace_start"() <{level = 10 : i32, message = "ld,md->lm"}> : () -> ()
    %cst_13 = arith.constant dense<0.000000e+00> : vector<8x8xf32>
    %35 = tpu.matmul %32, %33, %cst_13 {dimension_numbers = #tpu.dot_dimension_numbers<[1], [1], [0], [0], [0, 0, 1, 0], [], []>} : vector<8x24xf32>, vector<8x24xf32>, vector<8x8xf32> -> vector<8x8xf32>
    "tpu.trace_stop"() : () -> ()
    %36 = arith.addf %35, %5 : vector<8x8xf32>
    %cst_14 = arith.constant dense<0xFF800000> : vector<8xf32>
    %37 = vector.multi_reduction <maximumf>, %36, %cst_14 [1] : vector<8x8xf32> to vector<8xf32>
    %38 = vector.shape_cast %37 : vector<8xf32> to vector<8x1xf32>
    %39 = vector.broadcast %38 : vector<8x1xf32> to vector<8x8xf32>
    %40 = arith.subf %36, %39 : vector<8x8xf32>
    %41 = math.exp %40 : vector<8x8xf32>
    %cst_15 = arith.constant dense<0.000000e+00> : vector<8xf32>
    %42 = vector.multi_reduction <add>, %41, %cst_15 [1] : vector<8x8xf32> to vector<8xf32>
    %43 = vector.shape_cast %42 : vector<8xf32> to vector<8x1xf32>
    %44 = vector.broadcast %43 : vector<8x1xf32> to vector<8x8xf32>
    %45 = arith.divf %41, %44 : vector<8x8xf32>
    %cst_16 = arith.constant dense<0.000000e+00> : vector<8x24xf32>
    %46 = tpu.matmul %45, %34, %cst_16 {dimension_numbers = #tpu.dot_dimension_numbers<[1], [0], [0], [1], [0, 0, 1, 1], [], []>} : vector<8x8xf32>, vector<8x24xf32>, vector<8x24xf32> -> vector<8x24xf32>
    %47 = vector.extract_strided_slice %12 {offsets = [0, 48], sizes = [8, 24], strides = [1, 1]} : vector<16x288xf32> to vector<8x24xf32>
    %cst_17 = arith.constant 0.204124153 : f32
    %48 = vector.broadcast %cst_17 : f32 to vector<8x24xf32>
    %49 = arith.mulf %47, %48 : vector<8x24xf32>
    %50 = vector.extract_strided_slice %12 {offsets = [0, 144], sizes = [8, 24], strides = [1, 1]} : vector<16x288xf32> to vector<8x24xf32>
    %51 = vector.extract_strided_slice %12 {offsets = [0, 240], sizes = [8, 24], strides = [1, 1]} : vector<16x288xf32> to vector<8x24xf32>
    "tpu.trace_start"() <{level = 10 : i32, message = "ld,md->lm"}> : () -> ()
    %cst_18 = arith.constant dense<0.000000e+00> : vector<8x8xf32>
    %52 = tpu.matmul %49, %50, %cst_18 {dimension_numbers = #tpu.dot_dimension_numbers<[1], [1], [0], [0], [0, 0, 1, 0], [], []>} : vector<8x24xf32>, vector<8x24xf32>, vector<8x8xf32> -> vector<8x8xf32>
    "tpu.trace_stop"() : () -> ()
    %53 = arith.addf %52, %5 : vector<8x8xf32>
    %cst_19 = arith.constant dense<0xFF800000> : vector<8xf32>
    %54 = vector.multi_reduction <maximumf>, %53, %cst_19 [1] : vector<8x8xf32> to vector<8xf32>
    %55 = vector.shape_cast %54 : vector<8xf32> to vector<8x1xf32>
    %56 = vector.broadcast %55 : vector<8x1xf32> to vector<8x8xf32>
    %57 = arith.subf %53, %56 : vector<8x8xf32>
    %58 = math.exp %57 : vector<8x8xf32>
    %cst_20 = arith.constant dense<0.000000e+00> : vector<8xf32>
    %59 = vector.multi_reduction <add>, %58, %cst_20 [1] : vector<8x8xf32> to vector<8xf32>
    %60 = vector.shape_cast %59 : vector<8xf32> to vector<8x1xf32>
    %61 = vector.broadcast %60 : vector<8x1xf32> to vector<8x8xf32>
    %62 = arith.divf %58, %61 : vector<8x8xf32>
    %cst_21 = arith.constant dense<0.000000e+00> : vector<8x24xf32>
    %63 = tpu.matmul %62, %51, %cst_21 {dimension_numbers = #tpu.dot_dimension_numbers<[1], [0], [0], [1], [0, 0, 1, 1], [], []>} : vector<8x8xf32>, vector<8x24xf32>, vector<8x24xf32> -> vector<8x24xf32>
    %64 = vector.extract_strided_slice %12 {offsets = [0, 72], sizes = [8, 24], strides = [1, 1]} : vector<16x288xf32> to vector<8x24xf32>
    %cst_22 = arith.constant 0.204124153 : f32
    %65 = vector.broadcast %cst_22 : f32 to vector<8x24xf32>
    %66 = arith.mulf %64, %65 : vector<8x24xf32>
    %67 = vector.extract_strided_slice %12 {offsets = [0, 168], sizes = [8, 24], strides = [1, 1]} : vector<16x288xf32> to vector<8x24xf32>
    %68 = vector.extract_strided_slice %12 {offsets = [0, 264], sizes = [8, 24], strides = [1, 1]} : vector<16x288xf32> to vector<8x24xf32>
    "tpu.trace_start"() <{level = 10 : i32, message = "ld,md->lm"}> : () -> ()
    %cst_23 = arith.constant dense<0.000000e+00> : vector<8x8xf32>
    %69 = tpu.matmul %66, %67, %cst_23 {dimension_numbers = #tpu.dot_dimension_numbers<[1], [1], [0], [0], [0, 0, 1, 0], [], []>} : vector<8x24xf32>, vector<8x24xf32>, vector<8x8xf32> -> vector<8x8xf32>
    "tpu.trace_stop"() : () -> ()
    %70 = arith.addf %69, %5 : vector<8x8xf32>
    %cst_24 = arith.constant dense<0xFF800000> : vector<8xf32>
    %71 = vector.multi_reduction <maximumf>, %70, %cst_24 [1] : vector<8x8xf32> to vector<8xf32>
    %72 = vector.shape_cast %71 : vector<8xf32> to vector<8x1xf32>
    %73 = vector.broadcast %72 : vector<8x1xf32> to vector<8x8xf32>
    %74 = arith.subf %70, %73 : vector<8x8xf32>
    %75 = math.exp %74 : vector<8x8xf32>
    %cst_25 = arith.constant dense<0.000000e+00> : vector<8xf32>
    %76 = vector.multi_reduction <add>, %75, %cst_25 [1] : vector<8x8xf32> to vector<8xf32>
    %77 = vector.shape_cast %76 : vector<8xf32> to vector<8x1xf32>
    %78 = vector.broadcast %77 : vector<8x1xf32> to vector<8x8xf32>
    %79 = arith.divf %75, %78 : vector<8x8xf32>
    %cst_26 = arith.constant dense<0.000000e+00> : vector<8x24xf32>
    %80 = tpu.matmul %79, %68, %cst_26 {dimension_numbers = #tpu.dot_dimension_numbers<[1], [0], [0], [1], [0, 0, 1, 1], [], []>} : vector<8x8xf32>, vector<8x24xf32>, vector<8x24xf32> -> vector<8x24xf32>
    %81 = tpu.concatenate %29, %46, %63, %80 in 1 : vector<8x24xf32>, vector<8x24xf32>, vector<8x24xf32>, vector<8x24xf32> -> vector<8x96xf32>
    %82 = vector.extract_strided_slice %12 {offsets = [8, 0], sizes = [8, 24], strides = [1, 1]} : vector<16x288xf32> to vector<8x24xf32>
    %cst_27 = arith.constant 0.204124153 : f32
    %83 = vector.broadcast %cst_27 : f32 to vector<8x24xf32>
    %84 = arith.mulf %82, %83 : vector<8x24xf32>
    %85 = vector.extract_strided_slice %12 {offsets = [8, 96], sizes = [8, 24], strides = [1, 1]} : vector<16x288xf32> to vector<8x24xf32>
    %86 = vector.extract_strided_slice %12 {offsets = [8, 192], sizes = [8, 24], strides = [1, 1]} : vector<16x288xf32> to vector<8x24xf32>
    "tpu.trace_start"() <{level = 10 : i32, message = "ld,md->lm"}> : () -> ()
    %cst_28 = arith.constant dense<0.000000e+00> : vector<8x8xf32>
    %87 = tpu.matmul %84, %85, %cst_28 {dimension_numbers = #tpu.dot_dimension_numbers<[1], [1], [0], [0], [0, 0, 1, 0], [], []>} : vector<8x24xf32>, vector<8x24xf32>, vector<8x8xf32> -> vector<8x8xf32>
    "tpu.trace_stop"() : () -> ()
    %88 = arith.addf %87, %5 : vector<8x8xf32>
    %cst_29 = arith.constant dense<0xFF800000> : vector<8xf32>
    %89 = vector.multi_reduction <maximumf>, %88, %cst_29 [1] : vector<8x8xf32> to vector<8xf32>
    %90 = vector.shape_cast %89 : vector<8xf32> to vector<8x1xf32>
    %91 = vector.broadcast %90 : vector<8x1xf32> to vector<8x8xf32>
    %92 = arith.subf %88, %91 : vector<8x8xf32>
    %93 = math.exp %92 : vector<8x8xf32>
    %cst_30 = arith.constant dense<0.000000e+00> : vector<8xf32>
    %94 = vector.multi_reduction <add>, %93, %cst_30 [1] : vector<8x8xf32> to vector<8xf32>
    %95 = vector.shape_cast %94 : vector<8xf32> to vector<8x1xf32>
    %96 = vector.broadcast %95 : vector<8x1xf32> to vector<8x8xf32>
    %97 = arith.divf %93, %96 : vector<8x8xf32>
    %cst_31 = arith.constant dense<0.000000e+00> : vector<8x24xf32>
    %98 = tpu.matmul %97, %86, %cst_31 {dimension_numbers = #tpu.dot_dimension_numbers<[1], [0], [0], [1], [0, 0, 1, 1], [], []>} : vector<8x8xf32>, vector<8x24xf32>, vector<8x24xf32> -> vector<8x24xf32>
    %99 = vector.extract_strided_slice %12 {offsets = [8, 24], sizes = [8, 24], strides = [1, 1]} : vector<16x288xf32> to vector<8x24xf32>
    %cst_32 = arith.constant 0.204124153 : f32
    %100 = vector.broadcast %cst_32 : f32 to vector<8x24xf32>
    %101 = arith.mulf %99, %100 : vector<8x24xf32>
    %102 = vector.extract_strided_slice %12 {offsets = [8, 120], sizes = [8, 24], strides = [1, 1]} : vector<16x288xf32> to vector<8x24xf32>
    %103 = vector.extract_strided_slice %12 {offsets = [8, 216], sizes = [8, 24], strides = [1, 1]} : vector<16x288xf32> to vector<8x24xf32>
    "tpu.trace_start"() <{level = 10 : i32, message = "ld,md->lm"}> : () -> ()
    %cst_33 = arith.constant dense<0.000000e+00> : vector<8x8xf32>
    %104 = tpu.matmul %101, %102, %cst_33 {dimension_numbers = #tpu.dot_dimension_numbers<[1], [1], [0], [0], [0, 0, 1, 0], [], []>} : vector<8x24xf32>, vector<8x24xf32>, vector<8x8xf32> -> vector<8x8xf32>
    "tpu.trace_stop"() : () -> ()
    %105 = arith.addf %104, %5 : vector<8x8xf32>
    %cst_34 = arith.constant dense<0xFF800000> : vector<8xf32>
    %106 = vector.multi_reduction <maximumf>, %105, %cst_34 [1] : vector<8x8xf32> to vector<8xf32>
    %107 = vector.shape_cast %106 : vector<8xf32> to vector<8x1xf32>
    %108 = vector.broadcast %107 : vector<8x1xf32> to vector<8x8xf32>
    %109 = arith.subf %105, %108 : vector<8x8xf32>
    %110 = math.exp %109 : vector<8x8xf32>
    %cst_35 = arith.constant dense<0.000000e+00> : vector<8xf32>
    %111 = vector.multi_reduction <add>, %110, %cst_35 [1] : vector<8x8xf32> to vector<8xf32>
    %112 = vector.shape_cast %111 : vector<8xf32> to vector<8x1xf32>
    %113 = vector.broadcast %112 : vector<8x1xf32> to vector<8x8xf32>
    %114 = arith.divf %110, %113 : vector<8x8xf32>
    %cst_36 = arith.constant dense<0.000000e+00> : vector<8x24xf32>
    %115 = tpu.matmul %114, %103, %cst_36 {dimension_numbers = #tpu.dot_dimension_numbers<[1], [0], [0], [1], [0, 0, 1, 1], [], []>} : vector<8x8xf32>, vector<8x24xf32>, vector<8x24xf32> -> vector<8x24xf32>
    %116 = vector.extract_strided_slice %12 {offsets = [8, 48], sizes = [8, 24], strides = [1, 1]} : vector<16x288xf32> to vector<8x24xf32>
    %cst_37 = arith.constant 0.204124153 : f32
    %117 = vector.broadcast %cst_37 : f32 to vector<8x24xf32>
    %118 = arith.mulf %116, %117 : vector<8x24xf32>
    %119 = vector.extract_strided_slice %12 {offsets = [8, 144], sizes = [8, 24], strides = [1, 1]} : vector<16x288xf32> to vector<8x24xf32>
    %120 = vector.extract_strided_slice %12 {offsets = [8, 240], sizes = [8, 24], strides = [1, 1]} : vector<16x288xf32> to vector<8x24xf32>
    "tpu.trace_start"() <{level = 10 : i32, message = "ld,md->lm"}> : () -> ()
    %cst_38 = arith.constant dense<0.000000e+00> : vector<8x8xf32>
    %121 = tpu.matmul %118, %119, %cst_38 {dimension_numbers = #tpu.dot_dimension_numbers<[1], [1], [0], [0], [0, 0, 1, 0], [], []>} : vector<8x24xf32>, vector<8x24xf32>, vector<8x8xf32> -> vector<8x8xf32>
    "tpu.trace_stop"() : () -> ()
    %122 = arith.addf %121, %5 : vector<8x8xf32>
    %cst_39 = arith.constant dense<0xFF800000> : vector<8xf32>
    %123 = vector.multi_reduction <maximumf>, %122, %cst_39 [1] : vector<8x8xf32> to vector<8xf32>
    %124 = vector.shape_cast %123 : vector<8xf32> to vector<8x1xf32>
    %125 = vector.broadcast %124 : vector<8x1xf32> to vector<8x8xf32>
    %126 = arith.subf %122, %125 : vector<8x8xf32>
    %127 = math.exp %126 : vector<8x8xf32>
    %cst_40 = arith.constant dense<0.000000e+00> : vector<8xf32>
    %128 = vector.multi_reduction <add>, %127, %cst_40 [1] : vector<8x8xf32> to vector<8xf32>
    %129 = vector.shape_cast %128 : vector<8xf32> to vector<8x1xf32>
    %130 = vector.broadcast %129 : vector<8x1xf32> to vector<8x8xf32>
    %131 = arith.divf %127, %130 : vector<8x8xf32>
    %cst_41 = arith.constant dense<0.000000e+00> : vector<8x24xf32>
    %132 = tpu.matmul %131, %120, %cst_41 {dimension_numbers = #tpu.dot_dimension_numbers<[1], [0], [0], [1], [0, 0, 1, 1], [], []>} : vector<8x8xf32>, vector<8x24xf32>, vector<8x24xf32> -> vector<8x24xf32>
    %133 = vector.extract_strided_slice %12 {offsets = [8, 72], sizes = [8, 24], strides = [1, 1]} : vector<16x288xf32> to vector<8x24xf32>
    %cst_42 = arith.constant 0.204124153 : f32
    %134 = vector.broadcast %cst_42 : f32 to vector<8x24xf32>
    %135 = arith.mulf %133, %134 : vector<8x24xf32>
    %136 = vector.extract_strided_slice %12 {offsets = [8, 168], sizes = [8, 24], strides = [1, 1]} : vector<16x288xf32> to vector<8x24xf32>
    %137 = vector.extract_strided_slice %12 {offsets = [8, 264], sizes = [8, 24], strides = [1, 1]} : vector<16x288xf32> to vector<8x24xf32>
    "tpu.trace_start"() <{level = 10 : i32, message = "ld,md->lm"}> : () -> ()
    %cst_43 = arith.constant dense<0.000000e+00> : vector<8x8xf32>
    %138 = tpu.matmul %135, %136, %cst_43 {dimension_numbers = #tpu.dot_dimension_numbers<[1], [1], [0], [0], [0, 0, 1, 0], [], []>} : vector<8x24xf32>, vector<8x24xf32>, vector<8x8xf32> -> vector<8x8xf32>
    "tpu.trace_stop"() : () -> ()
    %139 = arith.addf %138, %5 : vector<8x8xf32>
    %cst_44 = arith.constant dense<0xFF800000> : vector<8xf32>
    %140 = vector.multi_reduction <maximumf>, %139, %cst_44 [1] : vector<8x8xf32> to vector<8xf32>
    %141 = vector.shape_cast %140 : vector<8xf32> to vector<8x1xf32>
    %142 = vector.broadcast %141 : vector<8x1xf32> to vector<8x8xf32>
    %143 = arith.subf %139, %142 : vector<8x8xf32>
    %144 = math.exp %143 : vector<8x8xf32>
    %cst_45 = arith.constant dense<0.000000e+00> : vector<8xf32>
    %145 = vector.multi_reduction <add>, %144, %cst_45 [1] : vector<8x8xf32> to vector<8xf32>
    %146 = vector.shape_cast %145 : vector<8xf32> to vector<8x1xf32>
    %147 = vector.broadcast %146 : vector<8x1xf32> to vector<8x8xf32>
    %148 = arith.divf %144, %147 : vector<8x8xf32>
    %cst_46 = arith.constant dense<0.000000e+00> : vector<8x24xf32>
    %149 = tpu.matmul %148, %137, %cst_46 {dimension_numbers = #tpu.dot_dimension_numbers<[1], [0], [0], [1], [0, 0, 1, 1], [], []>} : vector<8x8xf32>, vector<8x24xf32>, vector<8x24xf32> -> vector<8x24xf32>
    %150 = tpu.concatenate %98, %115, %132, %149 in 1 : vector<8x24xf32>, vector<8x24xf32>, vector<8x24xf32>, vector<8x24xf32> -> vector<8x96xf32>
    %151 = tpu.concatenate %81, %150 in 0 : vector<8x96xf32>, vector<8x96xf32> -> vector<16x96xf32>
    %c0_47 = arith.constant 0 : index
    %c0_48 = arith.constant 0 : index
    %c0_49 = arith.constant 0 : index
    %152 = vector.load %arg3[%c0_47, %c0_48, %c0_49] : memref<2x96x96xbf16, #tpu.memory_space<vmem>>, vector<1x96x96xbf16>
    %153 = vector.shape_cast %152 : vector<1x96x96xbf16> to vector<96x96xbf16>
    %cst_50 = arith.constant dense<0.000000e+00> : vector<16x96xf32>
    %154 = tpu.matmul %151, %153, %cst_50 {dimension_numbers = #tpu.dot_dimension_numbers<[1], [0], [0], [1], [0, 0, 1, 1], [], []>} : vector<16x96xf32>, vector<96x96xbf16>, vector<16x96xf32> -> vector<16x96xf32>
    %c0_51 = arith.constant 0 : index
    %c0_52 = arith.constant 0 : index
    %c0_53 = arith.constant 0 : index
    %155 = vector.load %arg4[%c0_51, %c0_52, %c0_53] : memref<2x1x96xf32, #tpu.memory_space<vmem>>, vector<1x1x96xf32>
    %156 = vector.shape_cast %155 : vector<1x1x96xf32> to vector<1x96xf32>
    %157 = vector.broadcast %156 : vector<1x96xf32> to vector<16x96xf32>
    %158 = arith.addf %154, %157 : vector<16x96xf32>
    %159 = arith.addf %0, %158 : vector<16x96xf32>
    %c0_54 = arith.constant 0 : index
    %c0_55 = arith.constant 0 : index
    %c0_56 = arith.constant 0 : index
    %160 = vector.load %arg5[%c0_54, %c0_55, %c0_56] : memref<2x1x96xf32, #tpu.memory_space<vmem>>, vector<1x1x96xf32>
    %161 = vector.shape_cast %160 : vector<1x1x96xf32> to vector<1x96xf32>
    %c0_57 = arith.constant 0 : index
    %c0_58 = arith.constant 0 : index
    %c0_59 = arith.constant 0 : index
    %162 = vector.load %arg6[%c0_57, %c0_58, %c0_59] : memref<2x1x96xf32, #tpu.memory_space<vmem>>, vector<1x1x96xf32>
    %163 = vector.shape_cast %162 : vector<1x1x96xf32> to vector<1x96xf32>
    %cst_60 = arith.constant dense<0.000000e+00> : vector<16xf32>
    %164 = vector.multi_reduction <add>, %159, %cst_60 [1] : vector<16x96xf32> to vector<16xf32>
    %165 = vector.shape_cast %164 : vector<16xf32> to vector<16x1xf32>
    %cst_61 = arith.constant 9.600000e+01 : f32
    %166 = vector.broadcast %cst_61 : f32 to vector<16x1xf32>
    %167 = arith.divf %165, %166 : vector<16x1xf32>
    %168 = vector.broadcast %167 : vector<16x1xf32> to vector<16x96xf32>
    %169 = arith.subf %159, %168 : vector<16x96xf32>
    %170 = arith.mulf %169, %169 : vector<16x96xf32>
    %cst_62 = arith.constant dense<0.000000e+00> : vector<16xf32>
    %171 = vector.multi_reduction <add>, %170, %cst_62 [1] : vector<16x96xf32> to vector<16xf32>
    %172 = vector.shape_cast %171 : vector<16xf32> to vector<16x1xf32>
    %cst_63 = arith.constant 9.600000e+01 : f32
    %173 = vector.broadcast %cst_63 : f32 to vector<16x1xf32>
    %174 = arith.divf %172, %173 : vector<16x1xf32>
    %175 = vector.broadcast %167 : vector<16x1xf32> to vector<16x96xf32>
    %176 = arith.subf %159, %175 : vector<16x96xf32>
    %cst_64 = arith.constant 9.99999974E-6 : f32
    %177 = vector.broadcast %cst_64 : f32 to vector<16x1xf32>
    %178 = arith.addf %174, %177 : vector<16x1xf32>
    %179 = math.rsqrt %178 : vector<16x1xf32>
    %180 = vector.broadcast %179 : vector<16x1xf32> to vector<16x96xf32>
    %181 = arith.mulf %176, %180 : vector<16x96xf32>
    %182 = vector.broadcast %161 : vector<1x96xf32> to vector<16x96xf32>
    %183 = arith.mulf %181, %182 : vector<16x96xf32>
    %184 = vector.broadcast %163 : vector<1x96xf32> to vector<16x96xf32>
    %185 = arith.addf %183, %184 : vector<16x96xf32>
    %c0_65 = arith.constant 0 : index
    %c0_66 = arith.constant 0 : index
    %c0_67 = arith.constant 0 : index
    %186 = vector.load %arg7[%c0_65, %c0_66, %c0_67] : memref<2x96x2048xbf16, #tpu.memory_space<vmem>>, vector<1x96x2048xbf16>
    %187 = vector.shape_cast %186 : vector<1x96x2048xbf16> to vector<96x2048xbf16>
    %cst_68 = arith.constant dense<0.000000e+00> : vector<16x2048xf32>
    %188 = tpu.matmul %185, %187, %cst_68 {dimension_numbers = #tpu.dot_dimension_numbers<[1], [0], [0], [1], [0, 0, 1, 1], [], []>} : vector<16x96xf32>, vector<96x2048xbf16>, vector<16x2048xf32> -> vector<16x2048xf32>
    %c0_69 = arith.constant 0 : index
    %c0_70 = arith.constant 0 : index
    %c0_71 = arith.constant 0 : index
    %189 = vector.load %arg8[%c0_69, %c0_70, %c0_71] : memref<2x1x2048xf32, #tpu.memory_space<vmem>>, vector<1x1x2048xf32>
    %190 = vector.shape_cast %189 : vector<1x1x2048xf32> to vector<1x2048xf32>
    %191 = vector.broadcast %190 : vector<1x2048xf32> to vector<16x2048xf32>
    %192 = arith.addf %188, %191 : vector<16x2048xf32>
    %cst_72 = arith.constant 0.000000e+00 : f32
    %193 = vector.broadcast %cst_72 : f32 to vector<16x2048xf32>
    %194 = arith.maximumf %192, %193 : vector<16x2048xf32>
    %c0_73 = arith.constant 0 : index
    %c0_74 = arith.constant 0 : index
    %c0_75 = arith.constant 0 : index
    %195 = vector.load %arg9[%c0_73, %c0_74, %c0_75] : memref<2x2048x96xbf16, #tpu.memory_space<vmem>>, vector<1x2048x96xbf16>
    %196 = vector.shape_cast %195 : vector<1x2048x96xbf16> to vector<2048x96xbf16>
    %cst_76 = arith.constant dense<0.000000e+00> : vector<16x96xf32>
    %197 = tpu.matmul %194, %196, %cst_76 {dimension_numbers = #tpu.dot_dimension_numbers<[1], [0], [0], [1], [0, 0, 1, 1], [], []>} : vector<16x2048xf32>, vector<2048x96xbf16>, vector<16x96xf32> -> vector<16x96xf32>
    %c0_77 = arith.constant 0 : index
    %c0_78 = arith.constant 0 : index
    %c0_79 = arith.constant 0 : index
    %198 = vector.load %arg10[%c0_77, %c0_78, %c0_79] : memref<2x1x96xf32, #tpu.memory_space<vmem>>, vector<1x1x96xf32>
    %199 = vector.shape_cast %198 : vector<1x1x96xf32> to vector<1x96xf32>
    %200 = vector.broadcast %199 : vector<1x96xf32> to vector<16x96xf32>
    %201 = arith.addf %197, %200 : vector<16x96xf32>
    %202 = arith.addf %185, %201 : vector<16x96xf32>
    %c0_80 = arith.constant 0 : index
    %c0_81 = arith.constant 0 : index
    %c0_82 = arith.constant 0 : index
    %203 = vector.load %arg11[%c0_80, %c0_81, %c0_82] : memref<2x1x96xf32, #tpu.memory_space<vmem>>, vector<1x1x96xf32>
    %204 = vector.shape_cast %203 : vector<1x1x96xf32> to vector<1x96xf32>
    %c0_83 = arith.constant 0 : index
    %c0_84 = arith.constant 0 : index
    %c0_85 = arith.constant 0 : index
    %205 = vector.load %arg12[%c0_83, %c0_84, %c0_85] : memref<2x1x96xf32, #tpu.memory_space<vmem>>, vector<1x1x96xf32>
    %206 = vector.shape_cast %205 : vector<1x1x96xf32> to vector<1x96xf32>
    %cst_86 = arith.constant dense<0.000000e+00> : vector<16xf32>
    %207 = vector.multi_reduction <add>, %202, %cst_86 [1] : vector<16x96xf32> to vector<16xf32>
    %208 = vector.shape_cast %207 : vector<16xf32> to vector<16x1xf32>
    %cst_87 = arith.constant 9.600000e+01 : f32
    %209 = vector.broadcast %cst_87 : f32 to vector<16x1xf32>
    %210 = arith.divf %208, %209 : vector<16x1xf32>
    %211 = vector.broadcast %210 : vector<16x1xf32> to vector<16x96xf32>
    %212 = arith.subf %202, %211 : vector<16x96xf32>
    %213 = arith.mulf %212, %212 : vector<16x96xf32>
    %cst_88 = arith.constant dense<0.000000e+00> : vector<16xf32>
    %214 = vector.multi_reduction <add>, %213, %cst_88 [1] : vector<16x96xf32> to vector<16xf32>
    %215 = vector.shape_cast %214 : vector<16xf32> to vector<16x1xf32>
    %cst_89 = arith.constant 9.600000e+01 : f32
    %216 = vector.broadcast %cst_89 : f32 to vector<16x1xf32>
    %217 = arith.divf %215, %216 : vector<16x1xf32>
    %218 = vector.broadcast %210 : vector<16x1xf32> to vector<16x96xf32>
    %219 = arith.subf %202, %218 : vector<16x96xf32>
    %cst_90 = arith.constant 9.99999974E-6 : f32
    %220 = vector.broadcast %cst_90 : f32 to vector<16x1xf32>
    %221 = arith.addf %217, %220 : vector<16x1xf32>
    %222 = math.rsqrt %221 : vector<16x1xf32>
    %223 = vector.broadcast %222 : vector<16x1xf32> to vector<16x96xf32>
    %224 = arith.mulf %219, %223 : vector<16x96xf32>
    %225 = vector.broadcast %204 : vector<1x96xf32> to vector<16x96xf32>
    %226 = arith.mulf %224, %225 : vector<16x96xf32>
    %227 = vector.broadcast %206 : vector<1x96xf32> to vector<16x96xf32>
    %228 = arith.addf %226, %227 : vector<16x96xf32>
    %c1 = arith.constant 1 : index
    %c0_91 = arith.constant 0 : index
    %c0_92 = arith.constant 0 : index
    %229 = vector.load %arg1[%c1, %c0_91, %c0_92] : memref<2x96x288xbf16, #tpu.memory_space<vmem>>, vector<1x96x288xbf16>
    %230 = vector.shape_cast %229 : vector<1x96x288xbf16> to vector<96x288xbf16>
    %cst_93 = arith.constant dense<0.000000e+00> : vector<16x288xf32>
    %231 = tpu.matmul %228, %230, %cst_93 {dimension_numbers = #tpu.dot_dimension_numbers<[1], [0], [0], [1], [0, 0, 1, 1], [], []>} : vector<16x96xf32>, vector<96x288xbf16>, vector<16x288xf32> -> vector<16x288xf32>
    %c1_94 = arith.constant 1 : index
    %c0_95 = arith.constant 0 : index
    %c0_96 = arith.constant 0 : index
    %232 = vector.load %arg2[%c1_94, %c0_95, %c0_96] : memref<2x1x288xf32, #tpu.memory_space<vmem>>, vector<1x1x288xf32>
    %233 = vector.shape_cast %232 : vector<1x1x288xf32> to vector<1x288xf32>
    %234 = vector.broadcast %233 : vector<1x288xf32> to vector<16x288xf32>
    %235 = arith.addf %231, %234 : vector<16x288xf32>
    %236 = vector.extract_strided_slice %235 {offsets = [0, 0], sizes = [8, 24], strides = [1, 1]} : vector<16x288xf32> to vector<8x24xf32>
    %cst_97 = arith.constant 0.204124153 : f32
    %237 = vector.broadcast %cst_97 : f32 to vector<8x24xf32>
    %238 = arith.mulf %236, %237 : vector<8x24xf32>
    %239 = vector.extract_strided_slice %235 {offsets = [0, 96], sizes = [8, 24], strides = [1, 1]} : vector<16x288xf32> to vector<8x24xf32>
    %240 = vector.extract_strided_slice %235 {offsets = [0, 192], sizes = [8, 24], strides = [1, 1]} : vector<16x288xf32> to vector<8x24xf32>
    "tpu.trace_start"() <{level = 10 : i32, message = "ld,md->lm"}> : () -> ()
    %cst_98 = arith.constant dense<0.000000e+00> : vector<8x8xf32>
    %241 = tpu.matmul %238, %239, %cst_98 {dimension_numbers = #tpu.dot_dimension_numbers<[1], [1], [0], [0], [0, 0, 1, 0], [], []>} : vector<8x24xf32>, vector<8x24xf32>, vector<8x8xf32> -> vector<8x8xf32>
    "tpu.trace_stop"() : () -> ()
    %242 = arith.addf %241, %5 : vector<8x8xf32>
    %cst_99 = arith.constant dense<0xFF800000> : vector<8xf32>
    %243 = vector.multi_reduction <maximumf>, %242, %cst_99 [1] : vector<8x8xf32> to vector<8xf32>
    %244 = vector.shape_cast %243 : vector<8xf32> to vector<8x1xf32>
    %245 = vector.broadcast %244 : vector<8x1xf32> to vector<8x8xf32>
    %246 = arith.subf %242, %245 : vector<8x8xf32>
    %247 = math.exp %246 : vector<8x8xf32>
    %cst_100 = arith.constant dense<0.000000e+00> : vector<8xf32>
    %248 = vector.multi_reduction <add>, %247, %cst_100 [1] : vector<8x8xf32> to vector<8xf32>
    %249 = vector.shape_cast %248 : vector<8xf32> to vector<8x1xf32>
    %250 = vector.broadcast %249 : vector<8x1xf32> to vector<8x8xf32>
    %251 = arith.divf %247, %250 : vector<8x8xf32>
    %cst_101 = arith.constant dense<0.000000e+00> : vector<8x24xf32>
    %252 = tpu.matmul %251, %240, %cst_101 {dimension_numbers = #tpu.dot_dimension_numbers<[1], [0], [0], [1], [0, 0, 1, 1], [], []>} : vector<8x8xf32>, vector<8x24xf32>, vector<8x24xf32> -> vector<8x24xf32>
    %253 = vector.extract_strided_slice %235 {offsets = [0, 24], sizes = [8, 24], strides = [1, 1]} : vector<16x288xf32> to vector<8x24xf32>
    %cst_102 = arith.constant 0.204124153 : f32
    %254 = vector.broadcast %cst_102 : f32 to vector<8x24xf32>
    %255 = arith.mulf %253, %254 : vector<8x24xf32>
    %256 = vector.extract_strided_slice %235 {offsets = [0, 120], sizes = [8, 24], strides = [1, 1]} : vector<16x288xf32> to vector<8x24xf32>
    %257 = vector.extract_strided_slice %235 {offsets = [0, 216], sizes = [8, 24], strides = [1, 1]} : vector<16x288xf32> to vector<8x24xf32>
    "tpu.trace_start"() <{level = 10 : i32, message = "ld,md->lm"}> : () -> ()
    %cst_103 = arith.constant dense<0.000000e+00> : vector<8x8xf32>
    %258 = tpu.matmul %255, %256, %cst_103 {dimension_numbers = #tpu.dot_dimension_numbers<[1], [1], [0], [0], [0, 0, 1, 0], [], []>} : vector<8x24xf32>, vector<8x24xf32>, vector<8x8xf32> -> vector<8x8xf32>
    "tpu.trace_stop"() : () -> ()
    %259 = arith.addf %258, %5 : vector<8x8xf32>
    %cst_104 = arith.constant dense<0xFF800000> : vector<8xf32>
    %260 = vector.multi_reduction <maximumf>, %259, %cst_104 [1] : vector<8x8xf32> to vector<8xf32>
    %261 = vector.shape_cast %260 : vector<8xf32> to vector<8x1xf32>
    %262 = vector.broadcast %261 : vector<8x1xf32> to vector<8x8xf32>
    %263 = arith.subf %259, %262 : vector<8x8xf32>
    %264 = math.exp %263 : vector<8x8xf32>
    %cst_105 = arith.constant dense<0.000000e+00> : vector<8xf32>
    %265 = vector.multi_reduction <add>, %264, %cst_105 [1] : vector<8x8xf32> to vector<8xf32>
    %266 = vector.shape_cast %265 : vector<8xf32> to vector<8x1xf32>
    %267 = vector.broadcast %266 : vector<8x1xf32> to vector<8x8xf32>
    %268 = arith.divf %264, %267 : vector<8x8xf32>
    %cst_106 = arith.constant dense<0.000000e+00> : vector<8x24xf32>
    %269 = tpu.matmul %268, %257, %cst_106 {dimension_numbers = #tpu.dot_dimension_numbers<[1], [0], [0], [1], [0, 0, 1, 1], [], []>} : vector<8x8xf32>, vector<8x24xf32>, vector<8x24xf32> -> vector<8x24xf32>
    %270 = vector.extract_strided_slice %235 {offsets = [0, 48], sizes = [8, 24], strides = [1, 1]} : vector<16x288xf32> to vector<8x24xf32>
    %cst_107 = arith.constant 0.204124153 : f32
    %271 = vector.broadcast %cst_107 : f32 to vector<8x24xf32>
    %272 = arith.mulf %270, %271 : vector<8x24xf32>
    %273 = vector.extract_strided_slice %235 {offsets = [0, 144], sizes = [8, 24], strides = [1, 1]} : vector<16x288xf32> to vector<8x24xf32>
    %274 = vector.extract_strided_slice %235 {offsets = [0, 240], sizes = [8, 24], strides = [1, 1]} : vector<16x288xf32> to vector<8x24xf32>
    "tpu.trace_start"() <{level = 10 : i32, message = "ld,md->lm"}> : () -> ()
    %cst_108 = arith.constant dense<0.000000e+00> : vector<8x8xf32>
    %275 = tpu.matmul %272, %273, %cst_108 {dimension_numbers = #tpu.dot_dimension_numbers<[1], [1], [0], [0], [0, 0, 1, 0], [], []>} : vector<8x24xf32>, vector<8x24xf32>, vector<8x8xf32> -> vector<8x8xf32>
    "tpu.trace_stop"() : () -> ()
    %276 = arith.addf %275, %5 : vector<8x8xf32>
    %cst_109 = arith.constant dense<0xFF800000> : vector<8xf32>
    %277 = vector.multi_reduction <maximumf>, %276, %cst_109 [1] : vector<8x8xf32> to vector<8xf32>
    %278 = vector.shape_cast %277 : vector<8xf32> to vector<8x1xf32>
    %279 = vector.broadcast %278 : vector<8x1xf32> to vector<8x8xf32>
    %280 = arith.subf %276, %279 : vector<8x8xf32>
    %281 = math.exp %280 : vector<8x8xf32>
    %cst_110 = arith.constant dense<0.000000e+00> : vector<8xf32>
    %282 = vector.multi_reduction <add>, %281, %cst_110 [1] : vector<8x8xf32> to vector<8xf32>
    %283 = vector.shape_cast %282 : vector<8xf32> to vector<8x1xf32>
    %284 = vector.broadcast %283 : vector<8x1xf32> to vector<8x8xf32>
    %285 = arith.divf %281, %284 : vector<8x8xf32>
    %cst_111 = arith.constant dense<0.000000e+00> : vector<8x24xf32>
    %286 = tpu.matmul %285, %274, %cst_111 {dimension_numbers = #tpu.dot_dimension_numbers<[1], [0], [0], [1], [0, 0, 1, 1], [], []>} : vector<8x8xf32>, vector<8x24xf32>, vector<8x24xf32> -> vector<8x24xf32>
    %287 = vector.extract_strided_slice %235 {offsets = [0, 72], sizes = [8, 24], strides = [1, 1]} : vector<16x288xf32> to vector<8x24xf32>
    %cst_112 = arith.constant 0.204124153 : f32
    %288 = vector.broadcast %cst_112 : f32 to vector<8x24xf32>
    %289 = arith.mulf %287, %288 : vector<8x24xf32>
    %290 = vector.extract_strided_slice %235 {offsets = [0, 168], sizes = [8, 24], strides = [1, 1]} : vector<16x288xf32> to vector<8x24xf32>
    %291 = vector.extract_strided_slice %235 {offsets = [0, 264], sizes = [8, 24], strides = [1, 1]} : vector<16x288xf32> to vector<8x24xf32>
    "tpu.trace_start"() <{level = 10 : i32, message = "ld,md->lm"}> : () -> ()
    %cst_113 = arith.constant dense<0.000000e+00> : vector<8x8xf32>
    %292 = tpu.matmul %289, %290, %cst_113 {dimension_numbers = #tpu.dot_dimension_numbers<[1], [1], [0], [0], [0, 0, 1, 0], [], []>} : vector<8x24xf32>, vector<8x24xf32>, vector<8x8xf32> -> vector<8x8xf32>
    "tpu.trace_stop"() : () -> ()
    %293 = arith.addf %292, %5 : vector<8x8xf32>
    %cst_114 = arith.constant dense<0xFF800000> : vector<8xf32>
    %294 = vector.multi_reduction <maximumf>, %293, %cst_114 [1] : vector<8x8xf32> to vector<8xf32>
    %295 = vector.shape_cast %294 : vector<8xf32> to vector<8x1xf32>
    %296 = vector.broadcast %295 : vector<8x1xf32> to vector<8x8xf32>
    %297 = arith.subf %293, %296 : vector<8x8xf32>
    %298 = math.exp %297 : vector<8x8xf32>
    %cst_115 = arith.constant dense<0.000000e+00> : vector<8xf32>
    %299 = vector.multi_reduction <add>, %298, %cst_115 [1] : vector<8x8xf32> to vector<8xf32>
    %300 = vector.shape_cast %299 : vector<8xf32> to vector<8x1xf32>
    %301 = vector.broadcast %300 : vector<8x1xf32> to vector<8x8xf32>
    %302 = arith.divf %298, %301 : vector<8x8xf32>
    %cst_116 = arith.constant dense<0.000000e+00> : vector<8x24xf32>
    %303 = tpu.matmul %302, %291, %cst_116 {dimension_numbers = #tpu.dot_dimension_numbers<[1], [0], [0], [1], [0, 0, 1, 1], [], []>} : vector<8x8xf32>, vector<8x24xf32>, vector<8x24xf32> -> vector<8x24xf32>
    %304 = tpu.concatenate %252, %269, %286, %303 in 1 : vector<8x24xf32>, vector<8x24xf32>, vector<8x24xf32>, vector<8x24xf32> -> vector<8x96xf32>
    %305 = vector.extract_strided_slice %235 {offsets = [8, 0], sizes = [8, 24], strides = [1, 1]} : vector<16x288xf32> to vector<8x24xf32>
    %cst_117 = arith.constant 0.204124153 : f32
    %306 = vector.broadcast %cst_117 : f32 to vector<8x24xf32>
    %307 = arith.mulf %305, %306 : vector<8x24xf32>
    %308 = vector.extract_strided_slice %235 {offsets = [8, 96], sizes = [8, 24], strides = [1, 1]} : vector<16x288xf32> to vector<8x24xf32>
    %309 = vector.extract_strided_slice %235 {offsets = [8, 192], sizes = [8, 24], strides = [1, 1]} : vector<16x288xf32> to vector<8x24xf32>
    "tpu.trace_start"() <{level = 10 : i32, message = "ld,md->lm"}> : () -> ()
    %cst_118 = arith.constant dense<0.000000e+00> : vector<8x8xf32>
    %310 = tpu.matmul %307, %308, %cst_118 {dimension_numbers = #tpu.dot_dimension_numbers<[1], [1], [0], [0], [0, 0, 1, 0], [], []>} : vector<8x24xf32>, vector<8x24xf32>, vector<8x8xf32> -> vector<8x8xf32>
    "tpu.trace_stop"() : () -> ()
    %311 = arith.addf %310, %5 : vector<8x8xf32>
    %cst_119 = arith.constant dense<0xFF800000> : vector<8xf32>
    %312 = vector.multi_reduction <maximumf>, %311, %cst_119 [1] : vector<8x8xf32> to vector<8xf32>
    %313 = vector.shape_cast %312 : vector<8xf32> to vector<8x1xf32>
    %314 = vector.broadcast %313 : vector<8x1xf32> to vector<8x8xf32>
    %315 = arith.subf %311, %314 : vector<8x8xf32>
    %316 = math.exp %315 : vector<8x8xf32>
    %cst_120 = arith.constant dense<0.000000e+00> : vector<8xf32>
    %317 = vector.multi_reduction <add>, %316, %cst_120 [1] : vector<8x8xf32> to vector<8xf32>
    %318 = vector.shape_cast %317 : vector<8xf32> to vector<8x1xf32>
    %319 = vector.broadcast %318 : vector<8x1xf32> to vector<8x8xf32>
    %320 = arith.divf %316, %319 : vector<8x8xf32>
    %cst_121 = arith.constant dense<0.000000e+00> : vector<8x24xf32>
    %321 = tpu.matmul %320, %309, %cst_121 {dimension_numbers = #tpu.dot_dimension_numbers<[1], [0], [0], [1], [0, 0, 1, 1], [], []>} : vector<8x8xf32>, vector<8x24xf32>, vector<8x24xf32> -> vector<8x24xf32>
    %322 = vector.extract_strided_slice %235 {offsets = [8, 24], sizes = [8, 24], strides = [1, 1]} : vector<16x288xf32> to vector<8x24xf32>
    %cst_122 = arith.constant 0.204124153 : f32
    %323 = vector.broadcast %cst_122 : f32 to vector<8x24xf32>
    %324 = arith.mulf %322, %323 : vector<8x24xf32>
    %325 = vector.extract_strided_slice %235 {offsets = [8, 120], sizes = [8, 24], strides = [1, 1]} : vector<16x288xf32> to vector<8x24xf32>
    %326 = vector.extract_strided_slice %235 {offsets = [8, 216], sizes = [8, 24], strides = [1, 1]} : vector<16x288xf32> to vector<8x24xf32>
    "tpu.trace_start"() <{level = 10 : i32, message = "ld,md->lm"}> : () -> ()
    %cst_123 = arith.constant dense<0.000000e+00> : vector<8x8xf32>
    %327 = tpu.matmul %324, %325, %cst_123 {dimension_numbers = #tpu.dot_dimension_numbers<[1], [1], [0], [0], [0, 0, 1, 0], [], []>} : vector<8x24xf32>, vector<8x24xf32>, vector<8x8xf32> -> vector<8x8xf32>
    "tpu.trace_stop"() : () -> ()
    %328 = arith.addf %327, %5 : vector<8x8xf32>
    %cst_124 = arith.constant dense<0xFF800000> : vector<8xf32>
    %329 = vector.multi_reduction <maximumf>, %328, %cst_124 [1] : vector<8x8xf32> to vector<8xf32>
    %330 = vector.shape_cast %329 : vector<8xf32> to vector<8x1xf32>
    %331 = vector.broadcast %330 : vector<8x1xf32> to vector<8x8xf32>
    %332 = arith.subf %328, %331 : vector<8x8xf32>
    %333 = math.exp %332 : vector<8x8xf32>
    %cst_125 = arith.constant dense<0.000000e+00> : vector<8xf32>
    %334 = vector.multi_reduction <add>, %333, %cst_125 [1] : vector<8x8xf32> to vector<8xf32>
    %335 = vector.shape_cast %334 : vector<8xf32> to vector<8x1xf32>
    %336 = vector.broadcast %335 : vector<8x1xf32> to vector<8x8xf32>
    %337 = arith.divf %333, %336 : vector<8x8xf32>
    %cst_126 = arith.constant dense<0.000000e+00> : vector<8x24xf32>
    %338 = tpu.matmul %337, %326, %cst_126 {dimension_numbers = #tpu.dot_dimension_numbers<[1], [0], [0], [1], [0, 0, 1, 1], [], []>} : vector<8x8xf32>, vector<8x24xf32>, vector<8x24xf32> -> vector<8x24xf32>
    %339 = vector.extract_strided_slice %235 {offsets = [8, 48], sizes = [8, 24], strides = [1, 1]} : vector<16x288xf32> to vector<8x24xf32>
    %cst_127 = arith.constant 0.204124153 : f32
    %340 = vector.broadcast %cst_127 : f32 to vector<8x24xf32>
    %341 = arith.mulf %339, %340 : vector<8x24xf32>
    %342 = vector.extract_strided_slice %235 {offsets = [8, 144], sizes = [8, 24], strides = [1, 1]} : vector<16x288xf32> to vector<8x24xf32>
    %343 = vector.extract_strided_slice %235 {offsets = [8, 240], sizes = [8, 24], strides = [1, 1]} : vector<16x288xf32> to vector<8x24xf32>
    "tpu.trace_start"() <{level = 10 : i32, message = "ld,md->lm"}> : () -> ()
    %cst_128 = arith.constant dense<0.000000e+00> : vector<8x8xf32>
    %344 = tpu.matmul %341, %342, %cst_128 {dimension_numbers = #tpu.dot_dimension_numbers<[1], [1], [0], [0], [0, 0, 1, 0], [], []>} : vector<8x24xf32>, vector<8x24xf32>, vector<8x8xf32> -> vector<8x8xf32>
    "tpu.trace_stop"() : () -> ()
    %345 = arith.addf %344, %5 : vector<8x8xf32>
    %cst_129 = arith.constant dense<0xFF800000> : vector<8xf32>
    %346 = vector.multi_reduction <maximumf>, %345, %cst_129 [1] : vector<8x8xf32> to vector<8xf32>
    %347 = vector.shape_cast %346 : vector<8xf32> to vector<8x1xf32>
    %348 = vector.broadcast %347 : vector<8x1xf32> to vector<8x8xf32>
    %349 = arith.subf %345, %348 : vector<8x8xf32>
    %350 = math.exp %349 : vector<8x8xf32>
    %cst_130 = arith.constant dense<0.000000e+00> : vector<8xf32>
    %351 = vector.multi_reduction <add>, %350, %cst_130 [1] : vector<8x8xf32> to vector<8xf32>
    %352 = vector.shape_cast %351 : vector<8xf32> to vector<8x1xf32>
    %353 = vector.broadcast %352 : vector<8x1xf32> to vector<8x8xf32>
    %354 = arith.divf %350, %353 : vector<8x8xf32>
    %cst_131 = arith.constant dense<0.000000e+00> : vector<8x24xf32>
    %355 = tpu.matmul %354, %343, %cst_131 {dimension_numbers = #tpu.dot_dimension_numbers<[1], [0], [0], [1], [0, 0, 1, 1], [], []>} : vector<8x8xf32>, vector<8x24xf32>, vector<8x24xf32> -> vector<8x24xf32>
    %356 = vector.extract_strided_slice %235 {offsets = [8, 72], sizes = [8, 24], strides = [1, 1]} : vector<16x288xf32> to vector<8x24xf32>
    %cst_132 = arith.constant 0.204124153 : f32
    %357 = vector.broadcast %cst_132 : f32 to vector<8x24xf32>
    %358 = arith.mulf %356, %357 : vector<8x24xf32>
    %359 = vector.extract_strided_slice %235 {offsets = [8, 168], sizes = [8, 24], strides = [1, 1]} : vector<16x288xf32> to vector<8x24xf32>
    %360 = vector.extract_strided_slice %235 {offsets = [8, 264], sizes = [8, 24], strides = [1, 1]} : vector<16x288xf32> to vector<8x24xf32>
    "tpu.trace_start"() <{level = 10 : i32, message = "ld,md->lm"}> : () -> ()
    %cst_133 = arith.constant dense<0.000000e+00> : vector<8x8xf32>
    %361 = tpu.matmul %358, %359, %cst_133 {dimension_numbers = #tpu.dot_dimension_numbers<[1], [1], [0], [0], [0, 0, 1, 0], [], []>} : vector<8x24xf32>, vector<8x24xf32>, vector<8x8xf32> -> vector<8x8xf32>
    "tpu.trace_stop"() : () -> ()
    %362 = arith.addf %361, %5 : vector<8x8xf32>
    %cst_134 = arith.constant dense<0xFF800000> : vector<8xf32>
    %363 = vector.multi_reduction <maximumf>, %362, %cst_134 [1] : vector<8x8xf32> to vector<8xf32>
    %364 = vector.shape_cast %363 : vector<8xf32> to vector<8x1xf32>
    %365 = vector.broadcast %364 : vector<8x1xf32> to vector<8x8xf32>
    %366 = arith.subf %362, %365 : vector<8x8xf32>
    %367 = math.exp %366 : vector<8x8xf32>
    %cst_135 = arith.constant dense<0.000000e+00> : vector<8xf32>
    %368 = vector.multi_reduction <add>, %367, %cst_135 [1] : vector<8x8xf32> to vector<8xf32>
    %369 = vector.shape_cast %368 : vector<8xf32> to vector<8x1xf32>
    %370 = vector.broadcast %369 : vector<8x1xf32> to vector<8x8xf32>
    %371 = arith.divf %367, %370 : vector<8x8xf32>
    %cst_136 = arith.constant dense<0.000000e+00> : vector<8x24xf32>
    %372 = tpu.matmul %371, %360, %cst_136 {dimension_numbers = #tpu.dot_dimension_numbers<[1], [0], [0], [1], [0, 0, 1, 1], [], []>} : vector<8x8xf32>, vector<8x24xf32>, vector<8x24xf32> -> vector<8x24xf32>
    %373 = tpu.concatenate %321, %338, %355, %372 in 1 : vector<8x24xf32>, vector<8x24xf32>, vector<8x24xf32>, vector<8x24xf32> -> vector<8x96xf32>
    %374 = tpu.concatenate %304, %373 in 0 : vector<8x96xf32>, vector<8x96xf32> -> vector<16x96xf32>
    %c1_137 = arith.constant 1 : index
    %c0_138 = arith.constant 0 : index
    %c0_139 = arith.constant 0 : index
    %375 = vector.load %arg3[%c1_137, %c0_138, %c0_139] : memref<2x96x96xbf16, #tpu.memory_space<vmem>>, vector<1x96x96xbf16>
    %376 = vector.shape_cast %375 : vector<1x96x96xbf16> to vector<96x96xbf16>
    %cst_140 = arith.constant dense<0.000000e+00> : vector<16x96xf32>
    %377 = tpu.matmul %374, %376, %cst_140 {dimension_numbers = #tpu.dot_dimension_numbers<[1], [0], [0], [1], [0, 0, 1, 1], [], []>} : vector<16x96xf32>, vector<96x96xbf16>, vector<16x96xf32> -> vector<16x96xf32>
    %c1_141 = arith.constant 1 : index
    %c0_142 = arith.constant 0 : index
    %c0_143 = arith.constant 0 : index
    %378 = vector.load %arg4[%c1_141, %c0_142, %c0_143] : memref<2x1x96xf32, #tpu.memory_space<vmem>>, vector<1x1x96xf32>
    %379 = vector.shape_cast %378 : vector<1x1x96xf32> to vector<1x96xf32>
    %380 = vector.broadcast %379 : vector<1x96xf32> to vector<16x96xf32>
    %381 = arith.addf %377, %380 : vector<16x96xf32>
    %382 = arith.addf %228, %381 : vector<16x96xf32>
    %c1_144 = arith.constant 1 : index
    %c0_145 = arith.constant 0 : index
    %c0_146 = arith.constant 0 : index
    %383 = vector.load %arg5[%c1_144, %c0_145, %c0_146] : memref<2x1x96xf32, #tpu.memory_space<vmem>>, vector<1x1x96xf32>
    %384 = vector.shape_cast %383 : vector<1x1x96xf32> to vector<1x96xf32>
    %c1_147 = arith.constant 1 : index
    %c0_148 = arith.constant 0 : index
    %c0_149 = arith.constant 0 : index
    %385 = vector.load %arg6[%c1_147, %c0_148, %c0_149] : memref<2x1x96xf32, #tpu.memory_space<vmem>>, vector<1x1x96xf32>
    %386 = vector.shape_cast %385 : vector<1x1x96xf32> to vector<1x96xf32>
    %cst_150 = arith.constant dense<0.000000e+00> : vector<16xf32>
    %387 = vector.multi_reduction <add>, %382, %cst_150 [1] : vector<16x96xf32> to vector<16xf32>
    %388 = vector.shape_cast %387 : vector<16xf32> to vector<16x1xf32>
    %cst_151 = arith.constant 9.600000e+01 : f32
    %389 = vector.broadcast %cst_151 : f32 to vector<16x1xf32>
    %390 = arith.divf %388, %389 : vector<16x1xf32>
    %391 = vector.broadcast %390 : vector<16x1xf32> to vector<16x96xf32>
    %392 = arith.subf %382, %391 : vector<16x96xf32>
    %393 = arith.mulf %392, %392 : vector<16x96xf32>
    %cst_152 = arith.constant dense<0.000000e+00> : vector<16xf32>
    %394 = vector.multi_reduction <add>, %393, %cst_152 [1] : vector<16x96xf32> to vector<16xf32>
    %395 = vector.shape_cast %394 : vector<16xf32> to vector<16x1xf32>
    %cst_153 = arith.constant 9.600000e+01 : f32
    %396 = vector.broadcast %cst_153 : f32 to vector<16x1xf32>
    %397 = arith.divf %395, %396 : vector<16x1xf32>
    %398 = vector.broadcast %390 : vector<16x1xf32> to vector<16x96xf32>
    %399 = arith.subf %382, %398 : vector<16x96xf32>
    %cst_154 = arith.constant 9.99999974E-6 : f32
    %400 = vector.broadcast %cst_154 : f32 to vector<16x1xf32>
    %401 = arith.addf %397, %400 : vector<16x1xf32>
    %402 = math.rsqrt %401 : vector<16x1xf32>
    %403 = vector.broadcast %402 : vector<16x1xf32> to vector<16x96xf32>
    %404 = arith.mulf %399, %403 : vector<16x96xf32>
    %405 = vector.broadcast %384 : vector<1x96xf32> to vector<16x96xf32>
    %406 = arith.mulf %404, %405 : vector<16x96xf32>
    %407 = vector.broadcast %386 : vector<1x96xf32> to vector<16x96xf32>
    %408 = arith.addf %406, %407 : vector<16x96xf32>
    %c1_155 = arith.constant 1 : index
    %c0_156 = arith.constant 0 : index
    %c0_157 = arith.constant 0 : index
    %409 = vector.load %arg7[%c1_155, %c0_156, %c0_157] : memref<2x96x2048xbf16, #tpu.memory_space<vmem>>, vector<1x96x2048xbf16>
    %410 = vector.shape_cast %409 : vector<1x96x2048xbf16> to vector<96x2048xbf16>
    %cst_158 = arith.constant dense<0.000000e+00> : vector<16x2048xf32>
    %411 = tpu.matmul %408, %410, %cst_158 {dimension_numbers = #tpu.dot_dimension_numbers<[1], [0], [0], [1], [0, 0, 1, 1], [], []>} : vector<16x96xf32>, vector<96x2048xbf16>, vector<16x2048xf32> -> vector<16x2048xf32>
    %c1_159 = arith.constant 1 : index
    %c0_160 = arith.constant 0 : index
    %c0_161 = arith.constant 0 : index
    %412 = vector.load %arg8[%c1_159, %c0_160, %c0_161] : memref<2x1x2048xf32, #tpu.memory_space<vmem>>, vector<1x1x2048xf32>
    %413 = vector.shape_cast %412 : vector<1x1x2048xf32> to vector<1x2048xf32>
    %414 = vector.broadcast %413 : vector<1x2048xf32> to vector<16x2048xf32>
    %415 = arith.addf %411, %414 : vector<16x2048xf32>
    %cst_162 = arith.constant 0.000000e+00 : f32
    %416 = vector.broadcast %cst_162 : f32 to vector<16x2048xf32>
    %417 = arith.maximumf %415, %416 : vector<16x2048xf32>
    %c1_163 = arith.constant 1 : index
    %c0_164 = arith.constant 0 : index
    %c0_165 = arith.constant 0 : index
    %418 = vector.load %arg9[%c1_163, %c0_164, %c0_165] : memref<2x2048x96xbf16, #tpu.memory_space<vmem>>, vector<1x2048x96xbf16>
    %419 = vector.shape_cast %418 : vector<1x2048x96xbf16> to vector<2048x96xbf16>
    %cst_166 = arith.constant dense<0.000000e+00> : vector<16x96xf32>
    %420 = tpu.matmul %417, %419, %cst_166 {dimension_numbers = #tpu.dot_dimension_numbers<[1], [0], [0], [1], [0, 0, 1, 1], [], []>} : vector<16x2048xf32>, vector<2048x96xbf16>, vector<16x96xf32> -> vector<16x96xf32>
    %c1_167 = arith.constant 1 : index
    %c0_168 = arith.constant 0 : index
    %c0_169 = arith.constant 0 : index
    %421 = vector.load %arg10[%c1_167, %c0_168, %c0_169] : memref<2x1x96xf32, #tpu.memory_space<vmem>>, vector<1x1x96xf32>
    %422 = vector.shape_cast %421 : vector<1x1x96xf32> to vector<1x96xf32>
    %423 = vector.broadcast %422 : vector<1x96xf32> to vector<16x96xf32>
    %424 = arith.addf %420, %423 : vector<16x96xf32>
    %425 = arith.addf %408, %424 : vector<16x96xf32>
    %c1_170 = arith.constant 1 : index
    %c0_171 = arith.constant 0 : index
    %c0_172 = arith.constant 0 : index
    %426 = vector.load %arg11[%c1_170, %c0_171, %c0_172] : memref<2x1x96xf32, #tpu.memory_space<vmem>>, vector<1x1x96xf32>
    %427 = vector.shape_cast %426 : vector<1x1x96xf32> to vector<1x96xf32>
    %c1_173 = arith.constant 1 : index
    %c0_174 = arith.constant 0 : index
    %c0_175 = arith.constant 0 : index
    %428 = vector.load %arg12[%c1_173, %c0_174, %c0_175] : memref<2x1x96xf32, #tpu.memory_space<vmem>>, vector<1x1x96xf32>
    %429 = vector.shape_cast %428 : vector<1x1x96xf32> to vector<1x96xf32>
    %cst_176 = arith.constant dense<0.000000e+00> : vector<16xf32>
    %430 = vector.multi_reduction <add>, %425, %cst_176 [1] : vector<16x96xf32> to vector<16xf32>
    %431 = vector.shape_cast %430 : vector<16xf32> to vector<16x1xf32>
    %cst_177 = arith.constant 9.600000e+01 : f32
    %432 = vector.broadcast %cst_177 : f32 to vector<16x1xf32>
    %433 = arith.divf %431, %432 : vector<16x1xf32>
    %434 = vector.broadcast %433 : vector<16x1xf32> to vector<16x96xf32>
    %435 = arith.subf %425, %434 : vector<16x96xf32>
    %436 = arith.mulf %435, %435 : vector<16x96xf32>
    %cst_178 = arith.constant dense<0.000000e+00> : vector<16xf32>
    %437 = vector.multi_reduction <add>, %436, %cst_178 [1] : vector<16x96xf32> to vector<16xf32>
    %438 = vector.shape_cast %437 : vector<16xf32> to vector<16x1xf32>
    %cst_179 = arith.constant 9.600000e+01 : f32
    %439 = vector.broadcast %cst_179 : f32 to vector<16x1xf32>
    %440 = arith.divf %438, %439 : vector<16x1xf32>
    %441 = vector.broadcast %433 : vector<16x1xf32> to vector<16x96xf32>
    %442 = arith.subf %425, %441 : vector<16x96xf32>
    %cst_180 = arith.constant 9.99999974E-6 : f32
    %443 = vector.broadcast %cst_180 : f32 to vector<16x1xf32>
    %444 = arith.addf %440, %443 : vector<16x1xf32>
    %445 = math.rsqrt %444 : vector<16x1xf32>
    %446 = vector.broadcast %445 : vector<16x1xf32> to vector<16x96xf32>
    %447 = arith.mulf %442, %446 : vector<16x96xf32>
    %448 = vector.broadcast %427 : vector<1x96xf32> to vector<16x96xf32>
    %449 = arith.mulf %447, %448 : vector<16x96xf32>
    %450 = vector.broadcast %429 : vector<1x96xf32> to vector<16x96xf32>
    %451 = arith.addf %449, %450 : vector<16x96xf32>
    %c0_181 = arith.constant 0 : index
    %c0_182 = arith.constant 0 : index
    %452 = vector.load %arg13[%c0_181, %c0_182] : memref<96x5xf32, #tpu.memory_space<vmem>>, vector<96x5xf32>
    %cst_183 = arith.constant dense<0.000000e+00> : vector<16x5xf32>
    %453 = tpu.matmul %451, %452, %cst_183 {dimension_numbers = #tpu.dot_dimension_numbers<[1], [0], [0], [1], [0, 0, 1, 1], [], []>} : vector<16x96xf32>, vector<96x5xf32>, vector<16x5xf32> -> vector<16x5xf32>
    %c0_184 = arith.constant 0 : index
    %c0_185 = arith.constant 0 : index
    %454 = vector.load %arg14[%c0_184, %c0_185] : memref<1x5xf32, #tpu.memory_space<vmem>>, vector<1x5xf32>
    %455 = vector.broadcast %454 : vector<1x5xf32> to vector<16x5xf32>
    %456 = arith.addf %453, %455 : vector<16x5xf32>
    %cst_186 = arith.constant dense<0xFF800000> : vector<16xf32>
    %457 = vector.multi_reduction <maximumf>, %456, %cst_186 [1] : vector<16x5xf32> to vector<16xf32>
    %458 = vector.shape_cast %457 : vector<16xf32> to vector<16x1xf32>
    %459 = vector.broadcast %458 : vector<16x1xf32> to vector<16x5xf32>
    %460 = arith.subf %456, %459 : vector<16x5xf32>
    %461 = math.exp %460 : vector<16x5xf32>
    %cst_187 = arith.constant dense<0.000000e+00> : vector<16xf32>
    %462 = vector.multi_reduction <add>, %461, %cst_187 [1] : vector<16x5xf32> to vector<16xf32>
    %463 = vector.shape_cast %462 : vector<16xf32> to vector<16x1xf32>
    %464 = vector.broadcast %463 : vector<16x1xf32> to vector<16x5xf32>
    %465 = arith.divf %461, %464 : vector<16x5xf32>
    %c0_188 = arith.constant 0 : index
    %c0_189 = arith.constant 0 : index
    %466 = vector.load %arg15[%c0_188, %c0_189] : memref<16x5xf32, #tpu.memory_space<vmem>>, vector<16x5xf32>
    tpu.vector_store %arg15[%c0_188, %c0_189], %465 {strides = array<i32>} : memref<16x5xf32, #tpu.memory_space<vmem>>, vector<16x5xf32>,
    return
  }
}

</mosaic_0001>

<llo_original>
// kernel: model_forward.1
$region0: #{model_forward.1}
  #allocation0 [shape = 'u32[]', space=smem, size = 0x4, offset = 0x4, fixed_abs, tag = 'smem constant byte address 0x4 - core index']
  #allocation1 [shape = 'u32[144,128]{1,0:T(1,128)}', space=vmem, size = 0x12000, scoped, tag = 'internal scratch']
  %s0 = inlined_call_operand.vmem [shape: f32[16,96], index: 0, kind: input, shape index: {}]
  %s1 = inlined_call_operand.vmem [shape: bf16[2,96,288], index: 1, kind: input, shape index: {}]
  %s2 = inlined_call_operand.vmem [shape: f32[2,1,288], index: 2, kind: input, shape index: {}]
  %s3 = inlined_call_operand.vmem [shape: bf16[2,96,96], index: 3, kind: input, shape index: {}]
  %s4 = inlined_call_operand.vmem [shape: f32[2,1,96], index: 4, kind: input, shape index: {}]
  %s5 = inlined_call_operand.vmem [shape: f32[2,1,96], index: 5, kind: input, shape index: {}]
  %s6 = inlined_call_operand.vmem [shape: f32[2,1,96], index: 6, kind: input, shape index: {}]
  %s7 = inlined_call_operand.vmem [shape: bf16[2,96,2048], index: 7, kind: input, shape index: {}]
  %s8 = inlined_call_operand.vmem [shape: f32[2,1,2048], index: 8, kind: input, shape index: {}]
  %s9 = inlined_call_operand.vmem [shape: bf16[2,2048,96], index: 9, kind: input, shape index: {}]
  %s10 = inlined_call_operand.vmem [shape: f32[2,1,96], index: 10, kind: input, shape index: {}]
  %s11 = inlined_call_operand.vmem [shape: f32[2,1,96], index: 11, kind: input, shape index: {}]
  %s12 = inlined_call_operand.vmem [shape: f32[2,1,96], index: 12, kind: input, shape index: {}]
  %s13 = inlined_call_operand.vmem [shape: f32[96,5], index: 13, kind: input, shape index: {}]
  %s14 = inlined_call_operand.vmem [shape: f32[1,5], index: 14, kind: input, shape index: {}]
  %s15 = inlined_call_operand.vmem [shape: f32[16,5], index: 15, kind: output, shape index: {}]
  %s16 = sld [smem:[#allocation0]]
  $region70: #{model_forward.1} parent=0
    _
  %s18 = ssub.s32 1, %s16
  %s19 = scalar_select 0, %s18, %s16
  // Predicated region
  $region2: #{model_forward.1} parent=0 // pred_check
    _
  $region3: #{model_forward.1} parent=0 // pred_check_branch
    %21 = sbr.rel (0) target = $region5
  $region4: #{model_forward.1} parent=0 // pred_region
    _
  $region5: #{model_forward.1} parent=0 // pred_fallthru
    _
  // Predicated region
  $region6: #{model_forward.1} parent=0 // pred_check
    _
  $region7: #{model_forward.1} parent=0 // pred_check_branch
    %23 = sbr.rel (0) target = $region9
  $region8: #{model_forward.1} parent=0 // pred_region
    _
  $region9: #{model_forward.1} parent=0 // pred_fallthru
    _
  // Predicated region
  $region10: #{model_forward.1} parent=0 // pred_check
    _
  $region11: #{model_forward.1} parent=0 // pred_check_branch
    %25 = sbr.rel (0) target = $region13
  $region12: #{model_forward.1} parent=0 // pred_region
    _
  $region13: #{model_forward.1} parent=0 // pred_fallthru
    _
  // Predicated region
  $region14: #{model_forward.1} parent=0 // pred_check
    _
  $region15: #{model_forward.1} parent=0 // pred_check_branch
    %27 = sbr.rel (0) target = $region17
  $region16: #{model_forward.1} parent=0 // pred_region
    _
  $region17: #{model_forward.1} parent=0 // pred_fallthru
    _
  // Predicated region
  $region18: #{model_forward.1} parent=0 // pred_check
    _
  $region19: #{model_forward.1} parent=0 // pred_check_branch
    %29 = sbr.rel (0) target = $region21
  $region20: #{model_forward.1} parent=0 // pred_region
    _
  $region21: #{model_forward.1} parent=0 // pred_fallthru
    _
  // Predicated region
  $region22: #{model_forward.1} parent=0 // pred_check
    _
  $region23: #{model_forward.1} parent=0 // pred_check_branch
    %31 = sbr.rel (0) target = $region25
  $region24: #{model_forward.1} parent=0 // pred_region
    _
  $region25: #{model_forward.1} parent=0 // pred_fallthru
    _
  // Predicated region
  $region26: #{model_forward.1} parent=0 // pred_check
    _
  $region27: #{model_forward.1} parent=0 // pred_check_branch
    %33 = sbr.rel (0) target = $region29
  $region28: #{model_forward.1} parent=0 // pred_region
    _
  $region29: #{model_forward.1} parent=0 // pred_fallthru
    _
  // Predicated region
  $region30: #{model_forward.1} parent=0 // pred_check
    _
  $region31: #{model_forward.1} parent=0 // pred_check_branch
    %35 = sbr.rel (0) target = $region33
  $region32: #{model_forward.1} parent=0 // pred_region
    _
  $region33: #{model_forward.1} parent=0 // pred_fallthru
    _
  // Predicated region
  $region34: #{model_forward.1} parent=0 // pred_check
    _
  $region35: #{model_forward.1} parent=0 // pred_check_branch
    %37 = sbr.rel (0) target = $region37
  $region36: #{model_forward.1} parent=0 // pred_region
    _
  $region37: #{model_forward.1} parent=0 // pred_fallthru
    _
  // Predicated region
  $region38: #{model_forward.1} parent=0 // pred_check
    _
  $region39: #{model_forward.1} parent=0 // pred_check_branch
    %39 = sbr.rel (0) target = $region41
  $region40: #{model_forward.1} parent=0 // pred_region
    _
  $region41: #{model_forward.1} parent=0 // pred_fallthru
    _
  // Predicated region
  $region42: #{model_forward.1} parent=0 // pred_check
    _
  $region43: #{model_forward.1} parent=0 // pred_check_branch
    %41 = sbr.rel (0) target = $region45
  $region44: #{model_forward.1} parent=0 // pred_region
    _
  $region45: #{model_forward.1} parent=0 // pred_fallthru
    _
  // Predicated region
  $region46: #{model_forward.1} parent=0 // pred_check
    _
  $region47: #{model_forward.1} parent=0 // pred_check_branch
    %43 = sbr.rel (0) target = $region49
  $region48: #{model_forward.1} parent=0 // pred_region
    _
  $region49: #{model_forward.1} parent=0 // pred_fallthru
    _
  // Predicated region
  $region50: #{model_forward.1} parent=0 // pred_check
    _
  $region51: #{model_forward.1} parent=0 // pred_check_branch
    %45 = sbr.rel (0) target = $region53
  $region52: #{model_forward.1} parent=0 // pred_region
    _
  $region53: #{model_forward.1} parent=0 // pred_fallthru
    _
  // Predicated region
  $region54: #{model_forward.1} parent=0 // pred_check
    _
  $region55: #{model_forward.1} parent=0 // pred_check_branch
    %47 = sbr.rel (0) target = $region57
  $region56: #{model_forward.1} parent=0 // pred_region
    _
  $region57: #{model_forward.1} parent=0 // pred_fallthru
    _
  // Predicated region
  $region58: #{model_forward.1} parent=0 // pred_check
    _
  $region59: #{model_forward.1} parent=0 // pred_check_branch
    %49 = sbr.rel (0) target = $region61
  $region60: #{model_forward.1} parent=0 // pred_region
    _
  $region61: #{model_forward.1} parent=0 // pred_fallthru
    _
  %v51 = vld [vmem:[%s0] sm:$0xff]
  %v52 = vld [vmem:[%s0 + $0x8] sm:$0xff]
  %v53 = vlaneseq
  %v54 = vshrl.u32 %v53, 7
  %v55 = vlaneseq
  %v56 = vand.u32 %v55, 127
  %vm57 = vcmp.ge.s32.totalorder %v54, %v56
  %v58 = vsel %vm57, 1, 0
  %v59 = vcvt.s32.f32 %v58
  %v60 = vld [vmem:[%s1] sm:$0xff]
  %v61 = vld [vmem:[%s1 + $0x8] sm:$0xf]
  %v62 = vld [vmem:[%s1 + $0xc] sm:$0xff]
  %v63 = vld [vmem:[%s1 + $0x14] sm:$0xf]
  %v64 = vld [vmem:[%s1 + $0x18] sm:$0xff]
  %v65 = vld [vmem:[%s1 + $0x20] sm:$0xf]
  %v66 = vld [vmem:[%s1 + $0x24] sm:$0xff]
  %v67 = vld [vmem:[%s1 + $0x2c] sm:$0xf]
  %v68 = vld [vmem:[%s1 + $0x30] sm:$0xff]
  %v69 = vld [vmem:[%s1 + $0x38] sm:$0xf]
  %v70 = vld [vmem:[%s1 + $0x3c] sm:$0xff]
  %v71 = vld [vmem:[%s1 + $0x44] sm:$0xf]
  %v72 = vld [vmem:[%s1 + $0x48] sm:$0xff]
  %v73 = vld [vmem:[%s1 + $0x50] sm:$0xf]
  %v74 = vld [vmem:[%s1 + $0x54] sm:$0xff]
  %v75 = vld [vmem:[%s1 + $0x5c] sm:$0xf]
  %v76 = vld [vmem:[%s1 + $0x60] sm:$0xff]
  %v77 = vld [vmem:[%s1 + $0x68] sm:$0xf]
  %v78 = vld [vmem:[%s1 + $0x6c] sm:$0xff]
  %v79 = vld [vmem:[%s1 + $0x74] sm:$0xf]
  %v80 = vld [vmem:[%s1 + $0x78] sm:$0xff]
  %v81 = vld [vmem:[%s1 + $0x80] sm:$0xf]
  %v82 = vld [vmem:[%s1 + $0x84] sm:$0xff]
  %v83 = vld [vmem:[%s1 + $0x8c] sm:$0xf]
  %v84 = vld [vmem:[%s2] sm:$0x7]
  %v86 = vlaneseq
  %v87 = vshrl.u32 %v86, 7
  %v88 = vsub.s32 0, %v87
  %v89 = vrot.slane %v84, %v88
  %v90 = vlaneseq
  %v91 = vshrl.u32 %v90, 7
  %v92 = vsub.s32 1, %v91
  %v93 = vrot.slane %v84, %v92
  %v94 = vlaneseq
  %v95 = vshrl.u32 %v94, 7
  %v96 = vsub.s32 2, %v95
  %v97 = vrot.slane %v84, %v96
  %v125 = vunpack.c.l.b16 %v60
  %v126 = vunpack.c.h.b16 %v60
  %v127 = vunpack.c.l.b16 %v61
  %v128 = vunpack.c.l.b16 %v62
  %v129 = vunpack.c.h.b16 %v62
  %v130 = vunpack.c.l.b16 %v63
  %v131 = vunpack.c.l.b16 %v64
  %v132 = vunpack.c.h.b16 %v64
  %v133 = vunpack.c.l.b16 %v65
  %v134 = vunpack.c.l.b16 %v66
  %v135 = vunpack.c.h.b16 %v66
  %v136 = vunpack.c.l.b16 %v67
  %v137 = vunpack.c.l.b16 %v68
  %v138 = vunpack.c.h.b16 %v68
  %v139 = vunpack.c.l.b16 %v69
  %v140 = vunpack.c.l.b16 %v70
  %v141 = vunpack.c.h.b16 %v70
  %v142 = vunpack.c.l.b16 %v71
  %v143 = vunpack.c.l.b16 %v72
  %v144 = vunpack.c.h.b16 %v72
  %v145 = vunpack.c.l.b16 %v73
  %v146 = vunpack.c.l.b16 %v74
  %v147 = vunpack.c.h.b16 %v74
  %v148 = vunpack.c.l.b16 %v75
  %v149 = vunpack.c.l.b16 %v76
  %v150 = vunpack.c.h.b16 %v76
  %v151 = vunpack.c.l.b16 %v77
  %v152 = vunpack.c.l.b16 %v78
  %v153 = vunpack.c.h.b16 %v78
  %v154 = vunpack.c.l.b16 %v79
  %v155 = vunpack.c.l.b16 %v80
  %v156 = vunpack.c.h.b16 %v80
  %v157 = vunpack.c.l.b16 %v81
  %v158 = vunpack.c.l.b16 %v82
  %v159 = vunpack.c.h.b16 %v82
  %v160 = vunpack.c.l.b16 %v83
  %v161 = vpack.c.b16 %v128, %v125
  %v162 = vpack.c.b16 %v129, %v126
  %v163 = vpack.c.b16 %v130, %v127
  %v164 = vpack.c.b16 %v134, %v131
  %v165 = vpack.c.b16 %v135, %v132
  %v166 = vpack.c.b16 %v136, %v133
  %v167 = vpack.c.b16 %v140, %v137
  %v168 = vpack.c.b16 %v141, %v138
  %v169 = vpack.c.b16 %v142, %v139
  %v170 = vpack.c.b16 %v146, %v143
  %v171 = vpack.c.b16 %v147, %v144
  %v172 = vpack.c.b16 %v148, %v145
  %v173 = vpack.c.b16 %v152, %v149
  %v174 = vpack.c.b16 %v153, %v150
  %v175 = vpack.c.b16 %v154, %v151
  %v176 = vpack.c.b16 %v158, %v155
  %v177 = vpack.c.b16 %v159, %v156
  %v178 = vpack.c.b16 %v160, %v157
  %vm197 = vcmask 785408
  %v199 = vsel %vm197, %v51, 0
  %v202 = vsel %vm197, %v52, 0
  %204 = vmatprep.subr.bf16.mxu0 %v162
  %205 = vmatpush1.bf16.msra.mxu0 %v161
  %206 = vmatprep.subr.bf16.mxu0 %v165
  %207 = vmatpush1.bf16.msra.mxu0 %v164
  %208 = vmatprep.subr.bf16.mxu0 %v168
  %209 = vmatpush1.bf16.msra.mxu0 %v167
  %210 = vmatprep.subr.bf16.mxu0 %v171
  %211 = vmatpush1.bf16.msra.mxu0 %v170
  %212 = vmatprep.subr.bf16.mxu0 %v174
  %213 = vmatpush1.bf16.msra.mxu0 %v173
  %214 = vmatprep.subr.bf16.mxu0 %v177
  %215 = vmatpush1.bf16.msra.mxu0 %v176
  %216 = vmatprep.subr.bf16.mxu0 0
  %217 = vmatpush1.bf16.msra.mxu0 0
  %218 = vmatprep.subr.bf16.mxu0 0
  %219 = vmatpush1.bf16.msra.mxu0 0
  %220 = vmatprep.subr.bf16.mxu0 0
  %221 = vmatpush1.bf16.msra.mxu0 0
  %222 = vmatprep.subr.bf16.mxu0 0
  %223 = vmatpush1.bf16.msra.mxu0 0
  %224 = vmatprep.subr.bf16.mxu0 0
  %225 = vmatpush1.bf16.msra.mxu0 0
  %226 = vmatprep.subr.bf16.mxu0 0
  %227 = vmatpush1.bf16.msra.mxu0 0
  %228 = vmatprep.subr.bf16.mxu0 0
  %229 = vmatpush1.bf16.msra.mxu0 0
  %230 = vmatprep.subr.bf16.mxu0 0
  %231 = vmatpush1.bf16.msra.mxu0 0
  %232 = vmatprep.subr.bf16.mxu0 0
  %233 = vmatpush1.bf16.msra.mxu0 0
  %234 = vmatprep.subr.bf16.mxu0 0
  %235 = vmatpush1.bf16.msra.mxu0 0
  %236 = vmatprep.mubr.f32.mxu0 0.0
  %237 = vmatmul.mubr.f32.gmra.mrb[0].mxu0 %v199
  %v238 = vpop.f32.mrb[0].mxu0
  %v239 = vadd.f32 %v89, %v238
  %v240 = vpop.f32.mrb[0].mxu0
  %v241 = vadd.f32 %v93, %v240
  %242 = vmatprep.mubr.f32.mxu0 0.0
  %243 = vmatmul.mubr.f32.gmra.mrb[0].mxu0 %v202
  %v244 = vpop.f32.mrb[0].mxu0
  %v245 = vadd.f32 %v89, %v244
  %v246 = vpop.f32.mrb[0].mxu0
  %v247 = vadd.f32 %v93, %v246
  %248 = vdwg.mxu0
  %249 = vmatprep.subr.bf16.mxu0 0
  %250 = vmatpush1.bf16.msra.mxu0 %v163
  %251 = vmatprep.subr.bf16.mxu0 0
  %252 = vmatpush1.bf16.msra.mxu0 %v166
  %253 = vmatprep.subr.bf16.mxu0 0
  %254 = vmatpush1.bf16.msra.mxu0 %v169
  %255 = vmatprep.subr.bf16.mxu0 0
  %256 = vmatpush1.bf16.msra.mxu0 %v172
  %257 = vmatprep.subr.bf16.mxu0 0
  %258 = vmatpush1.bf16.msra.mxu0 %v175
  %259 = vmatprep.subr.bf16.mxu0 0
  %260 = vmatpush1.bf16.msra.mxu0 %v178
  %261 = vmatprep.subr.bf16.mxu0 0
  %262 = vmatpush1.bf16.msra.mxu0 0
  %263 = vmatprep.subr.bf16.mxu0 0
  %264 = vmatpush1.bf16.msra.mxu0 0
  %265 = vmatprep.subr.bf16.mxu0 0
  %266 = vmatpush1.bf16.msra.mxu0 0
  %267 = vmatprep.subr.bf16.mxu0 0
  %268 = vmatpush1.bf16.msra.mxu0 0
  %269 = vmatprep.subr.bf16.mxu0 0
  %270 = vmatpush1.bf16.msra.mxu0 0
  %271 = vmatprep.subr.bf16.mxu0 0
  %272 = vmatpush1.bf16.msra.mxu0 0
  %273 = vmatprep.subr.bf16.mxu0 0
  %274 = vmatpush1.bf16.msra.mxu0 0
  %275 = vmatprep.subr.bf16.mxu0 0
  %276 = vmatpush1.bf16.msra.mxu0 0
  %277 = vmatprep.subr.bf16.mxu0 0
  %278 = vmatpush1.bf16.msra.mxu0 0
  %279 = vmatprep.subr.bf16.mxu0 0
  %280 = vmatpush1.bf16.msra.mxu0 0
  %281 = vmatprep.mubr.f32.mxu0 0.0
  %282 = vmatmul.mubr.f32.gmra.mrb[0].mxu0 %v199
  %v283 = vpop.f32.mrb[0].mxu0
  %v284 = vadd.f32 %v97, %v283
  %v285 = vpop.f32.mrb[0].mxu0
  %286 = vmatprep.mubr.f32.mxu0 0.0
  %287 = vmatmul.mubr.f32.gmra.mrb[0].mxu0 %v202
  %v288 = vpop.f32.mrb[0].mxu0
  %v289 = vadd.f32 %v97, %v288
  %v290 = vpop.f32.mrb[0].mxu0
  %291 = vdwg.mxu0
  %v292 = vmul.f32 %v239, 0.20412415
  %294 = vrot.lane.b32.xlu0 %v239, 32
  %v295 = vpop.permute.xlu0 %294
  %vm296 = vcmask 195584
  %v298 = vsel %vm296, %v292, 0
  %v300 = vsel %vm296, %v295, 0
  %302 = vmatprep.subr.mxu0 0.0
  %303 = vmatpush1.xpose.msra.mxu0 %v300
  %304 = vmatprep.subr.mxu0 0.0
  %305 = vmatpush1.xpose.msra.mxu0 0.0
  %306 = vmatprep.subr.mxu0 0.0
  %307 = vmatpush1.xpose.msra.mxu0 0.0
  %308 = vmatprep.subr.mxu0 0.0
  %309 = vmatpush1.xpose.msra.mxu0 0.0
  %310 = vmatprep.subr.mxu0 0.0
  %311 = vmatpush1.xpose.msra.mxu0 0.0
  %312 = vmatprep.subr.mxu0 0.0
  %313 = vmatpush1.xpose.msra.mxu0 0.0
  %314 = vmatprep.subr.mxu0 0.0
  %315 = vmatpush1.xpose.msra.mxu0 0.0
  %316 = vmatprep.subr.mxu0 0.0
  %317 = vmatpush1.xpose.msra.mxu0 0.0
  %318 = vmatprep.subr.mxu0 0.0
  %319 = vmatpush1.xpose.msra.mxu0 0.0
  %320 = vmatprep.subr.mxu0 0.0
  %321 = vmatpush1.xpose.msra.mxu0 0.0
  %322 = vmatprep.subr.mxu0 0.0
  %323 = vmatpush1.xpose.msra.mxu0 0.0
  %324 = vmatprep.subr.mxu0 0.0
  %325 = vmatpush1.xpose.msra.mxu0 0.0
  %326 = vmatprep.subr.mxu0 0.0
  %327 = vmatpush1.xpose.msra.mxu0 0.0
  %328 = vmatprep.subr.mxu0 0.0
  %329 = vmatpush1.xpose.msra.mxu0 0.0
  %330 = vmatprep.subr.mxu0 0.0
  %331 = vmatpush1.xpose.msra.mxu0 0.0
  %332 = vmatprep.subr.mxu0 0.0
  %333 = vmatpush1.xpose.msra.mxu0 0.0
  %334 = vmatprep.subr.mxu0 0.0
  %335 = vmatpush1.xpose.msra.mxu0 0.0
  %336 = vmatprep.subr.mxu0 0.0
  %337 = vmatpush1.xpose.msra.mxu0 0.0
  %338 = vmatprep.subr.mxu0 0.0
  %339 = vmatpush1.xpose.msra.mxu0 0.0
  %340 = vmatprep.subr.mxu0 0.0
  %341 = vmatpush1.xpose.msra.mxu0 0.0
  %342 = vmatprep.subr.mxu0 0.0
  %343 = vmatpush1.xpose.msra.mxu0 0.0
  %344 = vmatprep.subr.mxu0 0.0
  %345 = vmatpush1.xpose.msra.mxu0 0.0
  %346 = vmatprep.subr.mxu0 0.0
  %347 = vmatpush1.xpose.msra.mxu0 0.0
  %348 = vmatprep.subr.mxu0 0.0
  %349 = vmatpush1.xpose.msra.mxu0 0.0
  %350 = vmatprep.subr.mxu0 0.0
  %351 = vmatpush1.xpose.msra.mxu0 0.0
  %352 = vmatprep.subr.mxu0 0.0
  %353 = vmatpush1.xpose.msra.mxu0 0.0
  %354 = vmatprep.subr.mxu0 0.0
  %355 = vmatpush1.xpose.msra.mxu0 0.0
  %356 = vmatprep.subr.mxu0 0.0
  %357 = vmatpush1.xpose.msra.mxu0 0.0
  %358 = vmatprep.subr.mxu0 0.0
  %359 = vmatpush1.xpose.msra.mxu0 0.0
  %360 = vmatprep.subr.mxu0 0.0
  %361 = vmatpush1.xpose.msra.mxu0 0.0
  %362 = vmatprep.subr.mxu0 0.0
  %363 = vmatpush1.xpose.msra.mxu0 0.0
  %364 = vmatprep.subr.mxu0 0.0
  %365 = vmatpush1.xpose.msra.mxu0 0.0
  %366 = vmatprep.mubr.f32.mxu0 0.0
  %367 = vmatmul.mubr.f32.gmra.mrb[0].mxu0 %v298
  %v368 = vpop.f32.mrb[0].mxu0
  %v369 = vadd.f32 %v59, %v368
  %v370 = vpop.f32.mrb[0].mxu0
  %371 = vdwg.mxu0
  %vm372 = vcmask 64512
  %v373 = vsel %vm372, %v369, -inf
  %374 = vmax.xlane.f32.xlu0 %v373
  %v375 = vpop.xlane.xlu0 %374
  %v376 = vsub.f32 %v369, %v375
  %v377 = vmul.f32 %v376, 1.442695
  %v378 = vpow.pop %v377
  %v379 = vsel %vm372, %v378, 0.0
  %380 = vadd.xlane.f32.xlu0 %v379
  %v381 = vpop.xlane.xlu0 %380
  %v382 = vrcp.pop %v381
  %v383 = vmul.f32 %v378, %v382
  %385 = vrot.lane.b32.xlu0 %v241, 64
  %v386 = vpop.permute.xlu0 %385
  %v389 = vsel %vm372, %v383, 0
  %391 = vmatprep.subr.mxu0 0.0
  %392 = vmatpush1.msra.mxu0 %v386
  %393 = vmatprep.subr.mxu0 0.0
  %394 = vmatpush1.msra.mxu0 0.0
  %395 = vmatprep.subr.mxu0 0.0
  %396 = vmatpush1.msra.mxu0 0.0
  %397 = vmatprep.subr.mxu0 0.0
  %398 = vmatpush1.msra.mxu0 0.0
  %399 = vmatprep.subr.mxu0 0.0
  %400 = vmatpush1.msra.mxu0 0.0
  %401 = vmatprep.subr.mxu0 0.0
  %402 = vmatpush1.msra.mxu0 0.0
  %403 = vmatprep.subr.mxu0 0.0
  %404 = vmatpush1.msra.mxu0 0.0
  %405 = vmatprep.subr.mxu0 0.0
  %406 = vmatpush1.msra.mxu0 0.0
  %407 = vmatprep.subr.mxu0 0.0
  %408 = vmatpush1.msra.mxu0 0.0
  %409 = vmatprep.subr.mxu0 0.0
  %410 = vmatpush1.msra.mxu0 0.0
  %411 = vmatprep.subr.mxu0 0.0
  %412 = vmatpush1.msra.mxu0 0.0
  %413 = vmatprep.subr.mxu0 0.0
  %414 = vmatpush1.msra.mxu0 0.0
  %415 = vmatprep.subr.mxu0 0.0
  %416 = vmatpush1.msra.mxu0 0.0
  %417 = vmatprep.subr.mxu0 0.0
  %418 = vmatpush1.msra.mxu0 0.0
  %419 = vmatprep.subr.mxu0 0.0
  %420 = vmatpush1.msra.mxu0 0.0
  %421 = vmatprep.subr.mxu0 0.0
  %422 = vmatpush1.msra.mxu0 0.0
  %423 = vmatprep.subr.mxu0 0.0
  %424 = vmatpush1.msra.mxu0 0.0
  %425 = vmatprep.subr.mxu0 0.0
  %426 = vmatpush1.msra.mxu0 0.0
  %427 = vmatprep.subr.mxu0 0.0
  %428 = vmatpush1.msra.mxu0 0.0
  %429 = vmatprep.subr.mxu0 0.0
  %430 = vmatpush1.msra.mxu0 0.0
  %431 = vmatprep.subr.mxu0 0.0
  %432 = vmatpush1.msra.mxu0 0.0
  %433 = vmatprep.subr.mxu0 0.0
  %434 = vmatpush1.msra.mxu0 0.0
  %435 = vmatprep.subr.mxu0 0.0
  %436 = vmatpush1.msra.mxu0 0.0
  %437 = vmatprep.subr.mxu0 0.0
  %438 = vmatpush1.msra.mxu0 0.0
  %439 = vmatprep.subr.mxu0 0.0
  %440 = vmatpush1.msra.mxu0 0.0
  %441 = vmatprep.subr.mxu0 0.0
  %442 = vmatpush1.msra.mxu0 0.0
  %443 = vmatprep.subr.mxu0 0.0
  %444 = vmatpush1.msra.mxu0 0.0
  %445 = vmatprep.subr.mxu0 0.0
  %446 = vmatpush1.msra.mxu0 0.0
  %447 = vmatprep.subr.mxu0 0.0
  %448 = vmatpush1.msra.mxu0 0.0
  %449 = vmatprep.subr.mxu0 0.0
  %450 = vmatpush1.msra.mxu0 0.0
  %451 = vmatprep.subr.mxu0 0.0
  %452 = vmatpush1.msra.mxu0 0.0
  %453 = vmatprep.subr.mxu0 0.0
  %454 = vmatpush1.msra.mxu0 0.0
  %455 = vmatprep.mubr.f32.mxu0 0.0
  %456 = vmatmul.mubr.f32.gmra.mrb[0].mxu0 %v389
  %v457 = vpop.f32.mrb[0].mxu0
  %v458 = vadd.f32 0.0, %v457
  %v459 = vpop.f32.mrb[0].mxu0
  %460 = vdwg.mxu0
  %461 = vrot.lane.b32.xlu0 %v292, 104
  %v462 = vpop.permute.xlu0 %461
  %463 = vrot.lane.b32.xlu0 %v239, 8
  %v464 = vpop.permute.xlu0 %463
  %465 = vrot.lane.b32.xlu0 %v241, 8
  %v466 = vpop.permute.xlu0 %465
  %v467 = vsel %vm372, %v464, %v466
  %v468 = vsel %vm296, %v462, 0
  %v470 = vsel %vm296, %v467, 0
  %472 = vmatprep.subr.mxu0 0.0
  %473 = vmatpush1.xpose.msra.mxu0 %v470
  %474 = vmatprep.subr.mxu0 0.0
  %475 = vmatpush1.xpose.msra.mxu0 0.0
  %476 = vmatprep.subr.mxu0 0.0
  %477 = vmatpush1.xpose.msra.mxu0 0.0
  %478 = vmatprep.subr.mxu0 0.0
  %479 = vmatpush1.xpose.msra.mxu0 0.0
  %480 = vmatprep.subr.mxu0 0.0
  %481 = vmatpush1.xpose.msra.mxu0 0.0
  %482 = vmatprep.subr.mxu0 0.0
  %483 = vmatpush1.xpose.msra.mxu0 0.0
  %484 = vmatprep.subr.mxu0 0.0
  %485 = vmatpush1.xpose.msra.mxu0 0.0
  %486 = vmatprep.subr.mxu0 0.0
  %487 = vmatpush1.xpose.msra.mxu0 0.0
  %488 = vmatprep.subr.mxu0 0.0
  %489 = vmatpush1.xpose.msra.mxu0 0.0
  %490 = vmatprep.subr.mxu0 0.0
  %491 = vmatpush1.xpose.msra.mxu0 0.0
  %492 = vmatprep.subr.mxu0 0.0
  %493 = vmatpush1.xpose.msra.mxu0 0.0
  %494 = vmatprep.subr.mxu0 0.0
  %495 = vmatpush1.xpose.msra.mxu0 0.0
  %496 = vmatprep.subr.mxu0 0.0
  %497 = vmatpush1.xpose.msra.mxu0 0.0
  %498 = vmatprep.subr.mxu0 0.0
  %499 = vmatpush1.xpose.msra.mxu0 0.0
  %500 = vmatprep.subr.mxu0 0.0
  %501 = vmatpush1.xpose.msra.mxu0 0.0
  %502 = vmatprep.subr.mxu0 0.0
  %503 = vmatpush1.xpose.msra.mxu0 0.0
  %504 = vmatprep.subr.mxu0 0.0
  %505 = vmatpush1.xpose.msra.mxu0 0.0
  %506 = vmatprep.subr.mxu0 0.0
  %507 = vmatpush1.xpose.msra.mxu0 0.0
  %508 = vmatprep.subr.mxu0 0.0
  %509 = vmatpush1.xpose.msra.mxu0 0.0
  %510 = vmatprep.subr.mxu0 0.0
  %511 = vmatpush1.xpose.msra.mxu0 0.0
  %512 = vmatprep.subr.mxu0 0.0
  %513 = vmatpush1.xpose.msra.mxu0 0.0
  %514 = vmatprep.subr.mxu0 0.0
  %515 = vmatpush1.xpose.msra.mxu0 0.0
  %516 = vmatprep.subr.mxu0 0.0
  %517 = vmatpush1.xpose.msra.mxu0 0.0
  %518 = vmatprep.subr.mxu0 0.0
  %519 = vmatpush1.xpose.msra.mxu0 0.0
  %520 = vmatprep.subr.mxu0 0.0
  %521 = vmatpush1.xpose.msra.mxu0 0.0
  %522 = vmatprep.subr.mxu0 0.0
  %523 = vmatpush1.xpose.msra.mxu0 0.0
  %524 = vmatprep.subr.mxu0 0.0
  %525 = vmatpush1.xpose.msra.mxu0 0.0
  %526 = vmatprep.subr.mxu0 0.0
  %527 = vmatpush1.xpose.msra.mxu0 0.0
  %528 = vmatprep.subr.mxu0 0.0
  %529 = vmatpush1.xpose.msra.mxu0 0.0
  %530 = vmatprep.subr.mxu0 0.0
  %531 = vmatpush1.xpose.msra.mxu0 0.0
  %532 = vmatprep.subr.mxu0 0.0
  %533 = vmatpush1.xpose.msra.mxu0 0.0
  %534 = vmatprep.subr.mxu0 0.0
  %535 = vmatpush1.xpose.msra.mxu0 0.0
  %536 = vmatprep.mubr.f32.mxu0 0.0
  %537 = vmatmul.mubr.f32.gmra.mrb[0].mxu0 %v468
  %v538 = vpop.f32.mrb[0].mxu0
  %v539 = vadd.f32 %v59, %v538
  %v540 = vpop.f32.mrb[0].mxu0
  %541 = vdwg.mxu0
  %v542 = vsel %vm372, %v539, -inf
  %543 = vmax.xlane.f32.xlu0 %v542
  %v544 = vpop.xlane.xlu0 %543
  %v545 = vsub.f32 %v539, %v544
  %v546 = vmul.f32 %v545, 1.442695
  %v547 = vpow.pop %v546
  %v548 = vsel %vm372, %v547, 0.0
  %549 = vadd.xlane.f32.xlu0 %v548
  %v550 = vpop.xlane.xlu0 %549
  %v551 = vrcp.pop %v550
  %v552 = vmul.f32 %v547, %v551
  %553 = vrot.lane.b32.xlu0 %v241, 40
  %v554 = vpop.permute.xlu0 %553
  %v557 = vsel %vm372, %v552, 0
  %559 = vmatprep.subr.mxu0 0.0
  %560 = vmatpush1.msra.mxu0 %v554
  %561 = vmatprep.subr.mxu0 0.0
  %562 = vmatpush1.msra.mxu0 0.0
  %563 = vmatprep.subr.mxu0 0.0
  %564 = vmatpush1.msra.mxu0 0.0
  %565 = vmatprep.subr.mxu0 0.0
  %566 = vmatpush1.msra.mxu0 0.0
  %567 = vmatprep.subr.mxu0 0.0
  %568 = vmatpush1.msra.mxu0 0.0
  %569 = vmatprep.subr.mxu0 0.0
  %570 = vmatpush1.msra.mxu0 0.0
  %571 = vmatprep.subr.mxu0 0.0
  %572 = vmatpush1.msra.mxu0 0.0
  %573 = vmatprep.subr.mxu0 0.0
  %574 = vmatpush1.msra.mxu0 0.0
  %575 = vmatprep.subr.mxu0 0.0
  %576 = vmatpush1.msra.mxu0 0.0
  %577 = vmatprep.subr.mxu0 0.0
  %578 = vmatpush1.msra.mxu0 0.0
  %579 = vmatprep.subr.mxu0 0.0
  %580 = vmatpush1.msra.mxu0 0.0
  %581 = vmatprep.subr.mxu0 0.0
  %582 = vmatpush1.msra.mxu0 0.0
  %583 = vmatprep.subr.mxu0 0.0
  %584 = vmatpush1.msra.mxu0 0.0
  %585 = vmatprep.subr.mxu0 0.0
  %586 = vmatpush1.msra.mxu0 0.0
  %587 = vmatprep.subr.mxu0 0.0
  %588 = vmatpush1.msra.mxu0 0.0
  %589 = vmatprep.subr.mxu0 0.0
  %590 = vmatpush1.msra.mxu0 0.0
  %591 = vmatprep.subr.mxu0 0.0
  %592 = vmatpush1.msra.mxu0 0.0
  %593 = vmatprep.subr.mxu0 0.0
  %594 = vmatpush1.msra.mxu0 0.0
  %595 = vmatprep.subr.mxu0 0.0
  %596 = vmatpush1.msra.mxu0 0.0
  %597 = vmatprep.subr.mxu0 0.0
  %598 = vmatpush1.msra.mxu0 0.0
  %599 = vmatprep.subr.mxu0 0.0
  %600 = vmatpush1.msra.mxu0 0.0
  %601 = vmatprep.subr.mxu0 0.0
  %602 = vmatpush1.msra.mxu0 0.0
  %603 = vmatprep.subr.mxu0 0.0
  %604 = vmatpush1.msra.mxu0 0.0
  %605 = vmatprep.subr.mxu0 0.0
  %606 = vmatpush1.msra.mxu0 0.0
  %607 = vmatprep.subr.mxu0 0.0
  %608 = vmatpush1.msra.mxu0 0.0
  %609 = vmatprep.subr.mxu0 0.0
  %610 = vmatpush1.msra.mxu0 0.0
  %611 = vmatprep.subr.mxu0 0.0
  %612 = vmatpush1.msra.mxu0 0.0
  %613 = vmatprep.subr.mxu0 0.0
  %614 = vmatpush1.msra.mxu0 0.0
  %615 = vmatprep.subr.mxu0 0.0
  %616 = vmatpush1.msra.mxu0 0.0
  %617 = vmatprep.subr.mxu0 0.0
  %618 = vmatpush1.msra.mxu0 0.0
  %619 = vmatprep.subr.mxu0 0.0
  %620 = vmatpush1.msra.mxu0 0.0
  %621 = vmatprep.subr.mxu0 0.0
  %622 = vmatpush1.msra.mxu0 0.0
  %623 = vmatprep.mubr.f32.mxu0 0.0
  %624 = vmatmul.mubr.f32.gmra.mrb[0].mxu0 %v557
  %v625 = vpop.f32.mrb[0].mxu0
  %v626 = vadd.f32 0.0, %v625
  %v627 = vpop.f32.mrb[0].mxu0
  %628 = vdwg.mxu0
  %629 = vrot.lane.b32.xlu0 %v292, 80
  %v630 = vpop.permute.xlu0 %629
  %631 = vrot.lane.b32.xlu0 %v241, 112
  %v632 = vpop.permute.xlu0 %631
  %v633 = vsel %vm296, %v630, 0
  %v635 = vsel %vm296, %v632, 0
  %637 = vmatprep.subr.mxu0 0.0
  %638 = vmatpush1.xpose.msra.mxu0 %v635
  %639 = vmatprep.subr.mxu0 0.0
  %640 = vmatpush1.xpose.msra.mxu0 0.0
  %641 = vmatprep.subr.mxu0 0.0
  %642 = vmatpush1.xpose.msra.mxu0 0.0
  %643 = vmatprep.subr.mxu0 0.0
  %644 = vmatpush1.xpose.msra.mxu0 0.0
  %645 = vmatprep.subr.mxu0 0.0
  %646 = vmatpush1.xpose.msra.mxu0 0.0
  %647 = vmatprep.subr.mxu0 0.0
  %648 = vmatpush1.xpose.msra.mxu0 0.0
  %649 = vmatprep.subr.mxu0 0.0
  %650 = vmatpush1.xpose.msra.mxu0 0.0
  %651 = vmatprep.subr.mxu0 0.0
  %652 = vmatpush1.xpose.msra.mxu0 0.0
  %653 = vmatprep.subr.mxu0 0.0
  %654 = vmatpush1.xpose.msra.mxu0 0.0
  %655 = vmatprep.subr.mxu0 0.0
  %656 = vmatpush1.xpose.msra.mxu0 0.0
  %657 = vmatprep.subr.mxu0 0.0
  %658 = vmatpush1.xpose.msra.mxu0 0.0
  %659 = vmatprep.subr.mxu0 0.0
  %660 = vmatpush1.xpose.msra.mxu0 0.0
  %661 = vmatprep.subr.mxu0 0.0
  %662 = vmatpush1.xpose.msra.mxu0 0.0
  %663 = vmatprep.subr.mxu0 0.0
  %664 = vmatpush1.xpose.msra.mxu0 0.0
  %665 = vmatprep.subr.mxu0 0.0
  %666 = vmatpush1.xpose.msra.mxu0 0.0
  %667 = vmatprep.subr.mxu0 0.0
  %668 = vmatpush1.xpose.msra.mxu0 0.0
  %669 = vmatprep.subr.mxu0 0.0
  %670 = vmatpush1.xpose.msra.mxu0 0.0
  %671 = vmatprep.subr.mxu0 0.0
  %672 = vmatpush1.xpose.msra.mxu0 0.0
  %673 = vmatprep.subr.mxu0 0.0
  %674 = vmatpush1.xpose.msra.mxu0 0.0
  %675 = vmatprep.subr.mxu0 0.0
  %676 = vmatpush1.xpose.msra.mxu0 0.0
  %677 = vmatprep.subr.mxu0 0.0
  %678 = vmatpush1.xpose.msra.mxu0 0.0
  %679 = vmatprep.subr.mxu0 0.0
  %680 = vmatpush1.xpose.msra.mxu0 0.0
  %681 = vmatprep.subr.mxu0 0.0
  %682 = vmatpush1.xpose.msra.mxu0 0.0
  %683 = vmatprep.subr.mxu0 0.0
  %684 = vmatpush1.xpose.msra.mxu0 0.0
  %685 = vmatprep.subr.mxu0 0.0
  %686 = vmatpush1.xpose.msra.mxu0 0.0
  %687 = vmatprep.subr.mxu0 0.0
  %688 = vmatpush1.xpose.msra.mxu0 0.0
  %689 = vmatprep.subr.mxu0 0.0
  %690 = vmatpush1.xpose.msra.mxu0 0.0
  %691 = vmatprep.subr.mxu0 0.0
  %692 = vmatpush1.xpose.msra.mxu0 0.0
  %693 = vmatprep.subr.mxu0 0.0
  %694 = vmatpush1.xpose.msra.mxu0 0.0
  %695 = vmatprep.subr.mxu0 0.0
  %696 = vmatpush1.xpose.msra.mxu0 0.0
  %697 = vmatprep.subr.mxu0 0.0
  %698 = vmatpush1.xpose.msra.mxu0 0.0
  %699 = vmatprep.subr.mxu0 0.0
  %700 = vmatpush1.xpose.msra.mxu0 0.0
  %701 = vmatprep.mubr.f32.mxu0 0.0
  %702 = vmatmul.mubr.f32.gmra.mrb[0].mxu0 %v633
  %v703 = vpop.f32.mrb[0].mxu0
  %v704 = vadd.f32 %v59, %v703
  %v705 = vpop.f32.mrb[0].mxu0
  %706 = vdwg.mxu0
  %v707 = vsel %vm372, %v704, -inf
  %708 = vmax.xlane.f32.xlu0 %v707
  %v709 = vpop.xlane.xlu0 %708
  %v710 = vsub.f32 %v704, %v709
  %v711 = vmul.f32 %v710, 1.442695
  %v712 = vpow.pop %v711
  %v713 = vsel %vm372, %v712, 0.0
  %714 = vadd.xlane.f32.xlu0 %v713
  %v715 = vpop.xlane.xlu0 %714
  %v716 = vrcp.pop %v715
  %v717 = vmul.f32 %v712, %v716
  %719 = vrot.lane.b32.xlu0 %v241, 16
  %v720 = vpop.permute.xlu0 %719
  %721 = vrot.lane.b32.xlu0 %v284, 16
  %v722 = vpop.permute.xlu0 %721
  %vm723 = vcmask 130048
  %v724 = vsel %vm723, %v720, %v722
  %v727 = vsel %vm372, %v717, 0
  %729 = vmatprep.subr.mxu0 0.0
  %730 = vmatpush1.msra.mxu0 %v724
  %731 = vmatprep.subr.mxu0 0.0
  %732 = vmatpush1.msra.mxu0 0.0
  %733 = vmatprep.subr.mxu0 0.0
  %734 = vmatpush1.msra.mxu0 0.0
  %735 = vmatprep.subr.mxu0 0.0
  %736 = vmatpush1.msra.mxu0 0.0
  %737 = vmatprep.subr.mxu0 0.0
  %738 = vmatpush1.msra.mxu0 0.0
  %739 = vmatprep.subr.mxu0 0.0
  %740 = vmatpush1.msra.mxu0 0.0
  %741 = vmatprep.subr.mxu0 0.0
  %742 = vmatpush1.msra.mxu0 0.0
  %743 = vmatprep.subr.mxu0 0.0
  %744 = vmatpush1.msra.mxu0 0.0
  %745 = vmatprep.subr.mxu0 0.0
  %746 = vmatpush1.msra.mxu0 0.0
  %747 = vmatprep.subr.mxu0 0.0
  %748 = vmatpush1.msra.mxu0 0.0
  %749 = vmatprep.subr.mxu0 0.0
  %750 = vmatpush1.msra.mxu0 0.0
  %751 = vmatprep.subr.mxu0 0.0
  %752 = vmatpush1.msra.mxu0 0.0
  %753 = vmatprep.subr.mxu0 0.0
  %754 = vmatpush1.msra.mxu0 0.0
  %755 = vmatprep.subr.mxu0 0.0
  %756 = vmatpush1.msra.mxu0 0.0
  %757 = vmatprep.subr.mxu0 0.0
  %758 = vmatpush1.msra.mxu0 0.0
  %759 = vmatprep.subr.mxu0 0.0
  %760 = vmatpush1.msra.mxu0 0.0
  %761 = vmatprep.subr.mxu0 0.0
  %762 = vmatpush1.msra.mxu0 0.0
  %763 = vmatprep.subr.mxu0 0.0
  %764 = vmatpush1.msra.mxu0 0.0
  %765 = vmatprep.subr.mxu0 0.0
  %766 = vmatpush1.msra.mxu0 0.0
  %767 = vmatprep.subr.mxu0 0.0
  %768 = vmatpush1.msra.mxu0 0.0
  %769 = vmatprep.subr.mxu0 0.0
  %770 = vmatpush1.msra.mxu0 0.0
  %771 = vmatprep.subr.mxu0 0.0
  %772 = vmatpush1.msra.mxu0 0.0
  %773 = vmatprep.subr.mxu0 0.0
  %774 = vmatpush1.msra.mxu0 0.0
  %775 = vmatprep.subr.mxu0 0.0
  %776 = vmatpush1.msra.mxu0 0.0
  %777 = vmatprep.subr.mxu0 0.0
  %778 = vmatpush1.msra.mxu0 0.0
  %779 = vmatprep.subr.mxu0 0.0
  %780 = vmatpush1.msra.mxu0 0.0
  %781 = vmatprep.subr.mxu0 0.0
  %782 = vmatpush1.msra.mxu0 0.0
  %783 = vmatprep.subr.mxu0 0.0
  %784 = vmatpush1.msra.mxu0 0.0
  %785 = vmatprep.subr.mxu0 0.0
  %786 = vmatpush1.msra.mxu0 0.0
  %787 = vmatprep.subr.mxu0 0.0
  %788 = vmatpush1.msra.mxu0 0.0
  %789 = vmatprep.subr.mxu0 0.0
  %790 = vmatpush1.msra.mxu0 0.0
  %791 = vmatprep.subr.mxu0 0.0
  %792 = vmatpush1.msra.mxu0 0.0
  %793 = vmatprep.mubr.f32.mxu0 0.0
  %794 = vmatmul.mubr.f32.gmra.mrb[0].mxu0 %v727
  %v795 = vpop.f32.mrb[0].mxu0
  %v796 = vadd.f32 0.0, %v795
  %v797 = vpop.f32.mrb[0].mxu0
  %798 = vdwg.mxu0
  %799 = vrot.lane.b32.xlu0 %v292, 56
  %v800 = vpop.permute.xlu0 %799
  %801 = vrot.lane.b32.xlu0 %v241, 88
  %v802 = vpop.permute.xlu0 %801
  %v803 = vsel %vm296, %v800, 0
  %v805 = vsel %vm296, %v802, 0
  %807 = vmatprep.subr.mxu0 0.0
  %808 = vmatpush1.xpose.msra.mxu0 %v805
  %809 = vmatprep.subr.mxu0 0.0
  %810 = vmatpush1.xpose.msra.mxu0 0.0
  %811 = vmatprep.subr.mxu0 0.0
  %812 = vmatpush1.xpose.msra.mxu0 0.0
  %813 = vmatprep.subr.mxu0 0.0
  %814 = vmatpush1.xpose.msra.mxu0 0.0
  %815 = vmatprep.subr.mxu0 0.0
  %816 = vmatpush1.xpose.msra.mxu0 0.0
  %817 = vmatprep.subr.mxu0 0.0
  %818 = vmatpush1.xpose.msra.mxu0 0.0
  %819 = vmatprep.subr.mxu0 0.0
  %820 = vmatpush1.xpose.msra.mxu0 0.0
  %821 = vmatprep.subr.mxu0 0.0
  %822 = vmatpush1.xpose.msra.mxu0 0.0
  %823 = vmatprep.subr.mxu0 0.0
  %824 = vmatpush1.xpose.msra.mxu0 0.0
  %825 = vmatprep.subr.mxu0 0.0
  %826 = vmatpush1.xpose.msra.mxu0 0.0
  %827 = vmatprep.subr.mxu0 0.0
  %828 = vmatpush1.xpose.msra.mxu0 0.0
  %829 = vmatprep.subr.mxu0 0.0
  %830 = vmatpush1.xpose.msra.mxu0 0.0
  %831 = vmatprep.subr.mxu0 0.0
  %832 = vmatpush1.xpose.msra.mxu0 0.0
  %833 = vmatprep.subr.mxu0 0.0
  %834 = vmatpush1.xpose.msra.mxu0 0.0
  %835 = vmatprep.subr.mxu0 0.0
  %836 = vmatpush1.xpose.msra.mxu0 0.0
  %837 = vmatprep.subr.mxu0 0.0
  %838 = vmatpush1.xpose.msra.mxu0 0.0
  %839 = vmatprep.subr.mxu0 0.0
  %840 = vmatpush1.xpose.msra.mxu0 0.0
  %841 = vmatprep.subr.mxu0 0.0
  %842 = vmatpush1.xpose.msra.mxu0 0.0
  %843 = vmatprep.subr.mxu0 0.0
  %844 = vmatpush1.xpose.msra.mxu0 0.0
  %845 = vmatprep.subr.mxu0 0.0
  %846 = vmatpush1.xpose.msra.mxu0 0.0
  %847 = vmatprep.subr.mxu0 0.0
  %848 = vmatpush1.xpose.msra.mxu0 0.0
  %849 = vmatprep.subr.mxu0 0.0
  %850 = vmatpush1.xpose.msra.mxu0 0.0
  %851 = vmatprep.subr.mxu0 0.0
  %852 = vmatpush1.xpose.msra.mxu0 0.0
  %853 = vmatprep.subr.mxu0 0.0
  %854 = vmatpush1.xpose.msra.mxu0 0.0
  %855 = vmatprep.subr.mxu0 0.0
  %856 = vmatpush1.xpose.msra.mxu0 0.0
  %857 = vmatprep.subr.mxu0 0.0
  %858 = vmatpush1.xpose.msra.mxu0 0.0
  %859 = vmatprep.subr.mxu0 0.0
  %860 = vmatpush1.xpose.msra.mxu0 0.0
  %861 = vmatprep.subr.mxu0 0.0
  %862 = vmatpush1.xpose.msra.mxu0 0.0
  %863 = vmatprep.subr.mxu0 0.0
  %864 = vmatpush1.xpose.msra.mxu0 0.0
  %865 = vmatprep.subr.mxu0 0.0
  %866 = vmatpush1.xpose.msra.mxu0 0.0
  %867 = vmatprep.subr.mxu0 0.0
  %868 = vmatpush1.xpose.msra.mxu0 0.0
  %869 = vmatprep.subr.mxu0 0.0
  %870 = vmatpush1.xpose.msra.mxu0 0.0
  %871 = vmatprep.mubr.f32.mxu0 0.0
  %872 = vmatmul.mubr.f32.gmra.mrb[0].mxu0 %v803
  %v873 = vpop.f32.mrb[0].mxu0
  %v874 = vadd.f32 %v59, %v873
  %v875 = vpop.f32.mrb[0].mxu0
  %876 = vdwg.mxu0
  %v877 = vsel %vm372, %v874, -inf
  %878 = vmax.xlane.f32.xlu0 %v877
  %v879 = vpop.xlane.xlu0 %878
  %v880 = vsub.f32 %v874, %v879
  %v881 = vmul.f32 %v880, 1.442695
  %v882 = vpow.pop %v881
  %v883 = vsel %vm372, %v882, 0.0
  %884 = vadd.xlane.f32.xlu0 %v883
  %v885 = vpop.xlane.xlu0 %884
  %v886 = vrcp.pop %v885
  %v887 = vmul.f32 %v882, %v886
  %888 = vrot.lane.b32.xlu0 %v284, 120
  %v889 = vpop.permute.xlu0 %888
  %v892 = vsel %vm372, %v887, 0
  %894 = vmatprep.subr.mxu0 0.0
  %895 = vmatpush1.msra.mxu0 %v889
  %896 = vmatprep.subr.mxu0 0.0
  %897 = vmatpush1.msra.mxu0 0.0
  %898 = vmatprep.subr.mxu0 0.0
  %899 = vmatpush1.msra.mxu0 0.0
  %900 = vmatprep.subr.mxu0 0.0
  %901 = vmatpush1.msra.mxu0 0.0
  %902 = vmatprep.subr.mxu0 0.0
  %903 = vmatpush1.msra.mxu0 0.0
  %904 = vmatprep.subr.mxu0 0.0
  %905 = vmatpush1.msra.mxu0 0.0
  %906 = vmatprep.subr.mxu0 0.0
  %907 = vmatpush1.msra.mxu0 0.0
  %908 = vmatprep.subr.mxu0 0.0
  %909 = vmatpush1.msra.mxu0 0.0
  %910 = vmatprep.subr.mxu0 0.0
  %911 = vmatpush1.msra.mxu0 0.0
  %912 = vmatprep.subr.mxu0 0.0
  %913 = vmatpush1.msra.mxu0 0.0
  %914 = vmatprep.subr.mxu0 0.0
  %915 = vmatpush1.msra.mxu0 0.0
  %916 = vmatprep.subr.mxu0 0.0
  %917 = vmatpush1.msra.mxu0 0.0
  %918 = vmatprep.subr.mxu0 0.0
  %919 = vmatpush1.msra.mxu0 0.0
  %920 = vmatprep.subr.mxu0 0.0
  %921 = vmatpush1.msra.mxu0 0.0
  %922 = vmatprep.subr.mxu0 0.0
  %923 = vmatpush1.msra.mxu0 0.0
  %924 = vmatprep.subr.mxu0 0.0
  %925 = vmatpush1.msra.mxu0 0.0
  %926 = vmatprep.subr.mxu0 0.0
  %927 = vmatpush1.msra.mxu0 0.0
  %928 = vmatprep.subr.mxu0 0.0
  %929 = vmatpush1.msra.mxu0 0.0
  %930 = vmatprep.subr.mxu0 0.0
  %931 = vmatpush1.msra.mxu0 0.0
  %932 = vmatprep.subr.mxu0 0.0
  %933 = vmatpush1.msra.mxu0 0.0
  %934 = vmatprep.subr.mxu0 0.0
  %935 = vmatpush1.msra.mxu0 0.0
  %936 = vmatprep.subr.mxu0 0.0
  %937 = vmatpush1.msra.mxu0 0.0
  %938 = vmatprep.subr.mxu0 0.0
  %939 = vmatpush1.msra.mxu0 0.0
  %940 = vmatprep.subr.mxu0 0.0
  %941 = vmatpush1.msra.mxu0 0.0
  %942 = vmatprep.subr.mxu0 0.0
  %943 = vmatpush1.msra.mxu0 0.0
  %944 = vmatprep.subr.mxu0 0.0
  %945 = vmatpush1.msra.mxu0 0.0
  %946 = vmatprep.subr.mxu0 0.0
  %947 = vmatpush1.msra.mxu0 0.0
  %948 = vmatprep.subr.mxu0 0.0
  %949 = vmatpush1.msra.mxu0 0.0
  %950 = vmatprep.subr.mxu0 0.0
  %951 = vmatpush1.msra.mxu0 0.0
  %952 = vmatprep.subr.mxu0 0.0
  %953 = vmatpush1.msra.mxu0 0.0
  %954 = vmatprep.subr.mxu0 0.0
  %955 = vmatpush1.msra.mxu0 0.0
  %956 = vmatprep.subr.mxu0 0.0
  %957 = vmatpush1.msra.mxu0 0.0
  %958 = vmatprep.mubr.f32.mxu0 0.0
  %959 = vmatmul.mubr.f32.gmra.mrb[0].mxu0 %v892
  %v960 = vpop.f32.mrb[0].mxu0
  %v961 = vadd.f32 0.0, %v960
  %v962 = vpop.f32.mrb[0].mxu0
  %963 = vdwg.mxu0
  %965 = vrot.lane.b32.xlu0 %v626, 24
  %v966 = vpop.permute.xlu0 %965
  %969 = vrot.lane.b32.xlu0 %v796, 48
  %v970 = vpop.permute.xlu0 %969
  %973 = vrot.lane.b32.xlu0 %v961, 72
  %v974 = vpop.permute.xlu0 %973
  %v976 = vsel %vm296, %v458, %v966
  %vm977 = vcmask 392192
  %v978 = vsel %vm977, %v976, %v970
  %vm979 = vcmask 588800
  %v980 = vsel %vm979, %v978, %v974
  %v981 = vmul.f32 %v245, 0.20412415
  %983 = vrot.lane.b32.xlu0 %v245, 32
  %v984 = vpop.permute.xlu0 %983
  %v986 = vsel %vm296, %v981, 0
  %v988 = vsel %vm296, %v984, 0
  %990 = vmatprep.subr.mxu0 0.0
  %991 = vmatpush1.xpose.msra.mxu0 %v988
  %992 = vmatprep.subr.mxu0 0.0
  %993 = vmatpush1.xpose.msra.mxu0 0.0
  %994 = vmatprep.subr.mxu0 0.0
  %995 = vmatpush1.xpose.msra.mxu0 0.0
  %996 = vmatprep.subr.mxu0 0.0
  %997 = vmatpush1.xpose.msra.mxu0 0.0
  %998 = vmatprep.subr.mxu0 0.0
  %999 = vmatpush1.xpose.msra.mxu0 0.0
  %1000 = vmatprep.subr.mxu0 0.0
  %1001 = vmatpush1.xpose.msra.mxu0 0.0
  %1002 = vmatprep.subr.mxu0 0.0
  %1003 = vmatpush1.xpose.msra.mxu0 0.0
  %1004 = vmatprep.subr.mxu0 0.0
  %1005 = vmatpush1.xpose.msra.mxu0 0.0
  %1006 = vmatprep.subr.mxu0 0.0
  %1007 = vmatpush1.xpose.msra.mxu0 0.0
  %1008 = vmatprep.subr.mxu0 0.0
  %1009 = vmatpush1.xpose.msra.mxu0 0.0
  %1010 = vmatprep.subr.mxu0 0.0
  %1011 = vmatpush1.xpose.msra.mxu0 0.0
  %1012 = vmatprep.subr.mxu0 0.0
  %1013 = vmatpush1.xpose.msra.mxu0 0.0
  %1014 = vmatprep.subr.mxu0 0.0
  %1015 = vmatpush1.xpose.msra.mxu0 0.0
  %1016 = vmatprep.subr.mxu0 0.0
  %1017 = vmatpush1.xpose.msra.mxu0 0.0
  %1018 = vmatprep.subr.mxu0 0.0
  %1019 = vmatpush1.xpose.msra.mxu0 0.0
  %1020 = vmatprep.subr.mxu0 0.0
  %1021 = vmatpush1.xpose.msra.mxu0 0.0
  %1022 = vmatprep.subr.mxu0 0.0
  %1023 = vmatpush1.xpose.msra.mxu0 0.0
  %1024 = vmatprep.subr.mxu0 0.0
  %1025 = vmatpush1.xpose.msra.mxu0 0.0
  %1026 = vmatprep.subr.mxu0 0.0
  %1027 = vmatpush1.xpose.msra.mxu0 0.0
  %1028 = vmatprep.subr.mxu0 0.0
  %1029 = vmatpush1.xpose.msra.mxu0 0.0
  %1030 = vmatprep.subr.mxu0 0.0
  %1031 = vmatpush1.xpose.msra.mxu0 0.0
  %1032 = vmatprep.subr.mxu0 0.0
  %1033 = vmatpush1.xpose.msra.mxu0 0.0
  %1034 = vmatprep.subr.mxu0 0.0
  %1035 = vmatpush1.xpose.msra.mxu0 0.0
  %1036 = vmatprep.subr.mxu0 0.0
  %1037 = vmatpush1.xpose.msra.mxu0 0.0
  %1038 = vmatprep.subr.mxu0 0.0
  %1039 = vmatpush1.xpose.msra.mxu0 0.0
  %1040 = vmatprep.subr.mxu0 0.0
  %1041 = vmatpush1.xpose.msra.mxu0 0.0
  %1042 = vmatprep.subr.mxu0 0.0
  %1043 = vmatpush1.xpose.msra.mxu0 0.0
  %1044 = vmatprep.subr.mxu0 0.0
  %1045 = vmatpush1.xpose.msra.mxu0 0.0
  %1046 = vmatprep.subr.mxu0 0.0
  %1047 = vmatpush1.xpose.msra.mxu0 0.0
  %1048 = vmatprep.subr.mxu0 0.0
  %1049 = vmatpush1.xpose.msra.mxu0 0.0
  %1050 = vmatprep.subr.mxu0 0.0
  %1051 = vmatpush1.xpose.msra.mxu0 0.0
  %1052 = vmatprep.subr.mxu0 0.0
  %1053 = vmatpush1.xpose.msra.mxu0 0.0
  %1054 = vmatprep.mubr.f32.mxu0 0.0
  %1055 = vmatmul.mubr.f32.gmra.mrb[0].mxu0 %v986
  %v1056 = vpop.f32.mrb[0].mxu0
  %v1057 = vadd.f32 %v59, %v1056
  %v1058 = vpop.f32.mrb[0].mxu0
  %1059 = vdwg.mxu0
  %v1060 = vsel %vm372, %v1057, -inf
  %1061 = vmax.xlane.f32.xlu0 %v1060
  %v1062 = vpop.xlane.xlu0 %1061
  %v1063 = vsub.f32 %v1057, %v1062
  %v1064 = vmul.f32 %v1063, 1.442695
  %v1065 = vpow.pop %v1064
  %v1066 = vsel %vm372, %v1065, 0.0
  %1067 = vadd.xlane.f32.xlu0 %v1066
  %v1068 = vpop.xlane.xlu0 %1067
  %v1069 = vrcp.pop %v1068
  %v1070 = vmul.f32 %v1065, %v1069
  %1072 = vrot.lane.b32.xlu0 %v247, 64
  %v1073 = vpop.permute.xlu0 %1072
  %v1076 = vsel %vm372, %v1070, 0
  %1078 = vmatprep.subr.mxu0 0.0
  %1079 = vmatpush1.msra.mxu0 %v1073
  %1080 = vmatprep.subr.mxu0 0.0
  %1081 = vmatpush1.msra.mxu0 0.0
  %1082 = vmatprep.subr.mxu0 0.0
  %1083 = vmatpush1.msra.mxu0 0.0
  %1084 = vmatprep.subr.mxu0 0.0
  %1085 = vmatpush1.msra.mxu0 0.0
  %1086 = vmatprep.subr.mxu0 0.0
  %1087 = vmatpush1.msra.mxu0 0.0
  %1088 = vmatprep.subr.mxu0 0.0
  %1089 = vmatpush1.msra.mxu0 0.0
  %1090 = vmatprep.subr.mxu0 0.0
  %1091 = vmatpush1.msra.mxu0 0.0
  %1092 = vmatprep.subr.mxu0 0.0
  %1093 = vmatpush1.msra.mxu0 0.0
  %1094 = vmatprep.subr.mxu0 0.0
  %1095 = vmatpush1.msra.mxu0 0.0
  %1096 = vmatprep.subr.mxu0 0.0
  %1097 = vmatpush1.msra.mxu0 0.0
  %1098 = vmatprep.subr.mxu0 0.0
  %1099 = vmatpush1.msra.mxu0 0.0
  %1100 = vmatprep.subr.mxu0 0.0
  %1101 = vmatpush1.msra.mxu0 0.0
  %1102 = vmatprep.subr.mxu0 0.0
  %1103 = vmatpush1.msra.mxu0 0.0
  %1104 = vmatprep.subr.mxu0 0.0
  %1105 = vmatpush1.msra.mxu0 0.0
  %1106 = vmatprep.subr.mxu0 0.0
  %1107 = vmatpush1.msra.mxu0 0.0
  %1108 = vmatprep.subr.mxu0 0.0
  %1109 = vmatpush1.msra.mxu0 0.0
  %1110 = vmatprep.subr.mxu0 0.0
  %1111 = vmatpush1.msra.mxu0 0.0
  %1112 = vmatprep.subr.mxu0 0.0
  %1113 = vmatpush1.msra.mxu0 0.0
  %1114 = vmatprep.subr.mxu0 0.0
  %1115 = vmatpush1.msra.mxu0 0.0
  %1116 = vmatprep.subr.mxu0 0.0
  %1117 = vmatpush1.msra.mxu0 0.0
  %1118 = vmatprep.subr.mxu0 0.0
  %1119 = vmatpush1.msra.mxu0 0.0
  %1120 = vmatprep.subr.mxu0 0.0
  %1121 = vmatpush1.msra.mxu0 0.0
  %1122 = vmatprep.subr.mxu0 0.0
  %1123 = vmatpush1.msra.mxu0 0.0
  %1124 = vmatprep.subr.mxu0 0.0
  %1125 = vmatpush1.msra.mxu0 0.0
  %1126 = vmatprep.subr.mxu0 0.0
  %1127 = vmatpush1.msra.mxu0 0.0
  %1128 = vmatprep.subr.mxu0 0.0
  %1129 = vmatpush1.msra.mxu0 0.0
  %1130 = vmatprep.subr.mxu0 0.0
  %1131 = vmatpush1.msra.mxu0 0.0
  %1132 = vmatprep.subr.mxu0 0.0
  %1133 = vmatpush1.msra.mxu0 0.0
  %1134 = vmatprep.subr.mxu0 0.0
  %1135 = vmatpush1.msra.mxu0 0.0
  %1136 = vmatprep.subr.mxu0 0.0
  %1137 = vmatpush1.msra.mxu0 0.0
  %1138 = vmatprep.subr.mxu0 0.0
  %1139 = vmatpush1.msra.mxu0 0.0
  %1140 = vmatprep.subr.mxu0 0.0
  %1141 = vmatpush1.msra.mxu0 0.0
  %1142 = vmatprep.mubr.f32.mxu0 0.0
  %1143 = vmatmul.mubr.f32.gmra.mrb[0].mxu0 %v1076
  %v1144 = vpop.f32.mrb[0].mxu0
  %v1145 = vadd.f32 0.0, %v1144
  %v1146 = vpop.f32.mrb[0].mxu0
  %1147 = vdwg.mxu0
  %1148 = vrot.lane.b32.xlu0 %v981, 104
  %v1149 = vpop.permute.xlu0 %1148
  %1150 = vrot.lane.b32.xlu0 %v245, 8
  %v1151 = vpop.permute.xlu0 %1150
  %1152 = vrot.lane.b32.xlu0 %v247, 8
  %v1153 = vpop.permute.xlu0 %1152
  %v1154 = vsel %vm372, %v1151, %v1153
  %v1155 = vsel %vm296, %v1149, 0
  %v1157 = vsel %vm296, %v1154, 0
  %1159 = vmatprep.subr.mxu0 0.0
  %1160 = vmatpush1.xpose.msra.mxu0 %v1157
  %1161 = vmatprep.subr.mxu0 0.0
  %1162 = vmatpush1.xpose.msra.mxu0 0.0
  %1163 = vmatprep.subr.mxu0 0.0
  %1164 = vmatpush1.xpose.msra.mxu0 0.0
  %1165 = vmatprep.subr.mxu0 0.0
  %1166 = vmatpush1.xpose.msra.mxu0 0.0
  %1167 = vmatprep.subr.mxu0 0.0
  %1168 = vmatpush1.xpose.msra.mxu0 0.0
  %1169 = vmatprep.subr.mxu0 0.0
  %1170 = vmatpush1.xpose.msra.mxu0 0.0
  %1171 = vmatprep.subr.mxu0 0.0
  %1172 = vmatpush1.xpose.msra.mxu0 0.0
  %1173 = vmatprep.subr.mxu0 0.0
  %1174 = vmatpush1.xpose.msra.mxu0 0.0
  %1175 = vmatprep.subr.mxu0 0.0
  %1176 = vmatpush1.xpose.msra.mxu0 0.0
  %1177 = vmatprep.subr.mxu0 0.0
  %1178 = vmatpush1.xpose.msra.mxu0 0.0
  %1179 = vmatprep.subr.mxu0 0.0
  %1180 = vmatpush1.xpose.msra.mxu0 0.0
  %1181 = vmatprep.subr.mxu0 0.0
  %1182 = vmatpush1.xpose.msra.mxu0 0.0
  %1183 = vmatprep.subr.mxu0 0.0
  %1184 = vmatpush1.xpose.msra.mxu0 0.0
  %1185 = vmatprep.subr.mxu0 0.0
  %1186 = vmatpush1.xpose.msra.mxu0 0.0
  %1187 = vmatprep.subr.mxu0 0.0
  %1188 = vmatpush1.xpose.msra.mxu0 0.0
  %1189 = vmatprep.subr.mxu0 0.0
  %1190 = vmatpush1.xpose.msra.mxu0 0.0
  %1191 = vmatprep.subr.mxu0 0.0
  %1192 = vmatpush1.xpose.msra.mxu0 0.0
  %1193 = vmatprep.subr.mxu0 0.0
  %1194 = vmatpush1.xpose.msra.mxu0 0.0
  %1195 = vmatprep.subr.mxu0 0.0
  %1196 = vmatpush1.xpose.msra.mxu0 0.0
  %1197 = vmatprep.subr.mxu0 0.0
  %1198 = vmatpush1.xpose.msra.mxu0 0.0
  %1199 = vmatprep.subr.mxu0 0.0
  %1200 = vmatpush1.xpose.msra.mxu0 0.0
  %1201 = vmatprep.subr.mxu0 0.0
  %1202 = vmatpush1.xpose.msra.mxu0 0.0
  %1203 = vmatprep.subr.mxu0 0.0
  %1204 = vmatpush1.xpose.msra.mxu0 0.0
  %1205 = vmatprep.subr.mxu0 0.0
  %1206 = vmatpush1.xpose.msra.mxu0 0.0
  %1207 = vmatprep.subr.mxu0 0.0
  %1208 = vmatpush1.xpose.msra.mxu0 0.0
  %1209 = vmatprep.subr.mxu0 0.0
  %1210 = vmatpush1.xpose.msra.mxu0 0.0
  %1211 = vmatprep.subr.mxu0 0.0
  %1212 = vmatpush1.xpose.msra.mxu0 0.0
  %1213 = vmatprep.subr.mxu0 0.0
  %1214 = vmatpush1.xpose.msra.mxu0 0.0
  %1215 = vmatprep.subr.mxu0 0.0
  %1216 = vmatpush1.xpose.msra.mxu0 0.0
  %1217 = vmatprep.subr.mxu0 0.0
  %1218 = vmatpush1.xpose.msra.mxu0 0.0
  %1219 = vmatprep.subr.mxu0 0.0
  %1220 = vmatpush1.xpose.msra.mxu0 0.0
  %1221 = vmatprep.subr.mxu0 0.0
  %1222 = vmatpush1.xpose.msra.mxu0 0.0
  %1223 = vmatprep.mubr.f32.mxu0 0.0
  %1224 = vmatmul.mubr.f32.gmra.mrb[0].mxu0 %v1155
  %v1225 = vpop.f32.mrb[0].mxu0
  %v1226 = vadd.f32 %v59, %v1225
  %v1227 = vpop.f32.mrb[0].mxu0
  %1228 = vdwg.mxu0
  %v1229 = vsel %vm372, %v1226, -inf
  %1230 = vmax.xlane.f32.xlu0 %v1229
  %v1231 = vpop.xlane.xlu0 %1230
  %v1232 = vsub.f32 %v1226, %v1231
  %v1233 = vmul.f32 %v1232, 1.442695
  %v1234 = vpow.pop %v1233
  %v1235 = vsel %vm372, %v1234, 0.0
  %1236 = vadd.xlane.f32.xlu0 %v1235
  %v1237 = vpop.xlane.xlu0 %1236
  %v1238 = vrcp.pop %v1237
  %v1239 = vmul.f32 %v1234, %v1238
  %1240 = vrot.lane.b32.xlu0 %v247, 40
  %v1241 = vpop.permute.xlu0 %1240
  %v1244 = vsel %vm372, %v1239, 0
  %1246 = vmatprep.subr.mxu0 0.0
  %1247 = vmatpush1.msra.mxu0 %v1241
  %1248 = vmatprep.subr.mxu0 0.0
  %1249 = vmatpush1.msra.mxu0 0.0
  %1250 = vmatprep.subr.mxu0 0.0
  %1251 = vmatpush1.msra.mxu0 0.0
  %1252 = vmatprep.subr.mxu0 0.0
  %1253 = vmatpush1.msra.mxu0 0.0
  %1254 = vmatprep.subr.mxu0 0.0
  %1255 = vmatpush1.msra.mxu0 0.0
  %1256 = vmatprep.subr.mxu0 0.0
  %1257 = vmatpush1.msra.mxu0 0.0
  %1258 = vmatprep.subr.mxu0 0.0
  %1259 = vmatpush1.msra.mxu0 0.0
  %1260 = vmatprep.subr.mxu0 0.0
  %1261 = vmatpush1.msra.mxu0 0.0
  %1262 = vmatprep.subr.mxu0 0.0
  %1263 = vmatpush1.msra.mxu0 0.0
  %1264 = vmatprep.subr.mxu0 0.0
  %1265 = vmatpush1.msra.mxu0 0.0
  %1266 = vmatprep.subr.mxu0 0.0
  %1267 = vmatpush1.msra.mxu0 0.0
  %1268 = vmatprep.subr.mxu0 0.0
  %1269 = vmatpush1.msra.mxu0 0.0
  %1270 = vmatprep.subr.mxu0 0.0
  %1271 = vmatpush1.msra.mxu0 0.0
  %1272 = vmatprep.subr.mxu0 0.0
  %1273 = vmatpush1.msra.mxu0 0.0
  %1274 = vmatprep.subr.mxu0 0.0
  %1275 = vmatpush1.msra.mxu0 0.0
  %1276 = vmatprep.subr.mxu0 0.0
  %1277 = vmatpush1.msra.mxu0 0.0
  %1278 = vmatprep.subr.mxu0 0.0
  %1279 = vmatpush1.msra.mxu0 0.0
  %1280 = vmatprep.subr.mxu0 0.0
  %1281 = vmatpush1.msra.mxu0 0.0
  %1282 = vmatprep.subr.mxu0 0.0
  %1283 = vmatpush1.msra.mxu0 0.0
  %1284 = vmatprep.subr.mxu0 0.0
  %1285 = vmatpush1.msra.mxu0 0.0
  %1286 = vmatprep.subr.mxu0 0.0
  %1287 = vmatpush1.msra.mxu0 0.0
  %1288 = vmatprep.subr.mxu0 0.0
  %1289 = vmatpush1.msra.mxu0 0.0
  %1290 = vmatprep.subr.mxu0 0.0
  %1291 = vmatpush1.msra.mxu0 0.0
  %1292 = vmatprep.subr.mxu0 0.0
  %1293 = vmatpush1.msra.mxu0 0.0
  %1294 = vmatprep.subr.mxu0 0.0
  %1295 = vmatpush1.msra.mxu0 0.0
  %1296 = vmatprep.subr.mxu0 0.0
  %1297 = vmatpush1.msra.mxu0 0.0
  %1298 = vmatprep.subr.mxu0 0.0
  %1299 = vmatpush1.msra.mxu0 0.0
  %1300 = vmatprep.subr.mxu0 0.0
  %1301 = vmatpush1.msra.mxu0 0.0
  %1302 = vmatprep.subr.mxu0 0.0
  %1303 = vmatpush1.msra.mxu0 0.0
  %1304 = vmatprep.subr.mxu0 0.0
  %1305 = vmatpush1.msra.mxu0 0.0
  %1306 = vmatprep.subr.mxu0 0.0
  %1307 = vmatpush1.msra.mxu0 0.0
  %1308 = vmatprep.subr.mxu0 0.0
  %1309 = vmatpush1.msra.mxu0 0.0
  %1310 = vmatprep.mubr.f32.mxu0 0.0
  %1311 = vmatmul.mubr.f32.gmra.mrb[0].mxu0 %v1244
  %v1312 = vpop.f32.mrb[0].mxu0
  %v1313 = vadd.f32 0.0, %v1312
  %v1314 = vpop.f32.mrb[0].mxu0
  %1315 = vdwg.mxu0
  %1316 = vrot.lane.b32.xlu0 %v981, 80
  %v1317 = vpop.permute.xlu0 %1316
  %1318 = vrot.lane.b32.xlu0 %v247, 112
  %v1319 = vpop.permute.xlu0 %1318
  %v1320 = vsel %vm296, %v1317, 0
  %v1322 = vsel %vm296, %v1319, 0
  %1324 = vmatprep.subr.mxu0 0.0
  %1325 = vmatpush1.xpose.msra.mxu0 %v1322
  %1326 = vmatprep.subr.mxu0 0.0
  %1327 = vmatpush1.xpose.msra.mxu0 0.0
  %1328 = vmatprep.subr.mxu0 0.0
  %1329 = vmatpush1.xpose.msra.mxu0 0.0
  %1330 = vmatprep.subr.mxu0 0.0
  %1331 = vmatpush1.xpose.msra.mxu0 0.0
  %1332 = vmatprep.subr.mxu0 0.0
  %1333 = vmatpush1.xpose.msra.mxu0 0.0
  %1334 = vmatprep.subr.mxu0 0.0
  %1335 = vmatpush1.xpose.msra.mxu0 0.0
  %1336 = vmatprep.subr.mxu0 0.0
  %1337 = vmatpush1.xpose.msra.mxu0 0.0
  %1338 = vmatprep.subr.mxu0 0.0
  %1339 = vmatpush1.xpose.msra.mxu0 0.0
  %1340 = vmatprep.subr.mxu0 0.0
  %1341 = vmatpush1.xpose.msra.mxu0 0.0
  %1342 = vmatprep.subr.mxu0 0.0
  %1343 = vmatpush1.xpose.msra.mxu0 0.0
  %1344 = vmatprep.subr.mxu0 0.0
  %1345 = vmatpush1.xpose.msra.mxu0 0.0
  %1346 = vmatprep.subr.mxu0 0.0
  %1347 = vmatpush1.xpose.msra.mxu0 0.0
  %1348 = vmatprep.subr.mxu0 0.0
  %1349 = vmatpush1.xpose.msra.mxu0 0.0
  %1350 = vmatprep.subr.mxu0 0.0
  %1351 = vmatpush1.xpose.msra.mxu0 0.0
  %1352 = vmatprep.subr.mxu0 0.0
  %1353 = vmatpush1.xpose.msra.mxu0 0.0
  %1354 = vmatprep.subr.mxu0 0.0
  %1355 = vmatpush1.xpose.msra.mxu0 0.0
  %1356 = vmatprep.subr.mxu0 0.0
  %1357 = vmatpush1.xpose.msra.mxu0 0.0
  %1358 = vmatprep.subr.mxu0 0.0
  %1359 = vmatpush1.xpose.msra.mxu0 0.0
  %1360 = vmatprep.subr.mxu0 0.0
  %1361 = vmatpush1.xpose.msra.mxu0 0.0
  %1362 = vmatprep.subr.mxu0 0.0
  %1363 = vmatpush1.xpose.msra.mxu0 0.0
  %1364 = vmatprep.subr.mxu0 0.0
  %1365 = vmatpush1.xpose.msra.mxu0 0.0
  %1366 = vmatprep.subr.mxu0 0.0
  %1367 = vmatpush1.xpose.msra.mxu0 0.0
  %1368 = vmatprep.subr.mxu0 0.0
  %1369 = vmatpush1.xpose.msra.mxu0 0.0
  %1370 = vmatprep.subr.mxu0 0.0
  %1371 = vmatpush1.xpose.msra.mxu0 0.0
  %1372 = vmatprep.subr.mxu0 0.0
  %1373 = vmatpush1.xpose.msra.mxu0 0.0
  %1374 = vmatprep.subr.mxu0 0.0
  %1375 = vmatpush1.xpose.msra.mxu0 0.0
  %1376 = vmatprep.subr.mxu0 0.0
  %1377 = vmatpush1.xpose.msra.mxu0 0.0
  %1378 = vmatprep.subr.mxu0 0.0
  %1379 = vmatpush1.xpose.msra.mxu0 0.0
  %1380 = vmatprep.subr.mxu0 0.0
  %1381 = vmatpush1.xpose.msra.mxu0 0.0
  %1382 = vmatprep.subr.mxu0 0.0
  %1383 = vmatpush1.xpose.msra.mxu0 0.0
  %1384 = vmatprep.subr.mxu0 0.0
  %1385 = vmatpush1.xpose.msra.mxu0 0.0
  %1386 = vmatprep.subr.mxu0 0.0
  %1387 = vmatpush1.xpose.msra.mxu0 0.0
  %1388 = vmatprep.mubr.f32.mxu0 0.0
  %1389 = vmatmul.mubr.f32.gmra.mrb[0].mxu0 %v1320
  %v1390 = vpop.f32.mrb[0].mxu0
  %v1391 = vadd.f32 %v59, %v1390
  %v1392 = vpop.f32.mrb[0].mxu0
  %1393 = vdwg.mxu0
  %v1394 = vsel %vm372, %v1391, -inf
  %1395 = vmax.xlane.f32.xlu0 %v1394
  %v1396 = vpop.xlane.xlu0 %1395
  %v1397 = vsub.f32 %v1391, %v1396
  %v1398 = vmul.f32 %v1397, 1.442695
  %v1399 = vpow.pop %v1398
  %v1400 = vsel %vm372, %v1399, 0.0
  %1401 = vadd.xlane.f32.xlu0 %v1400
  %v1402 = vpop.xlane.xlu0 %1401
  %v1403 = vrcp.pop %v1402
  %v1404 = vmul.f32 %v1399, %v1403
  %1406 = vrot.lane.b32.xlu0 %v247, 16
  %v1407 = vpop.permute.xlu0 %1406
  %1408 = vrot.lane.b32.xlu0 %v289, 16
  %v1409 = vpop.permute.xlu0 %1408
  %v1410 = vsel %vm723, %v1407, %v1409
  %v1413 = vsel %vm372, %v1404, 0
  %1415 = vmatprep.subr.mxu0 0.0
  %1416 = vmatpush1.msra.mxu0 %v1410
  %1417 = vmatprep.subr.mxu0 0.0
  %1418 = vmatpush1.msra.mxu0 0.0
  %1419 = vmatprep.subr.mxu0 0.0
  %1420 = vmatpush1.msra.mxu0 0.0
  %1421 = vmatprep.subr.mxu0 0.0
  %1422 = vmatpush1.msra.mxu0 0.0
  %1423 = vmatprep.subr.mxu0 0.0
  %1424 = vmatpush1.msra.mxu0 0.0
  %1425 = vmatprep.subr.mxu0 0.0
  %1426 = vmatpush1.msra.mxu0 0.0
  %1427 = vmatprep.subr.mxu0 0.0
  %1428 = vmatpush1.msra.mxu0 0.0
  %1429 = vmatprep.subr.mxu0 0.0
  %1430 = vmatpush1.msra.mxu0 0.0
  %1431 = vmatprep.subr.mxu0 0.0
  %1432 = vmatpush1.msra.mxu0 0.0
  %1433 = vmatprep.subr.mxu0 0.0
  %1434 = vmatpush1.msra.mxu0 0.0
  %1435 = vmatprep.subr.mxu0 0.0
  %1436 = vmatpush1.msra.mxu0 0.0
  %1437 = vmatprep.subr.mxu0 0.0
  %1438 = vmatpush1.msra.mxu0 0.0
  %1439 = vmatprep.subr.mxu0 0.0
  %1440 = vmatpush1.msra.mxu0 0.0
  %1441 = vmatprep.subr.mxu0 0.0
  %1442 = vmatpush1.msra.mxu0 0.0
  %1443 = vmatprep.subr.mxu0 0.0
  %1444 = vmatpush1.msra.mxu0 0.0
  %1445 = vmatprep.subr.mxu0 0.0
  %1446 = vmatpush1.msra.mxu0 0.0
  %1447 = vmatprep.subr.mxu0 0.0
  %1448 = vmatpush1.msra.mxu0 0.0
  %1449 = vmatprep.subr.mxu0 0.0
  %1450 = vmatpush1.msra.mxu0 0.0
  %1451 = vmatprep.subr.mxu0 0.0
  %1452 = vmatpush1.msra.mxu0 0.0
  %1453 = vmatprep.subr.mxu0 0.0
  %1454 = vmatpush1.msra.mxu0 0.0
  %1455 = vmatprep.subr.mxu0 0.0
  %1456 = vmatpush1.msra.mxu0 0.0
  %1457 = vmatprep.subr.mxu0 0.0
  %1458 = vmatpush1.msra.mxu0 0.0
  %1459 = vmatprep.subr.mxu0 0.0
  %1460 = vmatpush1.msra.mxu0 0.0
  %1461 = vmatprep.subr.mxu0 0.0
  %1462 = vmatpush1.msra.mxu0 0.0
  %1463 = vmatprep.subr.mxu0 0.0
  %1464 = vmatpush1.msra.mxu0 0.0
  %1465 = vmatprep.subr.mxu0 0.0
  %1466 = vmatpush1.msra.mxu0 0.0
  %1467 = vmatprep.subr.mxu0 0.0
  %1468 = vmatpush1.msra.mxu0 0.0
  %1469 = vmatprep.subr.mxu0 0.0
  %1470 = vmatpush1.msra.mxu0 0.0
  %1471 = vmatprep.subr.mxu0 0.0
  %1472 = vmatpush1.msra.mxu0 0.0
  %1473 = vmatprep.subr.mxu0 0.0
  %1474 = vmatpush1.msra.mxu0 0.0
  %1475 = vmatprep.subr.mxu0 0.0
  %1476 = vmatpush1.msra.mxu0 0.0
  %1477 = vmatprep.subr.mxu0 0.0
  %1478 = vmatpush1.msra.mxu0 0.0
  %1479 = vmatprep.mubr.f32.mxu0 0.0
  %1480 = vmatmul.mubr.f32.gmra.mrb[0].mxu0 %v1413
  %v1481 = vpop.f32.mrb[0].mxu0
  %v1482 = vadd.f32 0.0, %v1481
  %v1483 = vpop.f32.mrb[0].mxu0
  %1484 = vdwg.mxu0
  %1485 = vrot.lane.b32.xlu0 %v981, 56
  %v1486 = vpop.permute.xlu0 %1485
  %1487 = vrot.lane.b32.xlu0 %v247, 88
  %v1488 = vpop.permute.xlu0 %1487
  %v1489 = vsel %vm296, %v1486, 0
  %v1491 = vsel %vm296, %v1488, 0
  %1493 = vmatprep.subr.mxu0 0.0
  %1494 = vmatpush1.xpose.msra.mxu0 %v1491
  %1495 = vmatprep.subr.mxu0 0.0
  %1496 = vmatpush1.xpose.msra.mxu0 0.0
  %1497 = vmatprep.subr.mxu0 0.0
  %1498 = vmatpush1.xpose.msra.mxu0 0.0
  %1499 = vmatprep.subr.mxu0 0.0
  %1500 = vmatpush1.xpose.msra.mxu0 0.0
  %1501 = vmatprep.subr.mxu0 0.0
  %1502 = vmatpush1.xpose.msra.mxu0 0.0
  %1503 = vmatprep.subr.mxu0 0.0
  %1504 = vmatpush1.xpose.msra.mxu0 0.0
  %1505 = vmatprep.subr.mxu0 0.0
  %1506 = vmatpush1.xpose.msra.mxu0 0.0
  %1507 = vmatprep.subr.mxu0 0.0
  %1508 = vmatpush1.xpose.msra.mxu0 0.0
  %1509 = vmatprep.subr.mxu0 0.0
  %1510 = vmatpush1.xpose.msra.mxu0 0.0
  %1511 = vmatprep.subr.mxu0 0.0
  %1512 = vmatpush1.xpose.msra.mxu0 0.0
  %1513 = vmatprep.subr.mxu0 0.0
  %1514 = vmatpush1.xpose.msra.mxu0 0.0
  %1515 = vmatprep.subr.mxu0 0.0
  %1516 = vmatpush1.xpose.msra.mxu0 0.0
  %1517 = vmatprep.subr.mxu0 0.0
  %1518 = vmatpush1.xpose.msra.mxu0 0.0
  %1519 = vmatprep.subr.mxu0 0.0
  %1520 = vmatpush1.xpose.msra.mxu0 0.0
  %1521 = vmatprep.subr.mxu0 0.0
  %1522 = vmatpush1.xpose.msra.mxu0 0.0
  %1523 = vmatprep.subr.mxu0 0.0
  %1524 = vmatpush1.xpose.msra.mxu0 0.0
  %1525 = vmatprep.subr.mxu0 0.0
  %1526 = vmatpush1.xpose.msra.mxu0 0.0
  %1527 = vmatprep.subr.mxu0 0.0
  %1528 = vmatpush1.xpose.msra.mxu0 0.0
  %1529 = vmatprep.subr.mxu0 0.0
  %1530 = vmatpush1.xpose.msra.mxu0 0.0
  %1531 = vmatprep.subr.mxu0 0.0
  %1532 = vmatpush1.xpose.msra.mxu0 0.0
  %1533 = vmatprep.subr.mxu0 0.0
  %1534 = vmatpush1.xpose.msra.mxu0 0.0
  %1535 = vmatprep.subr.mxu0 0.0
  %1536 = vmatpush1.xpose.msra.mxu0 0.0
  %1537 = vmatprep.subr.mxu0 0.0
  %1538 = vmatpush1.xpose.msra.mxu0 0.0
  %1539 = vmatprep.subr.mxu0 0.0
  %1540 = vmatpush1.xpose.msra.mxu0 0.0
  %1541 = vmatprep.subr.mxu0 0.0
  %1542 = vmatpush1.xpose.msra.mxu0 0.0
  %1543 = vmatprep.subr.mxu0 0.0
  %1544 = vmatpush1.xpose.msra.mxu0 0.0
  %1545 = vmatprep.subr.mxu0 0.0
  %1546 = vmatpush1.xpose.msra.mxu0 0.0
  %1547 = vmatprep.subr.mxu0 0.0
  %1548 = vmatpush1.xpose.msra.mxu0 0.0
  %1549 = vmatprep.subr.mxu0 0.0
  %1550 = vmatpush1.xpose.msra.mxu0 0.0
  %1551 = vmatprep.subr.mxu0 0.0
  %1552 = vmatpush1.xpose.msra.mxu0 0.0
  %1553 = vmatprep.subr.mxu0 0.0
  %1554 = vmatpush1.xpose.msra.mxu0 0.0
  %1555 = vmatprep.subr.mxu0 0.0
  %1556 = vmatpush1.xpose.msra.mxu0 0.0
  %1557 = vmatprep.mubr.f32.mxu0 0.0
  %1558 = vmatmul.mubr.f32.gmra.mrb[0].mxu0 %v1489
  %v1559 = vpop.f32.mrb[0].mxu0
  %v1560 = vadd.f32 %v59, %v1559
  %v1561 = vpop.f32.mrb[0].mxu0
  %1562 = vdwg.mxu0
  %v1563 = vsel %vm372, %v1560, -inf
  %1564 = vmax.xlane.f32.xlu0 %v1563
  %v1565 = vpop.xlane.xlu0 %1564
  %v1566 = vsub.f32 %v1560, %v1565
  %v1567 = vmul.f32 %v1566, 1.442695
  %v1568 = vpow.pop %v1567
  %v1569 = vsel %vm372, %v1568, 0.0
  %1570 = vadd.xlane.f32.xlu0 %v1569
  %v1571 = vpop.xlane.xlu0 %1570
  %v1572 = vrcp.pop %v1571
  %v1573 = vmul.f32 %v1568, %v1572
  %1574 = vrot.lane.b32.xlu0 %v289, 120
  %v1575 = vpop.permute.xlu0 %1574
  %v1578 = vsel %vm372, %v1573, 0
  %1580 = vmatprep.subr.mxu0 0.0
  %1581 = vmatpush1.msra.mxu0 %v1575
  %1582 = vmatprep.subr.mxu0 0.0
  %1583 = vmatpush1.msra.mxu0 0.0
  %1584 = vmatprep.subr.mxu0 0.0
  %1585 = vmatpush1.msra.mxu0 0.0
  %1586 = vmatprep.subr.mxu0 0.0
  %1587 = vmatpush1.msra.mxu0 0.0
  %1588 = vmatprep.subr.mxu0 0.0
  %1589 = vmatpush1.msra.mxu0 0.0
  %1590 = vmatprep.subr.mxu0 0.0
  %1591 = vmatpush1.msra.mxu0 0.0
  %1592 = vmatprep.subr.mxu0 0.0
  %1593 = vmatpush1.msra.mxu0 0.0
  %1594 = vmatprep.subr.mxu0 0.0
  %1595 = vmatpush1.msra.mxu0 0.0
  %1596 = vmatprep.subr.mxu0 0.0
  %1597 = vmatpush1.msra.mxu0 0.0
  %1598 = vmatprep.subr.mxu0 0.0
  %1599 = vmatpush1.msra.mxu0 0.0
  %1600 = vmatprep.subr.mxu0 0.0
  %1601 = vmatpush1.msra.mxu0 0.0
  %1602 = vmatprep.subr.mxu0 0.0
  %1603 = vmatpush1.msra.mxu0 0.0
  %1604 = vmatprep.subr.mxu0 0.0
  %1605 = vmatpush1.msra.mxu0 0.0
  %1606 = vmatprep.subr.mxu0 0.0
  %1607 = vmatpush1.msra.mxu0 0.0
  %1608 = vmatprep.subr.mxu0 0.0
  %1609 = vmatpush1.msra.mxu0 0.0
  %1610 = vmatprep.subr.mxu0 0.0
  %1611 = vmatpush1.msra.mxu0 0.0
  %1612 = vmatprep.subr.mxu0 0.0
  %1613 = vmatpush1.msra.mxu0 0.0
  %1614 = vmatprep.subr.mxu0 0.0
  %1615 = vmatpush1.msra.mxu0 0.0
  %1616 = vmatprep.subr.mxu0 0.0
  %1617 = vmatpush1.msra.mxu0 0.0
  %1618 = vmatprep.subr.mxu0 0.0
  %1619 = vmatpush1.msra.mxu0 0.0
  %1620 = vmatprep.subr.mxu0 0.0
  %1621 = vmatpush1.msra.mxu0 0.0
  %1622 = vmatprep.subr.mxu0 0.0
  %1623 = vmatpush1.msra.mxu0 0.0
  %1624 = vmatprep.subr.mxu0 0.0
  %1625 = vmatpush1.msra.mxu0 0.0
  %1626 = vmatprep.subr.mxu0 0.0
  %1627 = vmatpush1.msra.mxu0 0.0
  %1628 = vmatprep.subr.mxu0 0.0
  %1629 = vmatpush1.msra.mxu0 0.0
  %1630 = vmatprep.subr.mxu0 0.0
  %1631 = vmatpush1.msra.mxu0 0.0
  %1632 = vmatprep.subr.mxu0 0.0
  %1633 = vmatpush1.msra.mxu0 0.0
  %1634 = vmatprep.subr.mxu0 0.0
  %1635 = vmatpush1.msra.mxu0 0.0
  %1636 = vmatprep.subr.mxu0 0.0
  %1637 = vmatpush1.msra.mxu0 0.0
  %1638 = vmatprep.subr.mxu0 0.0
  %1639 = vmatpush1.msra.mxu0 0.0
  %1640 = vmatprep.subr.mxu0 0.0
  %1641 = vmatpush1.msra.mxu0 0.0
  %1642 = vmatprep.subr.mxu0 0.0
  %1643 = vmatpush1.msra.mxu0 0.0
  %1644 = vmatprep.mubr.f32.mxu0 0.0
  %1645 = vmatmul.mubr.f32.gmra.mrb[0].mxu0 %v1578
  %v1646 = vpop.f32.mrb[0].mxu0
  %v1647 = vadd.f32 0.0, %v1646
  %v1648 = vpop.f32.mrb[0].mxu0
  %1649 = vdwg.mxu0
  %1651 = vrot.lane.b32.xlu0 %v1313, 24
  %v1652 = vpop.permute.xlu0 %1651
  %1655 = vrot.lane.b32.xlu0 %v1482, 48
  %v1656 = vpop.permute.xlu0 %1655
  %1659 = vrot.lane.b32.xlu0 %v1647, 72
  %v1660 = vpop.permute.xlu0 %1659
  %v1662 = vsel %vm296, %v1145, %v1652
  %v1663 = vsel %vm977, %v1662, %v1656
  %v1664 = vsel %vm979, %v1663, %v1660
  %v1665 = vld [vmem:[%s3] sm:$0xf]
  %v1666 = vld [vmem:[%s3 + $0x4] sm:$0xf]
  %v1667 = vld [vmem:[%s3 + $0x8] sm:$0xf]
  %v1668 = vld [vmem:[%s3 + $0xc] sm:$0xf]
  %v1669 = vld [vmem:[%s3 + $0x10] sm:$0xf]
  %v1670 = vld [vmem:[%s3 + $0x14] sm:$0xf]
  %v1671 = vld [vmem:[%s3 + $0x18] sm:$0xf]
  %v1672 = vld [vmem:[%s3 + $0x1c] sm:$0xf]
  %v1673 = vld [vmem:[%s3 + $0x20] sm:$0xf]
  %v1674 = vld [vmem:[%s3 + $0x24] sm:$0xf]
  %v1675 = vld [vmem:[%s3 + $0x28] sm:$0xf]
  %v1676 = vld [vmem:[%s3 + $0x2c] sm:$0xf]
  %v1677 = vld [vmem:[%s4] sm:$0x1]
  %v1679 = vlaneseq
  %v1680 = vshrl.u32 %v1679, 7
  %v1681 = vsub.s32 0, %v1680
  %v1682 = vrot.slane %v1677, %v1681
  %v1696 = vunpack.c.l.b16 %v1665
  %v1697 = vunpack.c.l.b16 %v1666
  %v1698 = vunpack.c.l.b16 %v1667
  %v1699 = vunpack.c.l.b16 %v1668
  %v1700 = vunpack.c.l.b16 %v1669
  %v1701 = vunpack.c.l.b16 %v1670
  %v1702 = vunpack.c.l.b16 %v1671
  %v1703 = vunpack.c.l.b16 %v1672
  %v1704 = vunpack.c.l.b16 %v1673
  %v1705 = vunpack.c.l.b16 %v1674
  %v1706 = vunpack.c.l.b16 %v1675
  %v1707 = vunpack.c.l.b16 %v1676
  %v1708 = vpack.c.b16 %v1697, %v1696
  %v1709 = vpack.c.b16 %v1699, %v1698
  %v1710 = vpack.c.b16 %v1701, %v1700
  %v1711 = vpack.c.b16 %v1703, %v1702
  %v1712 = vpack.c.b16 %v1705, %v1704
  %v1713 = vpack.c.b16 %v1707, %v1706
  %v1721 = vsel %vm197, %v980, 0
  %v1724 = vsel %vm197, %v1664, 0
  %1726 = vmatprep.subr.bf16.mxu0 0
  %1727 = vmatpush1.bf16.msra.mxu0 %v1708
  %1728 = vmatprep.subr.bf16.mxu0 0
  %1729 = vmatpush1.bf16.msra.mxu0 %v1709
  %1730 = vmatprep.subr.bf16.mxu0 0
  %1731 = vmatpush1.bf16.msra.mxu0 %v1710
  %1732 = vmatprep.subr.bf16.mxu0 0
  %1733 = vmatpush1.bf16.msra.mxu0 %v1711
  %1734 = vmatprep.subr.bf16.mxu0 0
  %1735 = vmatpush1.bf16.msra.mxu0 %v1712
  %1736 = vmatprep.subr.bf16.mxu0 0
  %1737 = vmatpush1.bf16.msra.mxu0 %v1713
  %1738 = vmatprep.subr.bf16.mxu0 0
  %1739 = vmatpush1.bf16.msra.mxu0 0
  %1740 = vmatprep.subr.bf16.mxu0 0
  %1741 = vmatpush1.bf16.msra.mxu0 0
  %1742 = vmatprep.subr.bf16.mxu0 0
  %1743 = vmatpush1.bf16.msra.mxu0 0
  %1744 = vmatprep.subr.bf16.mxu0 0
  %1745 = vmatpush1.bf16.msra.mxu0 0
  %1746 = vmatprep.subr.bf16.mxu0 0
  %1747 = vmatpush1.bf16.msra.mxu0 0
  %1748 = vmatprep.subr.bf16.mxu0 0
  %1749 = vmatpush1.bf16.msra.mxu0 0
  %1750 = vmatprep.subr.bf16.mxu0 0
  %1751 = vmatpush1.bf16.msra.mxu0 0
  %1752 = vmatprep.subr.bf16.mxu0 0
  %1753 = vmatpush1.bf16.msra.mxu0 0
  %1754 = vmatprep.subr.bf16.mxu0 0
  %1755 = vmatpush1.bf16.msra.mxu0 0
  %1756 = vmatprep.subr.bf16.mxu0 0
  %1757 = vmatpush1.bf16.msra.mxu0 0
  %1758 = vmatprep.mubr.f32.mxu0 0.0
  %1759 = vmatmul.mubr.f32.gmra.mrb[0].mxu0 %v1721
  %v1760 = vpop.f32.mrb[0].mxu0
  %v1761 = vadd.f32 %v1682, %v1760
  %v1762 = vpop.f32.mrb[0].mxu0
  %1763 = vmatprep.mubr.f32.mxu0 0.0
  %1764 = vmatmul.mubr.f32.gmra.mrb[0].mxu0 %v1724
  %v1765 = vpop.f32.mrb[0].mxu0
  %v1766 = vadd.f32 %v1682, %v1765
  %v1767 = vpop.f32.mrb[0].mxu0
  %1768 = vdwg.mxu0
  %v1769 = vadd.f32 %v51, %v1761
  %v1770 = vadd.f32 %v52, %v1766
  %v1771 = vld [vmem:[%s5] sm:$0x1]
  %v1772 = vld [vmem:[%s6] sm:$0x1]
  %v1773 = vsel %vm197, %v1769, 0.0
  %1774 = vadd.xlane.f32.xlu0 %v1773
  %v1775 = vpop.xlane.xlu0 %1774
  %v1776 = vsel %vm197, %v1770, 0.0
  %1777 = vadd.xlane.f32.xlu0 %v1776
  %v1778 = vpop.xlane.xlu0 %1777
  %v1779 = vrcp.pop 96.0
  %v1780 = vmul.f32 %v1775, %v1779
  %v1781 = vmul.f32 %v1778, %v1779
  %v1782 = vsub.f32 %v1769, %v1780
  %v1783 = vsub.f32 %v1770, %v1781
  %v1784 = vmul.f32 %v1782, %v1782
  %v1785 = vmul.f32 %v1783, %v1783
  %v1786 = vsel %vm197, %v1784, 0.0
  %1787 = vadd.xlane.f32.xlu0 %v1786
  %v1788 = vpop.xlane.xlu0 %1787
  %v1789 = vsel %vm197, %v1785, 0.0
  %1790 = vadd.xlane.f32.xlu0 %v1789
  %v1791 = vpop.xlane.xlu0 %1790
  %v1792 = vmul.f32 %v1788, %v1779
  %v1793 = vmul.f32 %v1791, %v1779
  %v1794 = vadd.f32 %v1792, 1e-05
  %v1795 = vadd.f32 %v1793, 1e-05
  %v1796 = vrsqrt.pop %v1794
  %v1797 = vrsqrt.pop %v1795
  %v1798 = vmul.f32 %v1782, %v1796
  %v1799 = vmul.f32 %v1783, %v1797
  %v1801 = vlaneseq
  %v1802 = vshrl.u32 %v1801, 7
  %v1803 = vsub.s32 0, %v1802
  %v1804 = vrot.slane %v1771, %v1803
  %v1806 = vmul.f32 %v1798, %v1804
  %v1807 = vmul.f32 %v1799, %v1804
  %v1809 = vlaneseq
  %v1810 = vshrl.u32 %v1809, 7
  %v1811 = vsub.s32 0, %v1810
  %v1812 = vrot.slane %v1772, %v1811
  %v1814 = vadd.f32 %v1806, %v1812
  %v1815 = vadd.f32 %v1807, %v1812
  %v1816 = vld [vmem:[%s7] sm:$0xff]
  %v1817 = vld [vmem:[%s7 + $0x8] sm:$0xff]
  %v1818 = vld [vmem:[%s7 + $0x10] sm:$0xff]
  %v1819 = vld [vmem:[%s7 + $0x18] sm:$0xff]
  %v1820 = vld [vmem:[%s7 + $0x20] sm:$0xff]
  %v1821 = vld [vmem:[%s7 + $0x28] sm:$0xff]
  %v1822 = vld [vmem:[%s7 + $0x30] sm:$0xff]
  %v1823 = vld [vmem:[%s7 + $0x38] sm:$0xff]
  %v1824 = vld [vmem:[%s7 + $0x40] sm:$0xff]
  %v1825 = vld [vmem:[%s7 + $0x48] sm:$0xff]
  %v1826 = vld [vmem:[%s7 + $0x50] sm:$0xff]
  %v1827 = vld [vmem:[%s7 + $0x58] sm:$0xff]
  %v1828 = vld [vmem:[%s7 + $0x60] sm:$0xff]
  %v1829 = vld [vmem:[%s7 + $0x68] sm:$0xff]
  %v1830 = vld [vmem:[%s7 + $0x70] sm:$0xff]
  %v1831 = vld [vmem:[%s7 + $0x78] sm:$0xff]
  %v1832 = vld [vmem:[%s7 + $0x80] sm:$0xff]
  %v1833 = vld [vmem:[%s7 + $0x88] sm:$0xff]
  %v1834 = vld [vmem:[%s7 + $0x90] sm:$0xff]
  %v1835 = vld [vmem:[%s7 + $0x98] sm:$0xff]
  %v1836 = vld [vmem:[%s7 + $0xa0] sm:$0xff]
  %v1837 = vld [vmem:[%s7 + $0xa8] sm:$0xff]
  %v1838 = vld [vmem:[%s7 + $0xb0] sm:$0xff]
  %v1839 = vld [vmem:[%s7 + $0xb8] sm:$0xff]
  %v1840 = vld [vmem:[%s7 + $0xc0] sm:$0xff]
  %v1841 = vld [vmem:[%s7 + $0xc8] sm:$0xff]
  %v1842 = vld [vmem:[%s7 + $0xd0] sm:$0xff]
  %v1843 = vld [vmem:[%s7 + $0xd8] sm:$0xff]
  %v1844 = vld [vmem:[%s7 + $0xe0] sm:$0xff]
  %v1845 = vld [vmem:[%s7 + $0xe8] sm:$0xff]
  %v1846 = vld [vmem:[%s7 + $0xf0] sm:$0xff]
  %v1847 = vld [vmem:[%s7 + $0xf8] sm:$0xff]
  %v1848 = vld [vmem:[%s7 + $0x100] sm:$0xff]
  %v1849 = vld [vmem:[%s7 + $0x108] sm:$0xff]
  %v1850 = vld [vmem:[%s7 + $0x110] sm:$0xff]
  %v1851 = vld [vmem:[%s7 + $0x118] sm:$0xff]
  %v1852 = vld [vmem:[%s7 + $0x120] sm:$0xff]
  %v1853 = vld [vmem:[%s7 + $0x128] sm:$0xff]
  %v1854 = vld [vmem:[%s7 + $0x130] sm:$0xff]
  %v1855 = vld [vmem:[%s7 + $0x138] sm:$0xff]
  %v1856 = vld [vmem:[%s7 + $0x140] sm:$0xff]
  %v1857 = vld [vmem:[%s7 + $0x148] sm:$0xff]
  %v1858 = vld [vmem:[%s7 + $0x150] sm:$0xff]
  %v1859 = vld [vmem:[%s7 + $0x158] sm:$0xff]
  %v1860 = vld [vmem:[%s7 + $0x160] sm:$0xff]
  %v1861 = vld [vmem:[%s7 + $0x168] sm:$0xff]
  %v1862 = vld [vmem:[%s7 + $0x170] sm:$0xff]
  %v1863 = vld [vmem:[%s7 + $0x178] sm:$0xff]
  %v1864 = vld [vmem:[%s7 + $0x180] sm:$0xff]
  %v1865 = vld [vmem:[%s7 + $0x188] sm:$0xff]
  %v1866 = vld [vmem:[%s7 + $0x190] sm:$0xff]
  %v1867 = vld [vmem:[%s7 + $0x198] sm:$0xff]
  %v1868 = vld [vmem:[%s7 + $0x1a0] sm:$0xff]
  %v1869 = vld [vmem:[%s7 + $0x1a8] sm:$0xff]
  %v1870 = vld [vmem:[%s7 + $0x1b0] sm:$0xff]
  %v1871 = vld [vmem:[%s7 + $0x1b8] sm:$0xff]
  %v1872 = vld [vmem:[%s7 + $0x1c0] sm:$0xff]
  %v1873 = vld [vmem:[%s7 + $0x1c8] sm:$0xff]
  %v1874 = vld [vmem:[%s7 + $0x1d0] sm:$0xff]
  %v1875 = vld [vmem:[%s7 + $0x1d8] sm:$0xff]
  %v1876 = vld [vmem:[%s7 + $0x1e0] sm:$0xff]
  %v1877 = vld [vmem:[%s7 + $0x1e8] sm:$0xff]
  %v1878 = vld [vmem:[%s7 + $0x1f0] sm:$0xff]
  %v1879 = vld [vmem:[%s7 + $0x1f8] sm:$0xff]
  %v1880 = vld [vmem:[%s7 + $0x200] sm:$0xff]
  %v1881 = vld [vmem:[%s7 + $0x208] sm:$0xff]
  %v1882 = vld [vmem:[%s7 + $0x210] sm:$0xff]
  %v1883 = vld [vmem:[%s7 + $0x218] sm:$0xff]
  %v1884 = vld [vmem:[%s7 + $0x220] sm:$0xff]
  %v1885 = vld [vmem:[%s7 + $0x228] sm:$0xff]
  %v1886 = vld [vmem:[%s7 + $0x230] sm:$0xff]
  %v1887 = vld [vmem:[%s7 + $0x238] sm:$0xff]
  %v1888 = vld [vmem:[%s7 + $0x240] sm:$0xff]
  %v1889 = vld [vmem:[%s7 + $0x248] sm:$0xff]
  %v1890 = vld [vmem:[%s7 + $0x250] sm:$0xff]
  %v1891 = vld [vmem:[%s7 + $0x258] sm:$0xff]
  %v1892 = vld [vmem:[%s7 + $0x260] sm:$0xff]
  %v1893 = vld [vmem:[%s7 + $0x268] sm:$0xff]
  %v1894 = vld [vmem:[%s7 + $0x270] sm:$0xff]
  %v1895 = vld [vmem:[%s7 + $0x278] sm:$0xff]
  %v1896 = vld [vmem:[%s7 + $0x280] sm:$0xff]
  %v1897 = vld [vmem:[%s7 + $0x288] sm:$0xff]
  %v1898 = vld [vmem:[%s7 + $0x290] sm:$0xff]
  %v1899 = vld [vmem:[%s7 + $0x298] sm:$0xff]
  %v1900 = vld [vmem:[%s7 + $0x2a0] sm:$0xff]
  %v1901 = vld [vmem:[%s7 + $0x2a8] sm:$0xff]
  %v1902 = vld [vmem:[%s7 + $0x2b0] sm:$0xff]
  %v1903 = vld [vmem:[%s7 + $0x2b8] sm:$0xff]
  %v1904 = vld [vmem:[%s7 + $0x2c0] sm:$0xff]
  %v1905 = vld [vmem:[%s7 + $0x2c8] sm:$0xff]
  %v1906 = vld [vmem:[%s7 + $0x2d0] sm:$0xff]
  %v1907 = vld [vmem:[%s7 + $0x2d8] sm:$0xff]
  %v1908 = vld [vmem:[%s7 + $0x2e0] sm:$0xff]
  %v1909 = vld [vmem:[%s7 + $0x2e8] sm:$0xff]
  %v1910 = vld [vmem:[%s7 + $0x2f0] sm:$0xff]
  %v1911 = vld [vmem:[%s7 + $0x2f8] sm:$0xff]
  %v1912 = vld [vmem:[%s8] sm:$0xff]
  %v1913 = vld [vmem:[%s8 + $0x8] sm:$0xff]
  %v1916 = vlaneseq
  %v1917 = vshrl.u32 %v1916, 7
  %v1918 = vsub.s32 0, %v1917
  %v1919 = vrot.slane %v1912, %v1918
  %v1920 = vlaneseq
  %v1921 = vshrl.u32 %v1920, 7
  %v1922 = vsub.s32 1, %v1921
  %v1923 = vrot.slane %v1912, %v1922
  %v1924 = vlaneseq
  %v1925 = vshrl.u32 %v1924, 7
  %v1926 = vsub.s32 2, %v1925
  %v1927 = vrot.slane %v1912, %v1926
  %v1928 = vlaneseq
  %v1929 = vshrl.u32 %v1928, 7
  %v1930 = vsub.s32 3, %v1929
  %v1931 = vrot.slane %v1912, %v1930
  %v1932 = vlaneseq
  %v1933 = vshrl.u32 %v1932, 7
  %v1934 = vsub.s32 4, %v1933
  %v1935 = vrot.slane %v1912, %v1934
  %v1936 = vlaneseq
  %v1937 = vshrl.u32 %v1936, 7
  %v1938 = vsub.s32 5, %v1937
  %v1939 = vrot.slane %v1912, %v1938
  %v1940 = vlaneseq
  %v1941 = vshrl.u32 %v1940, 7
  %v1942 = vsub.s32 6, %v1941
  %v1943 = vrot.slane %v1912, %v1942
  %v1944 = vlaneseq
  %v1945 = vshrl.u32 %v1944, 7
  %v1946 = vsub.s32 7, %v1945
  %v1947 = vrot.slane %v1912, %v1946
  %v1948 = vlaneseq
  %v1949 = vshrl.u32 %v1948, 7
  %v1950 = vsub.s32 0, %v1949
  %v1951 = vrot.slane %v1913, %v1950
  %v1952 = vlaneseq
  %v1953 = vshrl.u32 %v1952, 7
  %v1954 = vsub.s32 1, %v1953
  %v1955 = vrot.slane %v1913, %v1954
  %v1956 = vlaneseq
  %v1957 = vshrl.u32 %v1956, 7
  %v1958 = vsub.s32 2, %v1957
  %v1959 = vrot.slane %v1913, %v1958
  %v1960 = vlaneseq
  %v1961 = vshrl.u32 %v1960, 7
  %v1962 = vsub.s32 3, %v1961
  %v1963 = vrot.slane %v1913, %v1962
  %v1964 = vlaneseq
  %v1965 = vshrl.u32 %v1964, 7
  %v1966 = vsub.s32 4, %v1965
  %v1967 = vrot.slane %v1913, %v1966
  %v1968 = vlaneseq
  %v1969 = vshrl.u32 %v1968, 7
  %v1970 = vsub.s32 5, %v1969
  %v1971 = vrot.slane %v1913, %v1970
  %v1972 = vlaneseq
  %v1973 = vshrl.u32 %v1972, 7
  %v1974 = vsub.s32 6, %v1973
  %v1975 = vrot.slane %v1913, %v1974
  %v1976 = vlaneseq
  %v1977 = vshrl.u32 %v1976, 7
  %v1978 = vsub.s32 7, %v1977
  %v1979 = vrot.slane %v1913, %v1978
  %v2092 = vunpack.c.l.b16 %v1816
  %v2093 = vunpack.c.h.b16 %v1816
  %v2094 = vunpack.c.l.b16 %v1817
  %v2095 = vunpack.c.h.b16 %v1817
  %v2096 = vunpack.c.l.b16 %v1818
  %v2097 = vunpack.c.h.b16 %v1818
  %v2098 = vunpack.c.l.b16 %v1819
  %v2099 = vunpack.c.h.b16 %v1819
  %v2100 = vunpack.c.l.b16 %v1820
  %v2101 = vunpack.c.h.b16 %v1820
  %v2102 = vunpack.c.l.b16 %v1821
  %v2103 = vunpack.c.h.b16 %v1821
  %v2104 = vunpack.c.l.b16 %v1822
  %v2105 = vunpack.c.h.b16 %v1822
  %v2106 = vunpack.c.l.b16 %v1823
  %v2107 = vunpack.c.h.b16 %v1823
  %v2108 = vunpack.c.l.b16 %v1824
  %v2109 = vunpack.c.h.b16 %v1824
  %v2110 = vunpack.c.l.b16 %v1825
  %v2111 = vunpack.c.h.b16 %v1825
  %v2112 = vunpack.c.l.b16 %v1826
  %v2113 = vunpack.c.h.b16 %v1826
  %v2114 = vunpack.c.l.b16 %v1827
  %v2115 = vunpack.c.h.b16 %v1827
  %v2116 = vunpack.c.l.b16 %v1828
  %v2117 = vunpack.c.h.b16 %v1828
  %v2118 = vunpack.c.l.b16 %v1829
  %v2119 = vunpack.c.h.b16 %v1829
  %v2120 = vunpack.c.l.b16 %v1830
  %v2121 = vunpack.c.h.b16 %v1830
  %v2122 = vunpack.c.l.b16 %v1831
  %v2123 = vunpack.c.h.b16 %v1831
  %v2124 = vunpack.c.l.b16 %v1832
  %v2125 = vunpack.c.h.b16 %v1832
  %v2126 = vunpack.c.l.b16 %v1833
  %v2127 = vunpack.c.h.b16 %v1833
  %v2128 = vunpack.c.l.b16 %v1834
  %v2129 = vunpack.c.h.b16 %v1834
  %v2130 = vunpack.c.l.b16 %v1835
  %v2131 = vunpack.c.h.b16 %v1835
  %v2132 = vunpack.c.l.b16 %v1836
  %v2133 = vunpack.c.h.b16 %v1836
  %v2134 = vunpack.c.l.b16 %v1837
  %v2135 = vunpack.c.h.b16 %v1837
  %v2136 = vunpack.c.l.b16 %v1838
  %v2137 = vunpack.c.h.b16 %v1838
  %v2138 = vunpack.c.l.b16 %v1839
  %v2139 = vunpack.c.h.b16 %v1839
  %v2140 = vunpack.c.l.b16 %v1840
  %v2141 = vunpack.c.h.b16 %v1840
  %v2142 = vunpack.c.l.b16 %v1841
  %v2143 = vunpack.c.h.b16 %v1841
  %v2144 = vunpack.c.l.b16 %v1842
  %v2145 = vunpack.c.h.b16 %v1842
  %v2146 = vunpack.c.l.b16 %v1843
  %v2147 = vunpack.c.h.b16 %v1843
  %v2148 = vunpack.c.l.b16 %v1844
  %v2149 = vunpack.c.h.b16 %v1844
  %v2150 = vunpack.c.l.b16 %v1845
  %v2151 = vunpack.c.h.b16 %v1845
  %v2152 = vunpack.c.l.b16 %v1846
  %v2153 = vunpack.c.h.b16 %v1846
  %v2154 = vunpack.c.l.b16 %v1847
  %v2155 = vunpack.c.h.b16 %v1847
  %v2156 = vunpack.c.l.b16 %v1848
  %v2157 = vunpack.c.h.b16 %v1848
  %v2158 = vunpack.c.l.b16 %v1849
  %v2159 = vunpack.c.h.b16 %v1849
  %v2160 = vunpack.c.l.b16 %v1850
  %v2161 = vunpack.c.h.b16 %v1850
  %v2162 = vunpack.c.l.b16 %v1851
  %v2163 = vunpack.c.h.b16 %v1851
  %v2164 = vunpack.c.l.b16 %v1852
  %v2165 = vunpack.c.h.b16 %v1852
  %v2166 = vunpack.c.l.b16 %v1853
  %v2167 = vunpack.c.h.b16 %v1853
  %v2168 = vunpack.c.l.b16 %v1854
  %v2169 = vunpack.c.h.b16 %v1854
  %v2170 = vunpack.c.l.b16 %v1855
  %v2171 = vunpack.c.h.b16 %v1855
  %v2172 = vunpack.c.l.b16 %v1856
  %v2173 = vunpack.c.h.b16 %v1856
  %v2174 = vunpack.c.l.b16 %v1857
  %v2175 = vunpack.c.h.b16 %v1857
  %v2176 = vunpack.c.l.b16 %v1858
  %v2177 = vunpack.c.h.b16 %v1858
  %v2178 = vunpack.c.l.b16 %v1859
  %v2179 = vunpack.c.h.b16 %v1859
  %v2180 = vunpack.c.l.b16 %v1860
  %v2181 = vunpack.c.h.b16 %v1860
  %v2182 = vunpack.c.l.b16 %v1861
  %v2183 = vunpack.c.h.b16 %v1861
  %v2184 = vunpack.c.l.b16 %v1862
  %v2185 = vunpack.c.h.b16 %v1862
  %v2186 = vunpack.c.l.b16 %v1863
  %v2187 = vunpack.c.h.b16 %v1863
  %v2188 = vunpack.c.l.b16 %v1864
  %v2189 = vunpack.c.h.b16 %v1864
  %v2190 = vunpack.c.l.b16 %v1865
  %v2191 = vunpack.c.h.b16 %v1865
  %v2192 = vunpack.c.l.b16 %v1866
  %v2193 = vunpack.c.h.b16 %v1866
  %v2194 = vunpack.c.l.b16 %v1867
  %v2195 = vunpack.c.h.b16 %v1867
  %v2196 = vunpack.c.l.b16 %v1868
  %v2197 = vunpack.c.h.b16 %v1868
  %v2198 = vunpack.c.l.b16 %v1869
  %v2199 = vunpack.c.h.b16 %v1869
  %v2200 = vunpack.c.l.b16 %v1870
  %v2201 = vunpack.c.h.b16 %v1870
  %v2202 = vunpack.c.l.b16 %v1871
  %v2203 = vunpack.c.h.b16 %v1871
  %v2204 = vunpack.c.l.b16 %v1872
  %v2205 = vunpack.c.h.b16 %v1872
  %v2206 = vunpack.c.l.b16 %v1873
  %v2207 = vunpack.c.h.b16 %v1873
  %v2208 = vunpack.c.l.b16 %v1874
  %v2209 = vunpack.c.h.b16 %v1874
  %v2210 = vunpack.c.l.b16 %v1875
  %v2211 = vunpack.c.h.b16 %v1875
  %v2212 = vunpack.c.l.b16 %v1876
  %v2213 = vunpack.c.h.b16 %v1876
  %v2214 = vunpack.c.l.b16 %v1877
  %v2215 = vunpack.c.h.b16 %v1877
  %v2216 = vunpack.c.l.b16 %v1878
  %v2217 = vunpack.c.h.b16 %v1878
  %v2218 = vunpack.c.l.b16 %v1879
  %v2219 = vunpack.c.h.b16 %v1879
  %v2220 = vunpack.c.l.b16 %v1880
  %v2221 = vunpack.c.h.b16 %v1880
  %v2222 = vunpack.c.l.b16 %v1881
  %v2223 = vunpack.c.h.b16 %v1881
  %v2224 = vunpack.c.l.b16 %v1882
  %v2225 = vunpack.c.h.b16 %v1882
  %v2226 = vunpack.c.l.b16 %v1883
  %v2227 = vunpack.c.h.b16 %v1883
  %v2228 = vunpack.c.l.b16 %v1884
  %v2229 = vunpack.c.h.b16 %v1884
  %v2230 = vunpack.c.l.b16 %v1885
  %v2231 = vunpack.c.h.b16 %v1885
  %v2232 = vunpack.c.l.b16 %v1886
  %v2233 = vunpack.c.h.b16 %v1886
  %v2234 = vunpack.c.l.b16 %v1887
  %v2235 = vunpack.c.h.b16 %v1887
  %v2236 = vunpack.c.l.b16 %v1888
  %v2237 = vunpack.c.h.b16 %v1888
  %v2238 = vunpack.c.l.b16 %v1889
  %v2239 = vunpack.c.h.b16 %v1889
  %v2240 = vunpack.c.l.b16 %v1890
  %v2241 = vunpack.c.h.b16 %v1890
  %v2242 = vunpack.c.l.b16 %v1891
  %v2243 = vunpack.c.h.b16 %v1891
  %v2244 = vunpack.c.l.b16 %v1892
  %v2245 = vunpack.c.h.b16 %v1892
  %v2246 = vunpack.c.l.b16 %v1893
  %v2247 = vunpack.c.h.b16 %v1893
  %v2248 = vunpack.c.l.b16 %v1894
  %v2249 = vunpack.c.h.b16 %v1894
  %v2250 = vunpack.c.l.b16 %v1895
  %v2251 = vunpack.c.h.b16 %v1895
  %v2252 = vunpack.c.l.b16 %v1896
  %v2253 = vunpack.c.h.b16 %v1896
  %v2254 = vunpack.c.l.b16 %v1897
  %v2255 = vunpack.c.h.b16 %v1897
  %v2256 = vunpack.c.l.b16 %v1898
  %v2257 = vunpack.c.h.b16 %v1898
  %v2258 = vunpack.c.l.b16 %v1899
  %v2259 = vunpack.c.h.b16 %v1899
  %v2260 = vunpack.c.l.b16 %v1900
  %v2261 = vunpack.c.h.b16 %v1900
  %v2262 = vunpack.c.l.b16 %v1901
  %v2263 = vunpack.c.h.b16 %v1901
  %v2264 = vunpack.c.l.b16 %v1902
  %v2265 = vunpack.c.h.b16 %v1902
  %v2266 = vunpack.c.l.b16 %v1903
  %v2267 = vunpack.c.h.b16 %v1903
  %v2268 = vunpack.c.l.b16 %v1904
  %v2269 = vunpack.c.h.b16 %v1904
  %v2270 = vunpack.c.l.b16 %v1905
  %v2271 = vunpack.c.h.b16 %v1905
  %v2272 = vunpack.c.l.b16 %v1906
  %v2273 = vunpack.c.h.b16 %v1906
  %v2274 = vunpack.c.l.b16 %v1907
  %v2275 = vunpack.c.h.b16 %v1907
  %v2276 = vunpack.c.l.b16 %v1908
  %v2277 = vunpack.c.h.b16 %v1908
  %v2278 = vunpack.c.l.b16 %v1909
  %v2279 = vunpack.c.h.b16 %v1909
  %v2280 = vunpack.c.l.b16 %v1910
  %v2281 = vunpack.c.h.b16 %v1910
  %v2282 = vunpack.c.l.b16 %v1911
  %v2283 = vunpack.c.h.b16 %v1911
  %v2284 = vpack.c.b16 %v2108, %v2092
  %v2285 = vpack.c.b16 %v2109, %v2093
  %v2286 = vpack.c.b16 %v2110, %v2094
  %v2287 = vpack.c.b16 %v2111, %v2095
  %v2288 = vpack.c.b16 %v2112, %v2096
  %v2289 = vpack.c.b16 %v2113, %v2097
  %v2290 = vpack.c.b16 %v2114, %v2098
  %v2291 = vpack.c.b16 %v2115, %v2099
  %v2292 = vpack.c.b16 %v2116, %v2100
  %v2293 = vpack.c.b16 %v2117, %v2101
  %v2294 = vpack.c.b16 %v2118, %v2102
  %v2295 = vpack.c.b16 %v2119, %v2103
  %v2296 = vpack.c.b16 %v2120, %v2104
  %v2297 = vpack.c.b16 %v2121, %v2105
  %v2298 = vpack.c.b16 %v2122, %v2106
  %v2299 = vpack.c.b16 %v2123, %v2107
  %v2300 = vpack.c.b16 %v2140, %v2124
  %v2301 = vpack.c.b16 %v2141, %v2125
  %v2302 = vpack.c.b16 %v2142, %v2126
  %v2303 = vpack.c.b16 %v2143, %v2127
  %v2304 = vpack.c.b16 %v2144, %v2128
  %v2305 = vpack.c.b16 %v2145, %v2129
  %v2306 = vpack.c.b16 %v2146, %v2130
  %v2307 = vpack.c.b16 %v2147, %v2131
  %v2308 = vpack.c.b16 %v2148, %v2132
  %v2309 = vpack.c.b16 %v2149, %v2133
  %v2310 = vpack.c.b16 %v2150, %v2134
  %v2311 = vpack.c.b16 %v2151, %v2135
  %v2312 = vpack.c.b16 %v2152, %v2136
  %v2313 = vpack.c.b16 %v2153, %v2137
  %v2314 = vpack.c.b16 %v2154, %v2138
  %v2315 = vpack.c.b16 %v2155, %v2139
  %v2316 = vpack.c.b16 %v2172, %v2156
  %v2317 = vpack.c.b16 %v2173, %v2157
  %v2318 = vpack.c.b16 %v2174, %v2158
  %v2319 = vpack.c.b16 %v2175, %v2159
  %v2320 = vpack.c.b16 %v2176, %v2160
  %v2321 = vpack.c.b16 %v2177, %v2161
  %v2322 = vpack.c.b16 %v2178, %v2162
  %v2323 = vpack.c.b16 %v2179, %v2163
  %v2324 = vpack.c.b16 %v2180, %v2164
  %v2325 = vpack.c.b16 %v2181, %v2165
  %v2326 = vpack.c.b16 %v2182, %v2166
  %v2327 = vpack.c.b16 %v2183, %v2167
  %v2328 = vpack.c.b16 %v2184, %v2168
  %v2329 = vpack.c.b16 %v2185, %v2169
  %v2330 = vpack.c.b16 %v2186, %v2170
  %v2331 = vpack.c.b16 %v2187, %v2171
  %v2332 = vpack.c.b16 %v2204, %v2188
  %v2333 = vpack.c.b16 %v2205, %v2189
  %v2334 = vpack.c.b16 %v2206, %v2190
  %v2335 = vpack.c.b16 %v2207, %v2191
  %v2336 = vpack.c.b16 %v2208, %v2192
  %v2337 = vpack.c.b16 %v2209, %v2193
  %v2338 = vpack.c.b16 %v2210, %v2194
  %v2339 = vpack.c.b16 %v2211, %v2195
  %v2340 = vpack.c.b16 %v2212, %v2196
  %v2341 = vpack.c.b16 %v2213, %v2197
  %v2342 = vpack.c.b16 %v2214, %v2198
  %v2343 = vpack.c.b16 %v2215, %v2199
  %v2344 = vpack.c.b16 %v2216, %v2200
  %v2345 = vpack.c.b16 %v2217, %v2201
  %v2346 = vpack.c.b16 %v2218, %v2202
  %v2347 = vpack.c.b16 %v2219, %v2203
  %v2348 = vpack.c.b16 %v2236, %v2220
  %v2349 = vpack.c.b16 %v2237, %v2221
  %v2350 = vpack.c.b16 %v2238, %v2222
  %v2351 = vpack.c.b16 %v2239, %v2223
  %v2352 = vpack.c.b16 %v2240, %v2224
  %v2353 = vpack.c.b16 %v2241, %v2225
  %v2354 = vpack.c.b16 %v2242, %v2226
  %v2355 = vpack.c.b16 %v2243, %v2227
  %v2356 = vpack.c.b16 %v2244, %v2228
  %v2357 = vpack.c.b16 %v2245, %v2229
  %v2358 = vpack.c.b16 %v2246, %v2230
  %v2359 = vpack.c.b16 %v2247, %v2231
  %v2360 = vpack.c.b16 %v2248, %v2232
  %v2361 = vpack.c.b16 %v2249, %v2233
  %v2362 = vpack.c.b16 %v2250, %v2234
  %v2363 = vpack.c.b16 %v2251, %v2235
  %v2364 = vpack.c.b16 %v2268, %v2252
  %v2365 = vpack.c.b16 %v2269, %v2253
  %v2366 = vpack.c.b16 %v2270, %v2254
  %v2367 = vpack.c.b16 %v2271, %v2255
  %v2368 = vpack.c.b16 %v2272, %v2256
  %v2369 = vpack.c.b16 %v2273, %v2257
  %v2370 = vpack.c.b16 %v2274, %v2258
  %v2371 = vpack.c.b16 %v2275, %v2259
  %v2372 = vpack.c.b16 %v2276, %v2260
  %v2373 = vpack.c.b16 %v2277, %v2261
  %v2374 = vpack.c.b16 %v2278, %v2262
  %v2375 = vpack.c.b16 %v2279, %v2263
  %v2376 = vpack.c.b16 %v2280, %v2264
  %v2377 = vpack.c.b16 %v2281, %v2265
  %v2378 = vpack.c.b16 %v2282, %v2266
  %v2379 = vpack.c.b16 %v2283, %v2267
  %v2477 = vsel %vm197, %v1814, 0
  %v2480 = vsel %vm197, %v1815, 0
  %2482 = vmatprep.subr.bf16.mxu0 %v2285
  %2483 = vmatpush1.bf16.msra.mxu0 %v2284
  %2484 = vmatprep.subr.bf16.mxu0 %v2301
  %2485 = vmatpush1.bf16.msra.mxu0 %v2300
  %2486 = vmatprep.subr.bf16.mxu0 %v2317
  %2487 = vmatpush1.bf16.msra.mxu0 %v2316
  %2488 = vmatprep.subr.bf16.mxu0 %v2333
  %2489 = vmatpush1.bf16.msra.mxu0 %v2332
  %2490 = vmatprep.subr.bf16.mxu0 %v2349
  %2491 = vmatpush1.bf16.msra.mxu0 %v2348
  %2492 = vmatprep.subr.bf16.mxu0 %v2365
  %2493 = vmatpush1.bf16.msra.mxu0 %v2364
  %2494 = vmatprep.subr.bf16.mxu0 0
  %2495 = vmatpush1.bf16.msra.mxu0 0
  %2496 = vmatprep.subr.bf16.mxu0 0
  %2497 = vmatpush1.bf16.msra.mxu0 0
  %2498 = vmatprep.subr.bf16.mxu0 0
  %2499 = vmatpush1.bf16.msra.mxu0 0
  %2500 = vmatprep.subr.bf16.mxu0 0
  %2501 = vmatpush1.bf16.msra.mxu0 0
  %2502 = vmatprep.subr.bf16.mxu0 0
  %2503 = vmatpush1.bf16.msra.mxu0 0
  %2504 = vmatprep.subr.bf16.mxu0 0
  %2505 = vmatpush1.bf16.msra.mxu0 0
  %2506 = vmatprep.subr.bf16.mxu0 0
  %2507 = vmatpush1.bf16.msra.mxu0 0
  %2508 = vmatprep.subr.bf16.mxu0 0
  %2509 = vmatpush1.bf16.msra.mxu0 0
  %2510 = vmatprep.subr.bf16.mxu0 0
  %2511 = vmatpush1.bf16.msra.mxu0 0
  %2512 = vmatprep.subr.bf16.mxu0 0
  %2513 = vmatpush1.bf16.msra.mxu0 0
  %2514 = vmatprep.mubr.f32.mxu0 0.0
  %2515 = vmatmul.mubr.f32.gmra.mrb[0].mxu0 %v2477
  %v2516 = vpop.f32.mrb[0].mxu0
  %v2517 = vadd.f32 %v1919, %v2516
  %v2518 = vpop.f32.mrb[0].mxu0
  %v2519 = vadd.f32 %v1923, %v2518
  %2520 = vmatprep.mubr.f32.mxu0 0.0
  %2521 = vmatmul.mubr.f32.gmra.mrb[0].mxu0 %v2480
  %v2522 = vpop.f32.mrb[0].mxu0
  %v2523 = vadd.f32 %v1919, %v2522
  %v2524 = vpop.f32.mrb[0].mxu0
  %v2525 = vadd.f32 %v1923, %v2524
  %2526 = vdwg.mxu0
  %2527 = vmatprep.subr.bf16.mxu0 %v2287
  %2528 = vmatpush1.bf16.msra.mxu0 %v2286
  %2529 = vmatprep.subr.bf16.mxu0 %v2303
  %2530 = vmatpush1.bf16.msra.mxu0 %v2302
  %2531 = vmatprep.subr.bf16.mxu0 %v2319
  %2532 = vmatpush1.bf16.msra.mxu0 %v2318
  %2533 = vmatprep.subr.bf16.mxu0 %v2335
  %2534 = vmatpush1.bf16.msra.mxu0 %v2334
  %2535 = vmatprep.subr.bf16.mxu0 %v2351
  %2536 = vmatpush1.bf16.msra.mxu0 %v2350
  %2537 = vmatprep.subr.bf16.mxu0 %v2367
  %2538 = vmatpush1.bf16.msra.mxu0 %v2366
  %2539 = vmatprep.subr.bf16.mxu0 0
  %2540 = vmatpush1.bf16.msra.mxu0 0
  %2541 = vmatprep.subr.bf16.mxu0 0
  %2542 = vmatpush1.bf16.msra.mxu0 0
  %2543 = vmatprep.subr.bf16.mxu0 0
  %2544 = vmatpush1.bf16.msra.mxu0 0
  %2545 = vmatprep.subr.bf16.mxu0 0
  %2546 = vmatpush1.bf16.msra.mxu0 0
  %2547 = vmatprep.subr.bf16.mxu0 0
  %2548 = vmatpush1.bf16.msra.mxu0 0
  %2549 = vmatprep.subr.bf16.mxu0 0
  %2550 = vmatpush1.bf16.msra.mxu0 0
  %2551 = vmatprep.subr.bf16.mxu0 0
  %2552 = vmatpush1.bf16.msra.mxu0 0
  %2553 = vmatprep.subr.bf16.mxu0 0
  %2554 = vmatpush1.bf16.msra.mxu0 0
  %2555 = vmatprep.subr.bf16.mxu0 0
  %2556 = vmatpush1.bf16.msra.mxu0 0
  %2557 = vmatprep.subr.bf16.mxu0 0
  %2558 = vmatpush1.bf16.msra.mxu0 0
  %2559 = vmatprep.mubr.f32.mxu0 0.0
  %2560 = vmatmul.mubr.f32.gmra.mrb[0].mxu0 %v2477
  %v2561 = vpop.f32.mrb[0].mxu0
  %v2562 = vadd.f32 %v1927, %v2561
  %v2563 = vpop.f32.mrb[0].mxu0
  %v2564 = vadd.f32 %v1931, %v2563
  %2565 = vmatprep.mubr.f32.mxu0 0.0
  %2566 = vmatmul.mubr.f32.gmra.mrb[0].mxu0 %v2480
  %v2567 = vpop.f32.mrb[0].mxu0
  %v2568 = vadd.f32 %v1927, %v2567
  %v2569 = vpop.f32.mrb[0].mxu0
  %v2570 = vadd.f32 %v1931, %v2569
  %2571 = vdwg.mxu0
  %2572 = vmatprep.subr.bf16.mxu0 %v2289
  %2573 = vmatpush1.bf16.msra.mxu0 %v2288
  %2574 = vmatprep.subr.bf16.mxu0 %v2305
  %2575 = vmatpush1.bf16.msra.mxu0 %v2304
  %2576 = vmatprep.subr.bf16.mxu0 %v2321
  %2577 = vmatpush1.bf16.msra.mxu0 %v2320
  %2578 = vmatprep.subr.bf16.mxu0 %v2337
  %2579 = vmatpush1.bf16.msra.mxu0 %v2336
  %2580 = vmatprep.subr.bf16.mxu0 %v2353
  %2581 = vmatpush1.bf16.msra.mxu0 %v2352
  %2582 = vmatprep.subr.bf16.mxu0 %v2369
  %2583 = vmatpush1.bf16.msra.mxu0 %v2368
  %2584 = vmatprep.subr.bf16.mxu0 0
  %2585 = vmatpush1.bf16.msra.mxu0 0
  %2586 = vmatprep.subr.bf16.mxu0 0
  %2587 = vmatpush1.bf16.msra.mxu0 0
  %2588 = vmatprep.subr.bf16.mxu0 0
  %2589 = vmatpush1.bf16.msra.mxu0 0
  %2590 = vmatprep.subr.bf16.mxu0 0
  %2591 = vmatpush1.bf16.msra.mxu0 0
  %2592 = vmatprep.subr.bf16.mxu0 0
  %2593 = vmatpush1.bf16.msra.mxu0 0
  %2594 = vmatprep.subr.bf16.mxu0 0
  %2595 = vmatpush1.bf16.msra.mxu0 0
  %2596 = vmatprep.subr.bf16.mxu0 0
  %2597 = vmatpush1.bf16.msra.mxu0 0
  %2598 = vmatprep.subr.bf16.mxu0 0
  %2599 = vmatpush1.bf16.msra.mxu0 0
  %2600 = vmatprep.subr.bf16.mxu0 0
  %2601 = vmatpush1.bf16.msra.mxu0 0
  %2602 = vmatprep.subr.bf16.mxu0 0
  %2603 = vmatpush1.bf16.msra.mxu0 0
  %2604 = vmatprep.mubr.f32.mxu0 0.0
  %2605 = vmatmul.mubr.f32.gmra.mrb[0].mxu0 %v2477
  %v2606 = vpop.f32.mrb[0].mxu0
  %v2607 = vadd.f32 %v1935, %v2606
  %v2608 = vpop.f32.mrb[0].mxu0
  %v2609 = vadd.f32 %v1939, %v2608
  %2610 = vmatprep.mubr.f32.mxu0 0.0
  %2611 = vmatmul.mubr.f32.gmra.mrb[0].mxu0 %v2480
  %v2612 = vpop.f32.mrb[0].mxu0
  %v2613 = vadd.f32 %v1935, %v2612
  %v2614 = vpop.f32.mrb[0].mxu0
  %v2615 = vadd.f32 %v1939, %v2614
  %2616 = vdwg.mxu0
  %2617 = vmatprep.subr.bf16.mxu0 %v2291
  %2618 = vmatpush1.bf16.msra.mxu0 %v2290
  %2619 = vmatprep.subr.bf16.mxu0 %v2307
  %2620 = vmatpush1.bf16.msra.mxu0 %v2306
  %2621 = vmatprep.subr.bf16.mxu0 %v2323
  %2622 = vmatpush1.bf16.msra.mxu0 %v2322
  %2623 = vmatprep.subr.bf16.mxu0 %v2339
  %2624 = vmatpush1.bf16.msra.mxu0 %v2338
  %2625 = vmatprep.subr.bf16.mxu0 %v2355
  %2626 = vmatpush1.bf16.msra.mxu0 %v2354
  %2627 = vmatprep.subr.bf16.mxu0 %v2371
  %2628 = vmatpush1.bf16.msra.mxu0 %v2370
  %2629 = vmatprep.subr.bf16.mxu0 0
  %2630 = vmatpush1.bf16.msra.mxu0 0
  %2631 = vmatprep.subr.bf16.mxu0 0
  %2632 = vmatpush1.bf16.msra.mxu0 0
  %2633 = vmatprep.subr.bf16.mxu0 0
  %2634 = vmatpush1.bf16.msra.mxu0 0
  %2635 = vmatprep.subr.bf16.mxu0 0
  %2636 = vmatpush1.bf16.msra.mxu0 0
  %2637 = vmatprep.subr.bf16.mxu0 0
  %2638 = vmatpush1.bf16.msra.mxu0 0
  %2639 = vmatprep.subr.bf16.mxu0 0
  %2640 = vmatpush1.bf16.msra.mxu0 0
  %2641 = vmatprep.subr.bf16.mxu0 0
  %2642 = vmatpush1.bf16.msra.mxu0 0
  %2643 = vmatprep.subr.bf16.mxu0 0
  %2644 = vmatpush1.bf16.msra.mxu0 0
  %2645 = vmatprep.subr.bf16.mxu0 0
  %2646 = vmatpush1.bf16.msra.mxu0 0
  %2647 = vmatprep.subr.bf16.mxu0 0
  %2648 = vmatpush1.bf16.msra.mxu0 0
  %2649 = vmatprep.mubr.f32.mxu0 0.0
  %2650 = vmatmul.mubr.f32.gmra.mrb[0].mxu0 %v2477
  %v2651 = vpop.f32.mrb[0].mxu0
  %v2652 = vadd.f32 %v1943, %v2651
  %v2653 = vpop.f32.mrb[0].mxu0
  %v2654 = vadd.f32 %v1947, %v2653
  %2655 = vmatprep.mubr.f32.mxu0 0.0
  %2656 = vmatmul.mubr.f32.gmra.mrb[0].mxu0 %v2480
  %v2657 = vpop.f32.mrb[0].mxu0
  %v2658 = vadd.f32 %v1943, %v2657
  %v2659 = vpop.f32.mrb[0].mxu0
  %v2660 = vadd.f32 %v1947, %v2659
  %2661 = vdwg.mxu0
  %2662 = vmatprep.subr.bf16.mxu0 %v2293
  %2663 = vmatpush1.bf16.msra.mxu0 %v2292
  %2664 = vmatprep.subr.bf16.mxu0 %v2309
  %2665 = vmatpush1.bf16.msra.mxu0 %v2308
  %2666 = vmatprep.subr.bf16.mxu0 %v2325
  %2667 = vmatpush1.bf16.msra.mxu0 %v2324
  %2668 = vmatprep.subr.bf16.mxu0 %v2341
  %2669 = vmatpush1.bf16.msra.mxu0 %v2340
  %2670 = vmatprep.subr.bf16.mxu0 %v2357
  %2671 = vmatpush1.bf16.msra.mxu0 %v2356
  %2672 = vmatprep.subr.bf16.mxu0 %v2373
  %2673 = vmatpush1.bf16.msra.mxu0 %v2372
  %2674 = vmatprep.subr.bf16.mxu0 0
  %2675 = vmatpush1.bf16.msra.mxu0 0
  %2676 = vmatprep.subr.bf16.mxu0 0
  %2677 = vmatpush1.bf16.msra.mxu0 0
  %2678 = vmatprep.subr.bf16.mxu0 0
  %2679 = vmatpush1.bf16.msra.mxu0 0
  %2680 = vmatprep.subr.bf16.mxu0 0
  %2681 = vmatpush1.bf16.msra.mxu0 0
  %2682 = vmatprep.subr.bf16.mxu0 0
  %2683 = vmatpush1.bf16.msra.mxu0 0
  %2684 = vmatprep.subr.bf16.mxu0 0
  %2685 = vmatpush1.bf16.msra.mxu0 0
  %2686 = vmatprep.subr.bf16.mxu0 0
  %2687 = vmatpush1.bf16.msra.mxu0 0
  %2688 = vmatprep.subr.bf16.mxu0 0
  %2689 = vmatpush1.bf16.msra.mxu0 0
  %2690 = vmatprep.subr.bf16.mxu0 0
  %2691 = vmatpush1.bf16.msra.mxu0 0
  %2692 = vmatprep.subr.bf16.mxu0 0
  %2693 = vmatpush1.bf16.msra.mxu0 0
  %2694 = vmatprep.mubr.f32.mxu0 0.0
  %2695 = vmatmul.mubr.f32.gmra.mrb[0].mxu0 %v2477
  %v2696 = vpop.f32.mrb[0].mxu0
  %v2697 = vadd.f32 %v1951, %v2696
  %v2698 = vpop.f32.mrb[0].mxu0
  %v2699 = vadd.f32 %v1955, %v2698
  %2700 = vmatprep.mubr.f32.mxu0 0.0
  %2701 = vmatmul.mubr.f32.gmra.mrb[0].mxu0 %v2480
  %v2702 = vpop.f32.mrb[0].mxu0
  %v2703 = vadd.f32 %v1951, %v2702
  %v2704 = vpop.f32.mrb[0].mxu0
  %v2705 = vadd.f32 %v1955, %v2704
  %2706 = vdwg.mxu0
  %2707 = vmatprep.subr.bf16.mxu0 %v2295
  %2708 = vmatpush1.bf16.msra.mxu0 %v2294
  %2709 = vmatprep.subr.bf16.mxu0 %v2311
  %2710 = vmatpush1.bf16.msra.mxu0 %v2310
  %2711 = vmatprep.subr.bf16.mxu0 %v2327
  %2712 = vmatpush1.bf16.msra.mxu0 %v2326
  %2713 = vmatprep.subr.bf16.mxu0 %v2343
  %2714 = vmatpush1.bf16.msra.mxu0 %v2342
  %2715 = vmatprep.subr.bf16.mxu0 %v2359
  %2716 = vmatpush1.bf16.msra.mxu0 %v2358
  %2717 = vmatprep.subr.bf16.mxu0 %v2375
  %2718 = vmatpush1.bf16.msra.mxu0 %v2374
  %2719 = vmatprep.subr.bf16.mxu0 0
  %2720 = vmatpush1.bf16.msra.mxu0 0
  %2721 = vmatprep.subr.bf16.mxu0 0
  %2722 = vmatpush1.bf16.msra.mxu0 0
  %2723 = vmatprep.subr.bf16.mxu0 0
  %2724 = vmatpush1.bf16.msra.mxu0 0
  %2725 = vmatprep.subr.bf16.mxu0 0
  %2726 = vmatpush1.bf16.msra.mxu0 0
  %2727 = vmatprep.subr.bf16.mxu0 0
  %2728 = vmatpush1.bf16.msra.mxu0 0
  %2729 = vmatprep.subr.bf16.mxu0 0
  %2730 = vmatpush1.bf16.msra.mxu0 0
  %2731 = vmatprep.subr.bf16.mxu0 0
  %2732 = vmatpush1.bf16.msra.mxu0 0
  %2733 = vmatprep.subr.bf16.mxu0 0
  %2734 = vmatpush1.bf16.msra.mxu0 0
  %2735 = vmatprep.subr.bf16.mxu0 0
  %2736 = vmatpush1.bf16.msra.mxu0 0
  %2737 = vmatprep.subr.bf16.mxu0 0
  %2738 = vmatpush1.bf16.msra.mxu0 0
  %2739 = vmatprep.mubr.f32.mxu0 0.0
  %2740 = vmatmul.mubr.f32.gmra.mrb[0].mxu0 %v2477
  %v2741 = vpop.f32.mrb[0].mxu0
  %v2742 = vadd.f32 %v1959, %v2741
  %v2743 = vpop.f32.mrb[0].mxu0
  %v2744 = vadd.f32 %v1963, %v2743
  %2745 = vmatprep.mubr.f32.mxu0 0.0
  %2746 = vmatmul.mubr.f32.gmra.mrb[0].mxu0 %v2480
  %v2747 = vpop.f32.mrb[0].mxu0
  %v2748 = vadd.f32 %v1959, %v2747
  %v2749 = vpop.f32.mrb[0].mxu0
  %v2750 = vadd.f32 %v1963, %v2749
  %2751 = vdwg.mxu0
  %2752 = vmatprep.subr.bf16.mxu0 %v2297
  %2753 = vmatpush1.bf16.msra.mxu0 %v2296
  %2754 = vmatprep.subr.bf16.mxu0 %v2313
  %2755 = vmatpush1.bf16.msra.mxu0 %v2312
  %2756 = vmatprep.subr.bf16.mxu0 %v2329
  %2757 = vmatpush1.bf16.msra.mxu0 %v2328
  %2758 = vmatprep.subr.bf16.mxu0 %v2345
  %2759 = vmatpush1.bf16.msra.mxu0 %v2344
  %2760 = vmatprep.subr.bf16.mxu0 %v2361
  %2761 = vmatpush1.bf16.msra.mxu0 %v2360
  %2762 = vmatprep.subr.bf16.mxu0 %v2377
  %2763 = vmatpush1.bf16.msra.mxu0 %v2376
  %2764 = vmatprep.subr.bf16.mxu0 0
  %2765 = vmatpush1.bf16.msra.mxu0 0
  %2766 = vmatprep.subr.bf16.mxu0 0
  %2767 = vmatpush1.bf16.msra.mxu0 0
  %2768 = vmatprep.subr.bf16.mxu0 0
  %2769 = vmatpush1.bf16.msra.mxu0 0
  %2770 = vmatprep.subr.bf16.mxu0 0
  %2771 = vmatpush1.bf16.msra.mxu0 0
  %2772 = vmatprep.subr.bf16.mxu0 0
  %2773 = vmatpush1.bf16.msra.mxu0 0
  %2774 = vmatprep.subr.bf16.mxu0 0
  %2775 = vmatpush1.bf16.msra.mxu0 0
  %2776 = vmatprep.subr.bf16.mxu0 0
  %2777 = vmatpush1.bf16.msra.mxu0 0
  %2778 = vmatprep.subr.bf16.mxu0 0
  %2779 = vmatpush1.bf16.msra.mxu0 0
  %2780 = vmatprep.subr.bf16.mxu0 0
  %2781 = vmatpush1.bf16.msra.mxu0 0
  %2782 = vmatprep.subr.bf16.mxu0 0
  %2783 = vmatpush1.bf16.msra.mxu0 0
  %2784 = vmatprep.mubr.f32.mxu0 0.0
  %2785 = vmatmul.mubr.f32.gmra.mrb[0].mxu0 %v2477
  %v2786 = vpop.f32.mrb[0].mxu0
  %v2787 = vadd.f32 %v1967, %v2786
  %v2788 = vpop.f32.mrb[0].mxu0
  %v2789 = vadd.f32 %v1971, %v2788
  %2790 = vmatprep.mubr.f32.mxu0 0.0
  %2791 = vmatmul.mubr.f32.gmra.mrb[0].mxu0 %v2480
  %v2792 = vpop.f32.mrb[0].mxu0
  %v2793 = vadd.f32 %v1967, %v2792
  %v2794 = vpop.f32.mrb[0].mxu0
  %v2795 = vadd.f32 %v1971, %v2794
  %2796 = vdwg.mxu0
  %2797 = vmatprep.subr.bf16.mxu0 %v2299
  %2798 = vmatpush1.bf16.msra.mxu0 %v2298
  %2799 = vmatprep.subr.bf16.mxu0 %v2315
  %2800 = vmatpush1.bf16.msra.mxu0 %v2314
  %2801 = vmatprep.subr.bf16.mxu0 %v2331
  %2802 = vmatpush1.bf16.msra.mxu0 %v2330
  %2803 = vmatprep.subr.bf16.mxu0 %v2347
  %2804 = vmatpush1.bf16.msra.mxu0 %v2346
  %2805 = vmatprep.subr.bf16.mxu0 %v2363
  %2806 = vmatpush1.bf16.msra.mxu0 %v2362
  %2807 = vmatprep.subr.bf16.mxu0 %v2379
  %2808 = vmatpush1.bf16.msra.mxu0 %v2378
  %2809 = vmatprep.subr.bf16.mxu0 0
  %2810 = vmatpush1.bf16.msra.mxu0 0
  %2811 = vmatprep.subr.bf16.mxu0 0
  %2812 = vmatpush1.bf16.msra.mxu0 0
  %2813 = vmatprep.subr.bf16.mxu0 0
  %2814 = vmatpush1.bf16.msra.mxu0 0
  %2815 = vmatprep.subr.bf16.mxu0 0
  %2816 = vmatpush1.bf16.msra.mxu0 0
  %2817 = vmatprep.subr.bf16.mxu0 0
  %2818 = vmatpush1.bf16.msra.mxu0 0
  %2819 = vmatprep.subr.bf16.mxu0 0
  %2820 = vmatpush1.bf16.msra.mxu0 0
  %2821 = vmatprep.subr.bf16.mxu0 0
  %2822 = vmatpush1.bf16.msra.mxu0 0
  %2823 = vmatprep.subr.bf16.mxu0 0
  %2824 = vmatpush1.bf16.msra.mxu0 0
  %2825 = vmatprep.subr.bf16.mxu0 0
  %2826 = vmatpush1.bf16.msra.mxu0 0
  %2827 = vmatprep.subr.bf16.mxu0 0
  %2828 = vmatpush1.bf16.msra.mxu0 0
  %2829 = vmatprep.mubr.f32.mxu0 0.0
  %2830 = vmatmul.mubr.f32.gmra.mrb[0].mxu0 %v2477
  %v2831 = vpop.f32.mrb[0].mxu0
  %v2832 = vadd.f32 %v1975, %v2831
  %v2833 = vpop.f32.mrb[0].mxu0
  %v2834 = vadd.f32 %v1979, %v2833
  %2835 = vmatprep.mubr.f32.mxu0 0.0
  %2836 = vmatmul.mubr.f32.gmra.mrb[0].mxu0 %v2480
  %v2837 = vpop.f32.mrb[0].mxu0
  %v2838 = vadd.f32 %v1975, %v2837
  %v2839 = vpop.f32.mrb[0].mxu0
  %v2840 = vadd.f32 %v1979, %v2839
  %2841 = vdwg.mxu0
  %v2842 = vmax.f32 %v2517, 0.0
  %v2843 = vmax.f32 %v2519, 0.0
  %v2844 = vmax.f32 %v2562, 0.0
  %v2845 = vmax.f32 %v2564, 0.0
  %v2846 = vmax.f32 %v2607, 0.0
  %v2847 = vmax.f32 %v2609, 0.0
  %v2848 = vmax.f32 %v2652, 0.0
  %v2849 = vmax.f32 %v2654, 0.0
  %v2850 = vmax.f32 %v2697, 0.0
  %v2851 = vmax.f32 %v2699, 0.0
  %v2852 = vmax.f32 %v2742, 0.0
  %v2853 = vmax.f32 %v2744, 0.0
  %v2854 = vmax.f32 %v2787, 0.0
  %v2855 = vmax.f32 %v2789, 0.0
  %v2856 = vmax.f32 %v2832, 0.0
  %v2857 = vmax.f32 %v2834, 0.0
  %v2858 = vmax.f32 %v2523, 0.0
  %v2859 = vmax.f32 %v2525, 0.0
  %v2860 = vmax.f32 %v2568, 0.0
  %v2861 = vmax.f32 %v2570, 0.0
  %v2862 = vmax.f32 %v2613, 0.0
  %v2863 = vmax.f32 %v2615, 0.0
  %v2864 = vmax.f32 %v2658, 0.0
  %v2865 = vmax.f32 %v2660, 0.0
  %v2866 = vmax.f32 %v2703, 0.0
  %v2867 = vmax.f32 %v2705, 0.0
  %v2868 = vmax.f32 %v2748, 0.0
  %v2869 = vmax.f32 %v2750, 0.0
  %v2870 = vmax.f32 %v2793, 0.0
  %v2871 = vmax.f32 %v2795, 0.0
  %v2872 = vmax.f32 %v2838, 0.0
  %v2873 = vmax.f32 %v2840, 0.0
  %v2874 = vld [vmem:[%s9] sm:$0xf]
  %v2875 = vld [vmem:[%s9 + $0x4] sm:$0xf]
  %v2876 = vld [vmem:[%s9 + $0x8] sm:$0xf]
  %v2877 = vld [vmem:[%s9 + $0xc] sm:$0xf]
  %v2878 = vld [vmem:[%s9 + $0x10] sm:$0xf]
  %v2879 = vld [vmem:[%s9 + $0x14] sm:$0xf]
  %v2880 = vld [vmem:[%s9 + $0x18] sm:$0xf]
  %v2881 = vld [vmem:[%s9 + $0x1c] sm:$0xf]
  %v2882 = vld [vmem:[%s9 + $0x20] sm:$0xf]
  %v2883 = vld [vmem:[%s9 + $0x24] sm:$0xf]
  %v2884 = vld [vmem:[%s9 + $0x28] sm:$0xf]
  %v2885 = vld [vmem:[%s9 + $0x2c] sm:$0xf]
  %v2886 = vld [vmem:[%s9 + $0x30] sm:$0xf]
  %v2887 = vld [vmem:[%s9 + $0x34] sm:$0xf]
  %v2888 = vld [vmem:[%s9 + $0x38] sm:$0xf]
  %v2889 = vld [vmem:[%s9 + $0x3c] sm:$0xf]
  %v2890 = vld [vmem:[%s9 + $0x40] sm:$0xf]
  %v2891 = vld [vmem:[%s9 + $0x44] sm:$0xf]
  %v2892 = vld [vmem:[%s9 + $0x48] sm:$0xf]
  %v2893 = vld [vmem:[%s9 + $0x4c] sm:$0xf]
  %v2894 = vld [vmem:[%s9 + $0x50] sm:$0xf]
  %v2895 = vld [vmem:[%s9 + $0x54] sm:$0xf]
  %v2896 = vld [vmem:[%s9 + $0x58] sm:$0xf]
  %v2897 = vld [vmem:[%s9 + $0x5c] sm:$0xf]
  %v2898 = vld [vmem:[%s9 + $0x60] sm:$0xf]
  %v2899 = vld [vmem:[%s9 + $0x64] sm:$0xf]
  %v2900 = vld [vmem:[%s9 + $0x68] sm:$0xf]
  %v2901 = vld [vmem:[%s9 + $0x6c] sm:$0xf]
  %v2902 = vld [vmem:[%s9 + $0x70] sm:$0xf]
  %v2903 = vld [vmem:[%s9 + $0x74] sm:$0xf]
  %v2904 = vld [vmem:[%s9 + $0x78] sm:$0xf]
  %v2905 = vld [vmem:[%s9 + $0x7c] sm:$0xf]
  %v2906 = vld [vmem:[%s9 + $0x80] sm:$0xf]
  %v2907 = vld [vmem:[%s9 + $0x84] sm:$0xf]
  %v2908 = vld [vmem:[%s9 + $0x88] sm:$0xf]
  %v2909 = vld [vmem:[%s9 + $0x8c] sm:$0xf]
  %v2910 = vld [vmem:[%s9 + $0x90] sm:$0xf]
  %v2911 = vld [vmem:[%s9 + $0x94] sm:$0xf]
  %v2912 = vld [vmem:[%s9 + $0x98] sm:$0xf]
  %v2913 = vld [vmem:[%s9 + $0x9c] sm:$0xf]
  %v2914 = vld [vmem:[%s9 + $0xa0] sm:$0xf]
  %v2915 = vld [vmem:[%s9 + $0xa4] sm:$0xf]
  %v2916 = vld [vmem:[%s9 + $0xa8] sm:$0xf]
  %v2917 = vld [vmem:[%s9 + $0xac] sm:$0xf]
  %v2918 = vld [vmem:[%s9 + $0xb0] sm:$0xf]
  %v2919 = vld [vmem:[%s9 + $0xb4] sm:$0xf]
  %v2920 = vld [vmem:[%s9 + $0xb8] sm:$0xf]
  %v2921 = vld [vmem:[%s9 + $0xbc] sm:$0xf]
  %v2922 = vld [vmem:[%s9 + $0xc0] sm:$0xf]
  %v2923 = vld [vmem:[%s9 + $0xc4] sm:$0xf]
  %v2924 = vld [vmem:[%s9 + $0xc8] sm:$0xf]
  %v2925 = vld [vmem:[%s9 + $0xcc] sm:$0xf]
  %v2926 = vld [vmem:[%s9 + $0xd0] sm:$0xf]
  %v2927 = vld [vmem:[%s9 + $0xd4] sm:$0xf]
  %v2928 = vld [vmem:[%s9 + $0xd8] sm:$0xf]
  %v2929 = vld [vmem:[%s9 + $0xdc] sm:$0xf]
  %v2930 = vld [vmem:[%s9 + $0xe0] sm:$0xf]
  %v2931 = vld [vmem:[%s9 + $0xe4] sm:$0xf]
  %v2932 = vld [vmem:[%s9 + $0xe8] sm:$0xf]
  %v2933 = vld [vmem:[%s9 + $0xec] sm:$0xf]
  %v2934 = vld [vmem:[%s9 + $0xf0] sm:$0xf]
  %v2935 = vld [vmem:[%s9 + $0xf4] sm:$0xf]
  %v2936 = vld [vmem:[%s9 + $0xf8] sm:$0xf]
  %v2937 = vld [vmem:[%s9 + $0xfc] sm:$0xf]
  %v2938 = vld [vmem:[%s9 + $0x100] sm:$0xf]
  %v2939 = vld [vmem:[%s9 + $0x104] sm:$0xf]
  %v2940 = vld [vmem:[%s9 + $0x108] sm:$0xf]
  %v2941 = vld [vmem:[%s9 + $0x10c] sm:$0xf]
  %v2942 = vld [vmem:[%s9 + $0x110] sm:$0xf]
  %v2943 = vld [vmem:[%s9 + $0x114] sm:$0xf]
  %v2944 = vld [vmem:[%s9 + $0x118] sm:$0xf]
  %v2945 = vld [vmem:[%s9 + $0x11c] sm:$0xf]
  %v2946 = vld [vmem:[%s9 + $0x120] sm:$0xf]
  %v2947 = vld [vmem:[%s9 + $0x124] sm:$0xf]
  %v2948 = vld [vmem:[%s9 + $0x128] sm:$0xf]
  %v2949 = vld [vmem:[%s9 + $0x12c] sm:$0xf]
  %v2950 = vld [vmem:[%s9 + $0x130] sm:$0xf]
  %v2951 = vld [vmem:[%s9 + $0x134] sm:$0xf]
  %v2952 = vld [vmem:[%s9 + $0x138] sm:$0xf]
  %v2953 = vld [vmem:[%s9 + $0x13c] sm:$0xf]
  %v2954 = vld [vmem:[%s9 + $0x140] sm:$0xf]
  %v2955 = vld [vmem:[%s9 + $0x144] sm:$0xf]
  %v2956 = vld [vmem:[%s9 + $0x148] sm:$0xf]
  %v2957 = vld [vmem:[%s9 + $0x14c] sm:$0xf]
  %v2958 = vld [vmem:[%s9 + $0x150] sm:$0xf]
  %v2959 = vld [vmem:[%s9 + $0x154] sm:$0xf]
  %v2960 = vld [vmem:[%s9 + $0x158] sm:$0xf]
  %v2961 = vld [vmem:[%s9 + $0x15c] sm:$0xf]
  %v2962 = vld [vmem:[%s9 + $0x160] sm:$0xf]
  %v2963 = vld [vmem:[%s9 + $0x164] sm:$0xf]
  %v2964 = vld [vmem:[%s9 + $0x168] sm:$0xf]
  %v2965 = vld [vmem:[%s9 + $0x16c] sm:$0xf]
  %v2966 = vld [vmem:[%s9 + $0x170] sm:$0xf]
  %v2967 = vld [vmem:[%s9 + $0x174] sm:$0xf]
  %v2968 = vld [vmem:[%s9 + $0x178] sm:$0xf]
  %v2969 = vld [vmem:[%s9 + $0x17c] sm:$0xf]
  %v2970 = vld [vmem:[%s9 + $0x180] sm:$0xf]
  %v2971 = vld [vmem:[%s9 + $0x184] sm:$0xf]
  %v2972 = vld [vmem:[%s9 + $0x188] sm:$0xf]
  %v2973 = vld [vmem:[%s9 + $0x18c] sm:$0xf]
  %v2974 = vld [vmem:[%s9 + $0x190] sm:$0xf]
  %v2975 = vld [vmem:[%s9 + $0x194] sm:$0xf]
  %v2976 = vld [vmem:[%s9 + $0x198] sm:$0xf]
  %v2977 = vld [vmem:[%s9 + $0x19c] sm:$0xf]
  %v2978 = vld [vmem:[%s9 + $0x1a0] sm:$0xf]
  %v2979 = vld [vmem:[%s9 + $0x1a4] sm:$0xf]
  %v2980 = vld [vmem:[%s9 + $0x1a8] sm:$0xf]
  %v2981 = vld [vmem:[%s9 + $0x1ac] sm:$0xf]
  %v2982 = vld [vmem:[%s9 + $0x1b0] sm:$0xf]
  %v2983 = vld [vmem:[%s9 + $0x1b4] sm:$0xf]
  %v2984 = vld [vmem:[%s9 + $0x1b8] sm:$0xf]
  %v2985 = vld [vmem:[%s9 + $0x1bc] sm:$0xf]
  %v2986 = vld [vmem:[%s9 + $0x1c0] sm:$0xf]
  %v2987 = vld [vmem:[%s9 + $0x1c4] sm:$0xf]
  %v2988 = vld [vmem:[%s9 + $0x1c8] sm:$0xf]
  %v2989 = vld [vmem:[%s9 + $0x1cc] sm:$0xf]
  %v2990 = vld [vmem:[%s9 + $0x1d0] sm:$0xf]
  %v2991 = vld [vmem:[%s9 + $0x1d4] sm:$0xf]
  %v2992 = vld [vmem:[%s9 + $0x1d8] sm:$0xf]
  %v2993 = vld [vmem:[%s9 + $0x1dc] sm:$0xf]
  %v2994 = vld [vmem:[%s9 + $0x1e0] sm:$0xf]
  %v2995 = vld [vmem:[%s9 + $0x1e4] sm:$0xf]
  %v2996 = vld [vmem:[%s9 + $0x1e8] sm:$0xf]
  %v2997 = vld [vmem:[%s9 + $0x1ec] sm:$0xf]
  %v2998 = vld [vmem:[%s9 + $0x1f0] sm:$0xf]
  %v2999 = vld [vmem:[%s9 + $0x1f4] sm:$0xf]
  %v3000 = vld [vmem:[%s9 + $0x1f8] sm:$0xf]
  %v3001 = vld [vmem:[%s9 + $0x1fc] sm:$0xf]
  %v3002 = vld [vmem:[%s9 + $0x200] sm:$0xf]
  %v3003 = vld [vmem:[%s9 + $0x204] sm:$0xf]
  %v3004 = vld [vmem:[%s9 + $0x208] sm:$0xf]
  %v3005 = vld [vmem:[%s9 + $0x20c] sm:$0xf]
  %v3006 = vld [vmem:[%s9 + $0x210] sm:$0xf]
  %v3007 = vld [vmem:[%s9 + $0x214] sm:$0xf]
  %v3008 = vld [vmem:[%s9 + $0x218] sm:$0xf]
  %v3009 = vld [vmem:[%s9 + $0x21c] sm:$0xf]
  %v3010 = vld [vmem:[%s9 + $0x220] sm:$0xf]
  %v3011 = vld [vmem:[%s9 + $0x224] sm:$0xf]
  %v3012 = vld [vmem:[%s9 + $0x228] sm:$0xf]
  %v3013 = vld [vmem:[%s9 + $0x22c] sm:$0xf]
  %v3014 = vld [vmem:[%s9 + $0x230] sm:$0xf]
  %v3015 = vld [vmem:[%s9 + $0x234] sm:$0xf]
  %v3016 = vld [vmem:[%s9 + $0x238] sm:$0xf]
  %v3017 = vld [vmem:[%s9 + $0x23c] sm:$0xf]
  %v3018 = vld [vmem:[%s9 + $0x240] sm:$0xf]
  %v3019 = vld [vmem:[%s9 + $0x244] sm:$0xf]
  %v3020 = vld [vmem:[%s9 + $0x248] sm:$0xf]
  %v3021 = vld [vmem:[%s9 + $0x24c] sm:$0xf]
  %v3022 = vld [vmem:[%s9 + $0x250] sm:$0xf]
  %v3023 = vld [vmem:[%s9 + $0x254] sm:$0xf]
  %v3024 = vld [vmem:[%s9 + $0x258] sm:$0xf]
  %v3025 = vld [vmem:[%s9 + $0x25c] sm:$0xf]
  %v3026 = vld [vmem:[%s9 + $0x260] sm:$0xf]
  %v3027 = vld [vmem:[%s9 + $0x264] sm:$0xf]
  %v3028 = vld [vmem:[%s9 + $0x268] sm:$0xf]
  %v3029 = vld [vmem:[%s9 + $0x26c] sm:$0xf]
  %v3030 = vld [vmem:[%s9 + $0x270] sm:$0xf]
  %v3031 = vld [vmem:[%s9 + $0x274] sm:$0xf]
  %v3032 = vld [vmem:[%s9 + $0x278] sm:$0xf]
  %v3033 = vld [vmem:[%s9 + $0x27c] sm:$0xf]
  %v3034 = vld [vmem:[%s9 + $0x280] sm:$0xf]
  %v3035 = vld [vmem:[%s9 + $0x284] sm:$0xf]
  %v3036 = vld [vmem:[%s9 + $0x288] sm:$0xf]
  %v3037 = vld [vmem:[%s9 + $0x28c] sm:$0xf]
  %v3038 = vld [vmem:[%s9 + $0x290] sm:$0xf]
  %v3039 = vld [vmem:[%s9 + $0x294] sm:$0xf]
  %v3040 = vld [vmem:[%s9 + $0x298] sm:$0xf]
  %v3041 = vld [vmem:[%s9 + $0x29c] sm:$0xf]
  %v3042 = vld [vmem:[%s9 + $0x2a0] sm:$0xf]
  %v3043 = vld [vmem:[%s9 + $0x2a4] sm:$0xf]
  %v3044 = vld [vmem:[%s9 + $0x2a8] sm:$0xf]
  %v3045 = vld [vmem:[%s9 + $0x2ac] sm:$0xf]
  %v3046 = vld [vmem:[%s9 + $0x2b0] sm:$0xf]
  %v3047 = vld [vmem:[%s9 + $0x2b4] sm:$0xf]
  %v3048 = vld [vmem:[%s9 + $0x2b8] sm:$0xf]
  %v3049 = vld [vmem:[%s9 + $0x2bc] sm:$0xf]
  %v3050 = vld [vmem:[%s9 + $0x2c0] sm:$0xf]
  %v3051 = vld [vmem:[%s9 + $0x2c4] sm:$0xf]
  %v3052 = vld [vmem:[%s9 + $0x2c8] sm:$0xf]
  %v3053 = vld [vmem:[%s9 + $0x2cc] sm:$0xf]
  %v3054 = vld [vmem:[%s9 + $0x2d0] sm:$0xf]
  %v3055 = vld [vmem:[%s9 + $0x2d4] sm:$0xf]
  %v3056 = vld [vmem:[%s9 + $0x2d8] sm:$0xf]
  %v3057 = vld [vmem:[%s9 + $0x2dc] sm:$0xf]
  %v3058 = vld [vmem:[%s9 + $0x2e0] sm:$0xf]
  %v3059 = vld [vmem:[%s9 + $0x2e4] sm:$0xf]
  %v3060 = vld [vmem:[%s9 + $0x2e8] sm:$0xf]
  %v3061 = vld [vmem:[%s9 + $0x2ec] sm:$0xf]
  %v3062 = vld [vmem:[%s9 + $0x2f0] sm:$0xf]
  %v3063 = vld [vmem:[%s9 + $0x2f4] sm:$0xf]
  %v3064 = vld [vmem:[%s9 + $0x2f8] sm:$0xf]
  %v3065 = vld [vmem:[%s9 + $0x2fc] sm:$0xf]
  %v3066 = vld [vmem:[%s9 + $0x300] sm:$0xf]
  %v3067 = vld [vmem:[%s9 + $0x304] sm:$0xf]
  %v3068 = vld [vmem:[%s9 + $0x308] sm:$0xf]
  %v3069 = vld [vmem:[%s9 + $0x30c] sm:$0xf]
  %v3070 = vld [vmem:[%s9 + $0x310] sm:$0xf]
  %v3071 = vld [vmem:[%s9 + $0x314] sm:$0xf]
  %v3072 = vld [vmem:[%s9 + $0x318] sm:$0xf]
  %v3073 = vld [vmem:[%s9 + $0x31c] sm:$0xf]
  %v3074 = vld [vmem:[%s9 + $0x320] sm:$0xf]
  %v3075 = vld [vmem:[%s9 + $0x324] sm:$0xf]
  %v3076 = vld [vmem:[%s9 + $0x328] sm:$0xf]
  %v3077 = vld [vmem:[%s9 + $0x32c] sm:$0xf]
  %v3078 = vld [vmem:[%s9 + $0x330] sm:$0xf]
  %v3079 = vld [vmem:[%s9 + $0x334] sm:$0xf]
  %v3080 = vld [vmem:[%s9 + $0x338] sm:$0xf]
  %v3081 = vld [vmem:[%s9 + $0x33c] sm:$0xf]
  %v3082 = vld [vmem:[%s9 + $0x340] sm:$0xf]
  %v3083 = vld [vmem:[%s9 + $0x344] sm:$0xf]
  %v3084 = vld [vmem:[%s9 + $0x348] sm:$0xf]
  %v3085 = vld [vmem:[%s9 + $0x34c] sm:$0xf]
  %v3086 = vld [vmem:[%s9 + $0x350] sm:$0xf]
  %v3087 = vld [vmem:[%s9 + $0x354] sm:$0xf]
  %v3088 = vld [vmem:[%s9 + $0x358] sm:$0xf]
  %v3089 = vld [vmem:[%s9 + $0x35c] sm:$0xf]
  %v3090 = vld [vmem:[%s9 + $0x360] sm:$0xf]
  %v3091 = vld [vmem:[%s9 + $0x364] sm:$0xf]
  %v3092 = vld [vmem:[%s9 + $0x368] sm:$0xf]
  %v3093 = vld [vmem:[%s9 + $0x36c] sm:$0xf]
  %v3094 = vld [vmem:[%s9 + $0x370] sm:$0xf]
  %v3095 = vld [vmem:[%s9 + $0x374] sm:$0xf]
  %v3096 = vld [vmem:[%s9 + $0x378] sm:$0xf]
  %v3097 = vld [vmem:[%s9 + $0x37c] sm:$0xf]
  %v3098 = vld [vmem:[%s9 + $0x380] sm:$0xf]
  %v3099 = vld [vmem:[%s9 + $0x384] sm:$0xf]
  %v3100 = vld [vmem:[%s9 + $0x388] sm:$0xf]
  %v3101 = vld [vmem:[%s9 + $0x38c] sm:$0xf]
  %v3102 = vld [vmem:[%s9 + $0x390] sm:$0xf]
  %v3103 = vld [vmem:[%s9 + $0x394] sm:$0xf]
  %v3104 = vld [vmem:[%s9 + $0x398] sm:$0xf]
  %v3105 = vld [vmem:[%s9 + $0x39c] sm:$0xf]
  %v3106 = vld [vmem:[%s9 + $0x3a0] sm:$0xf]
  %v3107 = vld [vmem:[%s9 + $0x3a4] sm:$0xf]
  %v3108 = vld [vmem:[%s9 + $0x3a8] sm:$0xf]
  %v3109 = vld [vmem:[%s9 + $0x3ac] sm:$0xf]
  %v3110 = vld [vmem:[%s9 + $0x3b0] sm:$0xf]
  %v3111 = vld [vmem:[%s9 + $0x3b4] sm:$0xf]
  %v3112 = vld [vmem:[%s9 + $0x3b8] sm:$0xf]
  %v3113 = vld [vmem:[%s9 + $0x3bc] sm:$0xf]
  %v3114 = vld [vmem:[%s9 + $0x3c0] sm:$0xf]
  %v3115 = vld [vmem:[%s9 + $0x3c4] sm:$0xf]
  %v3116 = vld [vmem:[%s9 + $0x3c8] sm:$0xf]
  %v3117 = vld [vmem:[%s9 + $0x3cc] sm:$0xf]
  %v3118 = vld [vmem:[%s9 + $0x3d0] sm:$0xf]
  %v3119 = vld [vmem:[%s9 + $0x3d4] sm:$0xf]
  %v3120 = vld [vmem:[%s9 + $0x3d8] sm:$0xf]
  %v3121 = vld [vmem:[%s9 + $0x3dc] sm:$0xf]
  %v3122 = vld [vmem:[%s9 + $0x3e0] sm:$0xf]
  %v3123 = vld [vmem:[%s9 + $0x3e4] sm:$0xf]
  %v3124 = vld [vmem:[%s9 + $0x3e8] sm:$0xf]
  %v3125 = vld [vmem:[%s9 + $0x3ec] sm:$0xf]
  %v3126 = vld [vmem:[%s9 + $0x3f0] sm:$0xf]
  %v3127 = vld [vmem:[%s9 + $0x3f4] sm:$0xf]
  %v3128 = vld [vmem:[%s9 + $0x3f8] sm:$0xf]
  %v3129 = vld [vmem:[%s9 + $0x3fc] sm:$0xf]
  %v3130 = vld [vmem:[%s10] sm:$0x1]
  %v3132 = vlaneseq
  %v3133 = vshrl.u32 %v3132, 7
  %v3134 = vsub.s32 0, %v3133
  %v3135 = vrot.slane %v3130, %v3134
  %v3393 = vunpack.c.l.b16 %v2874
  %v3394 = vunpack.c.l.b16 %v2875
  %v3395 = vunpack.c.l.b16 %v2876
  %v3396 = vunpack.c.l.b16 %v2877
  %v3397 = vunpack.c.l.b16 %v2878
  %v3398 = vunpack.c.l.b16 %v2879
  %v3399 = vunpack.c.l.b16 %v2880
  %v3400 = vunpack.c.l.b16 %v2881
  %v3401 = vunpack.c.l.b16 %v2882
  %v3402 = vunpack.c.l.b16 %v2883
  %v3403 = vunpack.c.l.b16 %v2884
  %v3404 = vunpack.c.l.b16 %v2885
  %v3405 = vunpack.c.l.b16 %v2886
  %v3406 = vunpack.c.l.b16 %v2887
  %v3407 = vunpack.c.l.b16 %v2888
  %v3408 = vunpack.c.l.b16 %v2889
  %v3409 = vunpack.c.l.b16 %v2890
  %v3410 = vunpack.c.l.b16 %v2891
  %v3411 = vunpack.c.l.b16 %v2892
  %v3412 = vunpack.c.l.b16 %v2893
  %v3413 = vunpack.c.l.b16 %v2894
  %v3414 = vunpack.c.l.b16 %v2895
  %v3415 = vunpack.c.l.b16 %v2896
  %v3416 = vunpack.c.l.b16 %v2897
  %v3417 = vunpack.c.l.b16 %v2898
  %v3418 = vunpack.c.l.b16 %v2899
  %v3419 = vunpack.c.l.b16 %v2900
  %v3420 = vunpack.c.l.b16 %v2901
  %v3421 = vunpack.c.l.b16 %v2902
  %v3422 = vunpack.c.l.b16 %v2903
  %v3423 = vunpack.c.l.b16 %v2904
  %v3424 = vunpack.c.l.b16 %v2905
  %v3425 = vunpack.c.l.b16 %v2906
  %v3426 = vunpack.c.l.b16 %v2907
  %v3427 = vunpack.c.l.b16 %v2908
  %v3428 = vunpack.c.l.b16 %v2909
  %v3429 = vunpack.c.l.b16 %v2910
  %v3430 = vunpack.c.l.b16 %v2911
  %v3431 = vunpack.c.l.b16 %v2912
  %v3432 = vunpack.c.l.b16 %v2913
  %v3433 = vunpack.c.l.b16 %v2914
  %v3434 = vunpack.c.l.b16 %v2915
  %v3435 = vunpack.c.l.b16 %v2916
  %v3436 = vunpack.c.l.b16 %v2917
  %v3437 = vunpack.c.l.b16 %v2918
  %v3438 = vunpack.c.l.b16 %v2919
  %v3439 = vunpack.c.l.b16 %v2920
  %v3440 = vunpack.c.l.b16 %v2921
  %v3441 = vunpack.c.l.b16 %v2922
  %v3442 = vunpack.c.l.b16 %v2923
  %v3443 = vunpack.c.l.b16 %v2924
  %v3444 = vunpack.c.l.b16 %v2925
  %v3445 = vunpack.c.l.b16 %v2926
  %v3446 = vunpack.c.l.b16 %v2927
  %v3447 = vunpack.c.l.b16 %v2928
  %v3448 = vunpack.c.l.b16 %v2929
  %v3449 = vunpack.c.l.b16 %v2930
  %v3450 = vunpack.c.l.b16 %v2931
  %v3451 = vunpack.c.l.b16 %v2932
  %v3452 = vunpack.c.l.b16 %v2933
  %v3453 = vunpack.c.l.b16 %v2934
  %v3454 = vunpack.c.l.b16 %v2935
  %v3455 = vunpack.c.l.b16 %v2936
  %v3456 = vunpack.c.l.b16 %v2937
  %v3457 = vunpack.c.l.b16 %v2938
  %v3458 = vunpack.c.l.b16 %v2939
  %v3459 = vunpack.c.l.b16 %v2940
  %v3460 = vunpack.c.l.b16 %v2941
  %v3461 = vunpack.c.l.b16 %v2942
  %v3462 = vunpack.c.l.b16 %v2943
  %v3463 = vunpack.c.l.b16 %v2944
  %v3464 = vunpack.c.l.b16 %v2945
  %v3465 = vunpack.c.l.b16 %v2946
  %v3466 = vunpack.c.l.b16 %v2947
  %v3467 = vunpack.c.l.b16 %v2948
  %v3468 = vunpack.c.l.b16 %v2949
  %v3469 = vunpack.c.l.b16 %v2950
  %v3470 = vunpack.c.l.b16 %v2951
  %v3471 = vunpack.c.l.b16 %v2952
  %v3472 = vunpack.c.l.b16 %v2953
  %v3473 = vunpack.c.l.b16 %v2954
  %v3474 = vunpack.c.l.b16 %v2955
  %v3475 = vunpack.c.l.b16 %v2956
  %v3476 = vunpack.c.l.b16 %v2957
  %v3477 = vunpack.c.l.b16 %v2958
  %v3478 = vunpack.c.l.b16 %v2959
  %v3479 = vunpack.c.l.b16 %v2960
  %v3480 = vunpack.c.l.b16 %v2961
  %v3481 = vunpack.c.l.b16 %v2962
  %v3482 = vunpack.c.l.b16 %v2963
  %v3483 = vunpack.c.l.b16 %v2964
  %v3484 = vunpack.c.l.b16 %v2965
  %v3485 = vunpack.c.l.b16 %v2966
  %v3486 = vunpack.c.l.b16 %v2967
  %v3487 = vunpack.c.l.b16 %v2968
  %v3488 = vunpack.c.l.b16 %v2969
  %v3489 = vunpack.c.l.b16 %v2970
  %v3490 = vunpack.c.l.b16 %v2971
  %v3491 = vunpack.c.l.b16 %v2972
  %v3492 = vunpack.c.l.b16 %v2973
  %v3493 = vunpack.c.l.b16 %v2974
  %v3494 = vunpack.c.l.b16 %v2975
  %v3495 = vunpack.c.l.b16 %v2976
  %v3496 = vunpack.c.l.b16 %v2977
  %v3497 = vunpack.c.l.b16 %v2978
  %v3498 = vunpack.c.l.b16 %v2979
  %v3499 = vunpack.c.l.b16 %v2980
  %v3500 = vunpack.c.l.b16 %v2981
  %v3501 = vunpack.c.l.b16 %v2982
  %v3502 = vunpack.c.l.b16 %v2983
  %v3503 = vunpack.c.l.b16 %v2984
  %v3504 = vunpack.c.l.b16 %v2985
  %v3505 = vunpack.c.l.b16 %v2986
  %v3506 = vunpack.c.l.b16 %v2987
  %v3507 = vunpack.c.l.b16 %v2988
  %v3508 = vunpack.c.l.b16 %v2989
  %v3509 = vunpack.c.l.b16 %v2990
  %v3510 = vunpack.c.l.b16 %v2991
  %v3511 = vunpack.c.l.b16 %v2992
  %v3512 = vunpack.c.l.b16 %v2993
  %v3513 = vunpack.c.l.b16 %v2994
  %v3514 = vunpack.c.l.b16 %v2995
  %v3515 = vunpack.c.l.b16 %v2996
  %v3516 = vunpack.c.l.b16 %v2997
  %v3517 = vunpack.c.l.b16 %v2998
  %v3518 = vunpack.c.l.b16 %v2999
  %v3519 = vunpack.c.l.b16 %v3000
  %v3520 = vunpack.c.l.b16 %v3001
  %v3521 = vunpack.c.l.b16 %v3002
  %v3522 = vunpack.c.l.b16 %v3003
  %v3523 = vunpack.c.l.b16 %v3004
  %v3524 = vunpack.c.l.b16 %v3005
  %v3525 = vunpack.c.l.b16 %v3006
  %v3526 = vunpack.c.l.b16 %v3007
  %v3527 = vunpack.c.l.b16 %v3008
  %v3528 = vunpack.c.l.b16 %v3009
  %v3529 = vunpack.c.l.b16 %v3010
  %v3530 = vunpack.c.l.b16 %v3011
  %v3531 = vunpack.c.l.b16 %v3012
  %v3532 = vunpack.c.l.b16 %v3013
  %v3533 = vunpack.c.l.b16 %v3014
  %v3534 = vunpack.c.l.b16 %v3015
  %v3535 = vunpack.c.l.b16 %v3016
  %v3536 = vunpack.c.l.b16 %v3017
  %v3537 = vunpack.c.l.b16 %v3018
  %v3538 = vunpack.c.l.b16 %v3019
  %v3539 = vunpack.c.l.b16 %v3020
  %v3540 = vunpack.c.l.b16 %v3021
  %v3541 = vunpack.c.l.b16 %v3022
  %v3542 = vunpack.c.l.b16 %v3023
  %v3543 = vunpack.c.l.b16 %v3024
  %v3544 = vunpack.c.l.b16 %v3025
  %v3545 = vunpack.c.l.b16 %v3026
  %v3546 = vunpack.c.l.b16 %v3027
  %v3547 = vunpack.c.l.b16 %v3028
  %v3548 = vunpack.c.l.b16 %v3029
  %v3549 = vunpack.c.l.b16 %v3030
  %v3550 = vunpack.c.l.b16 %v3031
  %v3551 = vunpack.c.l.b16 %v3032
  %v3552 = vunpack.c.l.b16 %v3033
  %v3553 = vunpack.c.l.b16 %v3034
  %v3554 = vunpack.c.l.b16 %v3035
  %v3555 = vunpack.c.l.b16 %v3036
  %v3556 = vunpack.c.l.b16 %v3037
  %v3557 = vunpack.c.l.b16 %v3038
  %v3558 = vunpack.c.l.b16 %v3039
  %v3559 = vunpack.c.l.b16 %v3040
  %v3560 = vunpack.c.l.b16 %v3041
  %v3561 = vunpack.c.l.b16 %v3042
  %v3562 = vunpack.c.l.b16 %v3043
  %v3563 = vunpack.c.l.b16 %v3044
  %v3564 = vunpack.c.l.b16 %v3045
  %v3565 = vunpack.c.l.b16 %v3046
  %v3566 = vunpack.c.l.b16 %v3047
  %v3567 = vunpack.c.l.b16 %v3048
  %v3568 = vunpack.c.l.b16 %v3049
  %v3569 = vunpack.c.l.b16 %v3050
  %v3570 = vunpack.c.l.b16 %v3051
  %v3571 = vunpack.c.l.b16 %v3052
  %v3572 = vunpack.c.l.b16 %v3053
  %v3573 = vunpack.c.l.b16 %v3054
  %v3574 = vunpack.c.l.b16 %v3055
  %v3575 = vunpack.c.l.b16 %v3056
  %v3576 = vunpack.c.l.b16 %v3057
  %v3577 = vunpack.c.l.b16 %v3058
  %v3578 = vunpack.c.l.b16 %v3059
  %v3579 = vunpack.c.l.b16 %v3060
  %v3580 = vunpack.c.l.b16 %v3061
  %v3581 = vunpack.c.l.b16 %v3062
  %v3582 = vunpack.c.l.b16 %v3063
  %v3583 = vunpack.c.l.b16 %v3064
  %v3584 = vunpack.c.l.b16 %v3065
  %v3585 = vunpack.c.l.b16 %v3066
  %v3586 = vunpack.c.l.b16 %v3067
  %v3587 = vunpack.c.l.b16 %v3068
  %v3588 = vunpack.c.l.b16 %v3069
  %v3589 = vunpack.c.l.b16 %v3070
  %v3590 = vunpack.c.l.b16 %v3071
  %v3591 = vunpack.c.l.b16 %v3072
  %v3592 = vunpack.c.l.b16 %v3073
  %v3593 = vunpack.c.l.b16 %v3074
  %v3594 = vunpack.c.l.b16 %v3075
  %v3595 = vunpack.c.l.b16 %v3076
  %v3596 = vunpack.c.l.b16 %v3077
  %v3597 = vunpack.c.l.b16 %v3078
  %v3598 = vunpack.c.l.b16 %v3079
  %v3599 = vunpack.c.l.b16 %v3080
  %v3600 = vunpack.c.l.b16 %v3081
  %v3601 = vunpack.c.l.b16 %v3082
  %v3602 = vunpack.c.l.b16 %v3083
  %v3603 = vunpack.c.l.b16 %v3084
  %v3604 = vunpack.c.l.b16 %v3085
  %v3605 = vunpack.c.l.b16 %v3086
  %v3606 = vunpack.c.l.b16 %v3087
  %v3607 = vunpack.c.l.b16 %v3088
  %v3608 = vunpack.c.l.b16 %v3089
  %v3609 = vunpack.c.l.b16 %v3090
  %v3610 = vunpack.c.l.b16 %v3091
  %v3611 = vunpack.c.l.b16 %v3092
  %v3612 = vunpack.c.l.b16 %v3093
  %v3613 = vunpack.c.l.b16 %v3094
  %v3614 = vunpack.c.l.b16 %v3095
  %v3615 = vunpack.c.l.b16 %v3096
  %v3616 = vunpack.c.l.b16 %v3097
  %v3617 = vunpack.c.l.b16 %v3098
  %v3618 = vunpack.c.l.b16 %v3099
  %v3619 = vunpack.c.l.b16 %v3100
  %v3620 = vunpack.c.l.b16 %v3101
  %v3621 = vunpack.c.l.b16 %v3102
  %v3622 = vunpack.c.l.b16 %v3103
  %v3623 = vunpack.c.l.b16 %v3104
  %v3624 = vunpack.c.l.b16 %v3105
  %v3625 = vunpack.c.l.b16 %v3106
  %v3626 = vunpack.c.l.b16 %v3107
  %v3627 = vunpack.c.l.b16 %v3108
  %v3628 = vunpack.c.l.b16 %v3109
  %v3629 = vunpack.c.l.b16 %v3110
  %v3630 = vunpack.c.l.b16 %v3111
  %v3631 = vunpack.c.l.b16 %v3112
  %v3632 = vunpack.c.l.b16 %v3113
  %v3633 = vunpack.c.l.b16 %v3114
  %v3634 = vunpack.c.l.b16 %v3115
  %v3635 = vunpack.c.l.b16 %v3116
  %v3636 = vunpack.c.l.b16 %v3117
  %v3637 = vunpack.c.l.b16 %v3118
  %v3638 = vunpack.c.l.b16 %v3119
  %v3639 = vunpack.c.l.b16 %v3120
  %v3640 = vunpack.c.l.b16 %v3121
  %v3641 = vunpack.c.l.b16 %v3122
  %v3642 = vunpack.c.l.b16 %v3123
  %v3643 = vunpack.c.l.b16 %v3124
  %v3644 = vunpack.c.l.b16 %v3125
  %v3645 = vunpack.c.l.b16 %v3126
  %v3646 = vunpack.c.l.b16 %v3127
  %v3647 = vunpack.c.l.b16 %v3128
  %v3648 = vunpack.c.l.b16 %v3129
  %v3649 = vpack.c.b16 %v3394, %v3393
  %v3650 = vpack.c.b16 %v3396, %v3395
  %v3651 = vpack.c.b16 %v3398, %v3397
  %v3652 = vpack.c.b16 %v3400, %v3399
  %v3653 = vpack.c.b16 %v3402, %v3401
  %v3654 = vpack.c.b16 %v3404, %v3403
  %v3655 = vpack.c.b16 %v3406, %v3405
  %v3656 = vpack.c.b16 %v3408, %v3407
  %v3657 = vpack.c.b16 %v3410, %v3409
  %v3658 = vpack.c.b16 %v3412, %v3411
  %v3659 = vpack.c.b16 %v3414, %v3413
  %v3660 = vpack.c.b16 %v3416, %v3415
  %v3661 = vpack.c.b16 %v3418, %v3417
  %v3662 = vpack.c.b16 %v3420, %v3419
  %v3663 = vpack.c.b16 %v3422, %v3421
  %v3664 = vpack.c.b16 %v3424, %v3423
  %v3665 = vpack.c.b16 %v3426, %v3425
  %v3666 = vpack.c.b16 %v3428, %v3427
  %v3667 = vpack.c.b16 %v3430, %v3429
  %v3668 = vpack.c.b16 %v3432, %v3431
  %v3669 = vpack.c.b16 %v3434, %v3433
  %v3670 = vpack.c.b16 %v3436, %v3435
  %v3671 = vpack.c.b16 %v3438, %v3437
  %v3672 = vpack.c.b16 %v3440, %v3439
  %v3673 = vpack.c.b16 %v3442, %v3441
  %v3674 = vpack.c.b16 %v3444, %v3443
  %v3675 = vpack.c.b16 %v3446, %v3445
  %v3676 = vpack.c.b16 %v3448, %v3447
  %v3677 = vpack.c.b16 %v3450, %v3449
  %v3678 = vpack.c.b16 %v3452, %v3451
  %v3679 = vpack.c.b16 %v3454, %v3453
  %v3680 = vpack.c.b16 %v3456, %v3455
  %v3681 = vpack.c.b16 %v3458, %v3457
  %v3682 = vpack.c.b16 %v3460, %v3459
  %v3683 = vpack.c.b16 %v3462, %v3461
  %v3684 = vpack.c.b16 %v3464, %v3463
  %v3685 = vpack.c.b16 %v3466, %v3465
  %v3686 = vpack.c.b16 %v3468, %v3467
  %v3687 = vpack.c.b16 %v3470, %v3469
  %v3688 = vpack.c.b16 %v3472, %v3471
  %v3689 = vpack.c.b16 %v3474, %v3473
  %v3690 = vpack.c.b16 %v3476, %v3475
  %v3691 = vpack.c.b16 %v3478, %v3477
  %v3692 = vpack.c.b16 %v3480, %v3479
  %v3693 = vpack.c.b16 %v3482, %v3481
  %v3694 = vpack.c.b16 %v3484, %v3483
  %v3695 = vpack.c.b16 %v3486, %v3485
  %v3696 = vpack.c.b16 %v3488, %v3487
  %v3697 = vpack.c.b16 %v3490, %v3489
  %v3698 = vpack.c.b16 %v3492, %v3491
  %v3699 = vpack.c.b16 %v3494, %v3493
  %v3700 = vpack.c.b16 %v3496, %v3495
  %v3701 = vpack.c.b16 %v3498, %v3497
  %v3702 = vpack.c.b16 %v3500, %v3499
  %v3703 = vpack.c.b16 %v3502, %v3501
  %v3704 = vpack.c.b16 %v3504, %v3503
  %v3705 = vpack.c.b16 %v3506, %v3505
  %v3706 = vpack.c.b16 %v3508, %v3507
  %v3707 = vpack.c.b16 %v3510, %v3509
  %v3708 = vpack.c.b16 %v3512, %v3511
  %v3709 = vpack.c.b16 %v3514, %v3513
  %v3710 = vpack.c.b16 %v3516, %v3515
  %v3711 = vpack.c.b16 %v3518, %v3517
  %v3712 = vpack.c.b16 %v3520, %v3519
  %v3713 = vpack.c.b16 %v3522, %v3521
  %v3714 = vpack.c.b16 %v3524, %v3523
  %v3715 = vpack.c.b16 %v3526, %v3525
  %v3716 = vpack.c.b16 %v3528, %v3527
  %v3717 = vpack.c.b16 %v3530, %v3529
  %v3718 = vpack.c.b16 %v3532, %v3531
  %v3719 = vpack.c.b16 %v3534, %v3533
  %v3720 = vpack.c.b16 %v3536, %v3535
  %v3721 = vpack.c.b16 %v3538, %v3537
  %v3722 = vpack.c.b16 %v3540, %v3539
  %v3723 = vpack.c.b16 %v3542, %v3541
  %v3724 = vpack.c.b16 %v3544, %v3543
  %v3725 = vpack.c.b16 %v3546, %v3545
  %v3726 = vpack.c.b16 %v3548, %v3547
  %v3727 = vpack.c.b16 %v3550, %v3549
  %v3728 = vpack.c.b16 %v3552, %v3551
  %v3729 = vpack.c.b16 %v3554, %v3553
  %v3730 = vpack.c.b16 %v3556, %v3555
  %v3731 = vpack.c.b16 %v3558, %v3557
  %v3732 = vpack.c.b16 %v3560, %v3559
  %v3733 = vpack.c.b16 %v3562, %v3561
  %v3734 = vpack.c.b16 %v3564, %v3563
  %v3735 = vpack.c.b16 %v3566, %v3565
  %v3736 = vpack.c.b16 %v3568, %v3567
  %v3737 = vpack.c.b16 %v3570, %v3569
  %v3738 = vpack.c.b16 %v3572, %v3571
  %v3739 = vpack.c.b16 %v3574, %v3573
  %v3740 = vpack.c.b16 %v3576, %v3575
  %v3741 = vpack.c.b16 %v3578, %v3577
  %v3742 = vpack.c.b16 %v3580, %v3579
  %v3743 = vpack.c.b16 %v3582, %v3581
  %v3744 = vpack.c.b16 %v3584, %v3583
  %v3745 = vpack.c.b16 %v3586, %v3585
  %v3746 = vpack.c.b16 %v3588, %v3587
  %v3747 = vpack.c.b16 %v3590, %v3589
  %v3748 = vpack.c.b16 %v3592, %v3591
  %v3749 = vpack.c.b16 %v3594, %v3593
  %v3750 = vpack.c.b16 %v3596, %v3595
  %v3751 = vpack.c.b16 %v3598, %v3597
  %v3752 = vpack.c.b16 %v3600, %v3599
  %v3753 = vpack.c.b16 %v3602, %v3601
  %v3754 = vpack.c.b16 %v3604, %v3603
  %v3755 = vpack.c.b16 %v3606, %v3605
  %v3756 = vpack.c.b16 %v3608, %v3607
  %v3757 = vpack.c.b16 %v3610, %v3609
  %v3758 = vpack.c.b16 %v3612, %v3611
  %v3759 = vpack.c.b16 %v3614, %v3613
  %v3760 = vpack.c.b16 %v3616, %v3615
  %v3761 = vpack.c.b16 %v3618, %v3617
  %v3762 = vpack.c.b16 %v3620, %v3619
  %v3763 = vpack.c.b16 %v3622, %v3621
  %v3764 = vpack.c.b16 %v3624, %v3623
  %v3765 = vpack.c.b16 %v3626, %v3625
  %v3766 = vpack.c.b16 %v3628, %v3627
  %v3767 = vpack.c.b16 %v3630, %v3629
  %v3768 = vpack.c.b16 %v3632, %v3631
  %v3769 = vpack.c.b16 %v3634, %v3633
  %v3770 = vpack.c.b16 %v3636, %v3635
  %v3771 = vpack.c.b16 %v3638, %v3637
  %v3772 = vpack.c.b16 %v3640, %v3639
  %v3773 = vpack.c.b16 %v3642, %v3641
  %v3774 = vpack.c.b16 %v3644, %v3643
  %v3775 = vpack.c.b16 %v3646, %v3645
  %v3776 = vpack.c.b16 %v3648, %v3647
  %3905 = vmatprep.subr.bf16.mxu0 0
  %3906 = vmatpush1.bf16.msra.mxu0 %v3649
  %3907 = vmatprep.subr.bf16.mxu0 0
  %3908 = vmatpush1.bf16.msra.mxu0 %v3650
  %3909 = vmatprep.subr.bf16.mxu0 0
  %3910 = vmatpush1.bf16.msra.mxu0 %v3651
  %3911 = vmatprep.subr.bf16.mxu0 0
  %3912 = vmatpush1.bf16.msra.mxu0 %v3652
  %3913 = vmatprep.subr.bf16.mxu0 0
  %3914 = vmatpush1.bf16.msra.mxu0 %v3653
  %3915 = vmatprep.subr.bf16.mxu0 0
  %3916 = vmatpush1.bf16.msra.mxu0 %v3654
  %3917 = vmatprep.subr.bf16.mxu0 0
  %3918 = vmatpush1.bf16.msra.mxu0 %v3655
  %3919 = vmatprep.subr.bf16.mxu0 0
  %3920 = vmatpush1.bf16.msra.mxu0 %v3656
  %3921 = vmatprep.subr.bf16.mxu0 0
  %3922 = vmatpush1.bf16.msra.mxu0 %v3657
  %3923 = vmatprep.subr.bf16.mxu0 0
  %3924 = vmatpush1.bf16.msra.mxu0 %v3658
  %3925 = vmatprep.subr.bf16.mxu0 0
  %3926 = vmatpush1.bf16.msra.mxu0 %v3659
  %3927 = vmatprep.subr.bf16.mxu0 0
  %3928 = vmatpush1.bf16.msra.mxu0 %v3660
  %3929 = vmatprep.subr.bf16.mxu0 0
  %3930 = vmatpush1.bf16.msra.mxu0 %v3661
  %3931 = vmatprep.subr.bf16.mxu0 0
  %3932 = vmatpush1.bf16.msra.mxu0 %v3662
  %3933 = vmatprep.subr.bf16.mxu0 0
  %3934 = vmatpush1.bf16.msra.mxu0 %v3663
  %3935 = vmatprep.subr.bf16.mxu0 0
  %3936 = vmatpush1.bf16.msra.mxu0 %v3664
  %3937 = vmatprep.mubr.f32.mxu0 %v2843
  %3938 = vmatmul.mubr.f32.gmra.mrb[0].mxu0 %v2842
  %v3939 = vpop.f32.mrb[0].mxu0
  %v3940 = vadd.f32 %v3135, %v3939
  %v3941 = vpop.f32.mrb[0].mxu0
  %3942 = vmatprep.mubr.f32.mxu0 %v2859
  %3943 = vmatmul.mubr.f32.gmra.mrb[0].mxu0 %v2858
  %v3944 = vpop.f32.mrb[0].mxu0
  %v3945 = vadd.f32 %v3135, %v3944
  %v3946 = vpop.f32.mrb[0].mxu0
  %3947 = vdwg.mxu0
  %3948 = vmatprep.subr.bf16.mxu0 0
  %3949 = vmatpush1.bf16.msra.mxu0 %v3665
  %3950 = vmatprep.subr.bf16.mxu0 0
  %3951 = vmatpush1.bf16.msra.mxu0 %v3666
  %3952 = vmatprep.subr.bf16.mxu0 0
  %3953 = vmatpush1.bf16.msra.mxu0 %v3667
  %3954 = vmatprep.subr.bf16.mxu0 0
  %3955 = vmatpush1.bf16.msra.mxu0 %v3668
  %3956 = vmatprep.subr.bf16.mxu0 0
  %3957 = vmatpush1.bf16.msra.mxu0 %v3669
  %3958 = vmatprep.subr.bf16.mxu0 0
  %3959 = vmatpush1.bf16.msra.mxu0 %v3670
  %3960 = vmatprep.subr.bf16.mxu0 0
  %3961 = vmatpush1.bf16.msra.mxu0 %v3671
  %3962 = vmatprep.subr.bf16.mxu0 0
  %3963 = vmatpush1.bf16.msra.mxu0 %v3672
  %3964 = vmatprep.subr.bf16.mxu0 0
  %3965 = vmatpush1.bf16.msra.mxu0 %v3673
  %3966 = vmatprep.subr.bf16.mxu0 0
  %3967 = vmatpush1.bf16.msra.mxu0 %v3674
  %3968 = vmatprep.subr.bf16.mxu0 0
  %3969 = vmatpush1.bf16.msra.mxu0 %v3675
  %3970 = vmatprep.subr.bf16.mxu0 0
  %3971 = vmatpush1.bf16.msra.mxu0 %v3676
  %3972 = vmatprep.subr.bf16.mxu0 0
  %3973 = vmatpush1.bf16.msra.mxu0 %v3677
  %3974 = vmatprep.subr.bf16.mxu0 0
  %3975 = vmatpush1.bf16.msra.mxu0 %v3678
  %3976 = vmatprep.subr.bf16.mxu0 0
  %3977 = vmatpush1.bf16.msra.mxu0 %v3679
  %3978 = vmatprep.subr.bf16.mxu0 0
  %3979 = vmatpush1.bf16.msra.mxu0 %v3680
  %3980 = vmatprep.mubr.f32.mxu0 %v2845
  %3981 = vmatmul.mubr.f32.gmra.mrb[0].mxu0 %v2844
  %v3982 = vpop.f32.mrb[0].mxu0
  %v3983 = vadd.f32 %v3940, %v3982
  %v3984 = vpop.f32.mrb[0].mxu0
  %3985 = vmatprep.mubr.f32.mxu0 %v2861
  %3986 = vmatmul.mubr.f32.gmra.mrb[0].mxu0 %v2860
  %v3987 = vpop.f32.mrb[0].mxu0
  %v3988 = vadd.f32 %v3945, %v3987
  %v3989 = vpop.f32.mrb[0].mxu0
  %3990 = vdwg.mxu0
  %3991 = vmatprep.subr.bf16.mxu0 0
  %3992 = vmatpush1.bf16.msra.mxu0 %v3681
  %3993 = vmatprep.subr.bf16.mxu0 0
  %3994 = vmatpush1.bf16.msra.mxu0 %v3682
  %3995 = vmatprep.subr.bf16.mxu0 0
  %3996 = vmatpush1.bf16.msra.mxu0 %v3683
  %3997 = vmatprep.subr.bf16.mxu0 0
  %3998 = vmatpush1.bf16.msra.mxu0 %v3684
  %3999 = vmatprep.subr.bf16.mxu0 0
  %4000 = vmatpush1.bf16.msra.mxu0 %v3685
  %4001 = vmatprep.subr.bf16.mxu0 0
  %4002 = vmatpush1.bf16.msra.mxu0 %v3686
  %4003 = vmatprep.subr.bf16.mxu0 0
  %4004 = vmatpush1.bf16.msra.mxu0 %v3687
  %4005 = vmatprep.subr.bf16.mxu0 0
  %4006 = vmatpush1.bf16.msra.mxu0 %v3688
  %4007 = vmatprep.subr.bf16.mxu0 0
  %4008 = vmatpush1.bf16.msra.mxu0 %v3689
  %4009 = vmatprep.subr.bf16.mxu0 0
  %4010 = vmatpush1.bf16.msra.mxu0 %v3690
  %4011 = vmatprep.subr.bf16.mxu0 0
  %4012 = vmatpush1.bf16.msra.mxu0 %v3691
  %4013 = vmatprep.subr.bf16.mxu0 0
  %4014 = vmatpush1.bf16.msra.mxu0 %v3692
  %4015 = vmatprep.subr.bf16.mxu0 0
  %4016 = vmatpush1.bf16.msra.mxu0 %v3693
  %4017 = vmatprep.subr.bf16.mxu0 0
  %4018 = vmatpush1.bf16.msra.mxu0 %v3694
  %4019 = vmatprep.subr.bf16.mxu0 0
  %4020 = vmatpush1.bf16.msra.mxu0 %v3695
  %4021 = vmatprep.subr.bf16.mxu0 0
  %4022 = vmatpush1.bf16.msra.mxu0 %v3696
  %4023 = vmatprep.mubr.f32.mxu0 %v2847
  %4024 = vmatmul.mubr.f32.gmra.mrb[0].mxu0 %v2846
  %v4025 = vpop.f32.mrb[0].mxu0
  %v4026 = vadd.f32 %v3983, %v4025
  %v4027 = vpop.f32.mrb[0].mxu0
  %4028 = vmatprep.mubr.f32.mxu0 %v2863
  %4029 = vmatmul.mubr.f32.gmra.mrb[0].mxu0 %v2862
  %v4030 = vpop.f32.mrb[0].mxu0
  %v4031 = vadd.f32 %v3988, %v4030
  %v4032 = vpop.f32.mrb[0].mxu0
  %4033 = vdwg.mxu0
  %4034 = vmatprep.subr.bf16.mxu0 0
  %4035 = vmatpush1.bf16.msra.mxu0 %v3697
  %4036 = vmatprep.subr.bf16.mxu0 0
  %4037 = vmatpush1.bf16.msra.mxu0 %v3698
  %4038 = vmatprep.subr.bf16.mxu0 0
  %4039 = vmatpush1.bf16.msra.mxu0 %v3699
  %4040 = vmatprep.subr.bf16.mxu0 0
  %4041 = vmatpush1.bf16.msra.mxu0 %v3700
  %4042 = vmatprep.subr.bf16.mxu0 0
  %4043 = vmatpush1.bf16.msra.mxu0 %v3701
  %4044 = vmatprep.subr.bf16.mxu0 0
  %4045 = vmatpush1.bf16.msra.mxu0 %v3702
  %4046 = vmatprep.subr.bf16.mxu0 0
  %4047 = vmatpush1.bf16.msra.mxu0 %v3703
  %4048 = vmatprep.subr.bf16.mxu0 0
  %4049 = vmatpush1.bf16.msra.mxu0 %v3704
  %4050 = vmatprep.subr.bf16.mxu0 0
  %4051 = vmatpush1.bf16.msra.mxu0 %v3705
  %4052 = vmatprep.subr.bf16.mxu0 0
  %4053 = vmatpush1.bf16.msra.mxu0 %v3706
  %4054 = vmatprep.subr.bf16.mxu0 0
  %4055 = vmatpush1.bf16.msra.mxu0 %v3707
  %4056 = vmatprep.subr.bf16.mxu0 0
  %4057 = vmatpush1.bf16.msra.mxu0 %v3708
  %4058 = vmatprep.subr.bf16.mxu0 0
  %4059 = vmatpush1.bf16.msra.mxu0 %v3709
  %4060 = vmatprep.subr.bf16.mxu0 0
  %4061 = vmatpush1.bf16.msra.mxu0 %v3710
  %4062 = vmatprep.subr.bf16.mxu0 0
  %4063 = vmatpush1.bf16.msra.mxu0 %v3711
  %4064 = vmatprep.subr.bf16.mxu0 0
  %4065 = vmatpush1.bf16.msra.mxu0 %v3712
  %4066 = vmatprep.mubr.f32.mxu0 %v2849
  %4067 = vmatmul.mubr.f32.gmra.mrb[0].mxu0 %v2848
  %v4068 = vpop.f32.mrb[0].mxu0
  %v4069 = vadd.f32 %v4026, %v4068
  %v4070 = vpop.f32.mrb[0].mxu0
  %4071 = vmatprep.mubr.f32.mxu0 %v2865
  %4072 = vmatmul.mubr.f32.gmra.mrb[0].mxu0 %v2864
  %v4073 = vpop.f32.mrb[0].mxu0
  %v4074 = vadd.f32 %v4031, %v4073
  %v4075 = vpop.f32.mrb[0].mxu0
  %4076 = vdwg.mxu0
  %4077 = vmatprep.subr.bf16.mxu0 0
  %4078 = vmatpush1.bf16.msra.mxu0 %v3713
  %4079 = vmatprep.subr.bf16.mxu0 0
  %4080 = vmatpush1.bf16.msra.mxu0 %v3714
  %4081 = vmatprep.subr.bf16.mxu0 0
  %4082 = vmatpush1.bf16.msra.mxu0 %v3715
  %4083 = vmatprep.subr.bf16.mxu0 0
  %4084 = vmatpush1.bf16.msra.mxu0 %v3716
  %4085 = vmatprep.subr.bf16.mxu0 0
  %4086 = vmatpush1.bf16.msra.mxu0 %v3717
  %4087 = vmatprep.subr.bf16.mxu0 0
  %4088 = vmatpush1.bf16.msra.mxu0 %v3718
  %4089 = vmatprep.subr.bf16.mxu0 0
  %4090 = vmatpush1.bf16.msra.mxu0 %v3719
  %4091 = vmatprep.subr.bf16.mxu0 0
  %4092 = vmatpush1.bf16.msra.mxu0 %v3720
  %4093 = vmatprep.subr.bf16.mxu0 0
  %4094 = vmatpush1.bf16.msra.mxu0 %v3721
  %4095 = vmatprep.subr.bf16.mxu0 0
  %4096 = vmatpush1.bf16.msra.mxu0 %v3722
  %4097 = vmatprep.subr.bf16.mxu0 0
  %4098 = vmatpush1.bf16.msra.mxu0 %v3723
  %4099 = vmatprep.subr.bf16.mxu0 0
  %4100 = vmatpush1.bf16.msra.mxu0 %v3724
  %4101 = vmatprep.subr.bf16.mxu0 0
  %4102 = vmatpush1.bf16.msra.mxu0 %v3725
  %4103 = vmatprep.subr.bf16.mxu0 0
  %4104 = vmatpush1.bf16.msra.mxu0 %v3726
  %4105 = vmatprep.subr.bf16.mxu0 0
  %4106 = vmatpush1.bf16.msra.mxu0 %v3727
  %4107 = vmatprep.subr.bf16.mxu0 0
  %4108 = vmatpush1.bf16.msra.mxu0 %v3728
  %4109 = vmatprep.mubr.f32.mxu0 %v2851
  %4110 = vmatmul.mubr.f32.gmra.mrb[0].mxu0 %v2850
  %v4111 = vpop.f32.mrb[0].mxu0
  %v4112 = vadd.f32 %v4069, %v4111
  %v4113 = vpop.f32.mrb[0].mxu0
  %4114 = vmatprep.mubr.f32.mxu0 %v2867
  %4115 = vmatmul.mubr.f32.gmra.mrb[0].mxu0 %v2866
  %v4116 = vpop.f32.mrb[0].mxu0
  %v4117 = vadd.f32 %v4074, %v4116
  %v4118 = vpop.f32.mrb[0].mxu0
  %4119 = vdwg.mxu0
  %4120 = vmatprep.subr.bf16.mxu0 0
  %4121 = vmatpush1.bf16.msra.mxu0 %v3729
  %4122 = vmatprep.subr.bf16.mxu0 0
  %4123 = vmatpush1.bf16.msra.mxu0 %v3730
  %4124 = vmatprep.subr.bf16.mxu0 0
  %4125 = vmatpush1.bf16.msra.mxu0 %v3731
  %4126 = vmatprep.subr.bf16.mxu0 0
  %4127 = vmatpush1.bf16.msra.mxu0 %v3732
  %4128 = vmatprep.subr.bf16.mxu0 0
  %4129 = vmatpush1.bf16.msra.mxu0 %v3733
  %4130 = vmatprep.subr.bf16.mxu0 0
  %4131 = vmatpush1.bf16.msra.mxu0 %v3734
  %4132 = vmatprep.subr.bf16.mxu0 0
  %4133 = vmatpush1.bf16.msra.mxu0 %v3735
  %4134 = vmatprep.subr.bf16.mxu0 0
  %4135 = vmatpush1.bf16.msra.mxu0 %v3736
  %4136 = vmatprep.subr.bf16.mxu0 0
  %4137 = vmatpush1.bf16.msra.mxu0 %v3737
  %4138 = vmatprep.subr.bf16.mxu0 0
  %4139 = vmatpush1.bf16.msra.mxu0 %v3738
  %4140 = vmatprep.subr.bf16.mxu0 0
  %4141 = vmatpush1.bf16.msra.mxu0 %v3739
  %4142 = vmatprep.subr.bf16.mxu0 0
  %4143 = vmatpush1.bf16.msra.mxu0 %v3740
  %4144 = vmatprep.subr.bf16.mxu0 0
  %4145 = vmatpush1.bf16.msra.mxu0 %v3741
  %4146 = vmatprep.subr.bf16.mxu0 0
  %4147 = vmatpush1.bf16.msra.mxu0 %v3742
  %4148 = vmatprep.subr.bf16.mxu0 0
  %4149 = vmatpush1.bf16.msra.mxu0 %v3743
  %4150 = vmatprep.subr.bf16.mxu0 0
  %4151 = vmatpush1.bf16.msra.mxu0 %v3744
  %4152 = vmatprep.mubr.f32.mxu0 %v2853
  %4153 = vmatmul.mubr.f32.gmra.mrb[0].mxu0 %v2852
  %v4154 = vpop.f32.mrb[0].mxu0
  %v4155 = vadd.f32 %v4112, %v4154
  %v4156 = vpop.f32.mrb[0].mxu0
  %4157 = vmatprep.mubr.f32.mxu0 %v2869
  %4158 = vmatmul.mubr.f32.gmra.mrb[0].mxu0 %v2868
  %v4159 = vpop.f32.mrb[0].mxu0
  %v4160 = vadd.f32 %v4117, %v4159
  %v4161 = vpop.f32.mrb[0].mxu0
  %4162 = vdwg.mxu0
  %4163 = vmatprep.subr.bf16.mxu0 0
  %4164 = vmatpush1.bf16.msra.mxu0 %v3745
  %4165 = vmatprep.subr.bf16.mxu0 0
  %4166 = vmatpush1.bf16.msra.mxu0 %v3746
  %4167 = vmatprep.subr.bf16.mxu0 0
  %4168 = vmatpush1.bf16.msra.mxu0 %v3747
  %4169 = vmatprep.subr.bf16.mxu0 0
  %4170 = vmatpush1.bf16.msra.mxu0 %v3748
  %4171 = vmatprep.subr.bf16.mxu0 0
  %4172 = vmatpush1.bf16.msra.mxu0 %v3749
  %4173 = vmatprep.subr.bf16.mxu0 0
  %4174 = vmatpush1.bf16.msra.mxu0 %v3750
  %4175 = vmatprep.subr.bf16.mxu0 0
  %4176 = vmatpush1.bf16.msra.mxu0 %v3751
  %4177 = vmatprep.subr.bf16.mxu0 0
  %4178 = vmatpush1.bf16.msra.mxu0 %v3752
  %4179 = vmatprep.subr.bf16.mxu0 0
  %4180 = vmatpush1.bf16.msra.mxu0 %v3753
  %4181 = vmatprep.subr.bf16.mxu0 0
  %4182 = vmatpush1.bf16.msra.mxu0 %v3754
  %4183 = vmatprep.subr.bf16.mxu0 0
  %4184 = vmatpush1.bf16.msra.mxu0 %v3755
  %4185 = vmatprep.subr.bf16.mxu0 0
  %4186 = vmatpush1.bf16.msra.mxu0 %v3756
  %4187 = vmatprep.subr.bf16.mxu0 0
  %4188 = vmatpush1.bf16.msra.mxu0 %v3757
  %4189 = vmatprep.subr.bf16.mxu0 0
  %4190 = vmatpush1.bf16.msra.mxu0 %v3758
  %4191 = vmatprep.subr.bf16.mxu0 0
  %4192 = vmatpush1.bf16.msra.mxu0 %v3759
  %4193 = vmatprep.subr.bf16.mxu0 0
  %4194 = vmatpush1.bf16.msra.mxu0 %v3760
  %4195 = vmatprep.mubr.f32.mxu0 %v2855
  %4196 = vmatmul.mubr.f32.gmra.mrb[0].mxu0 %v2854
  %v4197 = vpop.f32.mrb[0].mxu0
  %v4198 = vadd.f32 %v4155, %v4197
  %v4199 = vpop.f32.mrb[0].mxu0
  %4200 = vmatprep.mubr.f32.mxu0 %v2871
  %4201 = vmatmul.mubr.f32.gmra.mrb[0].mxu0 %v2870
  %v4202 = vpop.f32.mrb[0].mxu0
  %v4203 = vadd.f32 %v4160, %v4202
  %v4204 = vpop.f32.mrb[0].mxu0
  %4205 = vdwg.mxu0
  %4206 = vmatprep.subr.bf16.mxu0 0
  %4207 = vmatpush1.bf16.msra.mxu0 %v3761
  %4208 = vmatprep.subr.bf16.mxu0 0
  %4209 = vmatpush1.bf16.msra.mxu0 %v3762
  %4210 = vmatprep.subr.bf16.mxu0 0
  %4211 = vmatpush1.bf16.msra.mxu0 %v3763
  %4212 = vmatprep.subr.bf16.mxu0 0
  %4213 = vmatpush1.bf16.msra.mxu0 %v3764
  %4214 = vmatprep.subr.bf16.mxu0 0
  %4215 = vmatpush1.bf16.msra.mxu0 %v3765
  %4216 = vmatprep.subr.bf16.mxu0 0
  %4217 = vmatpush1.bf16.msra.mxu0 %v3766
  %4218 = vmatprep.subr.bf16.mxu0 0
  %4219 = vmatpush1.bf16.msra.mxu0 %v3767
  %4220 = vmatprep.subr.bf16.mxu0 0
  %4221 = vmatpush1.bf16.msra.mxu0 %v3768
  %4222 = vmatprep.subr.bf16.mxu0 0
  %4223 = vmatpush1.bf16.msra.mxu0 %v3769
  %4224 = vmatprep.subr.bf16.mxu0 0
  %4225 = vmatpush1.bf16.msra.mxu0 %v3770
  %4226 = vmatprep.subr.bf16.mxu0 0
  %4227 = vmatpush1.bf16.msra.mxu0 %v3771
  %4228 = vmatprep.subr.bf16.mxu0 0
  %4229 = vmatpush1.bf16.msra.mxu0 %v3772
  %4230 = vmatprep.subr.bf16.mxu0 0
  %4231 = vmatpush1.bf16.msra.mxu0 %v3773
  %4232 = vmatprep.subr.bf16.mxu0 0
  %4233 = vmatpush1.bf16.msra.mxu0 %v3774
  %4234 = vmatprep.subr.bf16.mxu0 0
  %4235 = vmatpush1.bf16.msra.mxu0 %v3775
  %4236 = vmatprep.subr.bf16.mxu0 0
  %4237 = vmatpush1.bf16.msra.mxu0 %v3776
  %4238 = vmatprep.mubr.f32.mxu0 %v2857
  %4239 = vmatmul.mubr.f32.gmra.mrb[0].mxu0 %v2856
  %v4240 = vpop.f32.mrb[0].mxu0
  %v4241 = vadd.f32 %v4198, %v4240
  %v4242 = vpop.f32.mrb[0].mxu0
  %4243 = vmatprep.mubr.f32.mxu0 %v2873
  %4244 = vmatmul.mubr.f32.gmra.mrb[0].mxu0 %v2872
  %v4245 = vpop.f32.mrb[0].mxu0
  %v4246 = vadd.f32 %v4203, %v4245
  %v4247 = vpop.f32.mrb[0].mxu0
  %4248 = vdwg.mxu0
  %v4249 = vadd.f32 %v1814, %v4241
  %v4250 = vadd.f32 %v1815, %v4246
  %v4251 = vld [vmem:[%s11] sm:$0x1]
  %v4252 = vld [vmem:[%s12] sm:$0x1]
  %v4253 = vsel %vm197, %v4249, 0.0
  %4254 = vadd.xlane.f32.xlu0 %v4253
  %v4255 = vpop.xlane.xlu0 %4254
  %v4256 = vsel %vm197, %v4250, 0.0
  %4257 = vadd.xlane.f32.xlu0 %v4256
  %v4258 = vpop.xlane.xlu0 %4257
  %v4259 = vmul.f32 %v4255, %v1779
  %v4260 = vmul.f32 %v4258, %v1779
  %v4261 = vsub.f32 %v4249, %v4259
  %v4262 = vsub.f32 %v4250, %v4260
  %v4263 = vmul.f32 %v4261, %v4261
  %v4264 = vmul.f32 %v4262, %v4262
  %v4265 = vsel %vm197, %v4263, 0.0
  %4266 = vadd.xlane.f32.xlu0 %v4265
  %v4267 = vpop.xlane.xlu0 %4266
  %v4268 = vsel %vm197, %v4264, 0.0
  %4269 = vadd.xlane.f32.xlu0 %v4268
  %v4270 = vpop.xlane.xlu0 %4269
  %v4271 = vmul.f32 %v4267, %v1779
  %v4272 = vmul.f32 %v4270, %v1779
  %v4273 = vadd.f32 %v4271, 1e-05
  %v4274 = vadd.f32 %v4272, 1e-05
  %v4275 = vrsqrt.pop %v4273
  %v4276 = vrsqrt.pop %v4274
  %v4277 = vmul.f32 %v4261, %v4275
  %v4278 = vmul.f32 %v4262, %v4276
  %v4280 = vlaneseq
  %v4281 = vshrl.u32 %v4280, 7
  %v4282 = vsub.s32 0, %v4281
  %v4283 = vrot.slane %v4251, %v4282
  %v4285 = vmul.f32 %v4277, %v4283
  %v4286 = vmul.f32 %v4278, %v4283
  %v4288 = vlaneseq
  %v4289 = vshrl.u32 %v4288, 7
  %v4290 = vsub.s32 0, %v4289
  %v4291 = vrot.slane %v4252, %v4290
  %v4293 = vadd.f32 %v4285, %v4291
  %v4294 = vadd.f32 %v4286, %v4291
  %s4295 = scalar_lea.vmem %s1, 144
  %v4296 = vld [vmem:[%s4295] sm:$0xff]
  %v4297 = vld [vmem:[%s4295 + $0x8] sm:$0xf]
  %v4298 = vld [vmem:[%s4295 + $0xc] sm:$0xff]
  %v4299 = vld [vmem:[%s4295 + $0x14] sm:$0xf]
  %v4300 = vld [vmem:[%s4295 + $0x18] sm:$0xff]
  %v4301 = vld [vmem:[%s4295 + $0x20] sm:$0xf]
  %v4302 = vld [vmem:[%s4295 + $0x24] sm:$0xff]
  %v4303 = vld [vmem:[%s4295 + $0x2c] sm:$0xf]
  %v4304 = vld [vmem:[%s4295 + $0x30] sm:$0xff]
  %v4305 = vld [vmem:[%s4295 + $0x38] sm:$0xf]
  %v4306 = vld [vmem:[%s4295 + $0x3c] sm:$0xff]
  %v4307 = vld [vmem:[%s4295 + $0x44] sm:$0xf]
  %v4308 = vld [vmem:[%s4295 + $0x48] sm:$0xff]
  %v4309 = vld [vmem:[%s4295 + $0x50] sm:$0xf]
  %v4310 = vld [vmem:[%s4295 + $0x54] sm:$0xff]
  %v4311 = vld [vmem:[%s4295 + $0x5c] sm:$0xf]
  %v4312 = vld [vmem:[%s4295 + $0x60] sm:$0xff]
  %v4313 = vld [vmem:[%s4295 + $0x68] sm:$0xf]
  %v4314 = vld [vmem:[%s4295 + $0x6c] sm:$0xff]
  %v4315 = vld [vmem:[%s4295 + $0x74] sm:$0xf]
  %v4316 = vld [vmem:[%s4295 + $0x78] sm:$0xff]
  %v4317 = vld [vmem:[%s4295 + $0x80] sm:$0xf]
  %v4318 = vld [vmem:[%s4295 + $0x84] sm:$0xff]
  %v4319 = vld [vmem:[%s4295 + $0x8c] sm:$0xf]
  %s4320 = scalar_lea.vmem %s2, 3
  %v4321 = vld [vmem:[%s4320] sm:$0x7]
  %v4323 = vlaneseq
  %v4324 = vshrl.u32 %v4323, 7
  %v4325 = vsub.s32 0, %v4324
  %v4326 = vrot.slane %v4321, %v4325
  %v4327 = vlaneseq
  %v4328 = vshrl.u32 %v4327, 7
  %v4329 = vsub.s32 1, %v4328
  %v4330 = vrot.slane %v4321, %v4329
  %v4331 = vlaneseq
  %v4332 = vshrl.u32 %v4331, 7
  %v4333 = vsub.s32 2, %v4332
  %v4334 = vrot.slane %v4321, %v4333
  %v4362 = vunpack.c.l.b16 %v4296
  %v4363 = vunpack.c.h.b16 %v4296
  %v4364 = vunpack.c.l.b16 %v4297
  %v4365 = vunpack.c.l.b16 %v4298
  %v4366 = vunpack.c.h.b16 %v4298
  %v4367 = vunpack.c.l.b16 %v4299
  %v4368 = vunpack.c.l.b16 %v4300
  %v4369 = vunpack.c.h.b16 %v4300
  %v4370 = vunpack.c.l.b16 %v4301
  %v4371 = vunpack.c.l.b16 %v4302
  %v4372 = vunpack.c.h.b16 %v4302
  %v4373 = vunpack.c.l.b16 %v4303
  %v4374 = vunpack.c.l.b16 %v4304
  %v4375 = vunpack.c.h.b16 %v4304
  %v4376 = vunpack.c.l.b16 %v4305
  %v4377 = vunpack.c.l.b16 %v4306
  %v4378 = vunpack.c.h.b16 %v4306
  %v4379 = vunpack.c.l.b16 %v4307
  %v4380 = vunpack.c.l.b16 %v4308
  %v4381 = vunpack.c.h.b16 %v4308
  %v4382 = vunpack.c.l.b16 %v4309
  %v4383 = vunpack.c.l.b16 %v4310
  %v4384 = vunpack.c.h.b16 %v4310
  %v4385 = vunpack.c.l.b16 %v4311
  %v4386 = vunpack.c.l.b16 %v4312
  %v4387 = vunpack.c.h.b16 %v4312
  %v4388 = vunpack.c.l.b16 %v4313
  %v4389 = vunpack.c.l.b16 %v4314
  %v4390 = vunpack.c.h.b16 %v4314
  %v4391 = vunpack.c.l.b16 %v4315
  %v4392 = vunpack.c.l.b16 %v4316
  %v4393 = vunpack.c.h.b16 %v4316
  %v4394 = vunpack.c.l.b16 %v4317
  %v4395 = vunpack.c.l.b16 %v4318
  %v4396 = vunpack.c.h.b16 %v4318
  %v4397 = vunpack.c.l.b16 %v4319
  %v4398 = vpack.c.b16 %v4365, %v4362
  %v4399 = vpack.c.b16 %v4366, %v4363
  %v4400 = vpack.c.b16 %v4367, %v4364
  %v4401 = vpack.c.b16 %v4371, %v4368
  %v4402 = vpack.c.b16 %v4372, %v4369
  %v4403 = vpack.c.b16 %v4373, %v4370
  %v4404 = vpack.c.b16 %v4377, %v4374
  %v4405 = vpack.c.b16 %v4378, %v4375
  %v4406 = vpack.c.b16 %v4379, %v4376
  %v4407 = vpack.c.b16 %v4383, %v4380
  %v4408 = vpack.c.b16 %v4384, %v4381
  %v4409 = vpack.c.b16 %v4385, %v4382
  %v4410 = vpack.c.b16 %v4389, %v4386
  %v4411 = vpack.c.b16 %v4390, %v4387
  %v4412 = vpack.c.b16 %v4391, %v4388
  %v4413 = vpack.c.b16 %v4395, %v4392
  %v4414 = vpack.c.b16 %v4396, %v4393
  %v4415 = vpack.c.b16 %v4397, %v4394
  %v4435 = vsel %vm197, %v4293, 0
  %v4438 = vsel %vm197, %v4294, 0
  %4440 = vmatprep.subr.bf16.mxu0 %v4399
  %4441 = vmatpush1.bf16.msra.mxu0 %v4398
  %4442 = vmatprep.subr.bf16.mxu0 %v4402
  %4443 = vmatpush1.bf16.msra.mxu0 %v4401
  %4444 = vmatprep.subr.bf16.mxu0 %v4405
  %4445 = vmatpush1.bf16.msra.mxu0 %v4404
  %4446 = vmatprep.subr.bf16.mxu0 %v4408
  %4447 = vmatpush1.bf16.msra.mxu0 %v4407
  %4448 = vmatprep.subr.bf16.mxu0 %v4411
  %4449 = vmatpush1.bf16.msra.mxu0 %v4410
  %4450 = vmatprep.subr.bf16.mxu0 %v4414
  %4451 = vmatpush1.bf16.msra.mxu0 %v4413
  %4452 = vmatprep.subr.bf16.mxu0 0
  %4453 = vmatpush1.bf16.msra.mxu0 0
  %4454 = vmatprep.subr.bf16.mxu0 0
  %4455 = vmatpush1.bf16.msra.mxu0 0
  %4456 = vmatprep.subr.bf16.mxu0 0
  %4457 = vmatpush1.bf16.msra.mxu0 0
  %4458 = vmatprep.subr.bf16.mxu0 0
  %4459 = vmatpush1.bf16.msra.mxu0 0
  %4460 = vmatprep.subr.bf16.mxu0 0
  %4461 = vmatpush1.bf16.msra.mxu0 0
  %4462 = vmatprep.subr.bf16.mxu0 0
  %4463 = vmatpush1.bf16.msra.mxu0 0
  %4464 = vmatprep.subr.bf16.mxu0 0
  %4465 = vmatpush1.bf16.msra.mxu0 0
  %4466 = vmatprep.subr.bf16.mxu0 0
  %4467 = vmatpush1.bf16.msra.mxu0 0
  %4468 = vmatprep.subr.bf16.mxu0 0
  %4469 = vmatpush1.bf16.msra.mxu0 0
  %4470 = vmatprep.subr.bf16.mxu0 0
  %4471 = vmatpush1.bf16.msra.mxu0 0
  %4472 = vmatprep.mubr.f32.mxu0 0.0
  %4473 = vmatmul.mubr.f32.gmra.mrb[0].mxu0 %v4435
  %v4474 = vpop.f32.mrb[0].mxu0
  %v4475 = vadd.f32 %v4326, %v4474
  %v4476 = vpop.f32.mrb[0].mxu0
  %v4477 = vadd.f32 %v4330, %v4476
  %4478 = vmatprep.mubr.f32.mxu0 0.0
  %4479 = vmatmul.mubr.f32.gmra.mrb[0].mxu0 %v4438
  %v4480 = vpop.f32.mrb[0].mxu0
  %v4481 = vadd.f32 %v4326, %v4480
  %v4482 = vpop.f32.mrb[0].mxu0
  %v4483 = vadd.f32 %v4330, %v4482
  %4484 = vdwg.mxu0
  %4485 = vmatprep.subr.bf16.mxu0 0
  %4486 = vmatpush1.bf16.msra.mxu0 %v4400
  %4487 = vmatprep.subr.bf16.mxu0 0
  %4488 = vmatpush1.bf16.msra.mxu0 %v4403
  %4489 = vmatprep.subr.bf16.mxu0 0
  %4490 = vmatpush1.bf16.msra.mxu0 %v4406
  %4491 = vmatprep.subr.bf16.mxu0 0
  %4492 = vmatpush1.bf16.msra.mxu0 %v4409
  %4493 = vmatprep.subr.bf16.mxu0 0
  %4494 = vmatpush1.bf16.msra.mxu0 %v4412
  %4495 = vmatprep.subr.bf16.mxu0 0
  %4496 = vmatpush1.bf16.msra.mxu0 %v4415
  %4497 = vmatprep.subr.bf16.mxu0 0
  %4498 = vmatpush1.bf16.msra.mxu0 0
  %4499 = vmatprep.subr.bf16.mxu0 0
  %4500 = vmatpush1.bf16.msra.mxu0 0
  %4501 = vmatprep.subr.bf16.mxu0 0
  %4502 = vmatpush1.bf16.msra.mxu0 0
  %4503 = vmatprep.subr.bf16.mxu0 0
  %4504 = vmatpush1.bf16.msra.mxu0 0
  %4505 = vmatprep.subr.bf16.mxu0 0
  %4506 = vmatpush1.bf16.msra.mxu0 0
  %4507 = vmatprep.subr.bf16.mxu0 0
  %4508 = vmatpush1.bf16.msra.mxu0 0
  %4509 = vmatprep.subr.bf16.mxu0 0
  %4510 = vmatpush1.bf16.msra.mxu0 0
  %4511 = vmatprep.subr.bf16.mxu0 0
  %4512 = vmatpush1.bf16.msra.mxu0 0
  %4513 = vmatprep.subr.bf16.mxu0 0
  %4514 = vmatpush1.bf16.msra.mxu0 0
  %4515 = vmatprep.subr.bf16.mxu0 0
  %4516 = vmatpush1.bf16.msra.mxu0 0
  %4517 = vmatprep.mubr.f32.mxu0 0.0
  %4518 = vmatmul.mubr.f32.gmra.mrb[0].mxu0 %v4435
  %v4519 = vpop.f32.mrb[0].mxu0
  %v4520 = vadd.f32 %v4334, %v4519
  %v4521 = vpop.f32.mrb[0].mxu0
  %4522 = vmatprep.mubr.f32.mxu0 0.0
  %4523 = vmatmul.mubr.f32.gmra.mrb[0].mxu0 %v4438
  %v4524 = vpop.f32.mrb[0].mxu0
  %v4525 = vadd.f32 %v4334, %v4524
  %v4526 = vpop.f32.mrb[0].mxu0
  %4527 = vdwg.mxu0
  %v4528 = vmul.f32 %v4475, 0.20412415
  %4530 = vrot.lane.b32.xlu0 %v4475, 32
  %v4531 = vpop.permute.xlu0 %4530
  %v4533 = vsel %vm296, %v4528, 0
  %v4535 = vsel %vm296, %v4531, 0
  %4537 = vmatprep.subr.mxu0 0.0
  %4538 = vmatpush1.xpose.msra.mxu0 %v4535
  %4539 = vmatprep.subr.mxu0 0.0
  %4540 = vmatpush1.xpose.msra.mxu0 0.0
  %4541 = vmatprep.subr.mxu0 0.0
  %4542 = vmatpush1.xpose.msra.mxu0 0.0
  %4543 = vmatprep.subr.mxu0 0.0
  %4544 = vmatpush1.xpose.msra.mxu0 0.0
  %4545 = vmatprep.subr.mxu0 0.0
  %4546 = vmatpush1.xpose.msra.mxu0 0.0
  %4547 = vmatprep.subr.mxu0 0.0
  %4548 = vmatpush1.xpose.msra.mxu0 0.0
  %4549 = vmatprep.subr.mxu0 0.0
  %4550 = vmatpush1.xpose.msra.mxu0 0.0
  %4551 = vmatprep.subr.mxu0 0.0
  %4552 = vmatpush1.xpose.msra.mxu0 0.0
  %4553 = vmatprep.subr.mxu0 0.0
  %4554 = vmatpush1.xpose.msra.mxu0 0.0
  %4555 = vmatprep.subr.mxu0 0.0
  %4556 = vmatpush1.xpose.msra.mxu0 0.0
  %4557 = vmatprep.subr.mxu0 0.0
  %4558 = vmatpush1.xpose.msra.mxu0 0.0
  %4559 = vmatprep.subr.mxu0 0.0
  %4560 = vmatpush1.xpose.msra.mxu0 0.0
  %4561 = vmatprep.subr.mxu0 0.0
  %4562 = vmatpush1.xpose.msra.mxu0 0.0
  %4563 = vmatprep.subr.mxu0 0.0
  %4564 = vmatpush1.xpose.msra.mxu0 0.0
  %4565 = vmatprep.subr.mxu0 0.0
  %4566 = vmatpush1.xpose.msra.mxu0 0.0
  %4567 = vmatprep.subr.mxu0 0.0
  %4568 = vmatpush1.xpose.msra.mxu0 0.0
  %4569 = vmatprep.subr.mxu0 0.0
  %4570 = vmatpush1.xpose.msra.mxu0 0.0
  %4571 = vmatprep.subr.mxu0 0.0
  %4572 = vmatpush1.xpose.msra.mxu0 0.0
  %4573 = vmatprep.subr.mxu0 0.0
  %4574 = vmatpush1.xpose.msra.mxu0 0.0
  %4575 = vmatprep.subr.mxu0 0.0
  %4576 = vmatpush1.xpose.msra.mxu0 0.0
  %4577 = vmatprep.subr.mxu0 0.0
  %4578 = vmatpush1.xpose.msra.mxu0 0.0
  %4579 = vmatprep.subr.mxu0 0.0
  %4580 = vmatpush1.xpose.msra.mxu0 0.0
  %4581 = vmatprep.subr.mxu0 0.0
  %4582 = vmatpush1.xpose.msra.mxu0 0.0
  %4583 = vmatprep.subr.mxu0 0.0
  %4584 = vmatpush1.xpose.msra.mxu0 0.0
  %4585 = vmatprep.subr.mxu0 0.0
  %4586 = vmatpush1.xpose.msra.mxu0 0.0
  %4587 = vmatprep.subr.mxu0 0.0
  %4588 = vmatpush1.xpose.msra.mxu0 0.0
  %4589 = vmatprep.subr.mxu0 0.0
  %4590 = vmatpush1.xpose.msra.mxu0 0.0
  %4591 = vmatprep.subr.mxu0 0.0
  %4592 = vmatpush1.xpose.msra.mxu0 0.0
  %4593 = vmatprep.subr.mxu0 0.0
  %4594 = vmatpush1.xpose.msra.mxu0 0.0
  %4595 = vmatprep.subr.mxu0 0.0
  %4596 = vmatpush1.xpose.msra.mxu0 0.0
  %4597 = vmatprep.subr.mxu0 0.0
  %4598 = vmatpush1.xpose.msra.mxu0 0.0
  %4599 = vmatprep.subr.mxu0 0.0
  %4600 = vmatpush1.xpose.msra.mxu0 0.0
  %4601 = vmatprep.mubr.f32.mxu0 0.0
  %4602 = vmatmul.mubr.f32.gmra.mrb[0].mxu0 %v4533
  %v4603 = vpop.f32.mrb[0].mxu0
  %v4604 = vadd.f32 %v59, %v4603
  %v4605 = vpop.f32.mrb[0].mxu0
  %4606 = vdwg.mxu0
  %v4607 = vsel %vm372, %v4604, -inf
  %4608 = vmax.xlane.f32.xlu0 %v4607
  %v4609 = vpop.xlane.xlu0 %4608
  %v4610 = vsub.f32 %v4604, %v4609
  %v4611 = vmul.f32 %v4610, 1.442695
  %v4612 = vpow.pop %v4611
  %v4613 = vsel %vm372, %v4612, 0.0
  %4614 = vadd.xlane.f32.xlu0 %v4613
  %v4615 = vpop.xlane.xlu0 %4614
  %v4616 = vrcp.pop %v4615
  %v4617 = vmul.f32 %v4612, %v4616
  %4619 = vrot.lane.b32.xlu0 %v4477, 64
  %v4620 = vpop.permute.xlu0 %4619
  %v4623 = vsel %vm372, %v4617, 0
  %4625 = vmatprep.subr.mxu0 0.0
  %4626 = vmatpush1.msra.mxu0 %v4620
  %4627 = vmatprep.subr.mxu0 0.0
  %4628 = vmatpush1.msra.mxu0 0.0
  %4629 = vmatprep.subr.mxu0 0.0
  %4630 = vmatpush1.msra.mxu0 0.0
  %4631 = vmatprep.subr.mxu0 0.0
  %4632 = vmatpush1.msra.mxu0 0.0
  %4633 = vmatprep.subr.mxu0 0.0
  %4634 = vmatpush1.msra.mxu0 0.0
  %4635 = vmatprep.subr.mxu0 0.0
  %4636 = vmatpush1.msra.mxu0 0.0
  %4637 = vmatprep.subr.mxu0 0.0
  %4638 = vmatpush1.msra.mxu0 0.0
  %4639 = vmatprep.subr.mxu0 0.0
  %4640 = vmatpush1.msra.mxu0 0.0
  %4641 = vmatprep.subr.mxu0 0.0
  %4642 = vmatpush1.msra.mxu0 0.0
  %4643 = vmatprep.subr.mxu0 0.0
  %4644 = vmatpush1.msra.mxu0 0.0
  %4645 = vmatprep.subr.mxu0 0.0
  %4646 = vmatpush1.msra.mxu0 0.0
  %4647 = vmatprep.subr.mxu0 0.0
  %4648 = vmatpush1.msra.mxu0 0.0
  %4649 = vmatprep.subr.mxu0 0.0
  %4650 = vmatpush1.msra.mxu0 0.0
  %4651 = vmatprep.subr.mxu0 0.0
  %4652 = vmatpush1.msra.mxu0 0.0
  %4653 = vmatprep.subr.mxu0 0.0
  %4654 = vmatpush1.msra.mxu0 0.0
  %4655 = vmatprep.subr.mxu0 0.0
  %4656 = vmatpush1.msra.mxu0 0.0
  %4657 = vmatprep.subr.mxu0 0.0
  %4658 = vmatpush1.msra.mxu0 0.0
  %4659 = vmatprep.subr.mxu0 0.0
  %4660 = vmatpush1.msra.mxu0 0.0
  %4661 = vmatprep.subr.mxu0 0.0
  %4662 = vmatpush1.msra.mxu0 0.0
  %4663 = vmatprep.subr.mxu0 0.0
  %4664 = vmatpush1.msra.mxu0 0.0
  %4665 = vmatprep.subr.mxu0 0.0
  %4666 = vmatpush1.msra.mxu0 0.0
  %4667 = vmatprep.subr.mxu0 0.0
  %4668 = vmatpush1.msra.mxu0 0.0
  %4669 = vmatprep.subr.mxu0 0.0
  %4670 = vmatpush1.msra.mxu0 0.0
  %4671 = vmatprep.subr.mxu0 0.0
  %4672 = vmatpush1.msra.mxu0 0.0
  %4673 = vmatprep.subr.mxu0 0.0
  %4674 = vmatpush1.msra.mxu0 0.0
  %4675 = vmatprep.subr.mxu0 0.0
  %4676 = vmatpush1.msra.mxu0 0.0
  %4677 = vmatprep.subr.mxu0 0.0
  %4678 = vmatpush1.msra.mxu0 0.0
  %4679 = vmatprep.subr.mxu0 0.0
  %4680 = vmatpush1.msra.mxu0 0.0
  %4681 = vmatprep.subr.mxu0 0.0
  %4682 = vmatpush1.msra.mxu0 0.0
  %4683 = vmatprep.subr.mxu0 0.0
  %4684 = vmatpush1.msra.mxu0 0.0
  %4685 = vmatprep.subr.mxu0 0.0
  %4686 = vmatpush1.msra.mxu0 0.0
  %4687 = vmatprep.subr.mxu0 0.0
  %4688 = vmatpush1.msra.mxu0 0.0
  %4689 = vmatprep.mubr.f32.mxu0 0.0
  %4690 = vmatmul.mubr.f32.gmra.mrb[0].mxu0 %v4623
  %v4691 = vpop.f32.mrb[0].mxu0
  %v4692 = vadd.f32 0.0, %v4691
  %v4693 = vpop.f32.mrb[0].mxu0
  %4694 = vdwg.mxu0
  %4695 = vrot.lane.b32.xlu0 %v4528, 104
  %v4696 = vpop.permute.xlu0 %4695
  %4697 = vrot.lane.b32.xlu0 %v4475, 8
  %v4698 = vpop.permute.xlu0 %4697
  %4699 = vrot.lane.b32.xlu0 %v4477, 8
  %v4700 = vpop.permute.xlu0 %4699
  %v4701 = vsel %vm372, %v4698, %v4700
  %v4702 = vsel %vm296, %v4696, 0
  %v4704 = vsel %vm296, %v4701, 0
  %4706 = vmatprep.subr.mxu0 0.0
  %4707 = vmatpush1.xpose.msra.mxu0 %v4704
  %4708 = vmatprep.subr.mxu0 0.0
  %4709 = vmatpush1.xpose.msra.mxu0 0.0
  %4710 = vmatprep.subr.mxu0 0.0
  %4711 = vmatpush1.xpose.msra.mxu0 0.0
  %4712 = vmatprep.subr.mxu0 0.0
  %4713 = vmatpush1.xpose.msra.mxu0 0.0
  %4714 = vmatprep.subr.mxu0 0.0
  %4715 = vmatpush1.xpose.msra.mxu0 0.0
  %4716 = vmatprep.subr.mxu0 0.0
  %4717 = vmatpush1.xpose.msra.mxu0 0.0
  %4718 = vmatprep.subr.mxu0 0.0
  %4719 = vmatpush1.xpose.msra.mxu0 0.0
  %4720 = vmatprep.subr.mxu0 0.0
  %4721 = vmatpush1.xpose.msra.mxu0 0.0
  %4722 = vmatprep.subr.mxu0 0.0
  %4723 = vmatpush1.xpose.msra.mxu0 0.0
  %4724 = vmatprep.subr.mxu0 0.0
  %4725 = vmatpush1.xpose.msra.mxu0 0.0
  %4726 = vmatprep.subr.mxu0 0.0
  %4727 = vmatpush1.xpose.msra.mxu0 0.0
  %4728 = vmatprep.subr.mxu0 0.0
  %4729 = vmatpush1.xpose.msra.mxu0 0.0
  %4730 = vmatprep.subr.mxu0 0.0
  %4731 = vmatpush1.xpose.msra.mxu0 0.0
  %4732 = vmatprep.subr.mxu0 0.0
  %4733 = vmatpush1.xpose.msra.mxu0 0.0
  %4734 = vmatprep.subr.mxu0 0.0
  %4735 = vmatpush1.xpose.msra.mxu0 0.0
  %4736 = vmatprep.subr.mxu0 0.0
  %4737 = vmatpush1.xpose.msra.mxu0 0.0
  %4738 = vmatprep.subr.mxu0 0.0
  %4739 = vmatpush1.xpose.msra.mxu0 0.0
  %4740 = vmatprep.subr.mxu0 0.0
  %4741 = vmatpush1.xpose.msra.mxu0 0.0
  %4742 = vmatprep.subr.mxu0 0.0
  %4743 = vmatpush1.xpose.msra.mxu0 0.0
  %4744 = vmatprep.subr.mxu0 0.0
  %4745 = vmatpush1.xpose.msra.mxu0 0.0
  %4746 = vmatprep.subr.mxu0 0.0
  %4747 = vmatpush1.xpose.msra.mxu0 0.0
  %4748 = vmatprep.subr.mxu0 0.0
  %4749 = vmatpush1.xpose.msra.mxu0 0.0
  %4750 = vmatprep.subr.mxu0 0.0
  %4751 = vmatpush1.xpose.msra.mxu0 0.0
  %4752 = vmatprep.subr.mxu0 0.0
  %4753 = vmatpush1.xpose.msra.mxu0 0.0
  %4754 = vmatprep.subr.mxu0 0.0
  %4755 = vmatpush1.xpose.msra.mxu0 0.0
  %4756 = vmatprep.subr.mxu0 0.0
  %4757 = vmatpush1.xpose.msra.mxu0 0.0
  %4758 = vmatprep.subr.mxu0 0.0
  %4759 = vmatpush1.xpose.msra.mxu0 0.0
  %4760 = vmatprep.subr.mxu0 0.0
  %4761 = vmatpush1.xpose.msra.mxu0 0.0
  %4762 = vmatprep.subr.mxu0 0.0
  %4763 = vmatpush1.xpose.msra.mxu0 0.0
  %4764 = vmatprep.subr.mxu0 0.0
  %4765 = vmatpush1.xpose.msra.mxu0 0.0
  %4766 = vmatprep.subr.mxu0 0.0
  %4767 = vmatpush1.xpose.msra.mxu0 0.0
  %4768 = vmatprep.subr.mxu0 0.0
  %4769 = vmatpush1.xpose.msra.mxu0 0.0
  %4770 = vmatprep.mubr.f32.mxu0 0.0
  %4771 = vmatmul.mubr.f32.gmra.mrb[0].mxu0 %v4702
  %v4772 = vpop.f32.mrb[0].mxu0
  %v4773 = vadd.f32 %v59, %v4772
  %v4774 = vpop.f32.mrb[0].mxu0
  %4775 = vdwg.mxu0
  %v4776 = vsel %vm372, %v4773, -inf
  %4777 = vmax.xlane.f32.xlu0 %v4776
  %v4778 = vpop.xlane.xlu0 %4777
  %v4779 = vsub.f32 %v4773, %v4778
  %v4780 = vmul.f32 %v4779, 1.442695
  %v4781 = vpow.pop %v4780
  %v4782 = vsel %vm372, %v4781, 0.0
  %4783 = vadd.xlane.f32.xlu0 %v4782
  %v4784 = vpop.xlane.xlu0 %4783
  %v4785 = vrcp.pop %v4784
  %v4786 = vmul.f32 %v4781, %v4785
  %4787 = vrot.lane.b32.xlu0 %v4477, 40
  %v4788 = vpop.permute.xlu0 %4787
  %v4791 = vsel %vm372, %v4786, 0
  %4793 = vmatprep.subr.mxu0 0.0
  %4794 = vmatpush1.msra.mxu0 %v4788
  %4795 = vmatprep.subr.mxu0 0.0
  %4796 = vmatpush1.msra.mxu0 0.0
  %4797 = vmatprep.subr.mxu0 0.0
  %4798 = vmatpush1.msra.mxu0 0.0
  %4799 = vmatprep.subr.mxu0 0.0
  %4800 = vmatpush1.msra.mxu0 0.0
  %4801 = vmatprep.subr.mxu0 0.0
  %4802 = vmatpush1.msra.mxu0 0.0
  %4803 = vmatprep.subr.mxu0 0.0
  %4804 = vmatpush1.msra.mxu0 0.0
  %4805 = vmatprep.subr.mxu0 0.0
  %4806 = vmatpush1.msra.mxu0 0.0
  %4807 = vmatprep.subr.mxu0 0.0
  %4808 = vmatpush1.msra.mxu0 0.0
  %4809 = vmatprep.subr.mxu0 0.0
  %4810 = vmatpush1.msra.mxu0 0.0
  %4811 = vmatprep.subr.mxu0 0.0
  %4812 = vmatpush1.msra.mxu0 0.0
  %4813 = vmatprep.subr.mxu0 0.0
  %4814 = vmatpush1.msra.mxu0 0.0
  %4815 = vmatprep.subr.mxu0 0.0
  %4816 = vmatpush1.msra.mxu0 0.0
  %4817 = vmatprep.subr.mxu0 0.0
  %4818 = vmatpush1.msra.mxu0 0.0
  %4819 = vmatprep.subr.mxu0 0.0
  %4820 = vmatpush1.msra.mxu0 0.0
  %4821 = vmatprep.subr.mxu0 0.0
  %4822 = vmatpush1.msra.mxu0 0.0
  %4823 = vmatprep.subr.mxu0 0.0
  %4824 = vmatpush1.msra.mxu0 0.0
  %4825 = vmatprep.subr.mxu0 0.0
  %4826 = vmatpush1.msra.mxu0 0.0
  %4827 = vmatprep.subr.mxu0 0.0
  %4828 = vmatpush1.msra.mxu0 0.0
  %4829 = vmatprep.subr.mxu0 0.0
  %4830 = vmatpush1.msra.mxu0 0.0
  %4831 = vmatprep.subr.mxu0 0.0
  %4832 = vmatpush1.msra.mxu0 0.0
  %4833 = vmatprep.subr.mxu0 0.0
  %4834 = vmatpush1.msra.mxu0 0.0
  %4835 = vmatprep.subr.mxu0 0.0
  %4836 = vmatpush1.msra.mxu0 0.0
  %4837 = vmatprep.subr.mxu0 0.0
  %4838 = vmatpush1.msra.mxu0 0.0
  %4839 = vmatprep.subr.mxu0 0.0
  %4840 = vmatpush1.msra.mxu0 0.0
  %4841 = vmatprep.subr.mxu0 0.0
  %4842 = vmatpush1.msra.mxu0 0.0
  %4843 = vmatprep.subr.mxu0 0.0
  %4844 = vmatpush1.msra.mxu0 0.0
  %4845 = vmatprep.subr.mxu0 0.0
  %4846 = vmatpush1.msra.mxu0 0.0
  %4847 = vmatprep.subr.mxu0 0.0
  %4848 = vmatpush1.msra.mxu0 0.0
  %4849 = vmatprep.subr.mxu0 0.0
  %4850 = vmatpush1.msra.mxu0 0.0
  %4851 = vmatprep.subr.mxu0 0.0
  %4852 = vmatpush1.msra.mxu0 0.0
  %4853 = vmatprep.subr.mxu0 0.0
  %4854 = vmatpush1.msra.mxu0 0.0
  %4855 = vmatprep.subr.mxu0 0.0
  %4856 = vmatpush1.msra.mxu0 0.0
  %4857 = vmatprep.mubr.f32.mxu0 0.0
  %4858 = vmatmul.mubr.f32.gmra.mrb[0].mxu0 %v4791
  %v4859 = vpop.f32.mrb[0].mxu0
  %v4860 = vadd.f32 0.0, %v4859
  %v4861 = vpop.f32.mrb[0].mxu0
  %4862 = vdwg.mxu0
  %4863 = vrot.lane.b32.xlu0 %v4528, 80
  %v4864 = vpop.permute.xlu0 %4863
  %4865 = vrot.lane.b32.xlu0 %v4477, 112
  %v4866 = vpop.permute.xlu0 %4865
  %v4867 = vsel %vm296, %v4864, 0
  %v4869 = vsel %vm296, %v4866, 0
  %4871 = vmatprep.subr.mxu0 0.0
  %4872 = vmatpush1.xpose.msra.mxu0 %v4869
  %4873 = vmatprep.subr.mxu0 0.0
  %4874 = vmatpush1.xpose.msra.mxu0 0.0
  %4875 = vmatprep.subr.mxu0 0.0
  %4876 = vmatpush1.xpose.msra.mxu0 0.0
  %4877 = vmatprep.subr.mxu0 0.0
  %4878 = vmatpush1.xpose.msra.mxu0 0.0
  %4879 = vmatprep.subr.mxu0 0.0
  %4880 = vmatpush1.xpose.msra.mxu0 0.0
  %4881 = vmatprep.subr.mxu0 0.0
  %4882 = vmatpush1.xpose.msra.mxu0 0.0
  %4883 = vmatprep.subr.mxu0 0.0
  %4884 = vmatpush1.xpose.msra.mxu0 0.0
  %4885 = vmatprep.subr.mxu0 0.0
  %4886 = vmatpush1.xpose.msra.mxu0 0.0
  %4887 = vmatprep.subr.mxu0 0.0
  %4888 = vmatpush1.xpose.msra.mxu0 0.0
  %4889 = vmatprep.subr.mxu0 0.0
  %4890 = vmatpush1.xpose.msra.mxu0 0.0
  %4891 = vmatprep.subr.mxu0 0.0
  %4892 = vmatpush1.xpose.msra.mxu0 0.0
  %4893 = vmatprep.subr.mxu0 0.0
  %4894 = vmatpush1.xpose.msra.mxu0 0.0
  %4895 = vmatprep.subr.mxu0 0.0
  %4896 = vmatpush1.xpose.msra.mxu0 0.0
  %4897 = vmatprep.subr.mxu0 0.0
  %4898 = vmatpush1.xpose.msra.mxu0 0.0
  %4899 = vmatprep.subr.mxu0 0.0
  %4900 = vmatpush1.xpose.msra.mxu0 0.0
  %4901 = vmatprep.subr.mxu0 0.0
  %4902 = vmatpush1.xpose.msra.mxu0 0.0
  %4903 = vmatprep.subr.mxu0 0.0
  %4904 = vmatpush1.xpose.msra.mxu0 0.0
  %4905 = vmatprep.subr.mxu0 0.0
  %4906 = vmatpush1.xpose.msra.mxu0 0.0
  %4907 = vmatprep.subr.mxu0 0.0
  %4908 = vmatpush1.xpose.msra.mxu0 0.0
  %4909 = vmatprep.subr.mxu0 0.0
  %4910 = vmatpush1.xpose.msra.mxu0 0.0
  %4911 = vmatprep.subr.mxu0 0.0
  %4912 = vmatpush1.xpose.msra.mxu0 0.0
  %4913 = vmatprep.subr.mxu0 0.0
  %4914 = vmatpush1.xpose.msra.mxu0 0.0
  %4915 = vmatprep.subr.mxu0 0.0
  %4916 = vmatpush1.xpose.msra.mxu0 0.0
  %4917 = vmatprep.subr.mxu0 0.0
  %4918 = vmatpush1.xpose.msra.mxu0 0.0
  %4919 = vmatprep.subr.mxu0 0.0
  %4920 = vmatpush1.xpose.msra.mxu0 0.0
  %4921 = vmatprep.subr.mxu0 0.0
  %4922 = vmatpush1.xpose.msra.mxu0 0.0
  %4923 = vmatprep.subr.mxu0 0.0
  %4924 = vmatpush1.xpose.msra.mxu0 0.0
  %4925 = vmatprep.subr.mxu0 0.0
  %4926 = vmatpush1.xpose.msra.mxu0 0.0
  %4927 = vmatprep.subr.mxu0 0.0
  %4928 = vmatpush1.xpose.msra.mxu0 0.0
  %4929 = vmatprep.subr.mxu0 0.0
  %4930 = vmatpush1.xpose.msra.mxu0 0.0
  %4931 = vmatprep.subr.mxu0 0.0
  %4932 = vmatpush1.xpose.msra.mxu0 0.0
  %4933 = vmatprep.subr.mxu0 0.0
  %4934 = vmatpush1.xpose.msra.mxu0 0.0
  %4935 = vmatprep.mubr.f32.mxu0 0.0
  %4936 = vmatmul.mubr.f32.gmra.mrb[0].mxu0 %v4867
  %v4937 = vpop.f32.mrb[0].mxu0
  %v4938 = vadd.f32 %v59, %v4937
  %v4939 = vpop.f32.mrb[0].mxu0
  %4940 = vdwg.mxu0
  %v4941 = vsel %vm372, %v4938, -inf
  %4942 = vmax.xlane.f32.xlu0 %v4941
  %v4943 = vpop.xlane.xlu0 %4942
  %v4944 = vsub.f32 %v4938, %v4943
  %v4945 = vmul.f32 %v4944, 1.442695
  %v4946 = vpow.pop %v4945
  %v4947 = vsel %vm372, %v4946, 0.0
  %4948 = vadd.xlane.f32.xlu0 %v4947
  %v4949 = vpop.xlane.xlu0 %4948
  %v4950 = vrcp.pop %v4949
  %v4951 = vmul.f32 %v4946, %v4950
  %4953 = vrot.lane.b32.xlu0 %v4477, 16
  %v4954 = vpop.permute.xlu0 %4953
  %4955 = vrot.lane.b32.xlu0 %v4520, 16
  %v4956 = vpop.permute.xlu0 %4955
  %v4957 = vsel %vm723, %v4954, %v4956
  %v4960 = vsel %vm372, %v4951, 0
  %4962 = vmatprep.subr.mxu0 0.0
  %4963 = vmatpush1.msra.mxu0 %v4957
  %4964 = vmatprep.subr.mxu0 0.0
  %4965 = vmatpush1.msra.mxu0 0.0
  %4966 = vmatprep.subr.mxu0 0.0
  %4967 = vmatpush1.msra.mxu0 0.0
  %4968 = vmatprep.subr.mxu0 0.0
  %4969 = vmatpush1.msra.mxu0 0.0
  %4970 = vmatprep.subr.mxu0 0.0
  %4971 = vmatpush1.msra.mxu0 0.0
  %4972 = vmatprep.subr.mxu0 0.0
  %4973 = vmatpush1.msra.mxu0 0.0
  %4974 = vmatprep.subr.mxu0 0.0
  %4975 = vmatpush1.msra.mxu0 0.0
  %4976 = vmatprep.subr.mxu0 0.0
  %4977 = vmatpush1.msra.mxu0 0.0
  %4978 = vmatprep.subr.mxu0 0.0
  %4979 = vmatpush1.msra.mxu0 0.0
  %4980 = vmatprep.subr.mxu0 0.0
  %4981 = vmatpush1.msra.mxu0 0.0
  %4982 = vmatprep.subr.mxu0 0.0
  %4983 = vmatpush1.msra.mxu0 0.0
  %4984 = vmatprep.subr.mxu0 0.0
  %4985 = vmatpush1.msra.mxu0 0.0
  %4986 = vmatprep.subr.mxu0 0.0
  %4987 = vmatpush1.msra.mxu0 0.0
  %4988 = vmatprep.subr.mxu0 0.0
  %4989 = vmatpush1.msra.mxu0 0.0
  %4990 = vmatprep.subr.mxu0 0.0
  %4991 = vmatpush1.msra.mxu0 0.0
  %4992 = vmatprep.subr.mxu0 0.0
  %4993 = vmatpush1.msra.mxu0 0.0
  %4994 = vmatprep.subr.mxu0 0.0
  %4995 = vmatpush1.msra.mxu0 0.0
  %4996 = vmatprep.subr.mxu0 0.0
  %4997 = vmatpush1.msra.mxu0 0.0
  %4998 = vmatprep.subr.mxu0 0.0
  %4999 = vmatpush1.msra.mxu0 0.0
  %5000 = vmatprep.subr.mxu0 0.0
  %5001 = vmatpush1.msra.mxu0 0.0
  %5002 = vmatprep.subr.mxu0 0.0
  %5003 = vmatpush1.msra.mxu0 0.0
  %5004 = vmatprep.subr.mxu0 0.0
  %5005 = vmatpush1.msra.mxu0 0.0
  %5006 = vmatprep.subr.mxu0 0.0
  %5007 = vmatpush1.msra.mxu0 0.0
  %5008 = vmatprep.subr.mxu0 0.0
  %5009 = vmatpush1.msra.mxu0 0.0
  %5010 = vmatprep.subr.mxu0 0.0
  %5011 = vmatpush1.msra.mxu0 0.0
  %5012 = vmatprep.subr.mxu0 0.0
  %5013 = vmatpush1.msra.mxu0 0.0
  %5014 = vmatprep.subr.mxu0 0.0
  %5015 = vmatpush1.msra.mxu0 0.0
  %5016 = vmatprep.subr.mxu0 0.0
  %5017 = vmatpush1.msra.mxu0 0.0
  %5018 = vmatprep.subr.mxu0 0.0
  %5019 = vmatpush1.msra.mxu0 0.0
  %5020 = vmatprep.subr.mxu0 0.0
  %5021 = vmatpush1.msra.mxu0 0.0
  %5022 = vmatprep.subr.mxu0 0.0
  %5023 = vmatpush1.msra.mxu0 0.0
  %5024 = vmatprep.subr.mxu0 0.0
  %5025 = vmatpush1.msra.mxu0 0.0
  %5026 = vmatprep.mubr.f32.mxu0 0.0
  %5027 = vmatmul.mubr.f32.gmra.mrb[0].mxu0 %v4960
  %v5028 = vpop.f32.mrb[0].mxu0
  %v5029 = vadd.f32 0.0, %v5028
  %v5030 = vpop.f32.mrb[0].mxu0
  %5031 = vdwg.mxu0
  %5032 = vrot.lane.b32.xlu0 %v4528, 56
  %v5033 = vpop.permute.xlu0 %5032
  %5034 = vrot.lane.b32.xlu0 %v4477, 88
  %v5035 = vpop.permute.xlu0 %5034
  %v5036 = vsel %vm296, %v5033, 0
  %v5038 = vsel %vm296, %v5035, 0
  %5040 = vmatprep.subr.mxu0 0.0
  %5041 = vmatpush1.xpose.msra.mxu0 %v5038
  %5042 = vmatprep.subr.mxu0 0.0
  %5043 = vmatpush1.xpose.msra.mxu0 0.0
  %5044 = vmatprep.subr.mxu0 0.0
  %5045 = vmatpush1.xpose.msra.mxu0 0.0
  %5046 = vmatprep.subr.mxu0 0.0
  %5047 = vmatpush1.xpose.msra.mxu0 0.0
  %5048 = vmatprep.subr.mxu0 0.0
  %5049 = vmatpush1.xpose.msra.mxu0 0.0
  %5050 = vmatprep.subr.mxu0 0.0
  %5051 = vmatpush1.xpose.msra.mxu0 0.0
  %5052 = vmatprep.subr.mxu0 0.0
  %5053 = vmatpush1.xpose.msra.mxu0 0.0
  %5054 = vmatprep.subr.mxu0 0.0
  %5055 = vmatpush1.xpose.msra.mxu0 0.0
  %5056 = vmatprep.subr.mxu0 0.0
  %5057 = vmatpush1.xpose.msra.mxu0 0.0
  %5058 = vmatprep.subr.mxu0 0.0
  %5059 = vmatpush1.xpose.msra.mxu0 0.0
  %5060 = vmatprep.subr.mxu0 0.0
  %5061 = vmatpush1.xpose.msra.mxu0 0.0
  %5062 = vmatprep.subr.mxu0 0.0
  %5063 = vmatpush1.xpose.msra.mxu0 0.0
  %5064 = vmatprep.subr.mxu0 0.0
  %5065 = vmatpush1.xpose.msra.mxu0 0.0
  %5066 = vmatprep.subr.mxu0 0.0
  %5067 = vmatpush1.xpose.msra.mxu0 0.0
  %5068 = vmatprep.subr.mxu0 0.0
  %5069 = vmatpush1.xpose.msra.mxu0 0.0
  %5070 = vmatprep.subr.mxu0 0.0
  %5071 = vmatpush1.xpose.msra.mxu0 0.0
  %5072 = vmatprep.subr.mxu0 0.0
  %5073 = vmatpush1.xpose.msra.mxu0 0.0
  %5074 = vmatprep.subr.mxu0 0.0
  %5075 = vmatpush1.xpose.msra.mxu0 0.0
  %5076 = vmatprep.subr.mxu0 0.0
  %5077 = vmatpush1.xpose.msra.mxu0 0.0
  %5078 = vmatprep.subr.mxu0 0.0
  %5079 = vmatpush1.xpose.msra.mxu0 0.0
  %5080 = vmatprep.subr.mxu0 0.0
  %5081 = vmatpush1.xpose.msra.mxu0 0.0
  %5082 = vmatprep.subr.mxu0 0.0
  %5083 = vmatpush1.xpose.msra.mxu0 0.0
  %5084 = vmatprep.subr.mxu0 0.0
  %5085 = vmatpush1.xpose.msra.mxu0 0.0
  %5086 = vmatprep.subr.mxu0 0.0
  %5087 = vmatpush1.xpose.msra.mxu0 0.0
  %5088 = vmatprep.subr.mxu0 0.0
  %5089 = vmatpush1.xpose.msra.mxu0 0.0
  %5090 = vmatprep.subr.mxu0 0.0
  %5091 = vmatpush1.xpose.msra.mxu0 0.0
  %5092 = vmatprep.subr.mxu0 0.0
  %5093 = vmatpush1.xpose.msra.mxu0 0.0
  %5094 = vmatprep.subr.mxu0 0.0
  %5095 = vmatpush1.xpose.msra.mxu0 0.0
  %5096 = vmatprep.subr.mxu0 0.0
  %5097 = vmatpush1.xpose.msra.mxu0 0.0
  %5098 = vmatprep.subr.mxu0 0.0
  %5099 = vmatpush1.xpose.msra.mxu0 0.0
  %5100 = vmatprep.subr.mxu0 0.0
  %5101 = vmatpush1.xpose.msra.mxu0 0.0
  %5102 = vmatprep.subr.mxu0 0.0
  %5103 = vmatpush1.xpose.msra.mxu0 0.0
  %5104 = vmatprep.mubr.f32.mxu0 0.0
  %5105 = vmatmul.mubr.f32.gmra.mrb[0].mxu0 %v5036
  %v5106 = vpop.f32.mrb[0].mxu0
  %v5107 = vadd.f32 %v59, %v5106
  %v5108 = vpop.f32.mrb[0].mxu0
  %5109 = vdwg.mxu0
  %v5110 = vsel %vm372, %v5107, -inf
  %5111 = vmax.xlane.f32.xlu0 %v5110
  %v5112 = vpop.xlane.xlu0 %5111
  %v5113 = vsub.f32 %v5107, %v5112
  %v5114 = vmul.f32 %v5113, 1.442695
  %v5115 = vpow.pop %v5114
  %v5116 = vsel %vm372, %v5115, 0.0
  %5117 = vadd.xlane.f32.xlu0 %v5116
  %v5118 = vpop.xlane.xlu0 %5117
  %v5119 = vrcp.pop %v5118
  %v5120 = vmul.f32 %v5115, %v5119
  %5121 = vrot.lane.b32.xlu0 %v4520, 120
  %v5122 = vpop.permute.xlu0 %5121
  %v5125 = vsel %vm372, %v5120, 0
  %5127 = vmatprep.subr.mxu0 0.0
  %5128 = vmatpush1.msra.mxu0 %v5122
  %5129 = vmatprep.subr.mxu0 0.0
  %5130 = vmatpush1.msra.mxu0 0.0
  %5131 = vmatprep.subr.mxu0 0.0
  %5132 = vmatpush1.msra.mxu0 0.0
  %5133 = vmatprep.subr.mxu0 0.0
  %5134 = vmatpush1.msra.mxu0 0.0
  %5135 = vmatprep.subr.mxu0 0.0
  %5136 = vmatpush1.msra.mxu0 0.0
  %5137 = vmatprep.subr.mxu0 0.0
  %5138 = vmatpush1.msra.mxu0 0.0
  %5139 = vmatprep.subr.mxu0 0.0
  %5140 = vmatpush1.msra.mxu0 0.0
  %5141 = vmatprep.subr.mxu0 0.0
  %5142 = vmatpush1.msra.mxu0 0.0
  %5143 = vmatprep.subr.mxu0 0.0
  %5144 = vmatpush1.msra.mxu0 0.0
  %5145 = vmatprep.subr.mxu0 0.0
  %5146 = vmatpush1.msra.mxu0 0.0
  %5147 = vmatprep.subr.mxu0 0.0
  %5148 = vmatpush1.msra.mxu0 0.0
  %5149 = vmatprep.subr.mxu0 0.0
  %5150 = vmatpush1.msra.mxu0 0.0
  %5151 = vmatprep.subr.mxu0 0.0
  %5152 = vmatpush1.msra.mxu0 0.0
  %5153 = vmatprep.subr.mxu0 0.0
  %5154 = vmatpush1.msra.mxu0 0.0
  %5155 = vmatprep.subr.mxu0 0.0
  %5156 = vmatpush1.msra.mxu0 0.0
  %5157 = vmatprep.subr.mxu0 0.0
  %5158 = vmatpush1.msra.mxu0 0.0
  %5159 = vmatprep.subr.mxu0 0.0
  %5160 = vmatpush1.msra.mxu0 0.0
  %5161 = vmatprep.subr.mxu0 0.0
  %5162 = vmatpush1.msra.mxu0 0.0
  %5163 = vmatprep.subr.mxu0 0.0
  %5164 = vmatpush1.msra.mxu0 0.0
  %5165 = vmatprep.subr.mxu0 0.0
  %5166 = vmatpush1.msra.mxu0 0.0
  %5167 = vmatprep.subr.mxu0 0.0
  %5168 = vmatpush1.msra.mxu0 0.0
  %5169 = vmatprep.subr.mxu0 0.0
  %5170 = vmatpush1.msra.mxu0 0.0
  %5171 = vmatprep.subr.mxu0 0.0
  %5172 = vmatpush1.msra.mxu0 0.0
  %5173 = vmatprep.subr.mxu0 0.0
  %5174 = vmatpush1.msra.mxu0 0.0
  %5175 = vmatprep.subr.mxu0 0.0
  %5176 = vmatpush1.msra.mxu0 0.0
  %5177 = vmatprep.subr.mxu0 0.0
  %5178 = vmatpush1.msra.mxu0 0.0
  %5179 = vmatprep.subr.mxu0 0.0
  %5180 = vmatpush1.msra.mxu0 0.0
  %5181 = vmatprep.subr.mxu0 0.0
  %5182 = vmatpush1.msra.mxu0 0.0
  %5183 = vmatprep.subr.mxu0 0.0
  %5184 = vmatpush1.msra.mxu0 0.0
  %5185 = vmatprep.subr.mxu0 0.0
  %5186 = vmatpush1.msra.mxu0 0.0
  %5187 = vmatprep.subr.mxu0 0.0
  %5188 = vmatpush1.msra.mxu0 0.0
  %5189 = vmatprep.subr.mxu0 0.0
  %5190 = vmatpush1.msra.mxu0 0.0
  %5191 = vmatprep.mubr.f32.mxu0 0.0
  %5192 = vmatmul.mubr.f32.gmra.mrb[0].mxu0 %v5125
  %v5193 = vpop.f32.mrb[0].mxu0
  %v5194 = vadd.f32 0.0, %v5193
  %v5195 = vpop.f32.mrb[0].mxu0
  %5196 = vdwg.mxu0
  %5198 = vrot.lane.b32.xlu0 %v4860, 24
  %v5199 = vpop.permute.xlu0 %5198
  %5202 = vrot.lane.b32.xlu0 %v5029, 48
  %v5203 = vpop.permute.xlu0 %5202
  %5206 = vrot.lane.b32.xlu0 %v5194, 72
  %v5207 = vpop.permute.xlu0 %5206
  %v5209 = vsel %vm296, %v4692, %v5199
  %v5210 = vsel %vm977, %v5209, %v5203
  %v5211 = vsel %vm979, %v5210, %v5207
  %v5212 = vmul.f32 %v4481, 0.20412415
  %5214 = vrot.lane.b32.xlu0 %v4481, 32
  %v5215 = vpop.permute.xlu0 %5214
  %v5217 = vsel %vm296, %v5212, 0
  %v5219 = vsel %vm296, %v5215, 0
  %5221 = vmatprep.subr.mxu0 0.0
  %5222 = vmatpush1.xpose.msra.mxu0 %v5219
  %5223 = vmatprep.subr.mxu0 0.0
  %5224 = vmatpush1.xpose.msra.mxu0 0.0
  %5225 = vmatprep.subr.mxu0 0.0
  %5226 = vmatpush1.xpose.msra.mxu0 0.0
  %5227 = vmatprep.subr.mxu0 0.0
  %5228 = vmatpush1.xpose.msra.mxu0 0.0
  %5229 = vmatprep.subr.mxu0 0.0
  %5230 = vmatpush1.xpose.msra.mxu0 0.0
  %5231 = vmatprep.subr.mxu0 0.0
  %5232 = vmatpush1.xpose.msra.mxu0 0.0
  %5233 = vmatprep.subr.mxu0 0.0
  %5234 = vmatpush1.xpose.msra.mxu0 0.0
  %5235 = vmatprep.subr.mxu0 0.0
  %5236 = vmatpush1.xpose.msra.mxu0 0.0
  %5237 = vmatprep.subr.mxu0 0.0
  %5238 = vmatpush1.xpose.msra.mxu0 0.0
  %5239 = vmatprep.subr.mxu0 0.0
  %5240 = vmatpush1.xpose.msra.mxu0 0.0
  %5241 = vmatprep.subr.mxu0 0.0
  %5242 = vmatpush1.xpose.msra.mxu0 0.0
  %5243 = vmatprep.subr.mxu0 0.0
  %5244 = vmatpush1.xpose.msra.mxu0 0.0
  %5245 = vmatprep.subr.mxu0 0.0
  %5246 = vmatpush1.xpose.msra.mxu0 0.0
  %5247 = vmatprep.subr.mxu0 0.0
  %5248 = vmatpush1.xpose.msra.mxu0 0.0
  %5249 = vmatprep.subr.mxu0 0.0
  %5250 = vmatpush1.xpose.msra.mxu0 0.0
  %5251 = vmatprep.subr.mxu0 0.0
  %5252 = vmatpush1.xpose.msra.mxu0 0.0
  %5253 = vmatprep.subr.mxu0 0.0
  %5254 = vmatpush1.xpose.msra.mxu0 0.0
  %5255 = vmatprep.subr.mxu0 0.0
  %5256 = vmatpush1.xpose.msra.mxu0 0.0
  %5257 = vmatprep.subr.mxu0 0.0
  %5258 = vmatpush1.xpose.msra.mxu0 0.0
  %5259 = vmatprep.subr.mxu0 0.0
  %5260 = vmatpush1.xpose.msra.mxu0 0.0
  %5261 = vmatprep.subr.mxu0 0.0
  %5262 = vmatpush1.xpose.msra.mxu0 0.0
  %5263 = vmatprep.subr.mxu0 0.0
  %5264 = vmatpush1.xpose.msra.mxu0 0.0
  %5265 = vmatprep.subr.mxu0 0.0
  %5266 = vmatpush1.xpose.msra.mxu0 0.0
  %5267 = vmatprep.subr.mxu0 0.0
  %5268 = vmatpush1.xpose.msra.mxu0 0.0
  %5269 = vmatprep.subr.mxu0 0.0
  %5270 = vmatpush1.xpose.msra.mxu0 0.0
  %5271 = vmatprep.subr.mxu0 0.0
  %5272 = vmatpush1.xpose.msra.mxu0 0.0
  %5273 = vmatprep.subr.mxu0 0.0
  %5274 = vmatpush1.xpose.msra.mxu0 0.0
  %5275 = vmatprep.subr.mxu0 0.0
  %5276 = vmatpush1.xpose.msra.mxu0 0.0
  %5277 = vmatprep.subr.mxu0 0.0
  %5278 = vmatpush1.xpose.msra.mxu0 0.0
  %5279 = vmatprep.subr.mxu0 0.0
  %5280 = vmatpush1.xpose.msra.mxu0 0.0
  %5281 = vmatprep.subr.mxu0 0.0
  %5282 = vmatpush1.xpose.msra.mxu0 0.0
  %5283 = vmatprep.subr.mxu0 0.0
  %5284 = vmatpush1.xpose.msra.mxu0 0.0
  %5285 = vmatprep.mubr.f32.mxu0 0.0
  %5286 = vmatmul.mubr.f32.gmra.mrb[0].mxu0 %v5217
  %v5287 = vpop.f32.mrb[0].mxu0
  %v5288 = vadd.f32 %v59, %v5287
  %v5289 = vpop.f32.mrb[0].mxu0
  %5290 = vdwg.mxu0
  %v5291 = vsel %vm372, %v5288, -inf
  %5292 = vmax.xlane.f32.xlu0 %v5291
  %v5293 = vpop.xlane.xlu0 %5292
  %v5294 = vsub.f32 %v5288, %v5293
  %v5295 = vmul.f32 %v5294, 1.442695
  %v5296 = vpow.pop %v5295
  %v5297 = vsel %vm372, %v5296, 0.0
  %5298 = vadd.xlane.f32.xlu0 %v5297
  %v5299 = vpop.xlane.xlu0 %5298
  %v5300 = vrcp.pop %v5299
  %v5301 = vmul.f32 %v5296, %v5300
  %5303 = vrot.lane.b32.xlu0 %v4483, 64
  %v5304 = vpop.permute.xlu0 %5303
  %v5307 = vsel %vm372, %v5301, 0
  %5309 = vmatprep.subr.mxu0 0.0
  %5310 = vmatpush1.msra.mxu0 %v5304
  %5311 = vmatprep.subr.mxu0 0.0
  %5312 = vmatpush1.msra.mxu0 0.0
  %5313 = vmatprep.subr.mxu0 0.0
  %5314 = vmatpush1.msra.mxu0 0.0
  %5315 = vmatprep.subr.mxu0 0.0
  %5316 = vmatpush1.msra.mxu0 0.0
  %5317 = vmatprep.subr.mxu0 0.0
  %5318 = vmatpush1.msra.mxu0 0.0
  %5319 = vmatprep.subr.mxu0 0.0
  %5320 = vmatpush1.msra.mxu0 0.0
  %5321 = vmatprep.subr.mxu0 0.0
  %5322 = vmatpush1.msra.mxu0 0.0
  %5323 = vmatprep.subr.mxu0 0.0
  %5324 = vmatpush1.msra.mxu0 0.0
  %5325 = vmatprep.subr.mxu0 0.0
  %5326 = vmatpush1.msra.mxu0 0.0
  %5327 = vmatprep.subr.mxu0 0.0
  %5328 = vmatpush1.msra.mxu0 0.0
  %5329 = vmatprep.subr.mxu0 0.0
  %5330 = vmatpush1.msra.mxu0 0.0
  %5331 = vmatprep.subr.mxu0 0.0
  %5332 = vmatpush1.msra.mxu0 0.0
  %5333 = vmatprep.subr.mxu0 0.0
  %5334 = vmatpush1.msra.mxu0 0.0
  %5335 = vmatprep.subr.mxu0 0.0
  %5336 = vmatpush1.msra.mxu0 0.0
  %5337 = vmatprep.subr.mxu0 0.0
  %5338 = vmatpush1.msra.mxu0 0.0
  %5339 = vmatprep.subr.mxu0 0.0
  %5340 = vmatpush1.msra.mxu0 0.0
  %5341 = vmatprep.subr.mxu0 0.0
  %5342 = vmatpush1.msra.mxu0 0.0
  %5343 = vmatprep.subr.mxu0 0.0
  %5344 = vmatpush1.msra.mxu0 0.0
  %5345 = vmatprep.subr.mxu0 0.0
  %5346 = vmatpush1.msra.mxu0 0.0
  %5347 = vmatprep.subr.mxu0 0.0
  %5348 = vmatpush1.msra.mxu0 0.0
  %5349 = vmatprep.subr.mxu0 0.0
  %5350 = vmatpush1.msra.mxu0 0.0
  %5351 = vmatprep.subr.mxu0 0.0
  %5352 = vmatpush1.msra.mxu0 0.0
  %5353 = vmatprep.subr.mxu0 0.0
  %5354 = vmatpush1.msra.mxu0 0.0
  %5355 = vmatprep.subr.mxu0 0.0
  %5356 = vmatpush1.msra.mxu0 0.0
  %5357 = vmatprep.subr.mxu0 0.0
  %5358 = vmatpush1.msra.mxu0 0.0
  %5359 = vmatprep.subr.mxu0 0.0
  %5360 = vmatpush1.msra.mxu0 0.0
  %5361 = vmatprep.subr.mxu0 0.0
  %5362 = vmatpush1.msra.mxu0 0.0
  %5363 = vmatprep.subr.mxu0 0.0
  %5364 = vmatpush1.msra.mxu0 0.0
  %5365 = vmatprep.subr.mxu0 0.0
  %5366 = vmatpush1.msra.mxu0 0.0
  %5367 = vmatprep.subr.mxu0 0.0
  %5368 = vmatpush1.msra.mxu0 0.0
  %5369 = vmatprep.subr.mxu0 0.0
  %5370 = vmatpush1.msra.mxu0 0.0
  %5371 = vmatprep.subr.mxu0 0.0
  %5372 = vmatpush1.msra.mxu0 0.0
  %5373 = vmatprep.mubr.f32.mxu0 0.0
  %5374 = vmatmul.mubr.f32.gmra.mrb[0].mxu0 %v5307
  %v5375 = vpop.f32.mrb[0].mxu0
  %v5376 = vadd.f32 0.0, %v5375
  %v5377 = vpop.f32.mrb[0].mxu0
  %5378 = vdwg.mxu0
  %5379 = vrot.lane.b32.xlu0 %v5212, 104
  %v5380 = vpop.permute.xlu0 %5379
  %5381 = vrot.lane.b32.xlu0 %v4481, 8
  %v5382 = vpop.permute.xlu0 %5381
  %5383 = vrot.lane.b32.xlu0 %v4483, 8
  %v5384 = vpop.permute.xlu0 %5383
  %v5385 = vsel %vm372, %v5382, %v5384
  %v5386 = vsel %vm296, %v5380, 0
  %v5388 = vsel %vm296, %v5385, 0
  %5390 = vmatprep.subr.mxu0 0.0
  %5391 = vmatpush1.xpose.msra.mxu0 %v5388
  %5392 = vmatprep.subr.mxu0 0.0
  %5393 = vmatpush1.xpose.msra.mxu0 0.0
  %5394 = vmatprep.subr.mxu0 0.0
  %5395 = vmatpush1.xpose.msra.mxu0 0.0
  %5396 = vmatprep.subr.mxu0 0.0
  %5397 = vmatpush1.xpose.msra.mxu0 0.0
  %5398 = vmatprep.subr.mxu0 0.0
  %5399 = vmatpush1.xpose.msra.mxu0 0.0
  %5400 = vmatprep.subr.mxu0 0.0
  %5401 = vmatpush1.xpose.msra.mxu0 0.0
  %5402 = vmatprep.subr.mxu0 0.0
  %5403 = vmatpush1.xpose.msra.mxu0 0.0
  %5404 = vmatprep.subr.mxu0 0.0
  %5405 = vmatpush1.xpose.msra.mxu0 0.0
  %5406 = vmatprep.subr.mxu0 0.0
  %5407 = vmatpush1.xpose.msra.mxu0 0.0
  %5408 = vmatprep.subr.mxu0 0.0
  %5409 = vmatpush1.xpose.msra.mxu0 0.0
  %5410 = vmatprep.subr.mxu0 0.0
  %5411 = vmatpush1.xpose.msra.mxu0 0.0
  %5412 = vmatprep.subr.mxu0 0.0
  %5413 = vmatpush1.xpose.msra.mxu0 0.0
  %5414 = vmatprep.subr.mxu0 0.0
  %5415 = vmatpush1.xpose.msra.mxu0 0.0
  %5416 = vmatprep.subr.mxu0 0.0
  %5417 = vmatpush1.xpose.msra.mxu0 0.0
  %5418 = vmatprep.subr.mxu0 0.0
  %5419 = vmatpush1.xpose.msra.mxu0 0.0
  %5420 = vmatprep.subr.mxu0 0.0
  %5421 = vmatpush1.xpose.msra.mxu0 0.0
  %5422 = vmatprep.subr.mxu0 0.0
  %5423 = vmatpush1.xpose.msra.mxu0 0.0
  %5424 = vmatprep.subr.mxu0 0.0
  %5425 = vmatpush1.xpose.msra.mxu0 0.0
  %5426 = vmatprep.subr.mxu0 0.0
  %5427 = vmatpush1.xpose.msra.mxu0 0.0
  %5428 = vmatprep.subr.mxu0 0.0
  %5429 = vmatpush1.xpose.msra.mxu0 0.0
  %5430 = vmatprep.subr.mxu0 0.0
  %5431 = vmatpush1.xpose.msra.mxu0 0.0
  %5432 = vmatprep.subr.mxu0 0.0
  %5433 = vmatpush1.xpose.msra.mxu0 0.0
  %5434 = vmatprep.subr.mxu0 0.0
  %5435 = vmatpush1.xpose.msra.mxu0 0.0
  %5436 = vmatprep.subr.mxu0 0.0
  %5437 = vmatpush1.xpose.msra.mxu0 0.0
  %5438 = vmatprep.subr.mxu0 0.0
  %5439 = vmatpush1.xpose.msra.mxu0 0.0
  %5440 = vmatprep.subr.mxu0 0.0
  %5441 = vmatpush1.xpose.msra.mxu0 0.0
  %5442 = vmatprep.subr.mxu0 0.0
  %5443 = vmatpush1.xpose.msra.mxu0 0.0
  %5444 = vmatprep.subr.mxu0 0.0
  %5445 = vmatpush1.xpose.msra.mxu0 0.0
  %5446 = vmatprep.subr.mxu0 0.0
  %5447 = vmatpush1.xpose.msra.mxu0 0.0
  %5448 = vmatprep.subr.mxu0 0.0
  %5449 = vmatpush1.xpose.msra.mxu0 0.0
  %5450 = vmatprep.subr.mxu0 0.0
  %5451 = vmatpush1.xpose.msra.mxu0 0.0
  %5452 = vmatprep.subr.mxu0 0.0
  %5453 = vmatpush1.xpose.msra.mxu0 0.0
  %5454 = vmatprep.mubr.f32.mxu0 0.0
  %5455 = vmatmul.mubr.f32.gmra.mrb[0].mxu0 %v5386
  %v5456 = vpop.f32.mrb[0].mxu0
  %v5457 = vadd.f32 %v59, %v5456
  %v5458 = vpop.f32.mrb[0].mxu0
  %5459 = vdwg.mxu0
  %v5460 = vsel %vm372, %v5457, -inf
  %5461 = vmax.xlane.f32.xlu0 %v5460
  %v5462 = vpop.xlane.xlu0 %5461
  %v5463 = vsub.f32 %v5457, %v5462
  %v5464 = vmul.f32 %v5463, 1.442695
  %v5465 = vpow.pop %v5464
  %v5466 = vsel %vm372, %v5465, 0.0
  %5467 = vadd.xlane.f32.xlu0 %v5466
  %v5468 = vpop.xlane.xlu0 %5467
  %v5469 = vrcp.pop %v5468
  %v5470 = vmul.f32 %v5465, %v5469
  %5471 = vrot.lane.b32.xlu0 %v4483, 40
  %v5472 = vpop.permute.xlu0 %5471
  %v5475 = vsel %vm372, %v5470, 0
  %5477 = vmatprep.subr.mxu0 0.0
  %5478 = vmatpush1.msra.mxu0 %v5472
  %5479 = vmatprep.subr.mxu0 0.0
  %5480 = vmatpush1.msra.mxu0 0.0
  %5481 = vmatprep.subr.mxu0 0.0
  %5482 = vmatpush1.msra.mxu0 0.0
  %5483 = vmatprep.subr.mxu0 0.0
  %5484 = vmatpush1.msra.mxu0 0.0
  %5485 = vmatprep.subr.mxu0 0.0
  %5486 = vmatpush1.msra.mxu0 0.0
  %5487 = vmatprep.subr.mxu0 0.0
  %5488 = vmatpush1.msra.mxu0 0.0
  %5489 = vmatprep.subr.mxu0 0.0
  %5490 = vmatpush1.msra.mxu0 0.0
  %5491 = vmatprep.subr.mxu0 0.0
  %5492 = vmatpush1.msra.mxu0 0.0
  %5493 = vmatprep.subr.mxu0 0.0
  %5494 = vmatpush1.msra.mxu0 0.0
  %5495 = vmatprep.subr.mxu0 0.0
  %5496 = vmatpush1.msra.mxu0 0.0
  %5497 = vmatprep.subr.mxu0 0.0
  %5498 = vmatpush1.msra.mxu0 0.0
  %5499 = vmatprep.subr.mxu0 0.0
  %5500 = vmatpush1.msra.mxu0 0.0
  %5501 = vmatprep.subr.mxu0 0.0
  %5502 = vmatpush1.msra.mxu0 0.0
  %5503 = vmatprep.subr.mxu0 0.0
  %5504 = vmatpush1.msra.mxu0 0.0
  %5505 = vmatprep.subr.mxu0 0.0
  %5506 = vmatpush1.msra.mxu0 0.0
  %5507 = vmatprep.subr.mxu0 0.0
  %5508 = vmatpush1.msra.mxu0 0.0
  %5509 = vmatprep.subr.mxu0 0.0
  %5510 = vmatpush1.msra.mxu0 0.0
  %5511 = vmatprep.subr.mxu0 0.0
  %5512 = vmatpush1.msra.mxu0 0.0
  %5513 = vmatprep.subr.mxu0 0.0
  %5514 = vmatpush1.msra.mxu0 0.0
  %5515 = vmatprep.subr.mxu0 0.0
  %5516 = vmatpush1.msra.mxu0 0.0
  %5517 = vmatprep.subr.mxu0 0.0
  %5518 = vmatpush1.msra.mxu0 0.0
  %5519 = vmatprep.subr.mxu0 0.0
  %5520 = vmatpush1.msra.mxu0 0.0
  %5521 = vmatprep.subr.mxu0 0.0
  %5522 = vmatpush1.msra.mxu0 0.0
  %5523 = vmatprep.subr.mxu0 0.0
  %5524 = vmatpush1.msra.mxu0 0.0
  %5525 = vmatprep.subr.mxu0 0.0
  %5526 = vmatpush1.msra.mxu0 0.0
  %5527 = vmatprep.subr.mxu0 0.0
  %5528 = vmatpush1.msra.mxu0 0.0
  %5529 = vmatprep.subr.mxu0 0.0
  %5530 = vmatpush1.msra.mxu0 0.0
  %5531 = vmatprep.subr.mxu0 0.0
  %5532 = vmatpush1.msra.mxu0 0.0
  %5533 = vmatprep.subr.mxu0 0.0
  %5534 = vmatpush1.msra.mxu0 0.0
  %5535 = vmatprep.subr.mxu0 0.0
  %5536 = vmatpush1.msra.mxu0 0.0
  %5537 = vmatprep.subr.mxu0 0.0
  %5538 = vmatpush1.msra.mxu0 0.0
  %5539 = vmatprep.subr.mxu0 0.0
  %5540 = vmatpush1.msra.mxu0 0.0
  %5541 = vmatprep.mubr.f32.mxu0 0.0
  %5542 = vmatmul.mubr.f32.gmra.mrb[0].mxu0 %v5475
  %v5543 = vpop.f32.mrb[0].mxu0
  %v5544 = vadd.f32 0.0, %v5543
  %v5545 = vpop.f32.mrb[0].mxu0
  %5546 = vdwg.mxu0
  %5547 = vrot.lane.b32.xlu0 %v5212, 80
  %v5548 = vpop.permute.xlu0 %5547
  %5549 = vrot.lane.b32.xlu0 %v4483, 112
  %v5550 = vpop.permute.xlu0 %5549
  %v5551 = vsel %vm296, %v5548, 0
  %v5553 = vsel %vm296, %v5550, 0
  %5555 = vmatprep.subr.mxu0 0.0
  %5556 = vmatpush1.xpose.msra.mxu0 %v5553
  %5557 = vmatprep.subr.mxu0 0.0
  %5558 = vmatpush1.xpose.msra.mxu0 0.0
  %5559 = vmatprep.subr.mxu0 0.0
  %5560 = vmatpush1.xpose.msra.mxu0 0.0
  %5561 = vmatprep.subr.mxu0 0.0
  %5562 = vmatpush1.xpose.msra.mxu0 0.0
  %5563 = vmatprep.subr.mxu0 0.0
  %5564 = vmatpush1.xpose.msra.mxu0 0.0
  %5565 = vmatprep.subr.mxu0 0.0
  %5566 = vmatpush1.xpose.msra.mxu0 0.0
  %5567 = vmatprep.subr.mxu0 0.0
  %5568 = vmatpush1.xpose.msra.mxu0 0.0
  %5569 = vmatprep.subr.mxu0 0.0
  %5570 = vmatpush1.xpose.msra.mxu0 0.0
  %5571 = vmatprep.subr.mxu0 0.0
  %5572 = vmatpush1.xpose.msra.mxu0 0.0
  %5573 = vmatprep.subr.mxu0 0.0
  %5574 = vmatpush1.xpose.msra.mxu0 0.0
  %5575 = vmatprep.subr.mxu0 0.0
  %5576 = vmatpush1.xpose.msra.mxu0 0.0
  %5577 = vmatprep.subr.mxu0 0.0
  %5578 = vmatpush1.xpose.msra.mxu0 0.0
  %5579 = vmatprep.subr.mxu0 0.0
  %5580 = vmatpush1.xpose.msra.mxu0 0.0
  %5581 = vmatprep.subr.mxu0 0.0
  %5582 = vmatpush1.xpose.msra.mxu0 0.0
  %5583 = vmatprep.subr.mxu0 0.0
  %5584 = vmatpush1.xpose.msra.mxu0 0.0
  %5585 = vmatprep.subr.mxu0 0.0
  %5586 = vmatpush1.xpose.msra.mxu0 0.0
  %5587 = vmatprep.subr.mxu0 0.0
  %5588 = vmatpush1.xpose.msra.mxu0 0.0
  %5589 = vmatprep.subr.mxu0 0.0
  %5590 = vmatpush1.xpose.msra.mxu0 0.0
  %5591 = vmatprep.subr.mxu0 0.0
  %5592 = vmatpush1.xpose.msra.mxu0 0.0
  %5593 = vmatprep.subr.mxu0 0.0
  %5594 = vmatpush1.xpose.msra.mxu0 0.0
  %5595 = vmatprep.subr.mxu0 0.0
  %5596 = vmatpush1.xpose.msra.mxu0 0.0
  %5597 = vmatprep.subr.mxu0 0.0
  %5598 = vmatpush1.xpose.msra.mxu0 0.0
  %5599 = vmatprep.subr.mxu0 0.0
  %5600 = vmatpush1.xpose.msra.mxu0 0.0
  %5601 = vmatprep.subr.mxu0 0.0
  %5602 = vmatpush1.xpose.msra.mxu0 0.0
  %5603 = vmatprep.subr.mxu0 0.0
  %5604 = vmatpush1.xpose.msra.mxu0 0.0
  %5605 = vmatprep.subr.mxu0 0.0
  %5606 = vmatpush1.xpose.msra.mxu0 0.0
  %5607 = vmatprep.subr.mxu0 0.0
  %5608 = vmatpush1.xpose.msra.mxu0 0.0
  %5609 = vmatprep.subr.mxu0 0.0
  %5610 = vmatpush1.xpose.msra.mxu0 0.0
  %5611 = vmatprep.subr.mxu0 0.0
  %5612 = vmatpush1.xpose.msra.mxu0 0.0
  %5613 = vmatprep.subr.mxu0 0.0
  %5614 = vmatpush1.xpose.msra.mxu0 0.0
  %5615 = vmatprep.subr.mxu0 0.0
  %5616 = vmatpush1.xpose.msra.mxu0 0.0
  %5617 = vmatprep.subr.mxu0 0.0
  %5618 = vmatpush1.xpose.msra.mxu0 0.0
  %5619 = vmatprep.mubr.f32.mxu0 0.0
  %5620 = vmatmul.mubr.f32.gmra.mrb[0].mxu0 %v5551
  %v5621 = vpop.f32.mrb[0].mxu0
  %v5622 = vadd.f32 %v59, %v5621
  %v5623 = vpop.f32.mrb[0].mxu0
  %5624 = vdwg.mxu0
  %v5625 = vsel %vm372, %v5622, -inf
  %5626 = vmax.xlane.f32.xlu0 %v5625
  %v5627 = vpop.xlane.xlu0 %5626
  %v5628 = vsub.f32 %v5622, %v5627
  %v5629 = vmul.f32 %v5628, 1.442695
  %v5630 = vpow.pop %v5629
  %v5631 = vsel %vm372, %v5630, 0.0
  %5632 = vadd.xlane.f32.xlu0 %v5631
  %v5633 = vpop.xlane.xlu0 %5632
  %v5634 = vrcp.pop %v5633
  %v5635 = vmul.f32 %v5630, %v5634
  %5637 = vrot.lane.b32.xlu0 %v4483, 16
  %v5638 = vpop.permute.xlu0 %5637
  %5639 = vrot.lane.b32.xlu0 %v4525, 16
  %v5640 = vpop.permute.xlu0 %5639
  %v5641 = vsel %vm723, %v5638, %v5640
  %v5644 = vsel %vm372, %v5635, 0
  %5646 = vmatprep.subr.mxu0 0.0
  %5647 = vmatpush1.msra.mxu0 %v5641
  %5648 = vmatprep.subr.mxu0 0.0
  %5649 = vmatpush1.msra.mxu0 0.0
  %5650 = vmatprep.subr.mxu0 0.0
  %5651 = vmatpush1.msra.mxu0 0.0
  %5652 = vmatprep.subr.mxu0 0.0
  %5653 = vmatpush1.msra.mxu0 0.0
  %5654 = vmatprep.subr.mxu0 0.0
  %5655 = vmatpush1.msra.mxu0 0.0
  %5656 = vmatprep.subr.mxu0 0.0
  %5657 = vmatpush1.msra.mxu0 0.0
  %5658 = vmatprep.subr.mxu0 0.0
  %5659 = vmatpush1.msra.mxu0 0.0
  %5660 = vmatprep.subr.mxu0 0.0
  %5661 = vmatpush1.msra.mxu0 0.0
  %5662 = vmatprep.subr.mxu0 0.0
  %5663 = vmatpush1.msra.mxu0 0.0
  %5664 = vmatprep.subr.mxu0 0.0
  %5665 = vmatpush1.msra.mxu0 0.0
  %5666 = vmatprep.subr.mxu0 0.0
  %5667 = vmatpush1.msra.mxu0 0.0
  %5668 = vmatprep.subr.mxu0 0.0
  %5669 = vmatpush1.msra.mxu0 0.0
  %5670 = vmatprep.subr.mxu0 0.0
  %5671 = vmatpush1.msra.mxu0 0.0
  %5672 = vmatprep.subr.mxu0 0.0
  %5673 = vmatpush1.msra.mxu0 0.0
  %5674 = vmatprep.subr.mxu0 0.0
  %5675 = vmatpush1.msra.mxu0 0.0
  %5676 = vmatprep.subr.mxu0 0.0
  %5677 = vmatpush1.msra.mxu0 0.0
  %5678 = vmatprep.subr.mxu0 0.0
  %5679 = vmatpush1.msra.mxu0 0.0
  %5680 = vmatprep.subr.mxu0 0.0
  %5681 = vmatpush1.msra.mxu0 0.0
  %5682 = vmatprep.subr.mxu0 0.0
  %5683 = vmatpush1.msra.mxu0 0.0
  %5684 = vmatprep.subr.mxu0 0.0
  %5685 = vmatpush1.msra.mxu0 0.0
  %5686 = vmatprep.subr.mxu0 0.0
  %5687 = vmatpush1.msra.mxu0 0.0
  %5688 = vmatprep.subr.mxu0 0.0
  %5689 = vmatpush1.msra.mxu0 0.0
  %5690 = vmatprep.subr.mxu0 0.0
  %5691 = vmatpush1.msra.mxu0 0.0
  %5692 = vmatprep.subr.mxu0 0.0
  %5693 = vmatpush1.msra.mxu0 0.0
  %5694 = vmatprep.subr.mxu0 0.0
  %5695 = vmatpush1.msra.mxu0 0.0
  %5696 = vmatprep.subr.mxu0 0.0
  %5697 = vmatpush1.msra.mxu0 0.0
  %5698 = vmatprep.subr.mxu0 0.0
  %5699 = vmatpush1.msra.mxu0 0.0
  %5700 = vmatprep.subr.mxu0 0.0
  %5701 = vmatpush1.msra.mxu0 0.0
  %5702 = vmatprep.subr.mxu0 0.0
  %5703 = vmatpush1.msra.mxu0 0.0
  %5704 = vmatprep.subr.mxu0 0.0
  %5705 = vmatpush1.msra.mxu0 0.0
  %5706 = vmatprep.subr.mxu0 0.0
  %5707 = vmatpush1.msra.mxu0 0.0
  %5708 = vmatprep.subr.mxu0 0.0
  %5709 = vmatpush1.msra.mxu0 0.0
  %5710 = vmatprep.mubr.f32.mxu0 0.0
  %5711 = vmatmul.mubr.f32.gmra.mrb[0].mxu0 %v5644
  %v5712 = vpop.f32.mrb[0].mxu0
  %v5713 = vadd.f32 0.0, %v5712
  %v5714 = vpop.f32.mrb[0].mxu0
  %5715 = vdwg.mxu0
  %5716 = vrot.lane.b32.xlu0 %v5212, 56
  %v5717 = vpop.permute.xlu0 %5716
  %5718 = vrot.lane.b32.xlu0 %v4483, 88
  %v5719 = vpop.permute.xlu0 %5718
  %v5720 = vsel %vm296, %v5717, 0
  %v5722 = vsel %vm296, %v5719, 0
  %5724 = vmatprep.subr.mxu0 0.0
  %5725 = vmatpush1.xpose.msra.mxu0 %v5722
  %5726 = vmatprep.subr.mxu0 0.0
  %5727 = vmatpush1.xpose.msra.mxu0 0.0
  %5728 = vmatprep.subr.mxu0 0.0
  %5729 = vmatpush1.xpose.msra.mxu0 0.0
  %5730 = vmatprep.subr.mxu0 0.0
  %5731 = vmatpush1.xpose.msra.mxu0 0.0
  %5732 = vmatprep.subr.mxu0 0.0
  %5733 = vmatpush1.xpose.msra.mxu0 0.0
  %5734 = vmatprep.subr.mxu0 0.0
  %5735 = vmatpush1.xpose.msra.mxu0 0.0
  %5736 = vmatprep.subr.mxu0 0.0
  %5737 = vmatpush1.xpose.msra.mxu0 0.0
  %5738 = vmatprep.subr.mxu0 0.0
  %5739 = vmatpush1.xpose.msra.mxu0 0.0
  %5740 = vmatprep.subr.mxu0 0.0
  %5741 = vmatpush1.xpose.msra.mxu0 0.0
  %5742 = vmatprep.subr.mxu0 0.0
  %5743 = vmatpush1.xpose.msra.mxu0 0.0
  %5744 = vmatprep.subr.mxu0 0.0
  %5745 = vmatpush1.xpose.msra.mxu0 0.0
  %5746 = vmatprep.subr.mxu0 0.0
  %5747 = vmatpush1.xpose.msra.mxu0 0.0
  %5748 = vmatprep.subr.mxu0 0.0
  %5749 = vmatpush1.xpose.msra.mxu0 0.0
  %5750 = vmatprep.subr.mxu0 0.0
  %5751 = vmatpush1.xpose.msra.mxu0 0.0
  %5752 = vmatprep.subr.mxu0 0.0
  %5753 = vmatpush1.xpose.msra.mxu0 0.0
  %5754 = vmatprep.subr.mxu0 0.0
  %5755 = vmatpush1.xpose.msra.mxu0 0.0
  %5756 = vmatprep.subr.mxu0 0.0
  %5757 = vmatpush1.xpose.msra.mxu0 0.0
  %5758 = vmatprep.subr.mxu0 0.0
  %5759 = vmatpush1.xpose.msra.mxu0 0.0
  %5760 = vmatprep.subr.mxu0 0.0
  %5761 = vmatpush1.xpose.msra.mxu0 0.0
  %5762 = vmatprep.subr.mxu0 0.0
  %5763 = vmatpush1.xpose.msra.mxu0 0.0
  %5764 = vmatprep.subr.mxu0 0.0
  %5765 = vmatpush1.xpose.msra.mxu0 0.0
  %5766 = vmatprep.subr.mxu0 0.0
  %5767 = vmatpush1.xpose.msra.mxu0 0.0
  %5768 = vmatprep.subr.mxu0 0.0
  %5769 = vmatpush1.xpose.msra.mxu0 0.0
  %5770 = vmatprep.subr.mxu0 0.0
  %5771 = vmatpush1.xpose.msra.mxu0 0.0
  %5772 = vmatprep.subr.mxu0 0.0
  %5773 = vmatpush1.xpose.msra.mxu0 0.0
  %5774 = vmatprep.subr.mxu0 0.0
  %5775 = vmatpush1.xpose.msra.mxu0 0.0
  %5776 = vmatprep.subr.mxu0 0.0
  %5777 = vmatpush1.xpose.msra.mxu0 0.0
  %5778 = vmatprep.subr.mxu0 0.0
  %5779 = vmatpush1.xpose.msra.mxu0 0.0
  %5780 = vmatprep.subr.mxu0 0.0
  %5781 = vmatpush1.xpose.msra.mxu0 0.0
  %5782 = vmatprep.subr.mxu0 0.0
  %5783 = vmatpush1.xpose.msra.mxu0 0.0
  %5784 = vmatprep.subr.mxu0 0.0
  %5785 = vmatpush1.xpose.msra.mxu0 0.0
  %5786 = vmatprep.subr.mxu0 0.0
  %5787 = vmatpush1.xpose.msra.mxu0 0.0
  %5788 = vmatprep.mubr.f32.mxu0 0.0
  %5789 = vmatmul.mubr.f32.gmra.mrb[0].mxu0 %v5720
  %v5790 = vpop.f32.mrb[0].mxu0
  %v5791 = vadd.f32 %v59, %v5790
  %v5792 = vpop.f32.mrb[0].mxu0
  %5793 = vdwg.mxu0
  %v5794 = vsel %vm372, %v5791, -inf
  %5795 = vmax.xlane.f32.xlu0 %v5794
  %v5796 = vpop.xlane.xlu0 %5795
  %v5797 = vsub.f32 %v5791, %v5796
  %v5798 = vmul.f32 %v5797, 1.442695
  %v5799 = vpow.pop %v5798
  %v5800 = vsel %vm372, %v5799, 0.0
  %5801 = vadd.xlane.f32.xlu0 %v5800
  %v5802 = vpop.xlane.xlu0 %5801
  %v5803 = vrcp.pop %v5802
  %v5804 = vmul.f32 %v5799, %v5803
  %5805 = vrot.lane.b32.xlu0 %v4525, 120
  %v5806 = vpop.permute.xlu0 %5805
  %v5809 = vsel %vm372, %v5804, 0
  %5811 = vmatprep.subr.mxu0 0.0
  %5812 = vmatpush1.msra.mxu0 %v5806
  %5813 = vmatprep.subr.mxu0 0.0
  %5814 = vmatpush1.msra.mxu0 0.0
  %5815 = vmatprep.subr.mxu0 0.0
  %5816 = vmatpush1.msra.mxu0 0.0
  %5817 = vmatprep.subr.mxu0 0.0
  %5818 = vmatpush1.msra.mxu0 0.0
  %5819 = vmatprep.subr.mxu0 0.0
  %5820 = vmatpush1.msra.mxu0 0.0
  %5821 = vmatprep.subr.mxu0 0.0
  %5822 = vmatpush1.msra.mxu0 0.0
  %5823 = vmatprep.subr.mxu0 0.0
  %5824 = vmatpush1.msra.mxu0 0.0
  %5825 = vmatprep.subr.mxu0 0.0
  %5826 = vmatpush1.msra.mxu0 0.0
  %5827 = vmatprep.subr.mxu0 0.0
  %5828 = vmatpush1.msra.mxu0 0.0
  %5829 = vmatprep.subr.mxu0 0.0
  %5830 = vmatpush1.msra.mxu0 0.0
  %5831 = vmatprep.subr.mxu0 0.0
  %5832 = vmatpush1.msra.mxu0 0.0
  %5833 = vmatprep.subr.mxu0 0.0
  %5834 = vmatpush1.msra.mxu0 0.0
  %5835 = vmatprep.subr.mxu0 0.0
  %5836 = vmatpush1.msra.mxu0 0.0
  %5837 = vmatprep.subr.mxu0 0.0
  %5838 = vmatpush1.msra.mxu0 0.0
  %5839 = vmatprep.subr.mxu0 0.0
  %5840 = vmatpush1.msra.mxu0 0.0
  %5841 = vmatprep.subr.mxu0 0.0
  %5842 = vmatpush1.msra.mxu0 0.0
  %5843 = vmatprep.subr.mxu0 0.0
  %5844 = vmatpush1.msra.mxu0 0.0
  %5845 = vmatprep.subr.mxu0 0.0
  %5846 = vmatpush1.msra.mxu0 0.0
  %5847 = vmatprep.subr.mxu0 0.0
  %5848 = vmatpush1.msra.mxu0 0.0
  %5849 = vmatprep.subr.mxu0 0.0
  %5850 = vmatpush1.msra.mxu0 0.0
  %5851 = vmatprep.subr.mxu0 0.0
  %5852 = vmatpush1.msra.mxu0 0.0
  %5853 = vmatprep.subr.mxu0 0.0
  %5854 = vmatpush1.msra.mxu0 0.0
  %5855 = vmatprep.subr.mxu0 0.0
  %5856 = vmatpush1.msra.mxu0 0.0
  %5857 = vmatprep.subr.mxu0 0.0
  %5858 = vmatpush1.msra.mxu0 0.0
  %5859 = vmatprep.subr.mxu0 0.0
  %5860 = vmatpush1.msra.mxu0 0.0
  %5861 = vmatprep.subr.mxu0 0.0
  %5862 = vmatpush1.msra.mxu0 0.0
  %5863 = vmatprep.subr.mxu0 0.0
  %5864 = vmatpush1.msra.mxu0 0.0
  %5865 = vmatprep.subr.mxu0 0.0
  %5866 = vmatpush1.msra.mxu0 0.0
  %5867 = vmatprep.subr.mxu0 0.0
  %5868 = vmatpush1.msra.mxu0 0.0
  %5869 = vmatprep.subr.mxu0 0.0
  %5870 = vmatpush1.msra.mxu0 0.0
  %5871 = vmatprep.subr.mxu0 0.0
  %5872 = vmatpush1.msra.mxu0 0.0
  %5873 = vmatprep.subr.mxu0 0.0
  %5874 = vmatpush1.msra.mxu0 0.0
  %5875 = vmatprep.mubr.f32.mxu0 0.0
  %5876 = vmatmul.mubr.f32.gmra.mrb[0].mxu0 %v5809
  %v5877 = vpop.f32.mrb[0].mxu0
  %v5878 = vadd.f32 0.0, %v5877
  %v5879 = vpop.f32.mrb[0].mxu0
  %5880 = vdwg.mxu0
  %5882 = vrot.lane.b32.xlu0 %v5544, 24
  %v5883 = vpop.permute.xlu0 %5882
  %5886 = vrot.lane.b32.xlu0 %v5713, 48
  %v5887 = vpop.permute.xlu0 %5886
  %5890 = vrot.lane.b32.xlu0 %v5878, 72
  %v5891 = vpop.permute.xlu0 %5890
  %v5893 = vsel %vm296, %v5376, %v5883
  %v5894 = vsel %vm977, %v5893, %v5887
  %v5895 = vsel %vm979, %v5894, %v5891
  %s5896 = scalar_lea.vmem %s3, 48
  %v5897 = vld [vmem:[%s5896] sm:$0xf]
  %v5898 = vld [vmem:[%s5896 + $0x4] sm:$0xf]
  %v5899 = vld [vmem:[%s5896 + $0x8] sm:$0xf]
  %v5900 = vld [vmem:[%s5896 + $0xc] sm:$0xf]
  %v5901 = vld [vmem:[%s5896 + $0x10] sm:$0xf]
  %v5902 = vld [vmem:[%s5896 + $0x14] sm:$0xf]
  %v5903 = vld [vmem:[%s5896 + $0x18] sm:$0xf]
  %v5904 = vld [vmem:[%s5896 + $0x1c] sm:$0xf]
  %v5905 = vld [vmem:[%s5896 + $0x20] sm:$0xf]
  %v5906 = vld [vmem:[%s5896 + $0x24] sm:$0xf]
  %v5907 = vld [vmem:[%s5896 + $0x28] sm:$0xf]
  %v5908 = vld [vmem:[%s5896 + $0x2c] sm:$0xf]
  %s5909 = scalar_lea.vmem %s4, 1
  %v5910 = vld [vmem:[%s5909] sm:$0x1]
  %v5912 = vlaneseq
  %v5913 = vshrl.u32 %v5912, 7
  %v5914 = vsub.s32 0, %v5913
  %v5915 = vrot.slane %v5910, %v5914
  %v5929 = vunpack.c.l.b16 %v5897
  %v5930 = vunpack.c.l.b16 %v5898
  %v5931 = vunpack.c.l.b16 %v5899
  %v5932 = vunpack.c.l.b16 %v5900
  %v5933 = vunpack.c.l.b16 %v5901
  %v5934 = vunpack.c.l.b16 %v5902
  %v5935 = vunpack.c.l.b16 %v5903
  %v5936 = vunpack.c.l.b16 %v5904
  %v5937 = vunpack.c.l.b16 %v5905
  %v5938 = vunpack.c.l.b16 %v5906
  %v5939 = vunpack.c.l.b16 %v5907
  %v5940 = vunpack.c.l.b16 %v5908
  %v5941 = vpack.c.b16 %v5930, %v5929
  %v5942 = vpack.c.b16 %v5932, %v5931
  %v5943 = vpack.c.b16 %v5934, %v5933
  %v5944 = vpack.c.b16 %v5936, %v5935
  %v5945 = vpack.c.b16 %v5938, %v5937
  %v5946 = vpack.c.b16 %v5940, %v5939
  %v5954 = vsel %vm197, %v5211, 0
  %v5957 = vsel %vm197, %v5895, 0
  %5959 = vmatprep.subr.bf16.mxu0 0
  %5960 = vmatpush1.bf16.msra.mxu0 %v5941
  %5961 = vmatprep.subr.bf16.mxu0 0
  %5962 = vmatpush1.bf16.msra.mxu0 %v5942
  %5963 = vmatprep.subr.bf16.mxu0 0
  %5964 = vmatpush1.bf16.msra.mxu0 %v5943
  %5965 = vmatprep.subr.bf16.mxu0 0
  %5966 = vmatpush1.bf16.msra.mxu0 %v5944
  %5967 = vmatprep.subr.bf16.mxu0 0
  %5968 = vmatpush1.bf16.msra.mxu0 %v5945
  %5969 = vmatprep.subr.bf16.mxu0 0
  %5970 = vmatpush1.bf16.msra.mxu0 %v5946
  %5971 = vmatprep.subr.bf16.mxu0 0
  %5972 = vmatpush1.bf16.msra.mxu0 0
  %5973 = vmatprep.subr.bf16.mxu0 0
  %5974 = vmatpush1.bf16.msra.mxu0 0
  %5975 = vmatprep.subr.bf16.mxu0 0
  %5976 = vmatpush1.bf16.msra.mxu0 0
  %5977 = vmatprep.subr.bf16.mxu0 0
  %5978 = vmatpush1.bf16.msra.mxu0 0
  %5979 = vmatprep.subr.bf16.mxu0 0
  %5980 = vmatpush1.bf16.msra.mxu0 0
  %5981 = vmatprep.subr.bf16.mxu0 0
  %5982 = vmatpush1.bf16.msra.mxu0 0
  %5983 = vmatprep.subr.bf16.mxu0 0
  %5984 = vmatpush1.bf16.msra.mxu0 0
  %5985 = vmatprep.subr.bf16.mxu0 0
  %5986 = vmatpush1.bf16.msra.mxu0 0
  %5987 = vmatprep.subr.bf16.mxu0 0
  %5988 = vmatpush1.bf16.msra.mxu0 0
  %5989 = vmatprep.subr.bf16.mxu0 0
  %5990 = vmatpush1.bf16.msra.mxu0 0
  %5991 = vmatprep.mubr.f32.mxu0 0.0
  %5992 = vmatmul.mubr.f32.gmra.mrb[0].mxu0 %v5954
  %v5993 = vpop.f32.mrb[0].mxu0
  %v5994 = vadd.f32 %v5915, %v5993
  %v5995 = vpop.f32.mrb[0].mxu0
  %5996 = vmatprep.mubr.f32.mxu0 0.0
  %5997 = vmatmul.mubr.f32.gmra.mrb[0].mxu0 %v5957
  %v5998 = vpop.f32.mrb[0].mxu0
  %v5999 = vadd.f32 %v5915, %v5998
  %v6000 = vpop.f32.mrb[0].mxu0
  %6001 = vdwg.mxu0
  %v6002 = vadd.f32 %v4293, %v5994
  %v6003 = vadd.f32 %v4294, %v5999
  %s6004 = scalar_lea.vmem %s5, 1
  %v6005 = vld [vmem:[%s6004] sm:$0x1]
  %s6006 = scalar_lea.vmem %s6, 1
  %v6007 = vld [vmem:[%s6006] sm:$0x1]
  %v6008 = vsel %vm197, %v6002, 0.0
  %6009 = vadd.xlane.f32.xlu0 %v6008
  %v6010 = vpop.xlane.xlu0 %6009
  %v6011 = vsel %vm197, %v6003, 0.0
  %6012 = vadd.xlane.f32.xlu0 %v6011
  %v6013 = vpop.xlane.xlu0 %6012
  %v6014 = vmul.f32 %v6010, %v1779
  %v6015 = vmul.f32 %v6013, %v1779
  %v6016 = vsub.f32 %v6002, %v6014
  %v6017 = vsub.f32 %v6003, %v6015
  %v6018 = vmul.f32 %v6016, %v6016
  %v6019 = vmul.f32 %v6017, %v6017
  %v6020 = vsel %vm197, %v6018, 0.0
  %6021 = vadd.xlane.f32.xlu0 %v6020
  %v6022 = vpop.xlane.xlu0 %6021
  %v6023 = vsel %vm197, %v6019, 0.0
  %6024 = vadd.xlane.f32.xlu0 %v6023
  %v6025 = vpop.xlane.xlu0 %6024
  %v6026 = vmul.f32 %v6022, %v1779
  %v6027 = vmul.f32 %v6025, %v1779
  %v6028 = vadd.f32 %v6026, 1e-05
  %v6029 = vadd.f32 %v6027, 1e-05
  %v6030 = vrsqrt.pop %v6028
  %v6031 = vrsqrt.pop %v6029
  %v6032 = vmul.f32 %v6016, %v6030
  %v6033 = vmul.f32 %v6017, %v6031
  %v6035 = vlaneseq
  %v6036 = vshrl.u32 %v6035, 7
  %v6037 = vsub.s32 0, %v6036
  %v6038 = vrot.slane %v6005, %v6037
  %v6040 = vmul.f32 %v6032, %v6038
  %v6041 = vmul.f32 %v6033, %v6038
  %v6043 = vlaneseq
  %v6044 = vshrl.u32 %v6043, 7
  %v6045 = vsub.s32 0, %v6044
  %v6046 = vrot.slane %v6007, %v6045
  %v6048 = vadd.f32 %v6040, %v6046
  %v6049 = vadd.f32 %v6041, %v6046
  %s6050 = scalar_lea.vmem %s7, 768
  %v6051 = vld [vmem:[%s6050] sm:$0xff]
  %v6052 = vld [vmem:[%s6050 + $0x8] sm:$0xff]
  %v6053 = vld [vmem:[%s6050 + $0x10] sm:$0xff]
  %v6054 = vld [vmem:[%s6050 + $0x18] sm:$0xff]
  %v6055 = vld [vmem:[%s6050 + $0x20] sm:$0xff]
  %v6056 = vld [vmem:[%s6050 + $0x28] sm:$0xff]
  %v6057 = vld [vmem:[%s6050 + $0x30] sm:$0xff]
  %v6058 = vld [vmem:[%s6050 + $0x38] sm:$0xff]
  %v6059 = vld [vmem:[%s6050 + $0x40] sm:$0xff]
  %v6060 = vld [vmem:[%s6050 + $0x48] sm:$0xff]
  %v6061 = vld [vmem:[%s6050 + $0x50] sm:$0xff]
  %v6062 = vld [vmem:[%s6050 + $0x58] sm:$0xff]
  %v6063 = vld [vmem:[%s6050 + $0x60] sm:$0xff]
  %v6064 = vld [vmem:[%s6050 + $0x68] sm:$0xff]
  %v6065 = vld [vmem:[%s6050 + $0x70] sm:$0xff]
  %v6066 = vld [vmem:[%s6050 + $0x78] sm:$0xff]
  %v6067 = vld [vmem:[%s6050 + $0x80] sm:$0xff]
  %v6068 = vld [vmem:[%s6050 + $0x88] sm:$0xff]
  %v6069 = vld [vmem:[%s6050 + $0x90] sm:$0xff]
  %v6070 = vld [vmem:[%s6050 + $0x98] sm:$0xff]
  %v6071 = vld [vmem:[%s6050 + $0xa0] sm:$0xff]
  %v6072 = vld [vmem:[%s6050 + $0xa8] sm:$0xff]
  %v6073 = vld [vmem:[%s6050 + $0xb0] sm:$0xff]
  %v6074 = vld [vmem:[%s6050 + $0xb8] sm:$0xff]
  %v6075 = vld [vmem:[%s6050 + $0xc0] sm:$0xff]
  %v6076 = vld [vmem:[%s6050 + $0xc8] sm:$0xff]
  %v6077 = vld [vmem:[%s6050 + $0xd0] sm:$0xff]
  %v6078 = vld [vmem:[%s6050 + $0xd8] sm:$0xff]
  %v6079 = vld [vmem:[%s6050 + $0xe0] sm:$0xff]
  %v6080 = vld [vmem:[%s6050 + $0xe8] sm:$0xff]
  %v6081 = vld [vmem:[%s6050 + $0xf0] sm:$0xff]
  %v6082 = vld [vmem:[%s6050 + $0xf8] sm:$0xff]
  %v6083 = vld [vmem:[%s6050 + $0x100] sm:$0xff]
  %v6084 = vld [vmem:[%s6050 + $0x108] sm:$0xff]
  %v6085 = vld [vmem:[%s6050 + $0x110] sm:$0xff]
  %v6086 = vld [vmem:[%s6050 + $0x118] sm:$0xff]
  %v6087 = vld [vmem:[%s6050 + $0x120] sm:$0xff]
  %v6088 = vld [vmem:[%s6050 + $0x128] sm:$0xff]
  %v6089 = vld [vmem:[%s6050 + $0x130] sm:$0xff]
  %v6090 = vld [vmem:[%s6050 + $0x138] sm:$0xff]
  %v6091 = vld [vmem:[%s6050 + $0x140] sm:$0xff]
  %v6092 = vld [vmem:[%s6050 + $0x148] sm:$0xff]
  %v6093 = vld [vmem:[%s6050 + $0x150] sm:$0xff]
  %v6094 = vld [vmem:[%s6050 + $0x158] sm:$0xff]
  %v6095 = vld [vmem:[%s6050 + $0x160] sm:$0xff]
  %v6096 = vld [vmem:[%s6050 + $0x168] sm:$0xff]
  %v6097 = vld [vmem:[%s6050 + $0x170] sm:$0xff]
  %v6098 = vld [vmem:[%s6050 + $0x178] sm:$0xff]
  %v6099 = vld [vmem:[%s6050 + $0x180] sm:$0xff]
  %v6100 = vld [vmem:[%s6050 + $0x188] sm:$0xff]
  %v6101 = vld [vmem:[%s6050 + $0x190] sm:$0xff]
  %v6102 = vld [vmem:[%s6050 + $0x198] sm:$0xff]
  %v6103 = vld [vmem:[%s6050 + $0x1a0] sm:$0xff]
  %v6104 = vld [vmem:[%s6050 + $0x1a8] sm:$0xff]
  %v6105 = vld [vmem:[%s6050 + $0x1b0] sm:$0xff]
  %v6106 = vld [vmem:[%s6050 + $0x1b8] sm:$0xff]
  %v6107 = vld [vmem:[%s6050 + $0x1c0] sm:$0xff]
  %v6108 = vld [vmem:[%s6050 + $0x1c8] sm:$0xff]
  %v6109 = vld [vmem:[%s6050 + $0x1d0] sm:$0xff]
  %v6110 = vld [vmem:[%s6050 + $0x1d8] sm:$0xff]
  %v6111 = vld [vmem:[%s6050 + $0x1e0] sm:$0xff]
  %v6112 = vld [vmem:[%s6050 + $0x1e8] sm:$0xff]
  %v6113 = vld [vmem:[%s6050 + $0x1f0] sm:$0xff]
  %v6114 = vld [vmem:[%s6050 + $0x1f8] sm:$0xff]
  %v6115 = vld [vmem:[%s6050 + $0x200] sm:$0xff]
  %v6116 = vld [vmem:[%s6050 + $0x208] sm:$0xff]
  %v6117 = vld [vmem:[%s6050 + $0x210] sm:$0xff]
  %v6118 = vld [vmem:[%s6050 + $0x218] sm:$0xff]
  %v6119 = vld [vmem:[%s6050 + $0x220] sm:$0xff]
  %v6120 = vld [vmem:[%s6050 + $0x228] sm:$0xff]
  %v6121 = vld [vmem:[%s6050 + $0x230] sm:$0xff]
  %v6122 = vld [vmem:[%s6050 + $0x238] sm:$0xff]
  %v6123 = vld [vmem:[%s6050 + $0x240] sm:$0xff]
  %v6124 = vld [vmem:[%s6050 + $0x248] sm:$0xff]
  %v6125 = vld [vmem:[%s6050 + $0x250] sm:$0xff]
  %v6126 = vld [vmem:[%s6050 + $0x258] sm:$0xff]
  %v6127 = vld [vmem:[%s6050 + $0x260] sm:$0xff]
  %v6128 = vld [vmem:[%s6050 + $0x268] sm:$0xff]
  %v6129 = vld [vmem:[%s6050 + $0x270] sm:$0xff]
  %v6130 = vld [vmem:[%s6050 + $0x278] sm:$0xff]
  %v6131 = vld [vmem:[%s6050 + $0x280] sm:$0xff]
  %v6132 = vld [vmem:[%s6050 + $0x288] sm:$0xff]
  %v6133 = vld [vmem:[%s6050 + $0x290] sm:$0xff]
  %v6134 = vld [vmem:[%s6050 + $0x298] sm:$0xff]
  %v6135 = vld [vmem:[%s6050 + $0x2a0] sm:$0xff]
  %v6136 = vld [vmem:[%s6050 + $0x2a8] sm:$0xff]
  %v6137 = vld [vmem:[%s6050 + $0x2b0] sm:$0xff]
  %v6138 = vld [vmem:[%s6050 + $0x2b8] sm:$0xff]
  %v6139 = vld [vmem:[%s6050 + $0x2c0] sm:$0xff]
  %v6140 = vld [vmem:[%s6050 + $0x2c8] sm:$0xff]
  %v6141 = vld [vmem:[%s6050 + $0x2d0] sm:$0xff]
  %v6142 = vld [vmem:[%s6050 + $0x2d8] sm:$0xff]
  %v6143 = vld [vmem:[%s6050 + $0x2e0] sm:$0xff]
  %v6144 = vld [vmem:[%s6050 + $0x2e8] sm:$0xff]
  %v6145 = vld [vmem:[%s6050 + $0x2f0] sm:$0xff]
  %v6146 = vld [vmem:[%s6050 + $0x2f8] sm:$0xff]
  %s6147 = scalar_lea.vmem %s8, 16
  %v6148 = vld [vmem:[%s6147] sm:$0xff]
  %v6149 = vld [vmem:[%s6147 + $0x8] sm:$0xff]
  %v6152 = vlaneseq
  %v6153 = vshrl.u32 %v6152, 7
  %v6154 = vsub.s32 0, %v6153
  %v6155 = vrot.slane %v6148, %v6154
  %v6156 = vlaneseq
  %v6157 = vshrl.u32 %v6156, 7
  %v6158 = vsub.s32 1, %v6157
  %v6159 = vrot.slane %v6148, %v6158
  %v6160 = vlaneseq
  %v6161 = vshrl.u32 %v6160, 7
  %v6162 = vsub.s32 2, %v6161
  %v6163 = vrot.slane %v6148, %v6162
  %v6164 = vlaneseq
  %v6165 = vshrl.u32 %v6164, 7
  %v6166 = vsub.s32 3, %v6165
  %v6167 = vrot.slane %v6148, %v6166
  %v6168 = vlaneseq
  %v6169 = vshrl.u32 %v6168, 7
  %v6170 = vsub.s32 4, %v6169
  %v6171 = vrot.slane %v6148, %v6170
  %v6172 = vlaneseq
  %v6173 = vshrl.u32 %v6172, 7
  %v6174 = vsub.s32 5, %v6173
  %v6175 = vrot.slane %v6148, %v6174
  %v6176 = vlaneseq
  %v6177 = vshrl.u32 %v6176, 7
  %v6178 = vsub.s32 6, %v6177
  %v6179 = vrot.slane %v6148, %v6178
  %v6180 = vlaneseq
  %v6181 = vshrl.u32 %v6180, 7
  %v6182 = vsub.s32 7, %v6181
  %v6183 = vrot.slane %v6148, %v6182
  %v6184 = vlaneseq
  %v6185 = vshrl.u32 %v6184, 7
  %v6186 = vsub.s32 0, %v6185
  %v6187 = vrot.slane %v6149, %v6186
  %v6188 = vlaneseq
  %v6189 = vshrl.u32 %v6188, 7
  %v6190 = vsub.s32 1, %v6189
  %v6191 = vrot.slane %v6149, %v6190
  %v6192 = vlaneseq
  %v6193 = vshrl.u32 %v6192, 7
  %v6194 = vsub.s32 2, %v6193
  %v6195 = vrot.slane %v6149, %v6194
  %v6196 = vlaneseq
  %v6197 = vshrl.u32 %v6196, 7
  %v6198 = vsub.s32 3, %v6197
  %v6199 = vrot.slane %v6149, %v6198
  %v6200 = vlaneseq
  %v6201 = vshrl.u32 %v6200, 7
  %v6202 = vsub.s32 4, %v6201
  %v6203 = vrot.slane %v6149, %v6202
  %v6204 = vlaneseq
  %v6205 = vshrl.u32 %v6204, 7
  %v6206 = vsub.s32 5, %v6205
  %v6207 = vrot.slane %v6149, %v6206
  %v6208 = vlaneseq
  %v6209 = vshrl.u32 %v6208, 7
  %v6210 = vsub.s32 6, %v6209
  %v6211 = vrot.slane %v6149, %v6210
  %v6212 = vlaneseq
  %v6213 = vshrl.u32 %v6212, 7
  %v6214 = vsub.s32 7, %v6213
  %v6215 = vrot.slane %v6149, %v6214
  %v6328 = vunpack.c.l.b16 %v6051
  %v6329 = vunpack.c.h.b16 %v6051
  %v6330 = vunpack.c.l.b16 %v6052
  %v6331 = vunpack.c.h.b16 %v6052
  %v6332 = vunpack.c.l.b16 %v6053
  %v6333 = vunpack.c.h.b16 %v6053
  %v6334 = vunpack.c.l.b16 %v6054
  %v6335 = vunpack.c.h.b16 %v6054
  %v6336 = vunpack.c.l.b16 %v6055
  %v6337 = vunpack.c.h.b16 %v6055
  %v6338 = vunpack.c.l.b16 %v6056
  %v6339 = vunpack.c.h.b16 %v6056
  %v6340 = vunpack.c.l.b16 %v6057
  %v6341 = vunpack.c.h.b16 %v6057
  %v6342 = vunpack.c.l.b16 %v6058
  %v6343 = vunpack.c.h.b16 %v6058
  %v6344 = vunpack.c.l.b16 %v6059
  %v6345 = vunpack.c.h.b16 %v6059
  %v6346 = vunpack.c.l.b16 %v6060
  %v6347 = vunpack.c.h.b16 %v6060
  %v6348 = vunpack.c.l.b16 %v6061
  %v6349 = vunpack.c.h.b16 %v6061
  %v6350 = vunpack.c.l.b16 %v6062
  %v6351 = vunpack.c.h.b16 %v6062
  %v6352 = vunpack.c.l.b16 %v6063
  %v6353 = vunpack.c.h.b16 %v6063
  %v6354 = vunpack.c.l.b16 %v6064
  %v6355 = vunpack.c.h.b16 %v6064
  %v6356 = vunpack.c.l.b16 %v6065
  %v6357 = vunpack.c.h.b16 %v6065
  %v6358 = vunpack.c.l.b16 %v6066
  %v6359 = vunpack.c.h.b16 %v6066
  %v6360 = vunpack.c.l.b16 %v6067
  %v6361 = vunpack.c.h.b16 %v6067
  %v6362 = vunpack.c.l.b16 %v6068
  %v6363 = vunpack.c.h.b16 %v6068
  %v6364 = vunpack.c.l.b16 %v6069
  %v6365 = vunpack.c.h.b16 %v6069
  %v6366 = vunpack.c.l.b16 %v6070
  %v6367 = vunpack.c.h.b16 %v6070
  %v6368 = vunpack.c.l.b16 %v6071
  %v6369 = vunpack.c.h.b16 %v6071
  %v6370 = vunpack.c.l.b16 %v6072
  %v6371 = vunpack.c.h.b16 %v6072
  %v6372 = vunpack.c.l.b16 %v6073
  %v6373 = vunpack.c.h.b16 %v6073
  %v6374 = vunpack.c.l.b16 %v6074
  %v6375 = vunpack.c.h.b16 %v6074
  %v6376 = vunpack.c.l.b16 %v6075
  %v6377 = vunpack.c.h.b16 %v6075
  %v6378 = vunpack.c.l.b16 %v6076
  %v6379 = vunpack.c.h.b16 %v6076
  %v6380 = vunpack.c.l.b16 %v6077
  %v6381 = vunpack.c.h.b16 %v6077
  %v6382 = vunpack.c.l.b16 %v6078
  %v6383 = vunpack.c.h.b16 %v6078
  %v6384 = vunpack.c.l.b16 %v6079
  %v6385 = vunpack.c.h.b16 %v6079
  %v6386 = vunpack.c.l.b16 %v6080
  %v6387 = vunpack.c.h.b16 %v6080
  %v6388 = vunpack.c.l.b16 %v6081
  %v6389 = vunpack.c.h.b16 %v6081
  %v6390 = vunpack.c.l.b16 %v6082
  %v6391 = vunpack.c.h.b16 %v6082
  %v6392 = vunpack.c.l.b16 %v6083
  %v6393 = vunpack.c.h.b16 %v6083
  %v6394 = vunpack.c.l.b16 %v6084
  %v6395 = vunpack.c.h.b16 %v6084
  %v6396 = vunpack.c.l.b16 %v6085
  %v6397 = vunpack.c.h.b16 %v6085
  %v6398 = vunpack.c.l.b16 %v6086
  %v6399 = vunpack.c.h.b16 %v6086
  %v6400 = vunpack.c.l.b16 %v6087
  %v6401 = vunpack.c.h.b16 %v6087
  %v6402 = vunpack.c.l.b16 %v6088
  %v6403 = vunpack.c.h.b16 %v6088
  %v6404 = vunpack.c.l.b16 %v6089
  %v6405 = vunpack.c.h.b16 %v6089
  %v6406 = vunpack.c.l.b16 %v6090
  %v6407 = vunpack.c.h.b16 %v6090
  %v6408 = vunpack.c.l.b16 %v6091
  %v6409 = vunpack.c.h.b16 %v6091
  %v6410 = vunpack.c.l.b16 %v6092
  %v6411 = vunpack.c.h.b16 %v6092
  %v6412 = vunpack.c.l.b16 %v6093
  %v6413 = vunpack.c.h.b16 %v6093
  %v6414 = vunpack.c.l.b16 %v6094
  %v6415 = vunpack.c.h.b16 %v6094
  %v6416 = vunpack.c.l.b16 %v6095
  %v6417 = vunpack.c.h.b16 %v6095
  %v6418 = vunpack.c.l.b16 %v6096
  %v6419 = vunpack.c.h.b16 %v6096
  %v6420 = vunpack.c.l.b16 %v6097
  %v6421 = vunpack.c.h.b16 %v6097
  %v6422 = vunpack.c.l.b16 %v6098
  %v6423 = vunpack.c.h.b16 %v6098
  %v6424 = vunpack.c.l.b16 %v6099
  %v6425 = vunpack.c.h.b16 %v6099
  %v6426 = vunpack.c.l.b16 %v6100
  %v6427 = vunpack.c.h.b16 %v6100
  %v6428 = vunpack.c.l.b16 %v6101
  %v6429 = vunpack.c.h.b16 %v6101
  %v6430 = vunpack.c.l.b16 %v6102
  %v6431 = vunpack.c.h.b16 %v6102
  %v6432 = vunpack.c.l.b16 %v6103
  %v6433 = vunpack.c.h.b16 %v6103
  %v6434 = vunpack.c.l.b16 %v6104
  %v6435 = vunpack.c.h.b16 %v6104
  %v6436 = vunpack.c.l.b16 %v6105
  %v6437 = vunpack.c.h.b16 %v6105
  %v6438 = vunpack.c.l.b16 %v6106
  %v6439 = vunpack.c.h.b16 %v6106
  %v6440 = vunpack.c.l.b16 %v6107
  %v6441 = vunpack.c.h.b16 %v6107
  %v6442 = vunpack.c.l.b16 %v6108
  %v6443 = vunpack.c.h.b16 %v6108
  %v6444 = vunpack.c.l.b16 %v6109
  %v6445 = vunpack.c.h.b16 %v6109
  %v6446 = vunpack.c.l.b16 %v6110
  %v6447 = vunpack.c.h.b16 %v6110
  %v6448 = vunpack.c.l.b16 %v6111
  %v6449 = vunpack.c.h.b16 %v6111
  %v6450 = vunpack.c.l.b16 %v6112
  %v6451 = vunpack.c.h.b16 %v6112
  %v6452 = vunpack.c.l.b16 %v6113
  %v6453 = vunpack.c.h.b16 %v6113
  %v6454 = vunpack.c.l.b16 %v6114
  %v6455 = vunpack.c.h.b16 %v6114
  %v6456 = vunpack.c.l.b16 %v6115
  %v6457 = vunpack.c.h.b16 %v6115
  %v6458 = vunpack.c.l.b16 %v6116
  %v6459 = vunpack.c.h.b16 %v6116
  %v6460 = vunpack.c.l.b16 %v6117
  %v6461 = vunpack.c.h.b16 %v6117
  %v6462 = vunpack.c.l.b16 %v6118
  %v6463 = vunpack.c.h.b16 %v6118
  %v6464 = vunpack.c.l.b16 %v6119
  %v6465 = vunpack.c.h.b16 %v6119
  %v6466 = vunpack.c.l.b16 %v6120
  %v6467 = vunpack.c.h.b16 %v6120
  %v6468 = vunpack.c.l.b16 %v6121
  %v6469 = vunpack.c.h.b16 %v6121
  %v6470 = vunpack.c.l.b16 %v6122
  %v6471 = vunpack.c.h.b16 %v6122
  %v6472 = vunpack.c.l.b16 %v6123
  %v6473 = vunpack.c.h.b16 %v6123
  %v6474 = vunpack.c.l.b16 %v6124
  %v6475 = vunpack.c.h.b16 %v6124
  %v6476 = vunpack.c.l.b16 %v6125
  %v6477 = vunpack.c.h.b16 %v6125
  %v6478 = vunpack.c.l.b16 %v6126
  %v6479 = vunpack.c.h.b16 %v6126
  %v6480 = vunpack.c.l.b16 %v6127
  %v6481 = vunpack.c.h.b16 %v6127
  %v6482 = vunpack.c.l.b16 %v6128
  %v6483 = vunpack.c.h.b16 %v6128
  %v6484 = vunpack.c.l.b16 %v6129
  %v6485 = vunpack.c.h.b16 %v6129
  %v6486 = vunpack.c.l.b16 %v6130
  %v6487 = vunpack.c.h.b16 %v6130
  %v6488 = vunpack.c.l.b16 %v6131
  %v6489 = vunpack.c.h.b16 %v6131
  %v6490 = vunpack.c.l.b16 %v6132
  %v6491 = vunpack.c.h.b16 %v6132
  %v6492 = vunpack.c.l.b16 %v6133
  %v6493 = vunpack.c.h.b16 %v6133
  %v6494 = vunpack.c.l.b16 %v6134
  %v6495 = vunpack.c.h.b16 %v6134
  %v6496 = vunpack.c.l.b16 %v6135
  %v6497 = vunpack.c.h.b16 %v6135
  %v6498 = vunpack.c.l.b16 %v6136
  %v6499 = vunpack.c.h.b16 %v6136
  %v6500 = vunpack.c.l.b16 %v6137
  %v6501 = vunpack.c.h.b16 %v6137
  %v6502 = vunpack.c.l.b16 %v6138
  %v6503 = vunpack.c.h.b16 %v6138
  %v6504 = vunpack.c.l.b16 %v6139
  %v6505 = vunpack.c.h.b16 %v6139
  %v6506 = vunpack.c.l.b16 %v6140
  %v6507 = vunpack.c.h.b16 %v6140
  %v6508 = vunpack.c.l.b16 %v6141
  %v6509 = vunpack.c.h.b16 %v6141
  %v6510 = vunpack.c.l.b16 %v6142
  %v6511 = vunpack.c.h.b16 %v6142
  %v6512 = vunpack.c.l.b16 %v6143
  %v6513 = vunpack.c.h.b16 %v6143
  %v6514 = vunpack.c.l.b16 %v6144
  %v6515 = vunpack.c.h.b16 %v6144
  %v6516 = vunpack.c.l.b16 %v6145
  %v6517 = vunpack.c.h.b16 %v6145
  %v6518 = vunpack.c.l.b16 %v6146
  %v6519 = vunpack.c.h.b16 %v6146
  %v6520 = vpack.c.b16 %v6344, %v6328
  %v6521 = vpack.c.b16 %v6345, %v6329
  %v6522 = vpack.c.b16 %v6346, %v6330
  %v6523 = vpack.c.b16 %v6347, %v6331
  %v6524 = vpack.c.b16 %v6348, %v6332
  %v6525 = vpack.c.b16 %v6349, %v6333
  %v6526 = vpack.c.b16 %v6350, %v6334
  %v6527 = vpack.c.b16 %v6351, %v6335
  %v6528 = vpack.c.b16 %v6352, %v6336
  %v6529 = vpack.c.b16 %v6353, %v6337
  %v6530 = vpack.c.b16 %v6354, %v6338
  %v6531 = vpack.c.b16 %v6355, %v6339
  %v6532 = vpack.c.b16 %v6356, %v6340
  %v6533 = vpack.c.b16 %v6357, %v6341
  %v6534 = vpack.c.b16 %v6358, %v6342
  %v6535 = vpack.c.b16 %v6359, %v6343
  %v6536 = vpack.c.b16 %v6376, %v6360
  %v6537 = vpack.c.b16 %v6377, %v6361
  %v6538 = vpack.c.b16 %v6378, %v6362
  %v6539 = vpack.c.b16 %v6379, %v6363
  %v6540 = vpack.c.b16 %v6380, %v6364
  %v6541 = vpack.c.b16 %v6381, %v6365
  %v6542 = vpack.c.b16 %v6382, %v6366
  %v6543 = vpack.c.b16 %v6383, %v6367
  %v6544 = vpack.c.b16 %v6384, %v6368
  %v6545 = vpack.c.b16 %v6385, %v6369
  %v6546 = vpack.c.b16 %v6386, %v6370
  %v6547 = vpack.c.b16 %v6387, %v6371
  %v6548 = vpack.c.b16 %v6388, %v6372
  %v6549 = vpack.c.b16 %v6389, %v6373
  %v6550 = vpack.c.b16 %v6390, %v6374
  %v6551 = vpack.c.b16 %v6391, %v6375
  %v6552 = vpack.c.b16 %v6408, %v6392
  %v6553 = vpack.c.b16 %v6409, %v6393
  %v6554 = vpack.c.b16 %v6410, %v6394
  %v6555 = vpack.c.b16 %v6411, %v6395
  %v6556 = vpack.c.b16 %v6412, %v6396
  %v6557 = vpack.c.b16 %v6413, %v6397
  %v6558 = vpack.c.b16 %v6414, %v6398
  %v6559 = vpack.c.b16 %v6415, %v6399
  %v6560 = vpack.c.b16 %v6416, %v6400
  %v6561 = vpack.c.b16 %v6417, %v6401
  %v6562 = vpack.c.b16 %v6418, %v6402
  %v6563 = vpack.c.b16 %v6419, %v6403
  %v6564 = vpack.c.b16 %v6420, %v6404
  %v6565 = vpack.c.b16 %v6421, %v6405
  %v6566 = vpack.c.b16 %v6422, %v6406
  %v6567 = vpack.c.b16 %v6423, %v6407
  %v6568 = vpack.c.b16 %v6440, %v6424
  %v6569 = vpack.c.b16 %v6441, %v6425
  %v6570 = vpack.c.b16 %v6442, %v6426
  %v6571 = vpack.c.b16 %v6443, %v6427
  %v6572 = vpack.c.b16 %v6444, %v6428
  %v6573 = vpack.c.b16 %v6445, %v6429
  %v6574 = vpack.c.b16 %v6446, %v6430
  %v6575 = vpack.c.b16 %v6447, %v6431
  %v6576 = vpack.c.b16 %v6448, %v6432
  %v6577 = vpack.c.b16 %v6449, %v6433
  %v6578 = vpack.c.b16 %v6450, %v6434
  %v6579 = vpack.c.b16 %v6451, %v6435
  %v6580 = vpack.c.b16 %v6452, %v6436
  %v6581 = vpack.c.b16 %v6453, %v6437
  %v6582 = vpack.c.b16 %v6454, %v6438
  %v6583 = vpack.c.b16 %v6455, %v6439
  %v6584 = vpack.c.b16 %v6472, %v6456
  %v6585 = vpack.c.b16 %v6473, %v6457
  %v6586 = vpack.c.b16 %v6474, %v6458
  %v6587 = vpack.c.b16 %v6475, %v6459
  %v6588 = vpack.c.b16 %v6476, %v6460
  %v6589 = vpack.c.b16 %v6477, %v6461
  %v6590 = vpack.c.b16 %v6478, %v6462
  %v6591 = vpack.c.b16 %v6479, %v6463
  %v6592 = vpack.c.b16 %v6480, %v6464
  %v6593 = vpack.c.b16 %v6481, %v6465
  %v6594 = vpack.c.b16 %v6482, %v6466
  %v6595 = vpack.c.b16 %v6483, %v6467
  %v6596 = vpack.c.b16 %v6484, %v6468
  %v6597 = vpack.c.b16 %v6485, %v6469
  %v6598 = vpack.c.b16 %v6486, %v6470
  %v6599 = vpack.c.b16 %v6487, %v6471
  %v6600 = vpack.c.b16 %v6504, %v6488
  %v6601 = vpack.c.b16 %v6505, %v6489
  %v6602 = vpack.c.b16 %v6506, %v6490
  %v6603 = vpack.c.b16 %v6507, %v6491
  %v6604 = vpack.c.b16 %v6508, %v6492
  %v6605 = vpack.c.b16 %v6509, %v6493
  %v6606 = vpack.c.b16 %v6510, %v6494
  %v6607 = vpack.c.b16 %v6511, %v6495
  %v6608 = vpack.c.b16 %v6512, %v6496
  %v6609 = vpack.c.b16 %v6513, %v6497
  %v6610 = vpack.c.b16 %v6514, %v6498
  %v6611 = vpack.c.b16 %v6515, %v6499
  %v6612 = vpack.c.b16 %v6516, %v6500
  %v6613 = vpack.c.b16 %v6517, %v6501
  %v6614 = vpack.c.b16 %v6518, %v6502
  %v6615 = vpack.c.b16 %v6519, %v6503
  %v6713 = vsel %vm197, %v6048, 0
  %v6716 = vsel %vm197, %v6049, 0
  %6718 = vmatprep.subr.bf16.mxu0 %v6521
  %6719 = vmatpush1.bf16.msra.mxu0 %v6520
  %6720 = vmatprep.subr.bf16.mxu0 %v6537
  %6721 = vmatpush1.bf16.msra.mxu0 %v6536
  %6722 = vmatprep.subr.bf16.mxu0 %v6553
  %6723 = vmatpush1.bf16.msra.mxu0 %v6552
  %6724 = vmatprep.subr.bf16.mxu0 %v6569
  %6725 = vmatpush1.bf16.msra.mxu0 %v6568
  %6726 = vmatprep.subr.bf16.mxu0 %v6585
  %6727 = vmatpush1.bf16.msra.mxu0 %v6584
  %6728 = vmatprep.subr.bf16.mxu0 %v6601
  %6729 = vmatpush1.bf16.msra.mxu0 %v6600
  %6730 = vmatprep.subr.bf16.mxu0 0
  %6731 = vmatpush1.bf16.msra.mxu0 0
  %6732 = vmatprep.subr.bf16.mxu0 0
  %6733 = vmatpush1.bf16.msra.mxu0 0
  %6734 = vmatprep.subr.bf16.mxu0 0
  %6735 = vmatpush1.bf16.msra.mxu0 0
  %6736 = vmatprep.subr.bf16.mxu0 0
  %6737 = vmatpush1.bf16.msra.mxu0 0
  %6738 = vmatprep.subr.bf16.mxu0 0
  %6739 = vmatpush1.bf16.msra.mxu0 0
  %6740 = vmatprep.subr.bf16.mxu0 0
  %6741 = vmatpush1.bf16.msra.mxu0 0
  %6742 = vmatprep.subr.bf16.mxu0 0
  %6743 = vmatpush1.bf16.msra.mxu0 0
  %6744 = vmatprep.subr.bf16.mxu0 0
  %6745 = vmatpush1.bf16.msra.mxu0 0
  %6746 = vmatprep.subr.bf16.mxu0 0
  %6747 = vmatpush1.bf16.msra.mxu0 0
  %6748 = vmatprep.subr.bf16.mxu0 0
  %6749 = vmatpush1.bf16.msra.mxu0 0
  %6750 = vmatprep.mubr.f32.mxu0 0.0
  %6751 = vmatmul.mubr.f32.gmra.mrb[0].mxu0 %v6713
  %v6752 = vpop.f32.mrb[0].mxu0
  %v6753 = vadd.f32 %v6155, %v6752
  %v6754 = vpop.f32.mrb[0].mxu0
  %v6755 = vadd.f32 %v6159, %v6754
  %6756 = vmatprep.mubr.f32.mxu0 0.0
  %6757 = vmatmul.mubr.f32.gmra.mrb[0].mxu0 %v6716
  %v6758 = vpop.f32.mrb[0].mxu0
  %v6759 = vadd.f32 %v6155, %v6758
  %v6760 = vpop.f32.mrb[0].mxu0
  %v6761 = vadd.f32 %v6159, %v6760
  %6762 = vdwg.mxu0
  %6763 = vmatprep.subr.bf16.mxu0 %v6523
  %6764 = vmatpush1.bf16.msra.mxu0 %v6522
  %6765 = vmatprep.subr.bf16.mxu0 %v6539
  %6766 = vmatpush1.bf16.msra.mxu0 %v6538
  %6767 = vmatprep.subr.bf16.mxu0 %v6555
  %6768 = vmatpush1.bf16.msra.mxu0 %v6554
  %6769 = vmatprep.subr.bf16.mxu0 %v6571
  %6770 = vmatpush1.bf16.msra.mxu0 %v6570
  %6771 = vmatprep.subr.bf16.mxu0 %v6587
  %6772 = vmatpush1.bf16.msra.mxu0 %v6586
  %6773 = vmatprep.subr.bf16.mxu0 %v6603
  %6774 = vmatpush1.bf16.msra.mxu0 %v6602
  %6775 = vmatprep.subr.bf16.mxu0 0
  %6776 = vmatpush1.bf16.msra.mxu0 0
  %6777 = vmatprep.subr.bf16.mxu0 0
  %6778 = vmatpush1.bf16.msra.mxu0 0
  %6779 = vmatprep.subr.bf16.mxu0 0
  %6780 = vmatpush1.bf16.msra.mxu0 0
  %6781 = vmatprep.subr.bf16.mxu0 0
  %6782 = vmatpush1.bf16.msra.mxu0 0
  %6783 = vmatprep.subr.bf16.mxu0 0
  %6784 = vmatpush1.bf16.msra.mxu0 0
  %6785 = vmatprep.subr.bf16.mxu0 0
  %6786 = vmatpush1.bf16.msra.mxu0 0
  %6787 = vmatprep.subr.bf16.mxu0 0
  %6788 = vmatpush1.bf16.msra.mxu0 0
  %6789 = vmatprep.subr.bf16.mxu0 0
  %6790 = vmatpush1.bf16.msra.mxu0 0
  %6791 = vmatprep.subr.bf16.mxu0 0
  %6792 = vmatpush1.bf16.msra.mxu0 0
  %6793 = vmatprep.subr.bf16.mxu0 0
  %6794 = vmatpush1.bf16.msra.mxu0 0
  %6795 = vmatprep.mubr.f32.mxu0 0.0
  %6796 = vmatmul.mubr.f32.gmra.mrb[0].mxu0 %v6713
  %v6797 = vpop.f32.mrb[0].mxu0
  %v6798 = vadd.f32 %v6163, %v6797
  %v6799 = vpop.f32.mrb[0].mxu0
  %v6800 = vadd.f32 %v6167, %v6799
  %6801 = vmatprep.mubr.f32.mxu0 0.0
  %6802 = vmatmul.mubr.f32.gmra.mrb[0].mxu0 %v6716
  %v6803 = vpop.f32.mrb[0].mxu0
  %v6804 = vadd.f32 %v6163, %v6803
  %v6805 = vpop.f32.mrb[0].mxu0
  %v6806 = vadd.f32 %v6167, %v6805
  %6807 = vdwg.mxu0
  %6808 = vmatprep.subr.bf16.mxu0 %v6525
  %6809 = vmatpush1.bf16.msra.mxu0 %v6524
  %6810 = vmatprep.subr.bf16.mxu0 %v6541
  %6811 = vmatpush1.bf16.msra.mxu0 %v6540
  %6812 = vmatprep.subr.bf16.mxu0 %v6557
  %6813 = vmatpush1.bf16.msra.mxu0 %v6556
  %6814 = vmatprep.subr.bf16.mxu0 %v6573
  %6815 = vmatpush1.bf16.msra.mxu0 %v6572
  %6816 = vmatprep.subr.bf16.mxu0 %v6589
  %6817 = vmatpush1.bf16.msra.mxu0 %v6588
  %6818 = vmatprep.subr.bf16.mxu0 %v6605
  %6819 = vmatpush1.bf16.msra.mxu0 %v6604
  %6820 = vmatprep.subr.bf16.mxu0 0
  %6821 = vmatpush1.bf16.msra.mxu0 0
  %6822 = vmatprep.subr.bf16.mxu0 0
  %6823 = vmatpush1.bf16.msra.mxu0 0
  %6824 = vmatprep.subr.bf16.mxu0 0
  %6825 = vmatpush1.bf16.msra.mxu0 0
  %6826 = vmatprep.subr.bf16.mxu0 0
  %6827 = vmatpush1.bf16.msra.mxu0 0
  %6828 = vmatprep.subr.bf16.mxu0 0
  %6829 = vmatpush1.bf16.msra.mxu0 0
  %6830 = vmatprep.subr.bf16.mxu0 0
  %6831 = vmatpush1.bf16.msra.mxu0 0
  %6832 = vmatprep.subr.bf16.mxu0 0
  %6833 = vmatpush1.bf16.msra.mxu0 0
  %6834 = vmatprep.subr.bf16.mxu0 0
  %6835 = vmatpush1.bf16.msra.mxu0 0
  %6836 = vmatprep.subr.bf16.mxu0 0
  %6837 = vmatpush1.bf16.msra.mxu0 0
  %6838 = vmatprep.subr.bf16.mxu0 0
  %6839 = vmatpush1.bf16.msra.mxu0 0
  %6840 = vmatprep.mubr.f32.mxu0 0.0
  %6841 = vmatmul.mubr.f32.gmra.mrb[0].mxu0 %v6713
  %v6842 = vpop.f32.mrb[0].mxu0
  %v6843 = vadd.f32 %v6171, %v6842
  %v6844 = vpop.f32.mrb[0].mxu0
  %v6845 = vadd.f32 %v6175, %v6844
  %6846 = vmatprep.mubr.f32.mxu0 0.0
  %6847 = vmatmul.mubr.f32.gmra.mrb[0].mxu0 %v6716
  %v6848 = vpop.f32.mrb[0].mxu0
  %v6849 = vadd.f32 %v6171, %v6848
  %v6850 = vpop.f32.mrb[0].mxu0
  %v6851 = vadd.f32 %v6175, %v6850
  %6852 = vdwg.mxu0
  %6853 = vmatprep.subr.bf16.mxu0 %v6527
  %6854 = vmatpush1.bf16.msra.mxu0 %v6526
  %6855 = vmatprep.subr.bf16.mxu0 %v6543
  %6856 = vmatpush1.bf16.msra.mxu0 %v6542
  %6857 = vmatprep.subr.bf16.mxu0 %v6559
  %6858 = vmatpush1.bf16.msra.mxu0 %v6558
  %6859 = vmatprep.subr.bf16.mxu0 %v6575
  %6860 = vmatpush1.bf16.msra.mxu0 %v6574
  %6861 = vmatprep.subr.bf16.mxu0 %v6591
  %6862 = vmatpush1.bf16.msra.mxu0 %v6590
  %6863 = vmatprep.subr.bf16.mxu0 %v6607
  %6864 = vmatpush1.bf16.msra.mxu0 %v6606
  %6865 = vmatprep.subr.bf16.mxu0 0
  %6866 = vmatpush1.bf16.msra.mxu0 0
  %6867 = vmatprep.subr.bf16.mxu0 0
  %6868 = vmatpush1.bf16.msra.mxu0 0
  %6869 = vmatprep.subr.bf16.mxu0 0
  %6870 = vmatpush1.bf16.msra.mxu0 0
  %6871 = vmatprep.subr.bf16.mxu0 0
  %6872 = vmatpush1.bf16.msra.mxu0 0
  %6873 = vmatprep.subr.bf16.mxu0 0
  %6874 = vmatpush1.bf16.msra.mxu0 0
  %6875 = vmatprep.subr.bf16.mxu0 0
  %6876 = vmatpush1.bf16.msra.mxu0 0
  %6877 = vmatprep.subr.bf16.mxu0 0
  %6878 = vmatpush1.bf16.msra.mxu0 0
  %6879 = vmatprep.subr.bf16.mxu0 0
  %6880 = vmatpush1.bf16.msra.mxu0 0
  %6881 = vmatprep.subr.bf16.mxu0 0
  %6882 = vmatpush1.bf16.msra.mxu0 0
  %6883 = vmatprep.subr.bf16.mxu0 0
  %6884 = vmatpush1.bf16.msra.mxu0 0
  %6885 = vmatprep.mubr.f32.mxu0 0.0
  %6886 = vmatmul.mubr.f32.gmra.mrb[0].mxu0 %v6713
  %v6887 = vpop.f32.mrb[0].mxu0
  %v6888 = vadd.f32 %v6179, %v6887
  %v6889 = vpop.f32.mrb[0].mxu0
  %v6890 = vadd.f32 %v6183, %v6889
  %6891 = vmatprep.mubr.f32.mxu0 0.0
  %6892 = vmatmul.mubr.f32.gmra.mrb[0].mxu0 %v6716
  %v6893 = vpop.f32.mrb[0].mxu0
  %v6894 = vadd.f32 %v6179, %v6893
  %v6895 = vpop.f32.mrb[0].mxu0
  %v6896 = vadd.f32 %v6183, %v6895
  %6897 = vdwg.mxu0
  %6898 = vmatprep.subr.bf16.mxu0 %v6529
  %6899 = vmatpush1.bf16.msra.mxu0 %v6528
  %6900 = vmatprep.subr.bf16.mxu0 %v6545
  %6901 = vmatpush1.bf16.msra.mxu0 %v6544
  %6902 = vmatprep.subr.bf16.mxu0 %v6561
  %6903 = vmatpush1.bf16.msra.mxu0 %v6560
  %6904 = vmatprep.subr.bf16.mxu0 %v6577
  %6905 = vmatpush1.bf16.msra.mxu0 %v6576
  %6906 = vmatprep.subr.bf16.mxu0 %v6593
  %6907 = vmatpush1.bf16.msra.mxu0 %v6592
  %6908 = vmatprep.subr.bf16.mxu0 %v6609
  %6909 = vmatpush1.bf16.msra.mxu0 %v6608
  %6910 = vmatprep.subr.bf16.mxu0 0
  %6911 = vmatpush1.bf16.msra.mxu0 0
  %6912 = vmatprep.subr.bf16.mxu0 0
  %6913 = vmatpush1.bf16.msra.mxu0 0
  %6914 = vmatprep.subr.bf16.mxu0 0
  %6915 = vmatpush1.bf16.msra.mxu0 0
  %6916 = vmatprep.subr.bf16.mxu0 0
  %6917 = vmatpush1.bf16.msra.mxu0 0
  %6918 = vmatprep.subr.bf16.mxu0 0
  %6919 = vmatpush1.bf16.msra.mxu0 0
  %6920 = vmatprep.subr.bf16.mxu0 0
  %6921 = vmatpush1.bf16.msra.mxu0 0
  %6922 = vmatprep.subr.bf16.mxu0 0
  %6923 = vmatpush1.bf16.msra.mxu0 0
  %6924 = vmatprep.subr.bf16.mxu0 0
  %6925 = vmatpush1.bf16.msra.mxu0 0
  %6926 = vmatprep.subr.bf16.mxu0 0
  %6927 = vmatpush1.bf16.msra.mxu0 0
  %6928 = vmatprep.subr.bf16.mxu0 0
  %6929 = vmatpush1.bf16.msra.mxu0 0
  %6930 = vmatprep.mubr.f32.mxu0 0.0
  %6931 = vmatmul.mubr.f32.gmra.mrb[0].mxu0 %v6713
  %v6932 = vpop.f32.mrb[0].mxu0
  %v6933 = vadd.f32 %v6187, %v6932
  %v6934 = vpop.f32.mrb[0].mxu0
  %v6935 = vadd.f32 %v6191, %v6934
  %6936 = vmatprep.mubr.f32.mxu0 0.0
  %6937 = vmatmul.mubr.f32.gmra.mrb[0].mxu0 %v6716
  %v6938 = vpop.f32.mrb[0].mxu0
  %v6939 = vadd.f32 %v6187, %v6938
  %v6940 = vpop.f32.mrb[0].mxu0
  %v6941 = vadd.f32 %v6191, %v6940
  %6942 = vdwg.mxu0
  %6943 = vmatprep.subr.bf16.mxu0 %v6531
  %6944 = vmatpush1.bf16.msra.mxu0 %v6530
  %6945 = vmatprep.subr.bf16.mxu0 %v6547
  %6946 = vmatpush1.bf16.msra.mxu0 %v6546
  %6947 = vmatprep.subr.bf16.mxu0 %v6563
  %6948 = vmatpush1.bf16.msra.mxu0 %v6562
  %6949 = vmatprep.subr.bf16.mxu0 %v6579
  %6950 = vmatpush1.bf16.msra.mxu0 %v6578
  %6951 = vmatprep.subr.bf16.mxu0 %v6595
  %6952 = vmatpush1.bf16.msra.mxu0 %v6594
  %6953 = vmatprep.subr.bf16.mxu0 %v6611
  %6954 = vmatpush1.bf16.msra.mxu0 %v6610
  %6955 = vmatprep.subr.bf16.mxu0 0
  %6956 = vmatpush1.bf16.msra.mxu0 0
  %6957 = vmatprep.subr.bf16.mxu0 0
  %6958 = vmatpush1.bf16.msra.mxu0 0
  %6959 = vmatprep.subr.bf16.mxu0 0
  %6960 = vmatpush1.bf16.msra.mxu0 0
  %6961 = vmatprep.subr.bf16.mxu0 0
  %6962 = vmatpush1.bf16.msra.mxu0 0
  %6963 = vmatprep.subr.bf16.mxu0 0
  %6964 = vmatpush1.bf16.msra.mxu0 0
  %6965 = vmatprep.subr.bf16.mxu0 0
  %6966 = vmatpush1.bf16.msra.mxu0 0
  %6967 = vmatprep.subr.bf16.mxu0 0
  %6968 = vmatpush1.bf16.msra.mxu0 0
  %6969 = vmatprep.subr.bf16.mxu0 0
  %6970 = vmatpush1.bf16.msra.mxu0 0
  %6971 = vmatprep.subr.bf16.mxu0 0
  %6972 = vmatpush1.bf16.msra.mxu0 0
  %6973 = vmatprep.subr.bf16.mxu0 0
  %6974 = vmatpush1.bf16.msra.mxu0 0
  %6975 = vmatprep.mubr.f32.mxu0 0.0
  %6976 = vmatmul.mubr.f32.gmra.mrb[0].mxu0 %v6713
  %v6977 = vpop.f32.mrb[0].mxu0
  %v6978 = vadd.f32 %v6195, %v6977
  %v6979 = vpop.f32.mrb[0].mxu0
  %v6980 = vadd.f32 %v6199, %v6979
  %6981 = vmatprep.mubr.f32.mxu0 0.0
  %6982 = vmatmul.mubr.f32.gmra.mrb[0].mxu0 %v6716
  %v6983 = vpop.f32.mrb[0].mxu0
  %v6984 = vadd.f32 %v6195, %v6983
  %v6985 = vpop.f32.mrb[0].mxu0
  %v6986 = vadd.f32 %v6199, %v6985
  %6987 = vdwg.mxu0
  %6988 = vmatprep.subr.bf16.mxu0 %v6533
  %6989 = vmatpush1.bf16.msra.mxu0 %v6532
  %6990 = vmatprep.subr.bf16.mxu0 %v6549
  %6991 = vmatpush1.bf16.msra.mxu0 %v6548
  %6992 = vmatprep.subr.bf16.mxu0 %v6565
  %6993 = vmatpush1.bf16.msra.mxu0 %v6564
  %6994 = vmatprep.subr.bf16.mxu0 %v6581
  %6995 = vmatpush1.bf16.msra.mxu0 %v6580
  %6996 = vmatprep.subr.bf16.mxu0 %v6597
  %6997 = vmatpush1.bf16.msra.mxu0 %v6596
  %6998 = vmatprep.subr.bf16.mxu0 %v6613
  %6999 = vmatpush1.bf16.msra.mxu0 %v6612
  %7000 = vmatprep.subr.bf16.mxu0 0
  %7001 = vmatpush1.bf16.msra.mxu0 0
  %7002 = vmatprep.subr.bf16.mxu0 0
  %7003 = vmatpush1.bf16.msra.mxu0 0
  %7004 = vmatprep.subr.bf16.mxu0 0
  %7005 = vmatpush1.bf16.msra.mxu0 0
  %7006 = vmatprep.subr.bf16.mxu0 0
  %7007 = vmatpush1.bf16.msra.mxu0 0
  %7008 = vmatprep.subr.bf16.mxu0 0
  %7009 = vmatpush1.bf16.msra.mxu0 0
  %7010 = vmatprep.subr.bf16.mxu0 0
  %7011 = vmatpush1.bf16.msra.mxu0 0
  %7012 = vmatprep.subr.bf16.mxu0 0
  %7013 = vmatpush1.bf16.msra.mxu0 0
  %7014 = vmatprep.subr.bf16.mxu0 0
  %7015 = vmatpush1.bf16.msra.mxu0 0
  %7016 = vmatprep.subr.bf16.mxu0 0
  %7017 = vmatpush1.bf16.msra.mxu0 0
  %7018 = vmatprep.subr.bf16.mxu0 0
  %7019 = vmatpush1.bf16.msra.mxu0 0
  %7020 = vmatprep.mubr.f32.mxu0 0.0
  %7021 = vmatmul.mubr.f32.gmra.mrb[0].mxu0 %v6713
  %v7022 = vpop.f32.mrb[0].mxu0
  %v7023 = vadd.f32 %v6203, %v7022
  %v7024 = vpop.f32.mrb[0].mxu0
  %v7025 = vadd.f32 %v6207, %v7024
  %7026 = vmatprep.mubr.f32.mxu0 0.0
  %7027 = vmatmul.mubr.f32.gmra.mrb[0].mxu0 %v6716
  %v7028 = vpop.f32.mrb[0].mxu0
  %v7029 = vadd.f32 %v6203, %v7028
  %v7030 = vpop.f32.mrb[0].mxu0
  %v7031 = vadd.f32 %v6207, %v7030
  %7032 = vdwg.mxu0
  %7033 = vmatprep.subr.bf16.mxu0 %v6535
  %7034 = vmatpush1.bf16.msra.mxu0 %v6534
  %7035 = vmatprep.subr.bf16.mxu0 %v6551
  %7036 = vmatpush1.bf16.msra.mxu0 %v6550
  %7037 = vmatprep.subr.bf16.mxu0 %v6567
  %7038 = vmatpush1.bf16.msra.mxu0 %v6566
  %7039 = vmatprep.subr.bf16.mxu0 %v6583
  %7040 = vmatpush1.bf16.msra.mxu0 %v6582
  %7041 = vmatprep.subr.bf16.mxu0 %v6599
  %7042 = vmatpush1.bf16.msra.mxu0 %v6598
  %7043 = vmatprep.subr.bf16.mxu0 %v6615
  %7044 = vmatpush1.bf16.msra.mxu0 %v6614
  %7045 = vmatprep.subr.bf16.mxu0 0
  %7046 = vmatpush1.bf16.msra.mxu0 0
  %7047 = vmatprep.subr.bf16.mxu0 0
  %7048 = vmatpush1.bf16.msra.mxu0 0
  %7049 = vmatprep.subr.bf16.mxu0 0
  %7050 = vmatpush1.bf16.msra.mxu0 0
  %7051 = vmatprep.subr.bf16.mxu0 0
  %7052 = vmatpush1.bf16.msra.mxu0 0
  %7053 = vmatprep.subr.bf16.mxu0 0
  %7054 = vmatpush1.bf16.msra.mxu0 0
  %7055 = vmatprep.subr.bf16.mxu0 0
  %7056 = vmatpush1.bf16.msra.mxu0 0
  %7057 = vmatprep.subr.bf16.mxu0 0
  %7058 = vmatpush1.bf16.msra.mxu0 0
  %7059 = vmatprep.subr.bf16.mxu0 0
  %7060 = vmatpush1.bf16.msra.mxu0 0
  %7061 = vmatprep.subr.bf16.mxu0 0
  %7062 = vmatpush1.bf16.msra.mxu0 0
  %7063 = vmatprep.subr.bf16.mxu0 0
  %7064 = vmatpush1.bf16.msra.mxu0 0
  %7065 = vmatprep.mubr.f32.mxu0 0.0
  %7066 = vmatmul.mubr.f32.gmra.mrb[0].mxu0 %v6713
  %v7067 = vpop.f32.mrb[0].mxu0
  %v7068 = vadd.f32 %v6211, %v7067
  %v7069 = vpop.f32.mrb[0].mxu0
  %v7070 = vadd.f32 %v6215, %v7069
  %7071 = vmatprep.mubr.f32.mxu0 0.0
  %7072 = vmatmul.mubr.f32.gmra.mrb[0].mxu0 %v6716
  %v7073 = vpop.f32.mrb[0].mxu0
  %v7074 = vadd.f32 %v6211, %v7073
  %v7075 = vpop.f32.mrb[0].mxu0
  %v7076 = vadd.f32 %v6215, %v7075
  %7077 = vdwg.mxu0
  %v7078 = vmax.f32 %v6753, 0.0
  %v7079 = vmax.f32 %v6755, 0.0
  %v7080 = vmax.f32 %v6798, 0.0
  %v7081 = vmax.f32 %v6800, 0.0
  %v7082 = vmax.f32 %v6843, 0.0
  %v7083 = vmax.f32 %v6845, 0.0
  %v7084 = vmax.f32 %v6888, 0.0
  %v7085 = vmax.f32 %v6890, 0.0
  %v7086 = vmax.f32 %v6933, 0.0
  %v7087 = vmax.f32 %v6935, 0.0
  %v7088 = vmax.f32 %v6978, 0.0
  %v7089 = vmax.f32 %v6980, 0.0
  %v7090 = vmax.f32 %v7023, 0.0
  %v7091 = vmax.f32 %v7025, 0.0
  %v7092 = vmax.f32 %v7068, 0.0
  %v7093 = vmax.f32 %v7070, 0.0
  %v7094 = vmax.f32 %v6759, 0.0
  %v7095 = vmax.f32 %v6761, 0.0
  %v7096 = vmax.f32 %v6804, 0.0
  %v7097 = vmax.f32 %v6806, 0.0
  %v7098 = vmax.f32 %v6849, 0.0
  %v7099 = vmax.f32 %v6851, 0.0
  %v7100 = vmax.f32 %v6894, 0.0
  %v7101 = vmax.f32 %v6896, 0.0
  %v7102 = vmax.f32 %v6939, 0.0
  %v7103 = vmax.f32 %v6941, 0.0
  %v7104 = vmax.f32 %v6984, 0.0
  %v7105 = vmax.f32 %v6986, 0.0
  %v7106 = vmax.f32 %v7029, 0.0
  %v7107 = vmax.f32 %v7031, 0.0
  %v7108 = vmax.f32 %v7074, 0.0
  %v7109 = vmax.f32 %v7076, 0.0
  %s7110 = scalar_lea.vmem %s9, 1024
  %v7111 = vld [vmem:[%s7110] sm:$0xf]
  %v7112 = vld [vmem:[%s7110 + $0x4] sm:$0xf]
  %v7113 = vld [vmem:[%s7110 + $0x8] sm:$0xf]
  %v7114 = vld [vmem:[%s7110 + $0xc] sm:$0xf]
  %v7115 = vld [vmem:[%s7110 + $0x10] sm:$0xf]
  %v7116 = vld [vmem:[%s7110 + $0x14] sm:$0xf]
  %v7117 = vld [vmem:[%s7110 + $0x18] sm:$0xf]
  %v7118 = vld [vmem:[%s7110 + $0x1c] sm:$0xf]
  %v7119 = vld [vmem:[%s7110 + $0x20] sm:$0xf]
  %v7120 = vld [vmem:[%s7110 + $0x24] sm:$0xf]
  %v7121 = vld [vmem:[%s7110 + $0x28] sm:$0xf]
  %v7122 = vld [vmem:[%s7110 + $0x2c] sm:$0xf]
  %v7123 = vld [vmem:[%s7110 + $0x30] sm:$0xf]
  %v7124 = vld [vmem:[%s7110 + $0x34] sm:$0xf]
  %v7125 = vld [vmem:[%s7110 + $0x38] sm:$0xf]
  %v7126 = vld [vmem:[%s7110 + $0x3c] sm:$0xf]
  %v7127 = vld [vmem:[%s7110 + $0x40] sm:$0xf]
  %v7128 = vld [vmem:[%s7110 + $0x44] sm:$0xf]
  %v7129 = vld [vmem:[%s7110 + $0x48] sm:$0xf]
  %v7130 = vld [vmem:[%s7110 + $0x4c] sm:$0xf]
  %v7131 = vld [vmem:[%s7110 + $0x50] sm:$0xf]
  %v7132 = vld [vmem:[%s7110 + $0x54] sm:$0xf]
  %v7133 = vld [vmem:[%s7110 + $0x58] sm:$0xf]
  %v7134 = vld [vmem:[%s7110 + $0x5c] sm:$0xf]
  %v7135 = vld [vmem:[%s7110 + $0x60] sm:$0xf]
  %v7136 = vld [vmem:[%s7110 + $0x64] sm:$0xf]
  %v7137 = vld [vmem:[%s7110 + $0x68] sm:$0xf]
  %v7138 = vld [vmem:[%s7110 + $0x6c] sm:$0xf]
  %v7139 = vld [vmem:[%s7110 + $0x70] sm:$0xf]
  %v7140 = vld [vmem:[%s7110 + $0x74] sm:$0xf]
  %v7141 = vld [vmem:[%s7110 + $0x78] sm:$0xf]
  %v7142 = vld [vmem:[%s7110 + $0x7c] sm:$0xf]
  %v7143 = vld [vmem:[%s7110 + $0x80] sm:$0xf]
  %v7144 = vld [vmem:[%s7110 + $0x84] sm:$0xf]
  %v7145 = vld [vmem:[%s7110 + $0x88] sm:$0xf]
  %v7146 = vld [vmem:[%s7110 + $0x8c] sm:$0xf]
  %v7147 = vld [vmem:[%s7110 + $0x90] sm:$0xf]
  %v7148 = vld [vmem:[%s7110 + $0x94] sm:$0xf]
  %v7149 = vld [vmem:[%s7110 + $0x98] sm:$0xf]
  %v7150 = vld [vmem:[%s7110 + $0x9c] sm:$0xf]
  %v7151 = vld [vmem:[%s7110 + $0xa0] sm:$0xf]
  %v7152 = vld [vmem:[%s7110 + $0xa4] sm:$0xf]
  %v7153 = vld [vmem:[%s7110 + $0xa8] sm:$0xf]
  %v7154 = vld [vmem:[%s7110 + $0xac] sm:$0xf]
  %v7155 = vld [vmem:[%s7110 + $0xb0] sm:$0xf]
  %v7156 = vld [vmem:[%s7110 + $0xb4] sm:$0xf]
  %v7157 = vld [vmem:[%s7110 + $0xb8] sm:$0xf]
  %v7158 = vld [vmem:[%s7110 + $0xbc] sm:$0xf]
  %v7159 = vld [vmem:[%s7110 + $0xc0] sm:$0xf]
  %v7160 = vld [vmem:[%s7110 + $0xc4] sm:$0xf]
  %v7161 = vld [vmem:[%s7110 + $0xc8] sm:$0xf]
  %v7162 = vld [vmem:[%s7110 + $0xcc] sm:$0xf]
  %v7163 = vld [vmem:[%s7110 + $0xd0] sm:$0xf]
  %v7164 = vld [vmem:[%s7110 + $0xd4] sm:$0xf]
  %v7165 = vld [vmem:[%s7110 + $0xd8] sm:$0xf]
  %v7166 = vld [vmem:[%s7110 + $0xdc] sm:$0xf]
  %v7167 = vld [vmem:[%s7110 + $0xe0] sm:$0xf]
  %v7168 = vld [vmem:[%s7110 + $0xe4] sm:$0xf]
  %v7169 = vld [vmem:[%s7110 + $0xe8] sm:$0xf]
  %v7170 = vld [vmem:[%s7110 + $0xec] sm:$0xf]
  %v7171 = vld [vmem:[%s7110 + $0xf0] sm:$0xf]
  %v7172 = vld [vmem:[%s7110 + $0xf4] sm:$0xf]
  %v7173 = vld [vmem:[%s7110 + $0xf8] sm:$0xf]
  %v7174 = vld [vmem:[%s7110 + $0xfc] sm:$0xf]
  %v7175 = vld [vmem:[%s7110 + $0x100] sm:$0xf]
  %v7176 = vld [vmem:[%s7110 + $0x104] sm:$0xf]
  %v7177 = vld [vmem:[%s7110 + $0x108] sm:$0xf]
  %v7178 = vld [vmem:[%s7110 + $0x10c] sm:$0xf]
  %v7179 = vld [vmem:[%s7110 + $0x110] sm:$0xf]
  %v7180 = vld [vmem:[%s7110 + $0x114] sm:$0xf]
  %v7181 = vld [vmem:[%s7110 + $0x118] sm:$0xf]
  %v7182 = vld [vmem:[%s7110 + $0x11c] sm:$0xf]
  %v7183 = vld [vmem:[%s7110 + $0x120] sm:$0xf]
  %v7184 = vld [vmem:[%s7110 + $0x124] sm:$0xf]
  %v7185 = vld [vmem:[%s7110 + $0x128] sm:$0xf]
  %v7186 = vld [vmem:[%s7110 + $0x12c] sm:$0xf]
  %v7187 = vld [vmem:[%s7110 + $0x130] sm:$0xf]
  %v7188 = vld [vmem:[%s7110 + $0x134] sm:$0xf]
  %v7189 = vld [vmem:[%s7110 + $0x138] sm:$0xf]
  %v7190 = vld [vmem:[%s7110 + $0x13c] sm:$0xf]
  %v7191 = vld [vmem:[%s7110 + $0x140] sm:$0xf]
  %v7192 = vld [vmem:[%s7110 + $0x144] sm:$0xf]
  %v7193 = vld [vmem:[%s7110 + $0x148] sm:$0xf]
  %v7194 = vld [vmem:[%s7110 + $0x14c] sm:$0xf]
  %v7195 = vld [vmem:[%s7110 + $0x150] sm:$0xf]
  %v7196 = vld [vmem:[%s7110 + $0x154] sm:$0xf]
  %v7197 = vld [vmem:[%s7110 + $0x158] sm:$0xf]
  %v7198 = vld [vmem:[%s7110 + $0x15c] sm:$0xf]
  %v7199 = vld [vmem:[%s7110 + $0x160] sm:$0xf]
  %v7200 = vld [vmem:[%s7110 + $0x164] sm:$0xf]
  %v7201 = vld [vmem:[%s7110 + $0x168] sm:$0xf]
  %v7202 = vld [vmem:[%s7110 + $0x16c] sm:$0xf]
  %v7203 = vld [vmem:[%s7110 + $0x170] sm:$0xf]
  %v7204 = vld [vmem:[%s7110 + $0x174] sm:$0xf]
  %v7205 = vld [vmem:[%s7110 + $0x178] sm:$0xf]
  %v7206 = vld [vmem:[%s7110 + $0x17c] sm:$0xf]
  %v7207 = vld [vmem:[%s7110 + $0x180] sm:$0xf]
  %v7208 = vld [vmem:[%s7110 + $0x184] sm:$0xf]
  %v7209 = vld [vmem:[%s7110 + $0x188] sm:$0xf]
  %v7210 = vld [vmem:[%s7110 + $0x18c] sm:$0xf]
  %v7211 = vld [vmem:[%s7110 + $0x190] sm:$0xf]
  %v7212 = vld [vmem:[%s7110 + $0x194] sm:$0xf]
  %v7213 = vld [vmem:[%s7110 + $0x198] sm:$0xf]
  %v7214 = vld [vmem:[%s7110 + $0x19c] sm:$0xf]
  %v7215 = vld [vmem:[%s7110 + $0x1a0] sm:$0xf]
  %v7216 = vld [vmem:[%s7110 + $0x1a4] sm:$0xf]
  %v7217 = vld [vmem:[%s7110 + $0x1a8] sm:$0xf]
  %v7218 = vld [vmem:[%s7110 + $0x1ac] sm:$0xf]
  %v7219 = vld [vmem:[%s7110 + $0x1b0] sm:$0xf]
  %v7220 = vld [vmem:[%s7110 + $0x1b4] sm:$0xf]
  %v7221 = vld [vmem:[%s7110 + $0x1b8] sm:$0xf]
  %v7222 = vld [vmem:[%s7110 + $0x1bc] sm:$0xf]
  %v7223 = vld [vmem:[%s7110 + $0x1c0] sm:$0xf]
  %v7224 = vld [vmem:[%s7110 + $0x1c4] sm:$0xf]
  %v7225 = vld [vmem:[%s7110 + $0x1c8] sm:$0xf]
  %v7226 = vld [vmem:[%s7110 + $0x1cc] sm:$0xf]
  %v7227 = vld [vmem:[%s7110 + $0x1d0] sm:$0xf]
  %v7228 = vld [vmem:[%s7110 + $0x1d4] sm:$0xf]
  %v7229 = vld [vmem:[%s7110 + $0x1d8] sm:$0xf]
  %v7230 = vld [vmem:[%s7110 + $0x1dc] sm:$0xf]
  %v7231 = vld [vmem:[%s7110 + $0x1e0] sm:$0xf]
  %v7232 = vld [vmem:[%s7110 + $0x1e4] sm:$0xf]
  %v7233 = vld [vmem:[%s7110 + $0x1e8] sm:$0xf]
  %v7234 = vld [vmem:[%s7110 + $0x1ec] sm:$0xf]
  %v7235 = vld [vmem:[%s7110 + $0x1f0] sm:$0xf]
  %v7236 = vld [vmem:[%s7110 + $0x1f4] sm:$0xf]
  %v7237 = vld [vmem:[%s7110 + $0x1f8] sm:$0xf]
  %v7238 = vld [vmem:[%s7110 + $0x1fc] sm:$0xf]
  %v7239 = vld [vmem:[%s7110 + $0x200] sm:$0xf]
  %v7240 = vld [vmem:[%s7110 + $0x204] sm:$0xf]
  %v7241 = vld [vmem:[%s7110 + $0x208] sm:$0xf]
  %v7242 = vld [vmem:[%s7110 + $0x20c] sm:$0xf]
  %v7243 = vld [vmem:[%s7110 + $0x210] sm:$0xf]
  %v7244 = vld [vmem:[%s7110 + $0x214] sm:$0xf]
  %v7245 = vld [vmem:[%s7110 + $0x218] sm:$0xf]
  %v7246 = vld [vmem:[%s7110 + $0x21c] sm:$0xf]
  %v7247 = vld [vmem:[%s7110 + $0x220] sm:$0xf]
  %v7248 = vld [vmem:[%s7110 + $0x224] sm:$0xf]
  %v7249 = vld [vmem:[%s7110 + $0x228] sm:$0xf]
  %v7250 = vld [vmem:[%s7110 + $0x22c] sm:$0xf]
  %v7251 = vld [vmem:[%s7110 + $0x230] sm:$0xf]
  %v7252 = vld [vmem:[%s7110 + $0x234] sm:$0xf]
  %v7253 = vld [vmem:[%s7110 + $0x238] sm:$0xf]
  %v7254 = vld [vmem:[%s7110 + $0x23c] sm:$0xf]
  %v7255 = vld [vmem:[%s7110 + $0x240] sm:$0xf]
  %v7256 = vld [vmem:[%s7110 + $0x244] sm:$0xf]
  %v7257 = vld [vmem:[%s7110 + $0x248] sm:$0xf]
  %v7258 = vld [vmem:[%s7110 + $0x24c] sm:$0xf]
  %v7259 = vld [vmem:[%s7110 + $0x250] sm:$0xf]
  %v7260 = vld [vmem:[%s7110 + $0x254] sm:$0xf]
  %v7261 = vld [vmem:[%s7110 + $0x258] sm:$0xf]
  %v7262 = vld [vmem:[%s7110 + $0x25c] sm:$0xf]
  %v7263 = vld [vmem:[%s7110 + $0x260] sm:$0xf]
  %v7264 = vld [vmem:[%s7110 + $0x264] sm:$0xf]
  %v7265 = vld [vmem:[%s7110 + $0x268] sm:$0xf]
  %v7266 = vld [vmem:[%s7110 + $0x26c] sm:$0xf]
  %v7267 = vld [vmem:[%s7110 + $0x270] sm:$0xf]
  %v7268 = vld [vmem:[%s7110 + $0x274] sm:$0xf]
  %v7269 = vld [vmem:[%s7110 + $0x278] sm:$0xf]
  %v7270 = vld [vmem:[%s7110 + $0x27c] sm:$0xf]
  %v7271 = vld [vmem:[%s7110 + $0x280] sm:$0xf]
  %v7272 = vld [vmem:[%s7110 + $0x284] sm:$0xf]
  %v7273 = vld [vmem:[%s7110 + $0x288] sm:$0xf]
  %v7274 = vld [vmem:[%s7110 + $0x28c] sm:$0xf]
  %v7275 = vld [vmem:[%s7110 + $0x290] sm:$0xf]
  %v7276 = vld [vmem:[%s7110 + $0x294] sm:$0xf]
  %v7277 = vld [vmem:[%s7110 + $0x298] sm:$0xf]
  %v7278 = vld [vmem:[%s7110 + $0x29c] sm:$0xf]
  %v7279 = vld [vmem:[%s7110 + $0x2a0] sm:$0xf]
  %v7280 = vld [vmem:[%s7110 + $0x2a4] sm:$0xf]
  %v7281 = vld [vmem:[%s7110 + $0x2a8] sm:$0xf]
  %v7282 = vld [vmem:[%s7110 + $0x2ac] sm:$0xf]
  %v7283 = vld [vmem:[%s7110 + $0x2b0] sm:$0xf]
  %v7284 = vld [vmem:[%s7110 + $0x2b4] sm:$0xf]
  %v7285 = vld [vmem:[%s7110 + $0x2b8] sm:$0xf]
  %v7286 = vld [vmem:[%s7110 + $0x2bc] sm:$0xf]
  %v7287 = vld [vmem:[%s7110 + $0x2c0] sm:$0xf]
  %v7288 = vld [vmem:[%s7110 + $0x2c4] sm:$0xf]
  %v7289 = vld [vmem:[%s7110 + $0x2c8] sm:$0xf]
  %v7290 = vld [vmem:[%s7110 + $0x2cc] sm:$0xf]
  %v7291 = vld [vmem:[%s7110 + $0x2d0] sm:$0xf]
  %v7292 = vld [vmem:[%s7110 + $0x2d4] sm:$0xf]
  %v7293 = vld [vmem:[%s7110 + $0x2d8] sm:$0xf]
  %v7294 = vld [vmem:[%s7110 + $0x2dc] sm:$0xf]
  %v7295 = vld [vmem:[%s7110 + $0x2e0] sm:$0xf]
  %v7296 = vld [vmem:[%s7110 + $0x2e4] sm:$0xf]
  %v7297 = vld [vmem:[%s7110 + $0x2e8] sm:$0xf]
  %v7298 = vld [vmem:[%s7110 + $0x2ec] sm:$0xf]
  %v7299 = vld [vmem:[%s7110 + $0x2f0] sm:$0xf]
  %v7300 = vld [vmem:[%s7110 + $0x2f4] sm:$0xf]
  %v7301 = vld [vmem:[%s7110 + $0x2f8] sm:$0xf]
  %v7302 = vld [vmem:[%s7110 + $0x2fc] sm:$0xf]
  %v7303 = vld [vmem:[%s7110 + $0x300] sm:$0xf]
  %v7304 = vld [vmem:[%s7110 + $0x304] sm:$0xf]
  %v7305 = vld [vmem:[%s7110 + $0x308] sm:$0xf]
  %v7306 = vld [vmem:[%s7110 + $0x30c] sm:$0xf]
  %v7307 = vld [vmem:[%s7110 + $0x310] sm:$0xf]
  %v7308 = vld [vmem:[%s7110 + $0x314] sm:$0xf]
  %v7309 = vld [vmem:[%s7110 + $0x318] sm:$0xf]
  %v7310 = vld [vmem:[%s7110 + $0x31c] sm:$0xf]
  %v7311 = vld [vmem:[%s7110 + $0x320] sm:$0xf]
  %v7312 = vld [vmem:[%s7110 + $0x324] sm:$0xf]
  %v7313 = vld [vmem:[%s7110 + $0x328] sm:$0xf]
  %v7314 = vld [vmem:[%s7110 + $0x32c] sm:$0xf]
  %v7315 = vld [vmem:[%s7110 + $0x330] sm:$0xf]
  %v7316 = vld [vmem:[%s7110 + $0x334] sm:$0xf]
  %v7317 = vld [vmem:[%s7110 + $0x338] sm:$0xf]
  %v7318 = vld [vmem:[%s7110 + $0x33c] sm:$0xf]
  %v7319 = vld [vmem:[%s7110 + $0x340] sm:$0xf]
  %v7320 = vld [vmem:[%s7110 + $0x344] sm:$0xf]
  %v7321 = vld [vmem:[%s7110 + $0x348] sm:$0xf]
  %v7322 = vld [vmem:[%s7110 + $0x34c] sm:$0xf]
  %v7323 = vld [vmem:[%s7110 + $0x350] sm:$0xf]
  %v7324 = vld [vmem:[%s7110 + $0x354] sm:$0xf]
  %v7325 = vld [vmem:[%s7110 + $0x358] sm:$0xf]
  %v7326 = vld [vmem:[%s7110 + $0x35c] sm:$0xf]
  %v7327 = vld [vmem:[%s7110 + $0x360] sm:$0xf]
  %v7328 = vld [vmem:[%s7110 + $0x364] sm:$0xf]
  %v7329 = vld [vmem:[%s7110 + $0x368] sm:$0xf]
  %v7330 = vld [vmem:[%s7110 + $0x36c] sm:$0xf]
  %v7331 = vld [vmem:[%s7110 + $0x370] sm:$0xf]
  %v7332 = vld [vmem:[%s7110 + $0x374] sm:$0xf]
  %v7333 = vld [vmem:[%s7110 + $0x378] sm:$0xf]
  %v7334 = vld [vmem:[%s7110 + $0x37c] sm:$0xf]
  %v7335 = vld [vmem:[%s7110 + $0x380] sm:$0xf]
  %v7336 = vld [vmem:[%s7110 + $0x384] sm:$0xf]
  %v7337 = vld [vmem:[%s7110 + $0x388] sm:$0xf]
  %v7338 = vld [vmem:[%s7110 + $0x38c] sm:$0xf]
  %v7339 = vld [vmem:[%s7110 + $0x390] sm:$0xf]
  %v7340 = vld [vmem:[%s7110 + $0x394] sm:$0xf]
  %v7341 = vld [vmem:[%s7110 + $0x398] sm:$0xf]
  %v7342 = vld [vmem:[%s7110 + $0x39c] sm:$0xf]
  %v7343 = vld [vmem:[%s7110 + $0x3a0] sm:$0xf]
  %v7344 = vld [vmem:[%s7110 + $0x3a4] sm:$0xf]
  %v7345 = vld [vmem:[%s7110 + $0x3a8] sm:$0xf]
  %v7346 = vld [vmem:[%s7110 + $0x3ac] sm:$0xf]
  %v7347 = vld [vmem:[%s7110 + $0x3b0] sm:$0xf]
  %v7348 = vld [vmem:[%s7110 + $0x3b4] sm:$0xf]
  %v7349 = vld [vmem:[%s7110 + $0x3b8] sm:$0xf]
  %v7350 = vld [vmem:[%s7110 + $0x3bc] sm:$0xf]
  %v7351 = vld [vmem:[%s7110 + $0x3c0] sm:$0xf]
  %v7352 = vld [vmem:[%s7110 + $0x3c4] sm:$0xf]
  %v7353 = vld [vmem:[%s7110 + $0x3c8] sm:$0xf]
  %v7354 = vld [vmem:[%s7110 + $0x3cc] sm:$0xf]
  %v7355 = vld [vmem:[%s7110 + $0x3d0] sm:$0xf]
  %v7356 = vld [vmem:[%s7110 + $0x3d4] sm:$0xf]
  %v7357 = vld [vmem:[%s7110 + $0x3d8] sm:$0xf]
  %v7358 = vld [vmem:[%s7110 + $0x3dc] sm:$0xf]
  %v7359 = vld [vmem:[%s7110 + $0x3e0] sm:$0xf]
  %v7360 = vld [vmem:[%s7110 + $0x3e4] sm:$0xf]
  %v7361 = vld [vmem:[%s7110 + $0x3e8] sm:$0xf]
  %v7362 = vld [vmem:[%s7110 + $0x3ec] sm:$0xf]
  %v7363 = vld [vmem:[%s7110 + $0x3f0] sm:$0xf]
  %v7364 = vld [vmem:[%s7110 + $0x3f4] sm:$0xf]
  %v7365 = vld [vmem:[%s7110 + $0x3f8] sm:$0xf]
  %v7366 = vld [vmem:[%s7110 + $0x3fc] sm:$0xf]
  %s7367 = scalar_lea.vmem %s10, 1
  %v7368 = vld [vmem:[%s7367] sm:$0x1]
  %v7370 = vlaneseq
  %v7371 = vshrl.u32 %v7370, 7
  %v7372 = vsub.s32 0, %v7371
  %v7373 = vrot.slane %v7368, %v7372
  %v7631 = vunpack.c.l.b16 %v7111
  %v7632 = vunpack.c.l.b16 %v7112
  %v7633 = vunpack.c.l.b16 %v7113
  %v7634 = vunpack.c.l.b16 %v7114
  %v7635 = vunpack.c.l.b16 %v7115
  %v7636 = vunpack.c.l.b16 %v7116
  %v7637 = vunpack.c.l.b16 %v7117
  %v7638 = vunpack.c.l.b16 %v7118
  %v7639 = vunpack.c.l.b16 %v7119
  %v7640 = vunpack.c.l.b16 %v7120
  %v7641 = vunpack.c.l.b16 %v7121
  %v7642 = vunpack.c.l.b16 %v7122
  %v7643 = vunpack.c.l.b16 %v7123
  %v7644 = vunpack.c.l.b16 %v7124
  %v7645 = vunpack.c.l.b16 %v7125
  %v7646 = vunpack.c.l.b16 %v7126
  %v7647 = vunpack.c.l.b16 %v7127
  %v7648 = vunpack.c.l.b16 %v7128
  %v7649 = vunpack.c.l.b16 %v7129
  %v7650 = vunpack.c.l.b16 %v7130
  %v7651 = vunpack.c.l.b16 %v7131
  %v7652 = vunpack.c.l.b16 %v7132
  %v7653 = vunpack.c.l.b16 %v7133
  %v7654 = vunpack.c.l.b16 %v7134
  %v7655 = vunpack.c.l.b16 %v7135
  %v7656 = vunpack.c.l.b16 %v7136
  %v7657 = vunpack.c.l.b16 %v7137
  %v7658 = vunpack.c.l.b16 %v7138
  %v7659 = vunpack.c.l.b16 %v7139
  %v7660 = vunpack.c.l.b16 %v7140
  %v7661 = vunpack.c.l.b16 %v7141
  %v7662 = vunpack.c.l.b16 %v7142
  %v7663 = vunpack.c.l.b16 %v7143
  %v7664 = vunpack.c.l.b16 %v7144
  %v7665 = vunpack.c.l.b16 %v7145
  %v7666 = vunpack.c.l.b16 %v7146
  %v7667 = vunpack.c.l.b16 %v7147
  %v7668 = vunpack.c.l.b16 %v7148
  %v7669 = vunpack.c.l.b16 %v7149
  %v7670 = vunpack.c.l.b16 %v7150
  %v7671 = vunpack.c.l.b16 %v7151
  %v7672 = vunpack.c.l.b16 %v7152
  %v7673 = vunpack.c.l.b16 %v7153
  %v7674 = vunpack.c.l.b16 %v7154
  %v7675 = vunpack.c.l.b16 %v7155
  %v7676 = vunpack.c.l.b16 %v7156
  %v7677 = vunpack.c.l.b16 %v7157
  %v7678 = vunpack.c.l.b16 %v7158
  %v7679 = vunpack.c.l.b16 %v7159
  %v7680 = vunpack.c.l.b16 %v7160
  %v7681 = vunpack.c.l.b16 %v7161
  %v7682 = vunpack.c.l.b16 %v7162
  %v7683 = vunpack.c.l.b16 %v7163
  %v7684 = vunpack.c.l.b16 %v7164
  %v7685 = vunpack.c.l.b16 %v7165
  %v7686 = vunpack.c.l.b16 %v7166
  %v7687 = vunpack.c.l.b16 %v7167
  %v7688 = vunpack.c.l.b16 %v7168
  %v7689 = vunpack.c.l.b16 %v7169
  %v7690 = vunpack.c.l.b16 %v7170
  %v7691 = vunpack.c.l.b16 %v7171
  %v7692 = vunpack.c.l.b16 %v7172
  %v7693 = vunpack.c.l.b16 %v7173
  %v7694 = vunpack.c.l.b16 %v7174
  %v7695 = vunpack.c.l.b16 %v7175
  %v7696 = vunpack.c.l.b16 %v7176
  %v7697 = vunpack.c.l.b16 %v7177
  %v7698 = vunpack.c.l.b16 %v7178
  %v7699 = vunpack.c.l.b16 %v7179
  %v7700 = vunpack.c.l.b16 %v7180
  %v7701 = vunpack.c.l.b16 %v7181
  %v7702 = vunpack.c.l.b16 %v7182
  %v7703 = vunpack.c.l.b16 %v7183
  %v7704 = vunpack.c.l.b16 %v7184
  %v7705 = vunpack.c.l.b16 %v7185
  %v7706 = vunpack.c.l.b16 %v7186
  %v7707 = vunpack.c.l.b16 %v7187
  %v7708 = vunpack.c.l.b16 %v7188
  %v7709 = vunpack.c.l.b16 %v7189
  %v7710 = vunpack.c.l.b16 %v7190
  %v7711 = vunpack.c.l.b16 %v7191
  %v7712 = vunpack.c.l.b16 %v7192
  %v7713 = vunpack.c.l.b16 %v7193
  %v7714 = vunpack.c.l.b16 %v7194
  %v7715 = vunpack.c.l.b16 %v7195
  %v7716 = vunpack.c.l.b16 %v7196
  %v7717 = vunpack.c.l.b16 %v7197
  %v7718 = vunpack.c.l.b16 %v7198
  %v7719 = vunpack.c.l.b16 %v7199
  %v7720 = vunpack.c.l.b16 %v7200
  %v7721 = vunpack.c.l.b16 %v7201
  %v7722 = vunpack.c.l.b16 %v7202
  %v7723 = vunpack.c.l.b16 %v7203
  %v7724 = vunpack.c.l.b16 %v7204
  %v7725 = vunpack.c.l.b16 %v7205
  %v7726 = vunpack.c.l.b16 %v7206
  %v7727 = vunpack.c.l.b16 %v7207
  %v7728 = vunpack.c.l.b16 %v7208
  %v7729 = vunpack.c.l.b16 %v7209
  %v7730 = vunpack.c.l.b16 %v7210
  %v7731 = vunpack.c.l.b16 %v7211
  %v7732 = vunpack.c.l.b16 %v7212
  %v7733 = vunpack.c.l.b16 %v7213
  %v7734 = vunpack.c.l.b16 %v7214
  %v7735 = vunpack.c.l.b16 %v7215
  %v7736 = vunpack.c.l.b16 %v7216
  %v7737 = vunpack.c.l.b16 %v7217
  %v7738 = vunpack.c.l.b16 %v7218
  %v7739 = vunpack.c.l.b16 %v7219
  %v7740 = vunpack.c.l.b16 %v7220
  %v7741 = vunpack.c.l.b16 %v7221
  %v7742 = vunpack.c.l.b16 %v7222
  %v7743 = vunpack.c.l.b16 %v7223
  %v7744 = vunpack.c.l.b16 %v7224
  %v7745 = vunpack.c.l.b16 %v7225
  %v7746 = vunpack.c.l.b16 %v7226
  %v7747 = vunpack.c.l.b16 %v7227
  %v7748 = vunpack.c.l.b16 %v7228
  %v7749 = vunpack.c.l.b16 %v7229
  %v7750 = vunpack.c.l.b16 %v7230
  %v7751 = vunpack.c.l.b16 %v7231
  %v7752 = vunpack.c.l.b16 %v7232
  %v7753 = vunpack.c.l.b16 %v7233
  %v7754 = vunpack.c.l.b16 %v7234
  %v7755 = vunpack.c.l.b16 %v7235
  %v7756 = vunpack.c.l.b16 %v7236
  %v7757 = vunpack.c.l.b16 %v7237
  %v7758 = vunpack.c.l.b16 %v7238
  %v7759 = vunpack.c.l.b16 %v7239
  %v7760 = vunpack.c.l.b16 %v7240
  %v7761 = vunpack.c.l.b16 %v7241
  %v7762 = vunpack.c.l.b16 %v7242
  %v7763 = vunpack.c.l.b16 %v7243
  %v7764 = vunpack.c.l.b16 %v7244
  %v7765 = vunpack.c.l.b16 %v7245
  %v7766 = vunpack.c.l.b16 %v7246
  %v7767 = vunpack.c.l.b16 %v7247
  %v7768 = vunpack.c.l.b16 %v7248
  %v7769 = vunpack.c.l.b16 %v7249
  %v7770 = vunpack.c.l.b16 %v7250
  %v7771 = vunpack.c.l.b16 %v7251
  %v7772 = vunpack.c.l.b16 %v7252
  %v7773 = vunpack.c.l.b16 %v7253
  %v7774 = vunpack.c.l.b16 %v7254
  %v7775 = vunpack.c.l.b16 %v7255
  %v7776 = vunpack.c.l.b16 %v7256
  %v7777 = vunpack.c.l.b16 %v7257
  %v7778 = vunpack.c.l.b16 %v7258
  %v7779 = vunpack.c.l.b16 %v7259
  %v7780 = vunpack.c.l.b16 %v7260
  %v7781 = vunpack.c.l.b16 %v7261
  %v7782 = vunpack.c.l.b16 %v7262
  %v7783 = vunpack.c.l.b16 %v7263
  %v7784 = vunpack.c.l.b16 %v7264
  %v7785 = vunpack.c.l.b16 %v7265
  %v7786 = vunpack.c.l.b16 %v7266
  %v7787 = vunpack.c.l.b16 %v7267
  %v7788 = vunpack.c.l.b16 %v7268
  %v7789 = vunpack.c.l.b16 %v7269
  %v7790 = vunpack.c.l.b16 %v7270
  %v7791 = vunpack.c.l.b16 %v7271
  %v7792 = vunpack.c.l.b16 %v7272
  %v7793 = vunpack.c.l.b16 %v7273
  %v7794 = vunpack.c.l.b16 %v7274
  %v7795 = vunpack.c.l.b16 %v7275
  %v7796 = vunpack.c.l.b16 %v7276
  %v7797 = vunpack.c.l.b16 %v7277
  %v7798 = vunpack.c.l.b16 %v7278
  %v7799 = vunpack.c.l.b16 %v7279
  %v7800 = vunpack.c.l.b16 %v7280
  %v7801 = vunpack.c.l.b16 %v7281
  %v7802 = vunpack.c.l.b16 %v7282
  %v7803 = vunpack.c.l.b16 %v7283
  %v7804 = vunpack.c.l.b16 %v7284
  %v7805 = vunpack.c.l.b16 %v7285
  %v7806 = vunpack.c.l.b16 %v7286
  %v7807 = vunpack.c.l.b16 %v7287
  %v7808 = vunpack.c.l.b16 %v7288
  %v7809 = vunpack.c.l.b16 %v7289
  %v7810 = vunpack.c.l.b16 %v7290
  %v7811 = vunpack.c.l.b16 %v7291
  %v7812 = vunpack.c.l.b16 %v7292
  %v7813 = vunpack.c.l.b16 %v7293
  %v7814 = vunpack.c.l.b16 %v7294
  %v7815 = vunpack.c.l.b16 %v7295
  %v7816 = vunpack.c.l.b16 %v7296
  %v7817 = vunpack.c.l.b16 %v7297
  %v7818 = vunpack.c.l.b16 %v7298
  %v7819 = vunpack.c.l.b16 %v7299
  %v7820 = vunpack.c.l.b16 %v7300
  %v7821 = vunpack.c.l.b16 %v7301
  %v7822 = vunpack.c.l.b16 %v7302
  %v7823 = vunpack.c.l.b16 %v7303
  %v7824 = vunpack.c.l.b16 %v7304
  %v7825 = vunpack.c.l.b16 %v7305
  %v7826 = vunpack.c.l.b16 %v7306
  %v7827 = vunpack.c.l.b16 %v7307
  %v7828 = vunpack.c.l.b16 %v7308
  %v7829 = vunpack.c.l.b16 %v7309
  %v7830 = vunpack.c.l.b16 %v7310
  %v7831 = vunpack.c.l.b16 %v7311
  %v7832 = vunpack.c.l.b16 %v7312
  %v7833 = vunpack.c.l.b16 %v7313
  %v7834 = vunpack.c.l.b16 %v7314
  %v7835 = vunpack.c.l.b16 %v7315
  %v7836 = vunpack.c.l.b16 %v7316
  %v7837 = vunpack.c.l.b16 %v7317
  %v7838 = vunpack.c.l.b16 %v7318
  %v7839 = vunpack.c.l.b16 %v7319
  %v7840 = vunpack.c.l.b16 %v7320
  %v7841 = vunpack.c.l.b16 %v7321
  %v7842 = vunpack.c.l.b16 %v7322
  %v7843 = vunpack.c.l.b16 %v7323
  %v7844 = vunpack.c.l.b16 %v7324
  %v7845 = vunpack.c.l.b16 %v7325
  %v7846 = vunpack.c.l.b16 %v7326
  %v7847 = vunpack.c.l.b16 %v7327
  %v7848 = vunpack.c.l.b16 %v7328
  %v7849 = vunpack.c.l.b16 %v7329
  %v7850 = vunpack.c.l.b16 %v7330
  %v7851 = vunpack.c.l.b16 %v7331
  %v7852 = vunpack.c.l.b16 %v7332
  %v7853 = vunpack.c.l.b16 %v7333
  %v7854 = vunpack.c.l.b16 %v7334
  %v7855 = vunpack.c.l.b16 %v7335
  %v7856 = vunpack.c.l.b16 %v7336
  %v7857 = vunpack.c.l.b16 %v7337
  %v7858 = vunpack.c.l.b16 %v7338
  %v7859 = vunpack.c.l.b16 %v7339
  %v7860 = vunpack.c.l.b16 %v7340
  %v7861 = vunpack.c.l.b16 %v7341
  %v7862 = vunpack.c.l.b16 %v7342
  %v7863 = vunpack.c.l.b16 %v7343
  %v7864 = vunpack.c.l.b16 %v7344
  %v7865 = vunpack.c.l.b16 %v7345
  %v7866 = vunpack.c.l.b16 %v7346
  %v7867 = vunpack.c.l.b16 %v7347
  %v7868 = vunpack.c.l.b16 %v7348
  %v7869 = vunpack.c.l.b16 %v7349
  %v7870 = vunpack.c.l.b16 %v7350
  %v7871 = vunpack.c.l.b16 %v7351
  %v7872 = vunpack.c.l.b16 %v7352
  %v7873 = vunpack.c.l.b16 %v7353
  %v7874 = vunpack.c.l.b16 %v7354
  %v7875 = vunpack.c.l.b16 %v7355
  %v7876 = vunpack.c.l.b16 %v7356
  %v7877 = vunpack.c.l.b16 %v7357
  %v7878 = vunpack.c.l.b16 %v7358
  %v7879 = vunpack.c.l.b16 %v7359
  %v7880 = vunpack.c.l.b16 %v7360
  %v7881 = vunpack.c.l.b16 %v7361
  %v7882 = vunpack.c.l.b16 %v7362
  %v7883 = vunpack.c.l.b16 %v7363
  %v7884 = vunpack.c.l.b16 %v7364
  %v7885 = vunpack.c.l.b16 %v7365
  %v7886 = vunpack.c.l.b16 %v7366
  %v7887 = vpack.c.b16 %v7632, %v7631
  %v7888 = vpack.c.b16 %v7634, %v7633
  %v7889 = vpack.c.b16 %v7636, %v7635
  %v7890 = vpack.c.b16 %v7638, %v7637
  %v7891 = vpack.c.b16 %v7640, %v7639
  %v7892 = vpack.c.b16 %v7642, %v7641
  %v7893 = vpack.c.b16 %v7644, %v7643
  %v7894 = vpack.c.b16 %v7646, %v7645
  %v7895 = vpack.c.b16 %v7648, %v7647
  %v7896 = vpack.c.b16 %v7650, %v7649
  %v7897 = vpack.c.b16 %v7652, %v7651
  %v7898 = vpack.c.b16 %v7654, %v7653
  %v7899 = vpack.c.b16 %v7656, %v7655
  %v7900 = vpack.c.b16 %v7658, %v7657
  %v7901 = vpack.c.b16 %v7660, %v7659
  %v7902 = vpack.c.b16 %v7662, %v7661
  %v7903 = vpack.c.b16 %v7664, %v7663
  %v7904 = vpack.c.b16 %v7666, %v7665
  %v7905 = vpack.c.b16 %v7668, %v7667
  %v7906 = vpack.c.b16 %v7670, %v7669
  %v7907 = vpack.c.b16 %v7672, %v7671
  %v7908 = vpack.c.b16 %v7674, %v7673
  %v7909 = vpack.c.b16 %v7676, %v7675
  %v7910 = vpack.c.b16 %v7678, %v7677
  %v7911 = vpack.c.b16 %v7680, %v7679
  %v7912 = vpack.c.b16 %v7682, %v7681
  %v7913 = vpack.c.b16 %v7684, %v7683
  %v7914 = vpack.c.b16 %v7686, %v7685
  %v7915 = vpack.c.b16 %v7688, %v7687
  %v7916 = vpack.c.b16 %v7690, %v7689
  %v7917 = vpack.c.b16 %v7692, %v7691
  %v7918 = vpack.c.b16 %v7694, %v7693
  %v7919 = vpack.c.b16 %v7696, %v7695
  %v7920 = vpack.c.b16 %v7698, %v7697
  %v7921 = vpack.c.b16 %v7700, %v7699
  %v7922 = vpack.c.b16 %v7702, %v7701
  %v7923 = vpack.c.b16 %v7704, %v7703
  %v7924 = vpack.c.b16 %v7706, %v7705
  %v7925 = vpack.c.b16 %v7708, %v7707
  %v7926 = vpack.c.b16 %v7710, %v7709
  %v7927 = vpack.c.b16 %v7712, %v7711
  %v7928 = vpack.c.b16 %v7714, %v7713
  %v7929 = vpack.c.b16 %v7716, %v7715
  %v7930 = vpack.c.b16 %v7718, %v7717
  %v7931 = vpack.c.b16 %v7720, %v7719
  %v7932 = vpack.c.b16 %v7722, %v7721
  %v7933 = vpack.c.b16 %v7724, %v7723
  %v7934 = vpack.c.b16 %v7726, %v7725
  %v7935 = vpack.c.b16 %v7728, %v7727
  %v7936 = vpack.c.b16 %v7730, %v7729
  %v7937 = vpack.c.b16 %v7732, %v7731
  %v7938 = vpack.c.b16 %v7734, %v7733
  %v7939 = vpack.c.b16 %v7736, %v7735
  %v7940 = vpack.c.b16 %v7738, %v7737
  %v7941 = vpack.c.b16 %v7740, %v7739
  %v7942 = vpack.c.b16 %v7742, %v7741
  %v7943 = vpack.c.b16 %v7744, %v7743
  %v7944 = vpack.c.b16 %v7746, %v7745
  %v7945 = vpack.c.b16 %v7748, %v7747
  %v7946 = vpack.c.b16 %v7750, %v7749
  %v7947 = vpack.c.b16 %v7752, %v7751
  %v7948 = vpack.c.b16 %v7754, %v7753
  %v7949 = vpack.c.b16 %v7756, %v7755
  %v7950 = vpack.c.b16 %v7758, %v7757
  %v7951 = vpack.c.b16 %v7760, %v7759
  %v7952 = vpack.c.b16 %v7762, %v7761
  %v7953 = vpack.c.b16 %v7764, %v7763
  %v7954 = vpack.c.b16 %v7766, %v7765
  %v7955 = vpack.c.b16 %v7768, %v7767
  %v7956 = vpack.c.b16 %v7770, %v7769
  %v7957 = vpack.c.b16 %v7772, %v7771
  %v7958 = vpack.c.b16 %v7774, %v7773
  %v7959 = vpack.c.b16 %v7776, %v7775
  %v7960 = vpack.c.b16 %v7778, %v7777
  %v7961 = vpack.c.b16 %v7780, %v7779
  %v7962 = vpack.c.b16 %v7782, %v7781
  %v7963 = vpack.c.b16 %v7784, %v7783
  %v7964 = vpack.c.b16 %v7786, %v7785
  %v7965 = vpack.c.b16 %v7788, %v7787
  %v7966 = vpack.c.b16 %v7790, %v7789
  %v7967 = vpack.c.b16 %v7792, %v7791
  %v7968 = vpack.c.b16 %v7794, %v7793
  %v7969 = vpack.c.b16 %v7796, %v7795
  %v7970 = vpack.c.b16 %v7798, %v7797
  %v7971 = vpack.c.b16 %v7800, %v7799
  %v7972 = vpack.c.b16 %v7802, %v7801
  %v7973 = vpack.c.b16 %v7804, %v7803
  %v7974 = vpack.c.b16 %v7806, %v7805
  %v7975 = vpack.c.b16 %v7808, %v7807
  %v7976 = vpack.c.b16 %v7810, %v7809
  %v7977 = vpack.c.b16 %v7812, %v7811
  %v7978 = vpack.c.b16 %v7814, %v7813
  %v7979 = vpack.c.b16 %v7816, %v7815
  %v7980 = vpack.c.b16 %v7818, %v7817
  %v7981 = vpack.c.b16 %v7820, %v7819
  %v7982 = vpack.c.b16 %v7822, %v7821
  %v7983 = vpack.c.b16 %v7824, %v7823
  %v7984 = vpack.c.b16 %v7826, %v7825
  %v7985 = vpack.c.b16 %v7828, %v7827
  %v7986 = vpack.c.b16 %v7830, %v7829
  %v7987 = vpack.c.b16 %v7832, %v7831
  %v7988 = vpack.c.b16 %v7834, %v7833
  %v7989 = vpack.c.b16 %v7836, %v7835
  %v7990 = vpack.c.b16 %v7838, %v7837
  %v7991 = vpack.c.b16 %v7840, %v7839
  %v7992 = vpack.c.b16 %v7842, %v7841
  %v7993 = vpack.c.b16 %v7844, %v7843
  %v7994 = vpack.c.b16 %v7846, %v7845
  %v7995 = vpack.c.b16 %v7848, %v7847
  %v7996 = vpack.c.b16 %v7850, %v7849
  %v7997 = vpack.c.b16 %v7852, %v7851
  %v7998 = vpack.c.b16 %v7854, %v7853
  %v7999 = vpack.c.b16 %v7856, %v7855
  %v8000 = vpack.c.b16 %v7858, %v7857
  %v8001 = vpack.c.b16 %v7860, %v7859
  %v8002 = vpack.c.b16 %v7862, %v7861
  %v8003 = vpack.c.b16 %v7864, %v7863
  %v8004 = vpack.c.b16 %v7866, %v7865
  %v8005 = vpack.c.b16 %v7868, %v7867
  %v8006 = vpack.c.b16 %v7870, %v7869
  %v8007 = vpack.c.b16 %v7872, %v7871
  %v8008 = vpack.c.b16 %v7874, %v7873
  %v8009 = vpack.c.b16 %v7876, %v7875
  %v8010 = vpack.c.b16 %v7878, %v7877
  %v8011 = vpack.c.b16 %v7880, %v7879
  %v8012 = vpack.c.b16 %v7882, %v7881
  %v8013 = vpack.c.b16 %v7884, %v7883
  %v8014 = vpack.c.b16 %v7886, %v7885
  %8143 = vmatprep.subr.bf16.mxu0 0
  %8144 = vmatpush1.bf16.msra.mxu0 %v7887
  %8145 = vmatprep.subr.bf16.mxu0 0
  %8146 = vmatpush1.bf16.msra.mxu0 %v7888
  %8147 = vmatprep.subr.bf16.mxu0 0
  %8148 = vmatpush1.bf16.msra.mxu0 %v7889
  %8149 = vmatprep.subr.bf16.mxu0 0
  %8150 = vmatpush1.bf16.msra.mxu0 %v7890
  %8151 = vmatprep.subr.bf16.mxu0 0
  %8152 = vmatpush1.bf16.msra.mxu0 %v7891
  %8153 = vmatprep.subr.bf16.mxu0 0
  %8154 = vmatpush1.bf16.msra.mxu0 %v7892
  %8155 = vmatprep.subr.bf16.mxu0 0
  %8156 = vmatpush1.bf16.msra.mxu0 %v7893
  %8157 = vmatprep.subr.bf16.mxu0 0
  %8158 = vmatpush1.bf16.msra.mxu0 %v7894
  %8159 = vmatprep.subr.bf16.mxu0 0
  %8160 = vmatpush1.bf16.msra.mxu0 %v7895
  %8161 = vmatprep.subr.bf16.mxu0 0
  %8162 = vmatpush1.bf16.msra.mxu0 %v7896
  %8163 = vmatprep.subr.bf16.mxu0 0
  %8164 = vmatpush1.bf16.msra.mxu0 %v7897
  %8165 = vmatprep.subr.bf16.mxu0 0
  %8166 = vmatpush1.bf16.msra.mxu0 %v7898
  %8167 = vmatprep.subr.bf16.mxu0 0
  %8168 = vmatpush1.bf16.msra.mxu0 %v7899
  %8169 = vmatprep.subr.bf16.mxu0 0
  %8170 = vmatpush1.bf16.msra.mxu0 %v7900
  %8171 = vmatprep.subr.bf16.mxu0 0
  %8172 = vmatpush1.bf16.msra.mxu0 %v7901
  %8173 = vmatprep.subr.bf16.mxu0 0
  %8174 = vmatpush1.bf16.msra.mxu0 %v7902
  %8175 = vmatprep.mubr.f32.mxu0 %v7079
  %8176 = vmatmul.mubr.f32.gmra.mrb[0].mxu0 %v7078
  %v8177 = vpop.f32.mrb[0].mxu0
  %v8178 = vadd.f32 %v7373, %v8177
  %v8179 = vpop.f32.mrb[0].mxu0
  %8180 = vmatprep.mubr.f32.mxu0 %v7095
  %8181 = vmatmul.mubr.f32.gmra.mrb[0].mxu0 %v7094
  %v8182 = vpop.f32.mrb[0].mxu0
  %v8183 = vadd.f32 %v7373, %v8182
  %v8184 = vpop.f32.mrb[0].mxu0
  %8185 = vdwg.mxu0
  %8186 = vmatprep.subr.bf16.mxu0 0
  %8187 = vmatpush1.bf16.msra.mxu0 %v7903
  %8188 = vmatprep.subr.bf16.mxu0 0
  %8189 = vmatpush1.bf16.msra.mxu0 %v7904
  %8190 = vmatprep.subr.bf16.mxu0 0
  %8191 = vmatpush1.bf16.msra.mxu0 %v7905
  %8192 = vmatprep.subr.bf16.mxu0 0
  %8193 = vmatpush1.bf16.msra.mxu0 %v7906
  %8194 = vmatprep.subr.bf16.mxu0 0
  %8195 = vmatpush1.bf16.msra.mxu0 %v7907
  %8196 = vmatprep.subr.bf16.mxu0 0
  %8197 = vmatpush1.bf16.msra.mxu0 %v7908
  %8198 = vmatprep.subr.bf16.mxu0 0
  %8199 = vmatpush1.bf16.msra.mxu0 %v7909
  %8200 = vmatprep.subr.bf16.mxu0 0
  %8201 = vmatpush1.bf16.msra.mxu0 %v7910
  %8202 = vmatprep.subr.bf16.mxu0 0
  %8203 = vmatpush1.bf16.msra.mxu0 %v7911
  %8204 = vmatprep.subr.bf16.mxu0 0
  %8205 = vmatpush1.bf16.msra.mxu0 %v7912
  %8206 = vmatprep.subr.bf16.mxu0 0
  %8207 = vmatpush1.bf16.msra.mxu0 %v7913
  %8208 = vmatprep.subr.bf16.mxu0 0
  %8209 = vmatpush1.bf16.msra.mxu0 %v7914
  %8210 = vmatprep.subr.bf16.mxu0 0
  %8211 = vmatpush1.bf16.msra.mxu0 %v7915
  %8212 = vmatprep.subr.bf16.mxu0 0
  %8213 = vmatpush1.bf16.msra.mxu0 %v7916
  %8214 = vmatprep.subr.bf16.mxu0 0
  %8215 = vmatpush1.bf16.msra.mxu0 %v7917
  %8216 = vmatprep.subr.bf16.mxu0 0
  %8217 = vmatpush1.bf16.msra.mxu0 %v7918
  %8218 = vmatprep.mubr.f32.mxu0 %v7081
  %8219 = vmatmul.mubr.f32.gmra.mrb[0].mxu0 %v7080
  %v8220 = vpop.f32.mrb[0].mxu0
  %v8221 = vadd.f32 %v8178, %v8220
  %v8222 = vpop.f32.mrb[0].mxu0
  %8223 = vmatprep.mubr.f32.mxu0 %v7097
  %8224 = vmatmul.mubr.f32.gmra.mrb[0].mxu0 %v7096
  %v8225 = vpop.f32.mrb[0].mxu0
  %v8226 = vadd.f32 %v8183, %v8225
  %v8227 = vpop.f32.mrb[0].mxu0
  %8228 = vdwg.mxu0
  %8229 = vmatprep.subr.bf16.mxu0 0
  %8230 = vmatpush1.bf16.msra.mxu0 %v7919
  %8231 = vmatprep.subr.bf16.mxu0 0
  %8232 = vmatpush1.bf16.msra.mxu0 %v7920
  %8233 = vmatprep.subr.bf16.mxu0 0
  %8234 = vmatpush1.bf16.msra.mxu0 %v7921
  %8235 = vmatprep.subr.bf16.mxu0 0
  %8236 = vmatpush1.bf16.msra.mxu0 %v7922
  %8237 = vmatprep.subr.bf16.mxu0 0
  %8238 = vmatpush1.bf16.msra.mxu0 %v7923
  %8239 = vmatprep.subr.bf16.mxu0 0
  %8240 = vmatpush1.bf16.msra.mxu0 %v7924
  %8241 = vmatprep.subr.bf16.mxu0 0
  %8242 = vmatpush1.bf16.msra.mxu0 %v7925
  %8243 = vmatprep.subr.bf16.mxu0 0
  %8244 = vmatpush1.bf16.msra.mxu0 %v7926
  %8245 = vmatprep.subr.bf16.mxu0 0
  %8246 = vmatpush1.bf16.msra.mxu0 %v7927
  %8247 = vmatprep.subr.bf16.mxu0 0
  %8248 = vmatpush1.bf16.msra.mxu0 %v7928
  %8249 = vmatprep.subr.bf16.mxu0 0
  %8250 = vmatpush1.bf16.msra.mxu0 %v7929
  %8251 = vmatprep.subr.bf16.mxu0 0
  %8252 = vmatpush1.bf16.msra.mxu0 %v7930
  %8253 = vmatprep.subr.bf16.mxu0 0
  %8254 = vmatpush1.bf16.msra.mxu0 %v7931
  %8255 = vmatprep.subr.bf16.mxu0 0
  %8256 = vmatpush1.bf16.msra.mxu0 %v7932
  %8257 = vmatprep.subr.bf16.mxu0 0
  %8258 = vmatpush1.bf16.msra.mxu0 %v7933
  %8259 = vmatprep.subr.bf16.mxu0 0
  %8260 = vmatpush1.bf16.msra.mxu0 %v7934
  %8261 = vmatprep.mubr.f32.mxu0 %v7083
  %8262 = vmatmul.mubr.f32.gmra.mrb[0].mxu0 %v7082
  %v8263 = vpop.f32.mrb[0].mxu0
  %v8264 = vadd.f32 %v8221, %v8263
  %v8265 = vpop.f32.mrb[0].mxu0
  %8266 = vmatprep.mubr.f32.mxu0 %v7099
  %8267 = vmatmul.mubr.f32.gmra.mrb[0].mxu0 %v7098
  %v8268 = vpop.f32.mrb[0].mxu0
  %v8269 = vadd.f32 %v8226, %v8268
  %v8270 = vpop.f32.mrb[0].mxu0
  %8271 = vdwg.mxu0
  %8272 = vmatprep.subr.bf16.mxu0 0
  %8273 = vmatpush1.bf16.msra.mxu0 %v7935
  %8274 = vmatprep.subr.bf16.mxu0 0
  %8275 = vmatpush1.bf16.msra.mxu0 %v7936
  %8276 = vmatprep.subr.bf16.mxu0 0
  %8277 = vmatpush1.bf16.msra.mxu0 %v7937
  %8278 = vmatprep.subr.bf16.mxu0 0
  %8279 = vmatpush1.bf16.msra.mxu0 %v7938
  %8280 = vmatprep.subr.bf16.mxu0 0
  %8281 = vmatpush1.bf16.msra.mxu0 %v7939
  %8282 = vmatprep.subr.bf16.mxu0 0
  %8283 = vmatpush1.bf16.msra.mxu0 %v7940
  %8284 = vmatprep.subr.bf16.mxu0 0
  %8285 = vmatpush1.bf16.msra.mxu0 %v7941
  %8286 = vmatprep.subr.bf16.mxu0 0
  %8287 = vmatpush1.bf16.msra.mxu0 %v7942
  %8288 = vmatprep.subr.bf16.mxu0 0
  %8289 = vmatpush1.bf16.msra.mxu0 %v7943
  %8290 = vmatprep.subr.bf16.mxu0 0
  %8291 = vmatpush1.bf16.msra.mxu0 %v7944
  %8292 = vmatprep.subr.bf16.mxu0 0
  %8293 = vmatpush1.bf16.msra.mxu0 %v7945
  %8294 = vmatprep.subr.bf16.mxu0 0
  %8295 = vmatpush1.bf16.msra.mxu0 %v7946
  %8296 = vmatprep.subr.bf16.mxu0 0
  %8297 = vmatpush1.bf16.msra.mxu0 %v7947
  %8298 = vmatprep.subr.bf16.mxu0 0
  %8299 = vmatpush1.bf16.msra.mxu0 %v7948
  %8300 = vmatprep.subr.bf16.mxu0 0
  %8301 = vmatpush1.bf16.msra.mxu0 %v7949
  %8302 = vmatprep.subr.bf16.mxu0 0
  %8303 = vmatpush1.bf16.msra.mxu0 %v7950
  %8304 = vmatprep.mubr.f32.mxu0 %v7085
  %8305 = vmatmul.mubr.f32.gmra.mrb[0].mxu0 %v7084
  %v8306 = vpop.f32.mrb[0].mxu0
  %v8307 = vadd.f32 %v8264, %v8306
  %v8308 = vpop.f32.mrb[0].mxu0
  %8309 = vmatprep.mubr.f32.mxu0 %v7101
  %8310 = vmatmul.mubr.f32.gmra.mrb[0].mxu0 %v7100
  %v8311 = vpop.f32.mrb[0].mxu0
  %v8312 = vadd.f32 %v8269, %v8311
  %v8313 = vpop.f32.mrb[0].mxu0
  %8314 = vdwg.mxu0
  %8315 = vmatprep.subr.bf16.mxu0 0
  %8316 = vmatpush1.bf16.msra.mxu0 %v7951
  %8317 = vmatprep.subr.bf16.mxu0 0
  %8318 = vmatpush1.bf16.msra.mxu0 %v7952
  %8319 = vmatprep.subr.bf16.mxu0 0
  %8320 = vmatpush1.bf16.msra.mxu0 %v7953
  %8321 = vmatprep.subr.bf16.mxu0 0
  %8322 = vmatpush1.bf16.msra.mxu0 %v7954
  %8323 = vmatprep.subr.bf16.mxu0 0
  %8324 = vmatpush1.bf16.msra.mxu0 %v7955
  %8325 = vmatprep.subr.bf16.mxu0 0
  %8326 = vmatpush1.bf16.msra.mxu0 %v7956
  %8327 = vmatprep.subr.bf16.mxu0 0
  %8328 = vmatpush1.bf16.msra.mxu0 %v7957
  %8329 = vmatprep.subr.bf16.mxu0 0
  %8330 = vmatpush1.bf16.msra.mxu0 %v7958
  %8331 = vmatprep.subr.bf16.mxu0 0
  %8332 = vmatpush1.bf16.msra.mxu0 %v7959
  %8333 = vmatprep.subr.bf16.mxu0 0
  %8334 = vmatpush1.bf16.msra.mxu0 %v7960
  %8335 = vmatprep.subr.bf16.mxu0 0
  %8336 = vmatpush1.bf16.msra.mxu0 %v7961
  %8337 = vmatprep.subr.bf16.mxu0 0
  %8338 = vmatpush1.bf16.msra.mxu0 %v7962
  %8339 = vmatprep.subr.bf16.mxu0 0
  %8340 = vmatpush1.bf16.msra.mxu0 %v7963
  %8341 = vmatprep.subr.bf16.mxu0 0
  %8342 = vmatpush1.bf16.msra.mxu0 %v7964
  %8343 = vmatprep.subr.bf16.mxu0 0
  %8344 = vmatpush1.bf16.msra.mxu0 %v7965
  %8345 = vmatprep.subr.bf16.mxu0 0
  %8346 = vmatpush1.bf16.msra.mxu0 %v7966
  %8347 = vmatprep.mubr.f32.mxu0 %v7087
  %8348 = vmatmul.mubr.f32.gmra.mrb[0].mxu0 %v7086
  %v8349 = vpop.f32.mrb[0].mxu0
  %v8350 = vadd.f32 %v8307, %v8349
  %v8351 = vpop.f32.mrb[0].mxu0
  %8352 = vmatprep.mubr.f32.mxu0 %v7103
  %8353 = vmatmul.mubr.f32.gmra.mrb[0].mxu0 %v7102
  %v8354 = vpop.f32.mrb[0].mxu0
  %v8355 = vadd.f32 %v8312, %v8354
  %v8356 = vpop.f32.mrb[0].mxu0
  %8357 = vdwg.mxu0
  %8358 = vmatprep.subr.bf16.mxu0 0
  %8359 = vmatpush1.bf16.msra.mxu0 %v7967
  %8360 = vmatprep.subr.bf16.mxu0 0
  %8361 = vmatpush1.bf16.msra.mxu0 %v7968
  %8362 = vmatprep.subr.bf16.mxu0 0
  %8363 = vmatpush1.bf16.msra.mxu0 %v7969
  %8364 = vmatprep.subr.bf16.mxu0 0
  %8365 = vmatpush1.bf16.msra.mxu0 %v7970
  %8366 = vmatprep.subr.bf16.mxu0 0
  %8367 = vmatpush1.bf16.msra.mxu0 %v7971
  %8368 = vmatprep.subr.bf16.mxu0 0
  %8369 = vmatpush1.bf16.msra.mxu0 %v7972
  %8370 = vmatprep.subr.bf16.mxu0 0
  %8371 = vmatpush1.bf16.msra.mxu0 %v7973
  %8372 = vmatprep.subr.bf16.mxu0 0
  %8373 = vmatpush1.bf16.msra.mxu0 %v7974
  %8374 = vmatprep.subr.bf16.mxu0 0
  %8375 = vmatpush1.bf16.msra.mxu0 %v7975
  %8376 = vmatprep.subr.bf16.mxu0 0
  %8377 = vmatpush1.bf16.msra.mxu0 %v7976
  %8378 = vmatprep.subr.bf16.mxu0 0
  %8379 = vmatpush1.bf16.msra.mxu0 %v7977
  %8380 = vmatprep.subr.bf16.mxu0 0
  %8381 = vmatpush1.bf16.msra.mxu0 %v7978
  %8382 = vmatprep.subr.bf16.mxu0 0
  %8383 = vmatpush1.bf16.msra.mxu0 %v7979
  %8384 = vmatprep.subr.bf16.mxu0 0
  %8385 = vmatpush1.bf16.msra.mxu0 %v7980
  %8386 = vmatprep.subr.bf16.mxu0 0
  %8387 = vmatpush1.bf16.msra.mxu0 %v7981
  %8388 = vmatprep.subr.bf16.mxu0 0
  %8389 = vmatpush1.bf16.msra.mxu0 %v7982
  %8390 = vmatprep.mubr.f32.mxu0 %v7089
  %8391 = vmatmul.mubr.f32.gmra.mrb[0].mxu0 %v7088
  %v8392 = vpop.f32.mrb[0].mxu0
  %v8393 = vadd.f32 %v8350, %v8392
  %v8394 = vpop.f32.mrb[0].mxu0
  %8395 = vmatprep.mubr.f32.mxu0 %v7105
  %8396 = vmatmul.mubr.f32.gmra.mrb[0].mxu0 %v7104
  %v8397 = vpop.f32.mrb[0].mxu0
  %v8398 = vadd.f32 %v8355, %v8397
  %v8399 = vpop.f32.mrb[0].mxu0
  %8400 = vdwg.mxu0
  %8401 = vmatprep.subr.bf16.mxu0 0
  %8402 = vmatpush1.bf16.msra.mxu0 %v7983
  %8403 = vmatprep.subr.bf16.mxu0 0
  %8404 = vmatpush1.bf16.msra.mxu0 %v7984
  %8405 = vmatprep.subr.bf16.mxu0 0
  %8406 = vmatpush1.bf16.msra.mxu0 %v7985
  %8407 = vmatprep.subr.bf16.mxu0 0
  %8408 = vmatpush1.bf16.msra.mxu0 %v7986
  %8409 = vmatprep.subr.bf16.mxu0 0
  %8410 = vmatpush1.bf16.msra.mxu0 %v7987
  %8411 = vmatprep.subr.bf16.mxu0 0
  %8412 = vmatpush1.bf16.msra.mxu0 %v7988
  %8413 = vmatprep.subr.bf16.mxu0 0
  %8414 = vmatpush1.bf16.msra.mxu0 %v7989
  %8415 = vmatprep.subr.bf16.mxu0 0
  %8416 = vmatpush1.bf16.msra.mxu0 %v7990
  %8417 = vmatprep.subr.bf16.mxu0 0
  %8418 = vmatpush1.bf16.msra.mxu0 %v7991
  %8419 = vmatprep.subr.bf16.mxu0 0
  %8420 = vmatpush1.bf16.msra.mxu0 %v7992
  %8421 = vmatprep.subr.bf16.mxu0 0
  %8422 = vmatpush1.bf16.msra.mxu0 %v7993
  %8423 = vmatprep.subr.bf16.mxu0 0
  %8424 = vmatpush1.bf16.msra.mxu0 %v7994
  %8425 = vmatprep.subr.bf16.mxu0 0
  %8426 = vmatpush1.bf16.msra.mxu0 %v7995
  %8427 = vmatprep.subr.bf16.mxu0 0
  %8428 = vmatpush1.bf16.msra.mxu0 %v7996
  %8429 = vmatprep.subr.bf16.mxu0 0
  %8430 = vmatpush1.bf16.msra.mxu0 %v7997
  %8431 = vmatprep.subr.bf16.mxu0 0
  %8432 = vmatpush1.bf16.msra.mxu0 %v7998
  %8433 = vmatprep.mubr.f32.mxu0 %v7091
  %8434 = vmatmul.mubr.f32.gmra.mrb[0].mxu0 %v7090
  %v8435 = vpop.f32.mrb[0].mxu0
  %v8436 = vadd.f32 %v8393, %v8435
  %v8437 = vpop.f32.mrb[0].mxu0
  %8438 = vmatprep.mubr.f32.mxu0 %v7107
  %8439 = vmatmul.mubr.f32.gmra.mrb[0].mxu0 %v7106
  %v8440 = vpop.f32.mrb[0].mxu0
  %v8441 = vadd.f32 %v8398, %v8440
  %v8442 = vpop.f32.mrb[0].mxu0
  %8443 = vdwg.mxu0
  %8444 = vmatprep.subr.bf16.mxu0 0
  %8445 = vmatpush1.bf16.msra.mxu0 %v7999
  %8446 = vmatprep.subr.bf16.mxu0 0
  %8447 = vmatpush1.bf16.msra.mxu0 %v8000
  %8448 = vmatprep.subr.bf16.mxu0 0
  %8449 = vmatpush1.bf16.msra.mxu0 %v8001
  %8450 = vmatprep.subr.bf16.mxu0 0
  %8451 = vmatpush1.bf16.msra.mxu0 %v8002
  %8452 = vmatprep.subr.bf16.mxu0 0
  %8453 = vmatpush1.bf16.msra.mxu0 %v8003
  %8454 = vmatprep.subr.bf16.mxu0 0
  %8455 = vmatpush1.bf16.msra.mxu0 %v8004
  %8456 = vmatprep.subr.bf16.mxu0 0
  %8457 = vmatpush1.bf16.msra.mxu0 %v8005
  %8458 = vmatprep.subr.bf16.mxu0 0
  %8459 = vmatpush1.bf16.msra.mxu0 %v8006
  %8460 = vmatprep.subr.bf16.mxu0 0
  %8461 = vmatpush1.bf16.msra.mxu0 %v8007
  %8462 = vmatprep.subr.bf16.mxu0 0
  %8463 = vmatpush1.bf16.msra.mxu0 %v8008
  %8464 = vmatprep.subr.bf16.mxu0 0
  %8465 = vmatpush1.bf16.msra.mxu0 %v8009
  %8466 = vmatprep.subr.bf16.mxu0 0
  %8467 = vmatpush1.bf16.msra.mxu0 %v8010
  %8468 = vmatprep.subr.bf16.mxu0 0
  %8469 = vmatpush1.bf16.msra.mxu0 %v8011
  %8470 = vmatprep.subr.bf16.mxu0 0
  %8471 = vmatpush1.bf16.msra.mxu0 %v8012
  %8472 = vmatprep.subr.bf16.mxu0 0
  %8473 = vmatpush1.bf16.msra.mxu0 %v8013
  %8474 = vmatprep.subr.bf16.mxu0 0
  %8475 = vmatpush1.bf16.msra.mxu0 %v8014
  %8476 = vmatprep.mubr.f32.mxu0 %v7093
  %8477 = vmatmul.mubr.f32.gmra.mrb[0].mxu0 %v7092
  %v8478 = vpop.f32.mrb[0].mxu0
  %v8479 = vadd.f32 %v8436, %v8478
  %v8480 = vpop.f32.mrb[0].mxu0
  %8481 = vmatprep.mubr.f32.mxu0 %v7109
  %8482 = vmatmul.mubr.f32.gmra.mrb[0].mxu0 %v7108
  %v8483 = vpop.f32.mrb[0].mxu0
  %v8484 = vadd.f32 %v8441, %v8483
  %v8485 = vpop.f32.mrb[0].mxu0
  %8486 = vdwg.mxu0
  %v8487 = vadd.f32 %v6048, %v8479
  %v8488 = vadd.f32 %v6049, %v8484
  %s8489 = scalar_lea.vmem %s11, 1
  %v8490 = vld [vmem:[%s8489] sm:$0x1]
  %s8491 = scalar_lea.vmem %s12, 1
  %v8492 = vld [vmem:[%s8491] sm:$0x1]
  %v8493 = vsel %vm197, %v8487, 0.0
  %8494 = vadd.xlane.f32.xlu0 %v8493
  %v8495 = vpop.xlane.xlu0 %8494
  %v8496 = vsel %vm197, %v8488, 0.0
  %8497 = vadd.xlane.f32.xlu0 %v8496
  %v8498 = vpop.xlane.xlu0 %8497
  %v8499 = vmul.f32 %v8495, %v1779
  %v8500 = vmul.f32 %v8498, %v1779
  %v8501 = vsub.f32 %v8487, %v8499
  %v8502 = vsub.f32 %v8488, %v8500
  %v8503 = vmul.f32 %v8501, %v8501
  %v8504 = vmul.f32 %v8502, %v8502
  %v8505 = vsel %vm197, %v8503, 0.0
  %8506 = vadd.xlane.f32.xlu0 %v8505
  %v8507 = vpop.xlane.xlu0 %8506
  %v8508 = vsel %vm197, %v8504, 0.0
  %8509 = vadd.xlane.f32.xlu0 %v8508
  %v8510 = vpop.xlane.xlu0 %8509
  %v8511 = vmul.f32 %v8507, %v1779
  %v8512 = vmul.f32 %v8510, %v1779
  %v8513 = vadd.f32 %v8511, 1e-05
  %v8514 = vadd.f32 %v8512, 1e-05
  %v8515 = vrsqrt.pop %v8513
  %v8516 = vrsqrt.pop %v8514
  %v8517 = vmul.f32 %v8501, %v8515
  %v8518 = vmul.f32 %v8502, %v8516
  %v8520 = vlaneseq
  %v8521 = vshrl.u32 %v8520, 7
  %v8522 = vsub.s32 0, %v8521
  %v8523 = vrot.slane %v8490, %v8522
  %v8525 = vmul.f32 %v8517, %v8523
  %v8526 = vmul.f32 %v8518, %v8523
  %v8528 = vlaneseq
  %v8529 = vshrl.u32 %v8528, 7
  %v8530 = vsub.s32 0, %v8529
  %v8531 = vrot.slane %v8492, %v8530
  %v8533 = vadd.f32 %v8525, %v8531
  %v8534 = vadd.f32 %v8526, %v8531
  %v8535 = vld [vmem:[%s13] sm:$0xff]
  %v8536 = vld [vmem:[%s13 + $0x8] sm:$0xff]
  %v8537 = vld [vmem:[%s13 + $0x10] sm:$0xff]
  %v8538 = vld [vmem:[%s13 + $0x18] sm:$0xff]
  %v8539 = vld [vmem:[%s13 + $0x20] sm:$0xff]
  %v8540 = vld [vmem:[%s13 + $0x28] sm:$0xff]
  %v8541 = vld [vmem:[%s13 + $0x30] sm:$0xff]
  %v8542 = vld [vmem:[%s13 + $0x38] sm:$0xff]
  %v8543 = vld [vmem:[%s13 + $0x40] sm:$0xff]
  %v8544 = vld [vmem:[%s13 + $0x48] sm:$0xff]
  %v8545 = vld [vmem:[%s13 + $0x50] sm:$0xff]
  %v8546 = vld [vmem:[%s13 + $0x58] sm:$0xff]
  %v8547 = vld [vmem:[%s14] sm:$0x1]
  %v8549 = vlaneseq
  %v8550 = vshrl.u32 %v8549, 7
  %v8551 = vsub.s32 0, %v8550
  %v8552 = vrot.slane %v8547, %v8551
  %v8555 = vsel %vm197, %v8533, 0
  %v8558 = vsel %vm197, %v8534, 0
  %8560 = vmatprep.subr.mxu0 0.0
  %8561 = vmatpush1.msra.mxu0 %v8535
  %8562 = vmatprep.subr.mxu0 0.0
  %8563 = vmatpush1.msra.mxu0 %v8536
  %8564 = vmatprep.subr.mxu0 0.0
  %8565 = vmatpush1.msra.mxu0 %v8537
  %8566 = vmatprep.subr.mxu0 0.0
  %8567 = vmatpush1.msra.mxu0 %v8538
  %8568 = vmatprep.subr.mxu0 0.0
  %8569 = vmatpush1.msra.mxu0 %v8539
  %8570 = vmatprep.subr.mxu0 0.0
  %8571 = vmatpush1.msra.mxu0 %v8540
  %8572 = vmatprep.subr.mxu0 0.0
  %8573 = vmatpush1.msra.mxu0 %v8541
  %8574 = vmatprep.subr.mxu0 0.0
  %8575 = vmatpush1.msra.mxu0 %v8542
  %8576 = vmatprep.subr.mxu0 0.0
  %8577 = vmatpush1.msra.mxu0 %v8543
  %8578 = vmatprep.subr.mxu0 0.0
  %8579 = vmatpush1.msra.mxu0 %v8544
  %8580 = vmatprep.subr.mxu0 0.0
  %8581 = vmatpush1.msra.mxu0 %v8545
  %8582 = vmatprep.subr.mxu0 0.0
  %8583 = vmatpush1.msra.mxu0 %v8546
  %8584 = vmatprep.subr.mxu0 0.0
  %8585 = vmatpush1.msra.mxu0 0.0
  %8586 = vmatprep.subr.mxu0 0.0
  %8587 = vmatpush1.msra.mxu0 0.0
  %8588 = vmatprep.subr.mxu0 0.0
  %8589 = vmatpush1.msra.mxu0 0.0
  %8590 = vmatprep.subr.mxu0 0.0
  %8591 = vmatpush1.msra.mxu0 0.0
  %8592 = vmatprep.subr.mxu0 0.0
  %8593 = vmatpush1.msra.mxu0 0.0
  %8594 = vmatprep.subr.mxu0 0.0
  %8595 = vmatpush1.msra.mxu0 0.0
  %8596 = vmatprep.subr.mxu0 0.0
  %8597 = vmatpush1.msra.mxu0 0.0
  %8598 = vmatprep.subr.mxu0 0.0
  %8599 = vmatpush1.msra.mxu0 0.0
  %8600 = vmatprep.subr.mxu0 0.0
  %8601 = vmatpush1.msra.mxu0 0.0
  %8602 = vmatprep.subr.mxu0 0.0
  %8603 = vmatpush1.msra.mxu0 0.0
  %8604 = vmatprep.subr.mxu0 0.0
  %8605 = vmatpush1.msra.mxu0 0.0
  %8606 = vmatprep.subr.mxu0 0.0
  %8607 = vmatpush1.msra.mxu0 0.0
  %8608 = vmatprep.subr.mxu0 0.0
  %8609 = vmatpush1.msra.mxu0 0.0
  %8610 = vmatprep.subr.mxu0 0.0
  %8611 = vmatpush1.msra.mxu0 0.0
  %8612 = vmatprep.subr.mxu0 0.0
  %8613 = vmatpush1.msra.mxu0 0.0
  %8614 = vmatprep.subr.mxu0 0.0
  %8615 = vmatpush1.msra.mxu0 0.0
  %8616 = vmatprep.subr.mxu0 0.0
  %8617 = vmatpush1.msra.mxu0 0.0
  %8618 = vmatprep.subr.mxu0 0.0
  %8619 = vmatpush1.msra.mxu0 0.0
  %8620 = vmatprep.subr.mxu0 0.0
  %8621 = vmatpush1.msra.mxu0 0.0
  %8622 = vmatprep.subr.mxu0 0.0
  %8623 = vmatpush1.msra.mxu0 0.0
  %8624 = vmatprep.mubr.f32.mxu0 0.0
  %8625 = vmatmul.mubr.f32.gmra.mrb[0].mxu0 %v8555
  %v8626 = vpop.f32.mrb[0].mxu0
  %v8627 = vadd.f32 %v8552, %v8626
  %v8628 = vpop.f32.mrb[0].mxu0
  %8629 = vmatprep.mubr.f32.mxu0 0.0
  %8630 = vmatmul.mubr.f32.gmra.mrb[0].mxu0 %v8558
  %v8631 = vpop.f32.mrb[0].mxu0
  %v8632 = vadd.f32 %v8552, %v8631
  %v8633 = vpop.f32.mrb[0].mxu0
  %8634 = vdwg.mxu0
  %vm8635 = vcmask 39936
  %v8636 = vsel %vm8635, %v8627, -inf
  %8637 = vmax.xlane.f32.xlu0 %v8636
  %v8638 = vpop.xlane.xlu0 %8637
  %v8639 = vsel %vm8635, %v8632, -inf
  %8640 = vmax.xlane.f32.xlu0 %v8639
  %v8641 = vpop.xlane.xlu0 %8640
  %v8642 = vsub.f32 %v8627, %v8638
  %v8643 = vsub.f32 %v8632, %v8641
  %v8644 = vmul.f32 %v8642, 1.442695
  %v8645 = vpow.pop %v8644
  %v8646 = vmul.f32 %v8643, 1.442695
  %v8647 = vpow.pop %v8646
  %v8648 = vsel %vm8635, %v8645, 0.0
  %8649 = vadd.xlane.f32.xlu0 %v8648
  %v8650 = vpop.xlane.xlu0 %8649
  %v8651 = vsel %vm8635, %v8647, 0.0
  %8652 = vadd.xlane.f32.xlu0 %v8651
  %v8653 = vpop.xlane.xlu0 %8652
  %v8654 = vrcp.pop %v8650
  %v8655 = vmul.f32 %v8645, %v8654
  %v8656 = vrcp.pop %v8653
  %v8657 = vmul.f32 %v8647, %v8656
  %8658 = vst.msk [vmem:[%s15] sm:$0xff] %vm8635, %v8655
  %8659 = vst.msk [vmem:[%s15 + $0x8] sm:$0xff] %vm8635, %v8657
  // Predicated region
  $region62: #{model_forward.1} parent=0 // pred_check
    _
  $region63: #{model_forward.1} parent=0 // pred_check_branch
    %8661 = sbr.rel (0) target = $region65
  $region64: #{model_forward.1} parent=0 // pred_region
    _
  $region65: #{model_forward.1} parent=0 // pred_fallthru
    _
  // Predicated region
  $region66: #{model_forward.1} parent=0 // pred_check
    _
  $region67: #{model_forward.1} parent=0 // pred_check_branch
    %8663 = sbr.rel (0) target = $region69
  $region68: #{model_forward.1} parent=0 // pred_region
    _
  $region69: #{model_forward.1} parent=0 // pred_fallthru
    _

</llo_original>
